<compile_context>
chip_gen: v6e
topology: v6e:2x2x1
jax: 0.10.0
libtpu: 0.0.40
codegen_flags: <defaults>
</compile_context>

<pallas_src>
import jax
import jax.numpy as jnp
from jax import lax
from jax.experimental import pallas as pl
from jax.experimental.pallas import tpu as pltpu

MAX_PAD = 3  # padding of the largest (7x7) branch


def msfa_kernel(x_ref, w3_ref, w5_ref, w7_ref, wc3_ref, wc5_ref, wc7_ref,
                o_ref, xpad_ref):
    # o_ref:    (1, C, H, W)
    # x_ref:    (1, C, H, W)                (unpadded input block)
    # xpad_ref: (C, H + 2*MAX_PAD, W + 2*MAX_PAD)  VMEM scratch (halo buffer)
    # w{3,5,7}_ref: (k, k, C, 1, 1)         per-channel depthwise taps
    # wc{3,5,7}_ref: (C_in, C_out, 1, 1)    folded pointwise+fuse weights
    _, C, H, W = o_ref.shape

    # ---- in-kernel halo: zero the scratch, drop the block into the interior ----
    xpad_ref[...] = jnp.zeros(xpad_ref.shape, xpad_ref.dtype)
    xpad_ref[:, MAX_PAD:MAX_PAD + H, MAX_PAD:MAX_PAD + W] = x_ref[0]

    # ---- merged depthwise pass: one 7x7 tap loop feeding 3 accumulators --------
    acc3 = jnp.zeros((C, H, W), jnp.float32)
    acc5 = jnp.zeros((C, H, W), jnp.float32)
    acc7 = jnp.zeros((C, H, W), jnp.float32)

    for dy in range(7):                      # static unroll: 49 taps total
        for dx in range(7):
            patch = xpad_ref[:, dy:dy + H, dx:dx + W]        # (C, H, W)
            acc7 = acc7 + patch * w7_ref[dy, dx]             # (C,1,1) splat
            if 1 <= dy <= 5 and 1 <= dx <= 5:
                acc5 = acc5 + patch * w5_ref[dy - 1, dx - 1]
            if 2 <= dy <= 4 and 2 <= dx <= 4:
                acc3 = acc3 + patch * w3_ref[dy - 2, dx - 2]

    # ---- folded pointwise+fuse channel mix (VPU; C is tiny) --------------------
    # out[co] = sum_ci acc3[ci]*Wc3[ci,co] + acc5[ci]*Wc5[ci,co] + acc7[ci]*Wc7[ci,co]
    for co in range(C):                      # static unroll over output channels
        mix = (acc3 * wc3_ref[:, co]         # wc*_ref[:, co] -> (C_in, 1, 1)
               + acc5 * wc5_ref[:, co]
               + acc7 * wc7_ref[:, co])
        o_ref[0, co] = jnp.sum(mix, axis=0)


def multi_scale_feature_aggregation(x_nchw, params):
    """x_nchw: (B, C, H, W) float32 -> (B, C, H, W) float32 (PyTorch semantics)."""
    wdw3, wdw5, wdw7, wpw1, wpw2, wpw3, wfuse = params
    x = x_nchw.astype(jnp.float32)
    B, C, H, W = x.shape
    Hp, Wp = H + 2 * MAX_PAD, W + 2 * MAX_PAD

    # Fold each pointwise 1x1 into its slice of the fuse 1x1 (exact: no activation
    # between the two convs):  Wc_i = wpw_i @ wfuse[i*C:(i+1)*C], shaped for a
    # per-channel-scalar broadcast in the kernel.
    wc3 = (wpw1 @ wfuse[0 * C:1 * C]).reshape(C, C, 1, 1)
    wc5 = (wpw2 @ wfuse[1 * C:2 * C]).reshape(C, C, 1, 1)
    wc7 = (wpw3 @ wfuse[2 * C:3 * C]).reshape(C, C, 1, 1)

    # Depthwise taps pre-shaped so w[dy, dx] is already a (C, 1, 1) per-channel
    # scalar (no per-tap broadcast/relayout setup inside the kernel).
    w3 = wdw3.reshape(3, 3, C, 1, 1)
    w5 = wdw5.reshape(5, 5, C, 1, 1)
    w7 = wdw7.reshape(7, 7, C, 1, 1)

    out = pl.pallas_call(
        msfa_kernel,
        out_shape=jax.ShapeDtypeStruct((B, C, H, W), jnp.float32),
        grid_spec=pltpu.PrefetchScalarGridSpec(
            num_scalar_prefetch=0,
            grid=(B,),
            in_specs=[
                pl.BlockSpec((1, C, H, W), lambda b: (b, 0, 0, 0)),
                pl.BlockSpec((3, 3, C, 1, 1), lambda b: (0, 0, 0, 0, 0)),
                pl.BlockSpec((5, 5, C, 1, 1), lambda b: (0, 0, 0, 0, 0)),
                pl.BlockSpec((7, 7, C, 1, 1), lambda b: (0, 0, 0, 0, 0)),
                pl.BlockSpec((C, C, 1, 1), lambda b: (0, 0, 0, 0)),
                pl.BlockSpec((C, C, 1, 1), lambda b: (0, 0, 0, 0)),
                pl.BlockSpec((C, C, 1, 1), lambda b: (0, 0, 0, 0)),
            ],
            out_specs=pl.BlockSpec((1, C, H, W), lambda b: (b, 0, 0, 0)),
            scratch_shapes=[pltpu.VMEM((C, Hp, Wp), jnp.float32)],
        ),
        compiler_params=pltpu.CompilerParams(
            dimension_semantics=("parallel",)),
    )(x, w3, w5, w7, wc3, wc5, wc7)

    return out  # already NCHW; no transpose / reshape pass needed


def ref_forward(x_nchw, params):
    """Pure-JAX reference (lax convs) matching the PyTorch module."""
    wdw3, wdw5, wdw7, wpw1, wpw2, wpw3, wfuse = params
    x = jnp.transpose(x_nchw, (0, 2, 3, 1)).astype(jnp.float32)
    C = x.shape[-1]
    dn = ('NHWC', 'HWIO', 'NHWC')

    def dsc(xin, wdw, wpw, k, p):
        dw = lax.conv_general_dilated(
            xin, wdw.reshape(k, k, 1, C), (1, 1), [(p, p), (p, p)],
            dimension_numbers=dn, feature_group_count=C)
        return lax.conv_general_dilated(
            dw, wpw.reshape(1, 1, *wpw.shape), (1, 1), 'VALID',
            dimension_numbers=dn)

    x1 = dsc(x, wdw3, wpw1, 3, 1)
    x2 = dsc(x, wdw5, wpw2, 5, 2)
    x3 = dsc(x, wdw7, wpw3, 7, 3)
    cat = jnp.concatenate([x1, x2, x3], axis=-1)
    out = lax.conv_general_dilated(
        cat, wfuse.reshape(1, 1, *wfuse.shape), (1, 1), 'VALID',
        dimension_numbers=dn)
    return jnp.transpose(out, (0, 3, 1, 2))


def init_params(key, C):
    ks = jax.random.split(key, 7)
    # depthwise weights stored (k, k, C)   (torch: (C, 1, k, k))
    wdw3 = 0.2 * jax.random.normal(ks[0], (3, 3, C), jnp.float32)
    wdw5 = 0.2 * jax.random.normal(ks[1], (5, 5, C), jnp.float32)
    wdw7 = 0.2 * jax.random.normal(ks[2], (7, 7, C), jnp.float32)
    # pointwise weights stored (C_in, C_out)   (torch: (C_out, C_in, 1, 1))
    wpw1 = 0.2 * jax.random.normal(ks[3], (C, C), jnp.float32)
    wpw2 = 0.2 * jax.random.normal(ks[4], (C, C), jnp.float32)
    wpw3 = 0.2 * jax.random.normal(ks[5], (C, C), jnp.float32)
    # fuse weight stored (3C, C)   (torch: (C, 3C, 1, 1))
    wfuse = 0.2 * jax.random.normal(ks[6], (3 * C, C), jnp.float32)
    return (wdw3, wdw5, wdw7, wpw1, wpw2, wpw3, wfuse)


if __name__ == "__main__":
    B, C, H, W = 2, 4, 16, 16
    key = jax.random.PRNGKey(0)
    kx, kp = jax.random.split(key)
    x = jax.random.normal(kx, (B, C, H, W), jnp.float32)
    params = init_params(kp, C)

    out = jax.block_until_ready(multi_scale_feature_aggregation(x, params))
    ref = jax.block_until_ready(ref_forward(x, params))

    assert out.shape == (B, C, H, W)
    assert jnp.allclose(out, ref, atol=1e-3, rtol=1e-3), "mismatch vs reference"

    print("KERNEL_OK")
</pallas_src>

<mosaic_0001>
module attributes {stable_mosaic.version = 11 : i64} {
  func.func @msfa_kernel(%arg0: i32, %arg1: memref<1x4x16x16xf32, #tpu.memory_space<vmem>>, %arg2: memref<3x3x4x1x1xf32, #tpu.memory_space<vmem>>, %arg3: memref<5x5x4x1x1xf32, #tpu.memory_space<vmem>>, %arg4: memref<7x7x4x1x1xf32, #tpu.memory_space<vmem>>, %arg5: memref<4x4x1x1xf32, #tpu.memory_space<vmem>>, %arg6: memref<4x4x1x1xf32, #tpu.memory_space<vmem>>, %arg7: memref<4x4x1x1xf32, #tpu.memory_space<vmem>>, %arg8: memref<1x4x16x16xf32, #tpu.memory_space<vmem>>, %arg9: memref<4x22x22xf32, #tpu.memory_space<vmem>>) attributes {dimension_semantics = [#tpu.dimension_semantics<parallel>], iteration_bounds = array<i64: 2>, scalar_prefetch = 0 : i64, scratch_operands = 1 : i64, tpu.core_type = #tpu.core_type<tc>, window_params = [{transform_indices = @transform_0, window_bounds = array<i64: 1, 4, 16, 16>}, {pipeline_mode = #tpu.pipeline_mode<synchronous>, transform_indices = @transform_1, window_bounds = array<i64: 3, 3, 4, 1, 1>}, {pipeline_mode = #tpu.pipeline_mode<synchronous>, transform_indices = @transform_2, window_bounds = array<i64: 5, 5, 4, 1, 1>}, {pipeline_mode = #tpu.pipeline_mode<synchronous>, transform_indices = @transform_3, window_bounds = array<i64: 7, 7, 4, 1, 1>}, {pipeline_mode = #tpu.pipeline_mode<synchronous>, transform_indices = @transform_4, window_bounds = array<i64: 4, 4, 1, 1>}, {pipeline_mode = #tpu.pipeline_mode<synchronous>, transform_indices = @transform_5, window_bounds = array<i64: 4, 4, 1, 1>}, {pipeline_mode = #tpu.pipeline_mode<synchronous>, transform_indices = @transform_6, window_bounds = array<i64: 4, 4, 1, 1>}, {transform_indices = @transform_7, window_bounds = array<i64: 1, 4, 16, 16>}]} {
    %cst = arith.constant 0.000000e+00 : f32
    %0 = vector.broadcast %cst : f32 to vector<4x22x22xf32>
    %c0 = arith.constant 0 : index
    %c0_0 = arith.constant 0 : index
    %c0_1 = arith.constant 0 : index
    %1 = vector.load %arg9[%c0, %c0_0, %c0_1] : memref<4x22x22xf32, #tpu.memory_space<vmem>>, vector<4x22x22xf32>
    tpu.vector_store %arg9[%c0, %c0_0, %c0_1], %0 {strides = array<i32>} : memref<4x22x22xf32, #tpu.memory_space<vmem>>, vector<4x22x22xf32>,
    %c0_2 = arith.constant 0 : index
    %c0_3 = arith.constant 0 : index
    %c0_4 = arith.constant 0 : index
    %c0_5 = arith.constant 0 : index
    %2 = vector.load %arg1[%c0_2, %c0_3, %c0_4, %c0_5] : memref<1x4x16x16xf32, #tpu.memory_space<vmem>>, vector<1x4x16x16xf32>
    %3 = vector.shape_cast %2 : vector<1x4x16x16xf32> to vector<4x16x16xf32>
    %c0_6 = arith.constant 0 : index
    %c3 = arith.constant 3 : index
    %c3_7 = arith.constant 3 : index
    %4 = vector.load %arg9[%c0_6, %c3, %c3_7] : memref<4x22x22xf32, #tpu.memory_space<vmem>>, vector<4x16x16xf32>
    tpu.vector_store %arg9[%c0_6, %c3, %c3_7], %3 {strides = array<i32>} : memref<4x22x22xf32, #tpu.memory_space<vmem>>, vector<4x16x16xf32>,
    %cst_8 = arith.constant 0.000000e+00 : f32
    %5 = vector.broadcast %cst_8 : f32 to vector<4x16x16xf32>
    %cst_9 = arith.constant 0.000000e+00 : f32
    %6 = vector.broadcast %cst_9 : f32 to vector<4x16x16xf32>
    %cst_10 = arith.constant 0.000000e+00 : f32
    %7 = vector.broadcast %cst_10 : f32 to vector<4x16x16xf32>
    %c0_11 = arith.constant 0 : index
    %c0_12 = arith.constant 0 : index
    %c0_13 = arith.constant 0 : index
    %8 = vector.load %arg9[%c0_11, %c0_12, %c0_13] : memref<4x22x22xf32, #tpu.memory_space<vmem>>, vector<4x16x16xf32>
    %c0_14 = arith.constant 0 : index
    %c0_15 = arith.constant 0 : index
    %c0_16 = arith.constant 0 : index
    %c0_17 = arith.constant 0 : index
    %c0_18 = arith.constant 0 : index
    %9 = vector.load %arg4[%c0_14, %c0_15, %c0_16, %c0_17, %c0_18] : memref<7x7x4x1x1xf32, #tpu.memory_space<vmem>>, vector<1x1x4x1x1xf32>
    %10 = vector.shape_cast %9 : vector<1x1x4x1x1xf32> to vector<4x1x1xf32>
    %11 = vector.broadcast %10 : vector<4x1x1xf32> to vector<4x16x16xf32>
    %12 = arith.mulf %8, %11 : vector<4x16x16xf32>
    %13 = arith.addf %7, %12 : vector<4x16x16xf32>
    %c0_19 = arith.constant 0 : index
    %c0_20 = arith.constant 0 : index
    %c1 = arith.constant 1 : index
    %14 = vector.load %arg9[%c0_19, %c0_20, %c1] : memref<4x22x22xf32, #tpu.memory_space<vmem>>, vector<4x16x16xf32>
    %c0_21 = arith.constant 0 : index
    %c1_22 = arith.constant 1 : index
    %c0_23 = arith.constant 0 : index
    %c0_24 = arith.constant 0 : index
    %c0_25 = arith.constant 0 : index
    %15 = vector.load %arg4[%c0_21, %c1_22, %c0_23, %c0_24, %c0_25] : memref<7x7x4x1x1xf32, #tpu.memory_space<vmem>>, vector<1x1x4x1x1xf32>
    %16 = vector.shape_cast %15 : vector<1x1x4x1x1xf32> to vector<4x1x1xf32>
    %17 = vector.broadcast %16 : vector<4x1x1xf32> to vector<4x16x16xf32>
    %18 = arith.mulf %14, %17 : vector<4x16x16xf32>
    %19 = arith.addf %13, %18 : vector<4x16x16xf32>
    %c0_26 = arith.constant 0 : index
    %c0_27 = arith.constant 0 : index
    %c2 = arith.constant 2 : index
    %20 = vector.load %arg9[%c0_26, %c0_27, %c2] : memref<4x22x22xf32, #tpu.memory_space<vmem>>, vector<4x16x16xf32>
    %c0_28 = arith.constant 0 : index
    %c2_29 = arith.constant 2 : index
    %c0_30 = arith.constant 0 : index
    %c0_31 = arith.constant 0 : index
    %c0_32 = arith.constant 0 : index
    %21 = vector.load %arg4[%c0_28, %c2_29, %c0_30, %c0_31, %c0_32] : memref<7x7x4x1x1xf32, #tpu.memory_space<vmem>>, vector<1x1x4x1x1xf32>
    %22 = vector.shape_cast %21 : vector<1x1x4x1x1xf32> to vector<4x1x1xf32>
    %23 = vector.broadcast %22 : vector<4x1x1xf32> to vector<4x16x16xf32>
    %24 = arith.mulf %20, %23 : vector<4x16x16xf32>
    %25 = arith.addf %19, %24 : vector<4x16x16xf32>
    %c0_33 = arith.constant 0 : index
    %c0_34 = arith.constant 0 : index
    %c3_35 = arith.constant 3 : index
    %26 = vector.load %arg9[%c0_33, %c0_34, %c3_35] : memref<4x22x22xf32, #tpu.memory_space<vmem>>, vector<4x16x16xf32>
    %c0_36 = arith.constant 0 : index
    %c3_37 = arith.constant 3 : index
    %c0_38 = arith.constant 0 : index
    %c0_39 = arith.constant 0 : index
    %c0_40 = arith.constant 0 : index
    %27 = vector.load %arg4[%c0_36, %c3_37, %c0_38, %c0_39, %c0_40] : memref<7x7x4x1x1xf32, #tpu.memory_space<vmem>>, vector<1x1x4x1x1xf32>
    %28 = vector.shape_cast %27 : vector<1x1x4x1x1xf32> to vector<4x1x1xf32>
    %29 = vector.broadcast %28 : vector<4x1x1xf32> to vector<4x16x16xf32>
    %30 = arith.mulf %26, %29 : vector<4x16x16xf32>
    %31 = arith.addf %25, %30 : vector<4x16x16xf32>
    %c0_41 = arith.constant 0 : index
    %c0_42 = arith.constant 0 : index
    %c4 = arith.constant 4 : index
    %32 = vector.load %arg9[%c0_41, %c0_42, %c4] : memref<4x22x22xf32, #tpu.memory_space<vmem>>, vector<4x16x16xf32>
    %c0_43 = arith.constant 0 : index
    %c4_44 = arith.constant 4 : index
    %c0_45 = arith.constant 0 : index
    %c0_46 = arith.constant 0 : index
    %c0_47 = arith.constant 0 : index
    %33 = vector.load %arg4[%c0_43, %c4_44, %c0_45, %c0_46, %c0_47] : memref<7x7x4x1x1xf32, #tpu.memory_space<vmem>>, vector<1x1x4x1x1xf32>
    %34 = vector.shape_cast %33 : vector<1x1x4x1x1xf32> to vector<4x1x1xf32>
    %35 = vector.broadcast %34 : vector<4x1x1xf32> to vector<4x16x16xf32>
    %36 = arith.mulf %32, %35 : vector<4x16x16xf32>
    %37 = arith.addf %31, %36 : vector<4x16x16xf32>
    %c0_48 = arith.constant 0 : index
    %c0_49 = arith.constant 0 : index
    %c5 = arith.constant 5 : index
    %38 = vector.load %arg9[%c0_48, %c0_49, %c5] : memref<4x22x22xf32, #tpu.memory_space<vmem>>, vector<4x16x16xf32>
    %c0_50 = arith.constant 0 : index
    %c5_51 = arith.constant 5 : index
    %c0_52 = arith.constant 0 : index
    %c0_53 = arith.constant 0 : index
    %c0_54 = arith.constant 0 : index
    %39 = vector.load %arg4[%c0_50, %c5_51, %c0_52, %c0_53, %c0_54] : memref<7x7x4x1x1xf32, #tpu.memory_space<vmem>>, vector<1x1x4x1x1xf32>
    %40 = vector.shape_cast %39 : vector<1x1x4x1x1xf32> to vector<4x1x1xf32>
    %41 = vector.broadcast %40 : vector<4x1x1xf32> to vector<4x16x16xf32>
    %42 = arith.mulf %38, %41 : vector<4x16x16xf32>
    %43 = arith.addf %37, %42 : vector<4x16x16xf32>
    %c0_55 = arith.constant 0 : index
    %c0_56 = arith.constant 0 : index
    %c6 = arith.constant 6 : index
    %44 = vector.load %arg9[%c0_55, %c0_56, %c6] : memref<4x22x22xf32, #tpu.memory_space<vmem>>, vector<4x16x16xf32>
    %c0_57 = arith.constant 0 : index
    %c6_58 = arith.constant 6 : index
    %c0_59 = arith.constant 0 : index
    %c0_60 = arith.constant 0 : index
    %c0_61 = arith.constant 0 : index
    %45 = vector.load %arg4[%c0_57, %c6_58, %c0_59, %c0_60, %c0_61] : memref<7x7x4x1x1xf32, #tpu.memory_space<vmem>>, vector<1x1x4x1x1xf32>
    %46 = vector.shape_cast %45 : vector<1x1x4x1x1xf32> to vector<4x1x1xf32>
    %47 = vector.broadcast %46 : vector<4x1x1xf32> to vector<4x16x16xf32>
    %48 = arith.mulf %44, %47 : vector<4x16x16xf32>
    %49 = arith.addf %43, %48 : vector<4x16x16xf32>
    %c0_62 = arith.constant 0 : index
    %c1_63 = arith.constant 1 : index
    %c0_64 = arith.constant 0 : index
    %50 = vector.load %arg9[%c0_62, %c1_63, %c0_64] : memref<4x22x22xf32, #tpu.memory_space<vmem>>, vector<4x16x16xf32>
    %c1_65 = arith.constant 1 : index
    %c0_66 = arith.constant 0 : index
    %c0_67 = arith.constant 0 : index
    %c0_68 = arith.constant 0 : index
    %c0_69 = arith.constant 0 : index
    %51 = vector.load %arg4[%c1_65, %c0_66, %c0_67, %c0_68, %c0_69] : memref<7x7x4x1x1xf32, #tpu.memory_space<vmem>>, vector<1x1x4x1x1xf32>
    %52 = vector.shape_cast %51 : vector<1x1x4x1x1xf32> to vector<4x1x1xf32>
    %53 = vector.broadcast %52 : vector<4x1x1xf32> to vector<4x16x16xf32>
    %54 = arith.mulf %50, %53 : vector<4x16x16xf32>
    %55 = arith.addf %49, %54 : vector<4x16x16xf32>
    %c0_70 = arith.constant 0 : index
    %c1_71 = arith.constant 1 : index
    %c1_72 = arith.constant 1 : index
    %56 = vector.load %arg9[%c0_70, %c1_71, %c1_72] : memref<4x22x22xf32, #tpu.memory_space<vmem>>, vector<4x16x16xf32>
    %c1_73 = arith.constant 1 : index
    %c1_74 = arith.constant 1 : index
    %c0_75 = arith.constant 0 : index
    %c0_76 = arith.constant 0 : index
    %c0_77 = arith.constant 0 : index
    %57 = vector.load %arg4[%c1_73, %c1_74, %c0_75, %c0_76, %c0_77] : memref<7x7x4x1x1xf32, #tpu.memory_space<vmem>>, vector<1x1x4x1x1xf32>
    %58 = vector.shape_cast %57 : vector<1x1x4x1x1xf32> to vector<4x1x1xf32>
    %59 = vector.broadcast %58 : vector<4x1x1xf32> to vector<4x16x16xf32>
    %60 = arith.mulf %56, %59 : vector<4x16x16xf32>
    %61 = arith.addf %55, %60 : vector<4x16x16xf32>
    %c0_78 = arith.constant 0 : index
    %c0_79 = arith.constant 0 : index
    %c0_80 = arith.constant 0 : index
    %c0_81 = arith.constant 0 : index
    %c0_82 = arith.constant 0 : index
    %62 = vector.load %arg3[%c0_78, %c0_79, %c0_80, %c0_81, %c0_82] : memref<5x5x4x1x1xf32, #tpu.memory_space<vmem>>, vector<1x1x4x1x1xf32>
    %63 = vector.shape_cast %62 : vector<1x1x4x1x1xf32> to vector<4x1x1xf32>
    %64 = vector.broadcast %63 : vector<4x1x1xf32> to vector<4x16x16xf32>
    %65 = arith.mulf %56, %64 : vector<4x16x16xf32>
    %66 = arith.addf %6, %65 : vector<4x16x16xf32>
    %c0_83 = arith.constant 0 : index
    %c1_84 = arith.constant 1 : index
    %c2_85 = arith.constant 2 : index
    %67 = vector.load %arg9[%c0_83, %c1_84, %c2_85] : memref<4x22x22xf32, #tpu.memory_space<vmem>>, vector<4x16x16xf32>
    %c1_86 = arith.constant 1 : index
    %c2_87 = arith.constant 2 : index
    %c0_88 = arith.constant 0 : index
    %c0_89 = arith.constant 0 : index
    %c0_90 = arith.constant 0 : index
    %68 = vector.load %arg4[%c1_86, %c2_87, %c0_88, %c0_89, %c0_90] : memref<7x7x4x1x1xf32, #tpu.memory_space<vmem>>, vector<1x1x4x1x1xf32>
    %69 = vector.shape_cast %68 : vector<1x1x4x1x1xf32> to vector<4x1x1xf32>
    %70 = vector.broadcast %69 : vector<4x1x1xf32> to vector<4x16x16xf32>
    %71 = arith.mulf %67, %70 : vector<4x16x16xf32>
    %72 = arith.addf %61, %71 : vector<4x16x16xf32>
    %c0_91 = arith.constant 0 : index
    %c1_92 = arith.constant 1 : index
    %c0_93 = arith.constant 0 : index
    %c0_94 = arith.constant 0 : index
    %c0_95 = arith.constant 0 : index
    %73 = vector.load %arg3[%c0_91, %c1_92, %c0_93, %c0_94, %c0_95] : memref<5x5x4x1x1xf32, #tpu.memory_space<vmem>>, vector<1x1x4x1x1xf32>
    %74 = vector.shape_cast %73 : vector<1x1x4x1x1xf32> to vector<4x1x1xf32>
    %75 = vector.broadcast %74 : vector<4x1x1xf32> to vector<4x16x16xf32>
    %76 = arith.mulf %67, %75 : vector<4x16x16xf32>
    %77 = arith.addf %66, %76 : vector<4x16x16xf32>
    %c0_96 = arith.constant 0 : index
    %c1_97 = arith.constant 1 : index
    %c3_98 = arith.constant 3 : index
    %78 = vector.load %arg9[%c0_96, %c1_97, %c3_98] : memref<4x22x22xf32, #tpu.memory_space<vmem>>, vector<4x16x16xf32>
    %c1_99 = arith.constant 1 : index
    %c3_100 = arith.constant 3 : index
    %c0_101 = arith.constant 0 : index
    %c0_102 = arith.constant 0 : index
    %c0_103 = arith.constant 0 : index
    %79 = vector.load %arg4[%c1_99, %c3_100, %c0_101, %c0_102, %c0_103] : memref<7x7x4x1x1xf32, #tpu.memory_space<vmem>>, vector<1x1x4x1x1xf32>
    %80 = vector.shape_cast %79 : vector<1x1x4x1x1xf32> to vector<4x1x1xf32>
    %81 = vector.broadcast %80 : vector<4x1x1xf32> to vector<4x16x16xf32>
    %82 = arith.mulf %78, %81 : vector<4x16x16xf32>
    %83 = arith.addf %72, %82 : vector<4x16x16xf32>
    %c0_104 = arith.constant 0 : index
    %c2_105 = arith.constant 2 : index
    %c0_106 = arith.constant 0 : index
    %c0_107 = arith.constant 0 : index
    %c0_108 = arith.constant 0 : index
    %84 = vector.load %arg3[%c0_104, %c2_105, %c0_106, %c0_107, %c0_108] : memref<5x5x4x1x1xf32, #tpu.memory_space<vmem>>, vector<1x1x4x1x1xf32>
    %85 = vector.shape_cast %84 : vector<1x1x4x1x1xf32> to vector<4x1x1xf32>
    %86 = vector.broadcast %85 : vector<4x1x1xf32> to vector<4x16x16xf32>
    %87 = arith.mulf %78, %86 : vector<4x16x16xf32>
    %88 = arith.addf %77, %87 : vector<4x16x16xf32>
    %c0_109 = arith.constant 0 : index
    %c1_110 = arith.constant 1 : index
    %c4_111 = arith.constant 4 : index
    %89 = vector.load %arg9[%c0_109, %c1_110, %c4_111] : memref<4x22x22xf32, #tpu.memory_space<vmem>>, vector<4x16x16xf32>
    %c1_112 = arith.constant 1 : index
    %c4_113 = arith.constant 4 : index
    %c0_114 = arith.constant 0 : index
    %c0_115 = arith.constant 0 : index
    %c0_116 = arith.constant 0 : index
    %90 = vector.load %arg4[%c1_112, %c4_113, %c0_114, %c0_115, %c0_116] : memref<7x7x4x1x1xf32, #tpu.memory_space<vmem>>, vector<1x1x4x1x1xf32>
    %91 = vector.shape_cast %90 : vector<1x1x4x1x1xf32> to vector<4x1x1xf32>
    %92 = vector.broadcast %91 : vector<4x1x1xf32> to vector<4x16x16xf32>
    %93 = arith.mulf %89, %92 : vector<4x16x16xf32>
    %94 = arith.addf %83, %93 : vector<4x16x16xf32>
    %c0_117 = arith.constant 0 : index
    %c3_118 = arith.constant 3 : index
    %c0_119 = arith.constant 0 : index
    %c0_120 = arith.constant 0 : index
    %c0_121 = arith.constant 0 : index
    %95 = vector.load %arg3[%c0_117, %c3_118, %c0_119, %c0_120, %c0_121] : memref<5x5x4x1x1xf32, #tpu.memory_space<vmem>>, vector<1x1x4x1x1xf32>
    %96 = vector.shape_cast %95 : vector<1x1x4x1x1xf32> to vector<4x1x1xf32>
    %97 = vector.broadcast %96 : vector<4x1x1xf32> to vector<4x16x16xf32>
    %98 = arith.mulf %89, %97 : vector<4x16x16xf32>
    %99 = arith.addf %88, %98 : vector<4x16x16xf32>
    %c0_122 = arith.constant 0 : index
    %c1_123 = arith.constant 1 : index
    %c5_124 = arith.constant 5 : index
    %100 = vector.load %arg9[%c0_122, %c1_123, %c5_124] : memref<4x22x22xf32, #tpu.memory_space<vmem>>, vector<4x16x16xf32>
    %c1_125 = arith.constant 1 : index
    %c5_126 = arith.constant 5 : index
    %c0_127 = arith.constant 0 : index
    %c0_128 = arith.constant 0 : index
    %c0_129 = arith.constant 0 : index
    %101 = vector.load %arg4[%c1_125, %c5_126, %c0_127, %c0_128, %c0_129] : memref<7x7x4x1x1xf32, #tpu.memory_space<vmem>>, vector<1x1x4x1x1xf32>
    %102 = vector.shape_cast %101 : vector<1x1x4x1x1xf32> to vector<4x1x1xf32>
    %103 = vector.broadcast %102 : vector<4x1x1xf32> to vector<4x16x16xf32>
    %104 = arith.mulf %100, %103 : vector<4x16x16xf32>
    %105 = arith.addf %94, %104 : vector<4x16x16xf32>
    %c0_130 = arith.constant 0 : index
    %c4_131 = arith.constant 4 : index
    %c0_132 = arith.constant 0 : index
    %c0_133 = arith.constant 0 : index
    %c0_134 = arith.constant 0 : index
    %106 = vector.load %arg3[%c0_130, %c4_131, %c0_132, %c0_133, %c0_134] : memref<5x5x4x1x1xf32, #tpu.memory_space<vmem>>, vector<1x1x4x1x1xf32>
    %107 = vector.shape_cast %106 : vector<1x1x4x1x1xf32> to vector<4x1x1xf32>
    %108 = vector.broadcast %107 : vector<4x1x1xf32> to vector<4x16x16xf32>
    %109 = arith.mulf %100, %108 : vector<4x16x16xf32>
    %110 = arith.addf %99, %109 : vector<4x16x16xf32>
    %c0_135 = arith.constant 0 : index
    %c1_136 = arith.constant 1 : index
    %c6_137 = arith.constant 6 : index
    %111 = vector.load %arg9[%c0_135, %c1_136, %c6_137] : memref<4x22x22xf32, #tpu.memory_space<vmem>>, vector<4x16x16xf32>
    %c1_138 = arith.constant 1 : index
    %c6_139 = arith.constant 6 : index
    %c0_140 = arith.constant 0 : index
    %c0_141 = arith.constant 0 : index
    %c0_142 = arith.constant 0 : index
    %112 = vector.load %arg4[%c1_138, %c6_139, %c0_140, %c0_141, %c0_142] : memref<7x7x4x1x1xf32, #tpu.memory_space<vmem>>, vector<1x1x4x1x1xf32>
    %113 = vector.shape_cast %112 : vector<1x1x4x1x1xf32> to vector<4x1x1xf32>
    %114 = vector.broadcast %113 : vector<4x1x1xf32> to vector<4x16x16xf32>
    %115 = arith.mulf %111, %114 : vector<4x16x16xf32>
    %116 = arith.addf %105, %115 : vector<4x16x16xf32>
    %c0_143 = arith.constant 0 : index
    %c2_144 = arith.constant 2 : index
    %c0_145 = arith.constant 0 : index
    %117 = vector.load %arg9[%c0_143, %c2_144, %c0_145] : memref<4x22x22xf32, #tpu.memory_space<vmem>>, vector<4x16x16xf32>
    %c2_146 = arith.constant 2 : index
    %c0_147 = arith.constant 0 : index
    %c0_148 = arith.constant 0 : index
    %c0_149 = arith.constant 0 : index
    %c0_150 = arith.constant 0 : index
    %118 = vector.load %arg4[%c2_146, %c0_147, %c0_148, %c0_149, %c0_150] : memref<7x7x4x1x1xf32, #tpu.memory_space<vmem>>, vector<1x1x4x1x1xf32>
    %119 = vector.shape_cast %118 : vector<1x1x4x1x1xf32> to vector<4x1x1xf32>
    %120 = vector.broadcast %119 : vector<4x1x1xf32> to vector<4x16x16xf32>
    %121 = arith.mulf %117, %120 : vector<4x16x16xf32>
    %122 = arith.addf %116, %121 : vector<4x16x16xf32>
    %c0_151 = arith.constant 0 : index
    %c2_152 = arith.constant 2 : index
    %c1_153 = arith.constant 1 : index
    %123 = vector.load %arg9[%c0_151, %c2_152, %c1_153] : memref<4x22x22xf32, #tpu.memory_space<vmem>>, vector<4x16x16xf32>
    %c2_154 = arith.constant 2 : index
    %c1_155 = arith.constant 1 : index
    %c0_156 = arith.constant 0 : index
    %c0_157 = arith.constant 0 : index
    %c0_158 = arith.constant 0 : index
    %124 = vector.load %arg4[%c2_154, %c1_155, %c0_156, %c0_157, %c0_158] : memref<7x7x4x1x1xf32, #tpu.memory_space<vmem>>, vector<1x1x4x1x1xf32>
    %125 = vector.shape_cast %124 : vector<1x1x4x1x1xf32> to vector<4x1x1xf32>
    %126 = vector.broadcast %125 : vector<4x1x1xf32> to vector<4x16x16xf32>
    %127 = arith.mulf %123, %126 : vector<4x16x16xf32>
    %128 = arith.addf %122, %127 : vector<4x16x16xf32>
    %c1_159 = arith.constant 1 : index
    %c0_160 = arith.constant 0 : index
    %c0_161 = arith.constant 0 : index
    %c0_162 = arith.constant 0 : index
    %c0_163 = arith.constant 0 : index
    %129 = vector.load %arg3[%c1_159, %c0_160, %c0_161, %c0_162, %c0_163] : memref<5x5x4x1x1xf32, #tpu.memory_space<vmem>>, vector<1x1x4x1x1xf32>
    %130 = vector.shape_cast %129 : vector<1x1x4x1x1xf32> to vector<4x1x1xf32>
    %131 = vector.broadcast %130 : vector<4x1x1xf32> to vector<4x16x16xf32>
    %132 = arith.mulf %123, %131 : vector<4x16x16xf32>
    %133 = arith.addf %110, %132 : vector<4x16x16xf32>
    %c0_164 = arith.constant 0 : index
    %c2_165 = arith.constant 2 : index
    %c2_166 = arith.constant 2 : index
    %134 = vector.load %arg9[%c0_164, %c2_165, %c2_166] : memref<4x22x22xf32, #tpu.memory_space<vmem>>, vector<4x16x16xf32>
    %c2_167 = arith.constant 2 : index
    %c2_168 = arith.constant 2 : index
    %c0_169 = arith.constant 0 : index
    %c0_170 = arith.constant 0 : index
    %c0_171 = arith.constant 0 : index
    %135 = vector.load %arg4[%c2_167, %c2_168, %c0_169, %c0_170, %c0_171] : memref<7x7x4x1x1xf32, #tpu.memory_space<vmem>>, vector<1x1x4x1x1xf32>
    %136 = vector.shape_cast %135 : vector<1x1x4x1x1xf32> to vector<4x1x1xf32>
    %137 = vector.broadcast %136 : vector<4x1x1xf32> to vector<4x16x16xf32>
    %138 = arith.mulf %134, %137 : vector<4x16x16xf32>
    %139 = arith.addf %128, %138 : vector<4x16x16xf32>
    %c1_172 = arith.constant 1 : index
    %c1_173 = arith.constant 1 : index
    %c0_174 = arith.constant 0 : index
    %c0_175 = arith.constant 0 : index
    %c0_176 = arith.constant 0 : index
    %140 = vector.load %arg3[%c1_172, %c1_173, %c0_174, %c0_175, %c0_176] : memref<5x5x4x1x1xf32, #tpu.memory_space<vmem>>, vector<1x1x4x1x1xf32>
    %141 = vector.shape_cast %140 : vector<1x1x4x1x1xf32> to vector<4x1x1xf32>
    %142 = vector.broadcast %141 : vector<4x1x1xf32> to vector<4x16x16xf32>
    %143 = arith.mulf %134, %142 : vector<4x16x16xf32>
    %144 = arith.addf %133, %143 : vector<4x16x16xf32>
    %c0_177 = arith.constant 0 : index
    %c0_178 = arith.constant 0 : index
    %c0_179 = arith.constant 0 : index
    %c0_180 = arith.constant 0 : index
    %c0_181 = arith.constant 0 : index
    %145 = vector.load %arg2[%c0_177, %c0_178, %c0_179, %c0_180, %c0_181] : memref<3x3x4x1x1xf32, #tpu.memory_space<vmem>>, vector<1x1x4x1x1xf32>
    %146 = vector.shape_cast %145 : vector<1x1x4x1x1xf32> to vector<4x1x1xf32>
    %147 = vector.broadcast %146 : vector<4x1x1xf32> to vector<4x16x16xf32>
    %148 = arith.mulf %134, %147 : vector<4x16x16xf32>
    %149 = arith.addf %5, %148 : vector<4x16x16xf32>
    %c0_182 = arith.constant 0 : index
    %c2_183 = arith.constant 2 : index
    %c3_184 = arith.constant 3 : index
    %150 = vector.load %arg9[%c0_182, %c2_183, %c3_184] : memref<4x22x22xf32, #tpu.memory_space<vmem>>, vector<4x16x16xf32>
    %c2_185 = arith.constant 2 : index
    %c3_186 = arith.constant 3 : index
    %c0_187 = arith.constant 0 : index
    %c0_188 = arith.constant 0 : index
    %c0_189 = arith.constant 0 : index
    %151 = vector.load %arg4[%c2_185, %c3_186, %c0_187, %c0_188, %c0_189] : memref<7x7x4x1x1xf32, #tpu.memory_space<vmem>>, vector<1x1x4x1x1xf32>
    %152 = vector.shape_cast %151 : vector<1x1x4x1x1xf32> to vector<4x1x1xf32>
    %153 = vector.broadcast %152 : vector<4x1x1xf32> to vector<4x16x16xf32>
    %154 = arith.mulf %150, %153 : vector<4x16x16xf32>
    %155 = arith.addf %139, %154 : vector<4x16x16xf32>
    %c1_190 = arith.constant 1 : index
    %c2_191 = arith.constant 2 : index
    %c0_192 = arith.constant 0 : index
    %c0_193 = arith.constant 0 : index
    %c0_194 = arith.constant 0 : index
    %156 = vector.load %arg3[%c1_190, %c2_191, %c0_192, %c0_193, %c0_194] : memref<5x5x4x1x1xf32, #tpu.memory_space<vmem>>, vector<1x1x4x1x1xf32>
    %157 = vector.shape_cast %156 : vector<1x1x4x1x1xf32> to vector<4x1x1xf32>
    %158 = vector.broadcast %157 : vector<4x1x1xf32> to vector<4x16x16xf32>
    %159 = arith.mulf %150, %158 : vector<4x16x16xf32>
    %160 = arith.addf %144, %159 : vector<4x16x16xf32>
    %c0_195 = arith.constant 0 : index
    %c1_196 = arith.constant 1 : index
    %c0_197 = arith.constant 0 : index
    %c0_198 = arith.constant 0 : index
    %c0_199 = arith.constant 0 : index
    %161 = vector.load %arg2[%c0_195, %c1_196, %c0_197, %c0_198, %c0_199] : memref<3x3x4x1x1xf32, #tpu.memory_space<vmem>>, vector<1x1x4x1x1xf32>
    %162 = vector.shape_cast %161 : vector<1x1x4x1x1xf32> to vector<4x1x1xf32>
    %163 = vector.broadcast %162 : vector<4x1x1xf32> to vector<4x16x16xf32>
    %164 = arith.mulf %150, %163 : vector<4x16x16xf32>
    %165 = arith.addf %149, %164 : vector<4x16x16xf32>
    %c0_200 = arith.constant 0 : index
    %c2_201 = arith.constant 2 : index
    %c4_202 = arith.constant 4 : index
    %166 = vector.load %arg9[%c0_200, %c2_201, %c4_202] : memref<4x22x22xf32, #tpu.memory_space<vmem>>, vector<4x16x16xf32>
    %c2_203 = arith.constant 2 : index
    %c4_204 = arith.constant 4 : index
    %c0_205 = arith.constant 0 : index
    %c0_206 = arith.constant 0 : index
    %c0_207 = arith.constant 0 : index
    %167 = vector.load %arg4[%c2_203, %c4_204, %c0_205, %c0_206, %c0_207] : memref<7x7x4x1x1xf32, #tpu.memory_space<vmem>>, vector<1x1x4x1x1xf32>
    %168 = vector.shape_cast %167 : vector<1x1x4x1x1xf32> to vector<4x1x1xf32>
    %169 = vector.broadcast %168 : vector<4x1x1xf32> to vector<4x16x16xf32>
    %170 = arith.mulf %166, %169 : vector<4x16x16xf32>
    %171 = arith.addf %155, %170 : vector<4x16x16xf32>
    %c1_208 = arith.constant 1 : index
    %c3_209 = arith.constant 3 : index
    %c0_210 = arith.constant 0 : index
    %c0_211 = arith.constant 0 : index
    %c0_212 = arith.constant 0 : index
    %172 = vector.load %arg3[%c1_208, %c3_209, %c0_210, %c0_211, %c0_212] : memref<5x5x4x1x1xf32, #tpu.memory_space<vmem>>, vector<1x1x4x1x1xf32>
    %173 = vector.shape_cast %172 : vector<1x1x4x1x1xf32> to vector<4x1x1xf32>
    %174 = vector.broadcast %173 : vector<4x1x1xf32> to vector<4x16x16xf32>
    %175 = arith.mulf %166, %174 : vector<4x16x16xf32>
    %176 = arith.addf %160, %175 : vector<4x16x16xf32>
    %c0_213 = arith.constant 0 : index
    %c2_214 = arith.constant 2 : index
    %c0_215 = arith.constant 0 : index
    %c0_216 = arith.constant 0 : index
    %c0_217 = arith.constant 0 : index
    %177 = vector.load %arg2[%c0_213, %c2_214, %c0_215, %c0_216, %c0_217] : memref<3x3x4x1x1xf32, #tpu.memory_space<vmem>>, vector<1x1x4x1x1xf32>
    %178 = vector.shape_cast %177 : vector<1x1x4x1x1xf32> to vector<4x1x1xf32>
    %179 = vector.broadcast %178 : vector<4x1x1xf32> to vector<4x16x16xf32>
    %180 = arith.mulf %166, %179 : vector<4x16x16xf32>
    %181 = arith.addf %165, %180 : vector<4x16x16xf32>
    %c0_218 = arith.constant 0 : index
    %c2_219 = arith.constant 2 : index
    %c5_220 = arith.constant 5 : index
    %182 = vector.load %arg9[%c0_218, %c2_219, %c5_220] : memref<4x22x22xf32, #tpu.memory_space<vmem>>, vector<4x16x16xf32>
    %c2_221 = arith.constant 2 : index
    %c5_222 = arith.constant 5 : index
    %c0_223 = arith.constant 0 : index
    %c0_224 = arith.constant 0 : index
    %c0_225 = arith.constant 0 : index
    %183 = vector.load %arg4[%c2_221, %c5_222, %c0_223, %c0_224, %c0_225] : memref<7x7x4x1x1xf32, #tpu.memory_space<vmem>>, vector<1x1x4x1x1xf32>
    %184 = vector.shape_cast %183 : vector<1x1x4x1x1xf32> to vector<4x1x1xf32>
    %185 = vector.broadcast %184 : vector<4x1x1xf32> to vector<4x16x16xf32>
    %186 = arith.mulf %182, %185 : vector<4x16x16xf32>
    %187 = arith.addf %171, %186 : vector<4x16x16xf32>
    %c1_226 = arith.constant 1 : index
    %c4_227 = arith.constant 4 : index
    %c0_228 = arith.constant 0 : index
    %c0_229 = arith.constant 0 : index
    %c0_230 = arith.constant 0 : index
    %188 = vector.load %arg3[%c1_226, %c4_227, %c0_228, %c0_229, %c0_230] : memref<5x5x4x1x1xf32, #tpu.memory_space<vmem>>, vector<1x1x4x1x1xf32>
    %189 = vector.shape_cast %188 : vector<1x1x4x1x1xf32> to vector<4x1x1xf32>
    %190 = vector.broadcast %189 : vector<4x1x1xf32> to vector<4x16x16xf32>
    %191 = arith.mulf %182, %190 : vector<4x16x16xf32>
    %192 = arith.addf %176, %191 : vector<4x16x16xf32>
    %c0_231 = arith.constant 0 : index
    %c2_232 = arith.constant 2 : index
    %c6_233 = arith.constant 6 : index
    %193 = vector.load %arg9[%c0_231, %c2_232, %c6_233] : memref<4x22x22xf32, #tpu.memory_space<vmem>>, vector<4x16x16xf32>
    %c2_234 = arith.constant 2 : index
    %c6_235 = arith.constant 6 : index
    %c0_236 = arith.constant 0 : index
    %c0_237 = arith.constant 0 : index
    %c0_238 = arith.constant 0 : index
    %194 = vector.load %arg4[%c2_234, %c6_235, %c0_236, %c0_237, %c0_238] : memref<7x7x4x1x1xf32, #tpu.memory_space<vmem>>, vector<1x1x4x1x1xf32>
    %195 = vector.shape_cast %194 : vector<1x1x4x1x1xf32> to vector<4x1x1xf32>
    %196 = vector.broadcast %195 : vector<4x1x1xf32> to vector<4x16x16xf32>
    %197 = arith.mulf %193, %196 : vector<4x16x16xf32>
    %198 = arith.addf %187, %197 : vector<4x16x16xf32>
    %c0_239 = arith.constant 0 : index
    %c3_240 = arith.constant 3 : index
    %c0_241 = arith.constant 0 : index
    %199 = vector.load %arg9[%c0_239, %c3_240, %c0_241] : memref<4x22x22xf32, #tpu.memory_space<vmem>>, vector<4x16x16xf32>
    %c3_242 = arith.constant 3 : index
    %c0_243 = arith.constant 0 : index
    %c0_244 = arith.constant 0 : index
    %c0_245 = arith.constant 0 : index
    %c0_246 = arith.constant 0 : index
    %200 = vector.load %arg4[%c3_242, %c0_243, %c0_244, %c0_245, %c0_246] : memref<7x7x4x1x1xf32, #tpu.memory_space<vmem>>, vector<1x1x4x1x1xf32>
    %201 = vector.shape_cast %200 : vector<1x1x4x1x1xf32> to vector<4x1x1xf32>
    %202 = vector.broadcast %201 : vector<4x1x1xf32> to vector<4x16x16xf32>
    %203 = arith.mulf %199, %202 : vector<4x16x16xf32>
    %204 = arith.addf %198, %203 : vector<4x16x16xf32>
    %c0_247 = arith.constant 0 : index
    %c3_248 = arith.constant 3 : index
    %c1_249 = arith.constant 1 : index
    %205 = vector.load %arg9[%c0_247, %c3_248, %c1_249] : memref<4x22x22xf32, #tpu.memory_space<vmem>>, vector<4x16x16xf32>
    %c3_250 = arith.constant 3 : index
    %c1_251 = arith.constant 1 : index
    %c0_252 = arith.constant 0 : index
    %c0_253 = arith.constant 0 : index
    %c0_254 = arith.constant 0 : index
    %206 = vector.load %arg4[%c3_250, %c1_251, %c0_252, %c0_253, %c0_254] : memref<7x7x4x1x1xf32, #tpu.memory_space<vmem>>, vector<1x1x4x1x1xf32>
    %207 = vector.shape_cast %206 : vector<1x1x4x1x1xf32> to vector<4x1x1xf32>
    %208 = vector.broadcast %207 : vector<4x1x1xf32> to vector<4x16x16xf32>
    %209 = arith.mulf %205, %208 : vector<4x16x16xf32>
    %210 = arith.addf %204, %209 : vector<4x16x16xf32>
    %c2_255 = arith.constant 2 : index
    %c0_256 = arith.constant 0 : index
    %c0_257 = arith.constant 0 : index
    %c0_258 = arith.constant 0 : index
    %c0_259 = arith.constant 0 : index
    %211 = vector.load %arg3[%c2_255, %c0_256, %c0_257, %c0_258, %c0_259] : memref<5x5x4x1x1xf32, #tpu.memory_space<vmem>>, vector<1x1x4x1x1xf32>
    %212 = vector.shape_cast %211 : vector<1x1x4x1x1xf32> to vector<4x1x1xf32>
    %213 = vector.broadcast %212 : vector<4x1x1xf32> to vector<4x16x16xf32>
    %214 = arith.mulf %205, %213 : vector<4x16x16xf32>
    %215 = arith.addf %192, %214 : vector<4x16x16xf32>
    %c0_260 = arith.constant 0 : index
    %c3_261 = arith.constant 3 : index
    %c2_262 = arith.constant 2 : index
    %216 = vector.load %arg9[%c0_260, %c3_261, %c2_262] : memref<4x22x22xf32, #tpu.memory_space<vmem>>, vector<4x16x16xf32>
    %c3_263 = arith.constant 3 : index
    %c2_264 = arith.constant 2 : index
    %c0_265 = arith.constant 0 : index
    %c0_266 = arith.constant 0 : index
    %c0_267 = arith.constant 0 : index
    %217 = vector.load %arg4[%c3_263, %c2_264, %c0_265, %c0_266, %c0_267] : memref<7x7x4x1x1xf32, #tpu.memory_space<vmem>>, vector<1x1x4x1x1xf32>
    %218 = vector.shape_cast %217 : vector<1x1x4x1x1xf32> to vector<4x1x1xf32>
    %219 = vector.broadcast %218 : vector<4x1x1xf32> to vector<4x16x16xf32>
    %220 = arith.mulf %216, %219 : vector<4x16x16xf32>
    %221 = arith.addf %210, %220 : vector<4x16x16xf32>
    %c2_268 = arith.constant 2 : index
    %c1_269 = arith.constant 1 : index
    %c0_270 = arith.constant 0 : index
    %c0_271 = arith.constant 0 : index
    %c0_272 = arith.constant 0 : index
    %222 = vector.load %arg3[%c2_268, %c1_269, %c0_270, %c0_271, %c0_272] : memref<5x5x4x1x1xf32, #tpu.memory_space<vmem>>, vector<1x1x4x1x1xf32>
    %223 = vector.shape_cast %222 : vector<1x1x4x1x1xf32> to vector<4x1x1xf32>
    %224 = vector.broadcast %223 : vector<4x1x1xf32> to vector<4x16x16xf32>
    %225 = arith.mulf %216, %224 : vector<4x16x16xf32>
    %226 = arith.addf %215, %225 : vector<4x16x16xf32>
    %c1_273 = arith.constant 1 : index
    %c0_274 = arith.constant 0 : index
    %c0_275 = arith.constant 0 : index
    %c0_276 = arith.constant 0 : index
    %c0_277 = arith.constant 0 : index
    %227 = vector.load %arg2[%c1_273, %c0_274, %c0_275, %c0_276, %c0_277] : memref<3x3x4x1x1xf32, #tpu.memory_space<vmem>>, vector<1x1x4x1x1xf32>
    %228 = vector.shape_cast %227 : vector<1x1x4x1x1xf32> to vector<4x1x1xf32>
    %229 = vector.broadcast %228 : vector<4x1x1xf32> to vector<4x16x16xf32>
    %230 = arith.mulf %216, %229 : vector<4x16x16xf32>
    %231 = arith.addf %181, %230 : vector<4x16x16xf32>
    %c0_278 = arith.constant 0 : index
    %c3_279 = arith.constant 3 : index
    %c3_280 = arith.constant 3 : index
    %232 = vector.load %arg9[%c0_278, %c3_279, %c3_280] : memref<4x22x22xf32, #tpu.memory_space<vmem>>, vector<4x16x16xf32>
    %c3_281 = arith.constant 3 : index
    %c3_282 = arith.constant 3 : index
    %c0_283 = arith.constant 0 : index
    %c0_284 = arith.constant 0 : index
    %c0_285 = arith.constant 0 : index
    %233 = vector.load %arg4[%c3_281, %c3_282, %c0_283, %c0_284, %c0_285] : memref<7x7x4x1x1xf32, #tpu.memory_space<vmem>>, vector<1x1x4x1x1xf32>
    %234 = vector.shape_cast %233 : vector<1x1x4x1x1xf32> to vector<4x1x1xf32>
    %235 = vector.broadcast %234 : vector<4x1x1xf32> to vector<4x16x16xf32>
    %236 = arith.mulf %232, %235 : vector<4x16x16xf32>
    %237 = arith.addf %221, %236 : vector<4x16x16xf32>
    %c2_286 = arith.constant 2 : index
    %c2_287 = arith.constant 2 : index
    %c0_288 = arith.constant 0 : index
    %c0_289 = arith.constant 0 : index
    %c0_290 = arith.constant 0 : index
    %238 = vector.load %arg3[%c2_286, %c2_287, %c0_288, %c0_289, %c0_290] : memref<5x5x4x1x1xf32, #tpu.memory_space<vmem>>, vector<1x1x4x1x1xf32>
    %239 = vector.shape_cast %238 : vector<1x1x4x1x1xf32> to vector<4x1x1xf32>
    %240 = vector.broadcast %239 : vector<4x1x1xf32> to vector<4x16x16xf32>
    %241 = arith.mulf %232, %240 : vector<4x16x16xf32>
    %242 = arith.addf %226, %241 : vector<4x16x16xf32>
    %c1_291 = arith.constant 1 : index
    %c1_292 = arith.constant 1 : index
    %c0_293 = arith.constant 0 : index
    %c0_294 = arith.constant 0 : index
    %c0_295 = arith.constant 0 : index
    %243 = vector.load %arg2[%c1_291, %c1_292, %c0_293, %c0_294, %c0_295] : memref<3x3x4x1x1xf32, #tpu.memory_space<vmem>>, vector<1x1x4x1x1xf32>
    %244 = vector.shape_cast %243 : vector<1x1x4x1x1xf32> to vector<4x1x1xf32>
    %245 = vector.broadcast %244 : vector<4x1x1xf32> to vector<4x16x16xf32>
    %246 = arith.mulf %232, %245 : vector<4x16x16xf32>
    %247 = arith.addf %231, %246 : vector<4x16x16xf32>
    %c0_296 = arith.constant 0 : index
    %c3_297 = arith.constant 3 : index
    %c4_298 = arith.constant 4 : index
    %248 = vector.load %arg9[%c0_296, %c3_297, %c4_298] : memref<4x22x22xf32, #tpu.memory_space<vmem>>, vector<4x16x16xf32>
    %c3_299 = arith.constant 3 : index
    %c4_300 = arith.constant 4 : index
    %c0_301 = arith.constant 0 : index
    %c0_302 = arith.constant 0 : index
    %c0_303 = arith.constant 0 : index
    %249 = vector.load %arg4[%c3_299, %c4_300, %c0_301, %c0_302, %c0_303] : memref<7x7x4x1x1xf32, #tpu.memory_space<vmem>>, vector<1x1x4x1x1xf32>
    %250 = vector.shape_cast %249 : vector<1x1x4x1x1xf32> to vector<4x1x1xf32>
    %251 = vector.broadcast %250 : vector<4x1x1xf32> to vector<4x16x16xf32>
    %252 = arith.mulf %248, %251 : vector<4x16x16xf32>
    %253 = arith.addf %237, %252 : vector<4x16x16xf32>
    %c2_304 = arith.constant 2 : index
    %c3_305 = arith.constant 3 : index
    %c0_306 = arith.constant 0 : index
    %c0_307 = arith.constant 0 : index
    %c0_308 = arith.constant 0 : index
    %254 = vector.load %arg3[%c2_304, %c3_305, %c0_306, %c0_307, %c0_308] : memref<5x5x4x1x1xf32, #tpu.memory_space<vmem>>, vector<1x1x4x1x1xf32>
    %255 = vector.shape_cast %254 : vector<1x1x4x1x1xf32> to vector<4x1x1xf32>
    %256 = vector.broadcast %255 : vector<4x1x1xf32> to vector<4x16x16xf32>
    %257 = arith.mulf %248, %256 : vector<4x16x16xf32>
    %258 = arith.addf %242, %257 : vector<4x16x16xf32>
    %c1_309 = arith.constant 1 : index
    %c2_310 = arith.constant 2 : index
    %c0_311 = arith.constant 0 : index
    %c0_312 = arith.constant 0 : index
    %c0_313 = arith.constant 0 : index
    %259 = vector.load %arg2[%c1_309, %c2_310, %c0_311, %c0_312, %c0_313] : memref<3x3x4x1x1xf32, #tpu.memory_space<vmem>>, vector<1x1x4x1x1xf32>
    %260 = vector.shape_cast %259 : vector<1x1x4x1x1xf32> to vector<4x1x1xf32>
    %261 = vector.broadcast %260 : vector<4x1x1xf32> to vector<4x16x16xf32>
    %262 = arith.mulf %248, %261 : vector<4x16x16xf32>
    %263 = arith.addf %247, %262 : vector<4x16x16xf32>
    %c0_314 = arith.constant 0 : index
    %c3_315 = arith.constant 3 : index
    %c5_316 = arith.constant 5 : index
    %264 = vector.load %arg9[%c0_314, %c3_315, %c5_316] : memref<4x22x22xf32, #tpu.memory_space<vmem>>, vector<4x16x16xf32>
    %c3_317 = arith.constant 3 : index
    %c5_318 = arith.constant 5 : index
    %c0_319 = arith.constant 0 : index
    %c0_320 = arith.constant 0 : index
    %c0_321 = arith.constant 0 : index
    %265 = vector.load %arg4[%c3_317, %c5_318, %c0_319, %c0_320, %c0_321] : memref<7x7x4x1x1xf32, #tpu.memory_space<vmem>>, vector<1x1x4x1x1xf32>
    %266 = vector.shape_cast %265 : vector<1x1x4x1x1xf32> to vector<4x1x1xf32>
    %267 = vector.broadcast %266 : vector<4x1x1xf32> to vector<4x16x16xf32>
    %268 = arith.mulf %264, %267 : vector<4x16x16xf32>
    %269 = arith.addf %253, %268 : vector<4x16x16xf32>
    %c2_322 = arith.constant 2 : index
    %c4_323 = arith.constant 4 : index
    %c0_324 = arith.constant 0 : index
    %c0_325 = arith.constant 0 : index
    %c0_326 = arith.constant 0 : index
    %270 = vector.load %arg3[%c2_322, %c4_323, %c0_324, %c0_325, %c0_326] : memref<5x5x4x1x1xf32, #tpu.memory_space<vmem>>, vector<1x1x4x1x1xf32>
    %271 = vector.shape_cast %270 : vector<1x1x4x1x1xf32> to vector<4x1x1xf32>
    %272 = vector.broadcast %271 : vector<4x1x1xf32> to vector<4x16x16xf32>
    %273 = arith.mulf %264, %272 : vector<4x16x16xf32>
    %274 = arith.addf %258, %273 : vector<4x16x16xf32>
    %c0_327 = arith.constant 0 : index
    %c3_328 = arith.constant 3 : index
    %c6_329 = arith.constant 6 : index
    %275 = vector.load %arg9[%c0_327, %c3_328, %c6_329] : memref<4x22x22xf32, #tpu.memory_space<vmem>>, vector<4x16x16xf32>
    %c3_330 = arith.constant 3 : index
    %c6_331 = arith.constant 6 : index
    %c0_332 = arith.constant 0 : index
    %c0_333 = arith.constant 0 : index
    %c0_334 = arith.constant 0 : index
    %276 = vector.load %arg4[%c3_330, %c6_331, %c0_332, %c0_333, %c0_334] : memref<7x7x4x1x1xf32, #tpu.memory_space<vmem>>, vector<1x1x4x1x1xf32>
    %277 = vector.shape_cast %276 : vector<1x1x4x1x1xf32> to vector<4x1x1xf32>
    %278 = vector.broadcast %277 : vector<4x1x1xf32> to vector<4x16x16xf32>
    %279 = arith.mulf %275, %278 : vector<4x16x16xf32>
    %280 = arith.addf %269, %279 : vector<4x16x16xf32>
    %c0_335 = arith.constant 0 : index
    %c4_336 = arith.constant 4 : index
    %c0_337 = arith.constant 0 : index
    %281 = vector.load %arg9[%c0_335, %c4_336, %c0_337] : memref<4x22x22xf32, #tpu.memory_space<vmem>>, vector<4x16x16xf32>
    %c4_338 = arith.constant 4 : index
    %c0_339 = arith.constant 0 : index
    %c0_340 = arith.constant 0 : index
    %c0_341 = arith.constant 0 : index
    %c0_342 = arith.constant 0 : index
    %282 = vector.load %arg4[%c4_338, %c0_339, %c0_340, %c0_341, %c0_342] : memref<7x7x4x1x1xf32, #tpu.memory_space<vmem>>, vector<1x1x4x1x1xf32>
    %283 = vector.shape_cast %282 : vector<1x1x4x1x1xf32> to vector<4x1x1xf32>
    %284 = vector.broadcast %283 : vector<4x1x1xf32> to vector<4x16x16xf32>
    %285 = arith.mulf %281, %284 : vector<4x16x16xf32>
    %286 = arith.addf %280, %285 : vector<4x16x16xf32>
    %c0_343 = arith.constant 0 : index
    %c4_344 = arith.constant 4 : index
    %c1_345 = arith.constant 1 : index
    %287 = vector.load %arg9[%c0_343, %c4_344, %c1_345] : memref<4x22x22xf32, #tpu.memory_space<vmem>>, vector<4x16x16xf32>
    %c4_346 = arith.constant 4 : index
    %c1_347 = arith.constant 1 : index
    %c0_348 = arith.constant 0 : index
    %c0_349 = arith.constant 0 : index
    %c0_350 = arith.constant 0 : index
    %288 = vector.load %arg4[%c4_346, %c1_347, %c0_348, %c0_349, %c0_350] : memref<7x7x4x1x1xf32, #tpu.memory_space<vmem>>, vector<1x1x4x1x1xf32>
    %289 = vector.shape_cast %288 : vector<1x1x4x1x1xf32> to vector<4x1x1xf32>
    %290 = vector.broadcast %289 : vector<4x1x1xf32> to vector<4x16x16xf32>
    %291 = arith.mulf %287, %290 : vector<4x16x16xf32>
    %292 = arith.addf %286, %291 : vector<4x16x16xf32>
    %c3_351 = arith.constant 3 : index
    %c0_352 = arith.constant 0 : index
    %c0_353 = arith.constant 0 : index
    %c0_354 = arith.constant 0 : index
    %c0_355 = arith.constant 0 : index
    %293 = vector.load %arg3[%c3_351, %c0_352, %c0_353, %c0_354, %c0_355] : memref<5x5x4x1x1xf32, #tpu.memory_space<vmem>>, vector<1x1x4x1x1xf32>
    %294 = vector.shape_cast %293 : vector<1x1x4x1x1xf32> to vector<4x1x1xf32>
    %295 = vector.broadcast %294 : vector<4x1x1xf32> to vector<4x16x16xf32>
    %296 = arith.mulf %287, %295 : vector<4x16x16xf32>
    %297 = arith.addf %274, %296 : vector<4x16x16xf32>
    %c0_356 = arith.constant 0 : index
    %c4_357 = arith.constant 4 : index
    %c2_358 = arith.constant 2 : index
    %298 = vector.load %arg9[%c0_356, %c4_357, %c2_358] : memref<4x22x22xf32, #tpu.memory_space<vmem>>, vector<4x16x16xf32>
    %c4_359 = arith.constant 4 : index
    %c2_360 = arith.constant 2 : index
    %c0_361 = arith.constant 0 : index
    %c0_362 = arith.constant 0 : index
    %c0_363 = arith.constant 0 : index
    %299 = vector.load %arg4[%c4_359, %c2_360, %c0_361, %c0_362, %c0_363] : memref<7x7x4x1x1xf32, #tpu.memory_space<vmem>>, vector<1x1x4x1x1xf32>
    %300 = vector.shape_cast %299 : vector<1x1x4x1x1xf32> to vector<4x1x1xf32>
    %301 = vector.broadcast %300 : vector<4x1x1xf32> to vector<4x16x16xf32>
    %302 = arith.mulf %298, %301 : vector<4x16x16xf32>
    %303 = arith.addf %292, %302 : vector<4x16x16xf32>
    %c3_364 = arith.constant 3 : index
    %c1_365 = arith.constant 1 : index
    %c0_366 = arith.constant 0 : index
    %c0_367 = arith.constant 0 : index
    %c0_368 = arith.constant 0 : index
    %304 = vector.load %arg3[%c3_364, %c1_365, %c0_366, %c0_367, %c0_368] : memref<5x5x4x1x1xf32, #tpu.memory_space<vmem>>, vector<1x1x4x1x1xf32>
    %305 = vector.shape_cast %304 : vector<1x1x4x1x1xf32> to vector<4x1x1xf32>
    %306 = vector.broadcast %305 : vector<4x1x1xf32> to vector<4x16x16xf32>
    %307 = arith.mulf %298, %306 : vector<4x16x16xf32>
    %308 = arith.addf %297, %307 : vector<4x16x16xf32>
    %c2_369 = arith.constant 2 : index
    %c0_370 = arith.constant 0 : index
    %c0_371 = arith.constant 0 : index
    %c0_372 = arith.constant 0 : index
    %c0_373 = arith.constant 0 : index
    %309 = vector.load %arg2[%c2_369, %c0_370, %c0_371, %c0_372, %c0_373] : memref<3x3x4x1x1xf32, #tpu.memory_space<vmem>>, vector<1x1x4x1x1xf32>
    %310 = vector.shape_cast %309 : vector<1x1x4x1x1xf32> to vector<4x1x1xf32>
    %311 = vector.broadcast %310 : vector<4x1x1xf32> to vector<4x16x16xf32>
    %312 = arith.mulf %298, %311 : vector<4x16x16xf32>
    %313 = arith.addf %263, %312 : vector<4x16x16xf32>
    %c0_374 = arith.constant 0 : index
    %c4_375 = arith.constant 4 : index
    %c3_376 = arith.constant 3 : index
    %314 = vector.load %arg9[%c0_374, %c4_375, %c3_376] : memref<4x22x22xf32, #tpu.memory_space<vmem>>, vector<4x16x16xf32>
    %c4_377 = arith.constant 4 : index
    %c3_378 = arith.constant 3 : index
    %c0_379 = arith.constant 0 : index
    %c0_380 = arith.constant 0 : index
    %c0_381 = arith.constant 0 : index
    %315 = vector.load %arg4[%c4_377, %c3_378, %c0_379, %c0_380, %c0_381] : memref<7x7x4x1x1xf32, #tpu.memory_space<vmem>>, vector<1x1x4x1x1xf32>
    %316 = vector.shape_cast %315 : vector<1x1x4x1x1xf32> to vector<4x1x1xf32>
    %317 = vector.broadcast %316 : vector<4x1x1xf32> to vector<4x16x16xf32>
    %318 = arith.mulf %314, %317 : vector<4x16x16xf32>
    %319 = arith.addf %303, %318 : vector<4x16x16xf32>
    %c3_382 = arith.constant 3 : index
    %c2_383 = arith.constant 2 : index
    %c0_384 = arith.constant 0 : index
    %c0_385 = arith.constant 0 : index
    %c0_386 = arith.constant 0 : index
    %320 = vector.load %arg3[%c3_382, %c2_383, %c0_384, %c0_385, %c0_386] : memref<5x5x4x1x1xf32, #tpu.memory_space<vmem>>, vector<1x1x4x1x1xf32>
    %321 = vector.shape_cast %320 : vector<1x1x4x1x1xf32> to vector<4x1x1xf32>
    %322 = vector.broadcast %321 : vector<4x1x1xf32> to vector<4x16x16xf32>
    %323 = arith.mulf %314, %322 : vector<4x16x16xf32>
    %324 = arith.addf %308, %323 : vector<4x16x16xf32>
    %c2_387 = arith.constant 2 : index
    %c1_388 = arith.constant 1 : index
    %c0_389 = arith.constant 0 : index
    %c0_390 = arith.constant 0 : index
    %c0_391 = arith.constant 0 : index
    %325 = vector.load %arg2[%c2_387, %c1_388, %c0_389, %c0_390, %c0_391] : memref<3x3x4x1x1xf32, #tpu.memory_space<vmem>>, vector<1x1x4x1x1xf32>
    %326 = vector.shape_cast %325 : vector<1x1x4x1x1xf32> to vector<4x1x1xf32>
    %327 = vector.broadcast %326 : vector<4x1x1xf32> to vector<4x16x16xf32>
    %328 = arith.mulf %314, %327 : vector<4x16x16xf32>
    %329 = arith.addf %313, %328 : vector<4x16x16xf32>
    %c0_392 = arith.constant 0 : index
    %c4_393 = arith.constant 4 : index
    %c4_394 = arith.constant 4 : index
    %330 = vector.load %arg9[%c0_392, %c4_393, %c4_394] : memref<4x22x22xf32, #tpu.memory_space<vmem>>, vector<4x16x16xf32>
    %c4_395 = arith.constant 4 : index
    %c4_396 = arith.constant 4 : index
    %c0_397 = arith.constant 0 : index
    %c0_398 = arith.constant 0 : index
    %c0_399 = arith.constant 0 : index
    %331 = vector.load %arg4[%c4_395, %c4_396, %c0_397, %c0_398, %c0_399] : memref<7x7x4x1x1xf32, #tpu.memory_space<vmem>>, vector<1x1x4x1x1xf32>
    %332 = vector.shape_cast %331 : vector<1x1x4x1x1xf32> to vector<4x1x1xf32>
    %333 = vector.broadcast %332 : vector<4x1x1xf32> to vector<4x16x16xf32>
    %334 = arith.mulf %330, %333 : vector<4x16x16xf32>
    %335 = arith.addf %319, %334 : vector<4x16x16xf32>
    %c3_400 = arith.constant 3 : index
    %c3_401 = arith.constant 3 : index
    %c0_402 = arith.constant 0 : index
    %c0_403 = arith.constant 0 : index
    %c0_404 = arith.constant 0 : index
    %336 = vector.load %arg3[%c3_400, %c3_401, %c0_402, %c0_403, %c0_404] : memref<5x5x4x1x1xf32, #tpu.memory_space<vmem>>, vector<1x1x4x1x1xf32>
    %337 = vector.shape_cast %336 : vector<1x1x4x1x1xf32> to vector<4x1x1xf32>
    %338 = vector.broadcast %337 : vector<4x1x1xf32> to vector<4x16x16xf32>
    %339 = arith.mulf %330, %338 : vector<4x16x16xf32>
    %340 = arith.addf %324, %339 : vector<4x16x16xf32>
    %c2_405 = arith.constant 2 : index
    %c2_406 = arith.constant 2 : index
    %c0_407 = arith.constant 0 : index
    %c0_408 = arith.constant 0 : index
    %c0_409 = arith.constant 0 : index
    %341 = vector.load %arg2[%c2_405, %c2_406, %c0_407, %c0_408, %c0_409] : memref<3x3x4x1x1xf32, #tpu.memory_space<vmem>>, vector<1x1x4x1x1xf32>
    %342 = vector.shape_cast %341 : vector<1x1x4x1x1xf32> to vector<4x1x1xf32>
    %343 = vector.broadcast %342 : vector<4x1x1xf32> to vector<4x16x16xf32>
    %344 = arith.mulf %330, %343 : vector<4x16x16xf32>
    %345 = arith.addf %329, %344 : vector<4x16x16xf32>
    %c0_410 = arith.constant 0 : index
    %c4_411 = arith.constant 4 : index
    %c5_412 = arith.constant 5 : index
    %346 = vector.load %arg9[%c0_410, %c4_411, %c5_412] : memref<4x22x22xf32, #tpu.memory_space<vmem>>, vector<4x16x16xf32>
    %c4_413 = arith.constant 4 : index
    %c5_414 = arith.constant 5 : index
    %c0_415 = arith.constant 0 : index
    %c0_416 = arith.constant 0 : index
    %c0_417 = arith.constant 0 : index
    %347 = vector.load %arg4[%c4_413, %c5_414, %c0_415, %c0_416, %c0_417] : memref<7x7x4x1x1xf32, #tpu.memory_space<vmem>>, vector<1x1x4x1x1xf32>
    %348 = vector.shape_cast %347 : vector<1x1x4x1x1xf32> to vector<4x1x1xf32>
    %349 = vector.broadcast %348 : vector<4x1x1xf32> to vector<4x16x16xf32>
    %350 = arith.mulf %346, %349 : vector<4x16x16xf32>
    %351 = arith.addf %335, %350 : vector<4x16x16xf32>
    %c3_418 = arith.constant 3 : index
    %c4_419 = arith.constant 4 : index
    %c0_420 = arith.constant 0 : index
    %c0_421 = arith.constant 0 : index
    %c0_422 = arith.constant 0 : index
    %352 = vector.load %arg3[%c3_418, %c4_419, %c0_420, %c0_421, %c0_422] : memref<5x5x4x1x1xf32, #tpu.memory_space<vmem>>, vector<1x1x4x1x1xf32>
    %353 = vector.shape_cast %352 : vector<1x1x4x1x1xf32> to vector<4x1x1xf32>
    %354 = vector.broadcast %353 : vector<4x1x1xf32> to vector<4x16x16xf32>
    %355 = arith.mulf %346, %354 : vector<4x16x16xf32>
    %356 = arith.addf %340, %355 : vector<4x16x16xf32>
    %c0_423 = arith.constant 0 : index
    %c4_424 = arith.constant 4 : index
    %c6_425 = arith.constant 6 : index
    %357 = vector.load %arg9[%c0_423, %c4_424, %c6_425] : memref<4x22x22xf32, #tpu.memory_space<vmem>>, vector<4x16x16xf32>
    %c4_426 = arith.constant 4 : index
    %c6_427 = arith.constant 6 : index
    %c0_428 = arith.constant 0 : index
    %c0_429 = arith.constant 0 : index
    %c0_430 = arith.constant 0 : index
    %358 = vector.load %arg4[%c4_426, %c6_427, %c0_428, %c0_429, %c0_430] : memref<7x7x4x1x1xf32, #tpu.memory_space<vmem>>, vector<1x1x4x1x1xf32>
    %359 = vector.shape_cast %358 : vector<1x1x4x1x1xf32> to vector<4x1x1xf32>
    %360 = vector.broadcast %359 : vector<4x1x1xf32> to vector<4x16x16xf32>
    %361 = arith.mulf %357, %360 : vector<4x16x16xf32>
    %362 = arith.addf %351, %361 : vector<4x16x16xf32>
    %c0_431 = arith.constant 0 : index
    %c5_432 = arith.constant 5 : index
    %c0_433 = arith.constant 0 : index
    %363 = vector.load %arg9[%c0_431, %c5_432, %c0_433] : memref<4x22x22xf32, #tpu.memory_space<vmem>>, vector<4x16x16xf32>
    %c5_434 = arith.constant 5 : index
    %c0_435 = arith.constant 0 : index
    %c0_436 = arith.constant 0 : index
    %c0_437 = arith.constant 0 : index
    %c0_438 = arith.constant 0 : index
    %364 = vector.load %arg4[%c5_434, %c0_435, %c0_436, %c0_437, %c0_438] : memref<7x7x4x1x1xf32, #tpu.memory_space<vmem>>, vector<1x1x4x1x1xf32>
    %365 = vector.shape_cast %364 : vector<1x1x4x1x1xf32> to vector<4x1x1xf32>
    %366 = vector.broadcast %365 : vector<4x1x1xf32> to vector<4x16x16xf32>
    %367 = arith.mulf %363, %366 : vector<4x16x16xf32>
    %368 = arith.addf %362, %367 : vector<4x16x16xf32>
    %c0_439 = arith.constant 0 : index
    %c5_440 = arith.constant 5 : index
    %c1_441 = arith.constant 1 : index
    %369 = vector.load %arg9[%c0_439, %c5_440, %c1_441] : memref<4x22x22xf32, #tpu.memory_space<vmem>>, vector<4x16x16xf32>
    %c5_442 = arith.constant 5 : index
    %c1_443 = arith.constant 1 : index
    %c0_444 = arith.constant 0 : index
    %c0_445 = arith.constant 0 : index
    %c0_446 = arith.constant 0 : index
    %370 = vector.load %arg4[%c5_442, %c1_443, %c0_444, %c0_445, %c0_446] : memref<7x7x4x1x1xf32, #tpu.memory_space<vmem>>, vector<1x1x4x1x1xf32>
    %371 = vector.shape_cast %370 : vector<1x1x4x1x1xf32> to vector<4x1x1xf32>
    %372 = vector.broadcast %371 : vector<4x1x1xf32> to vector<4x16x16xf32>
    %373 = arith.mulf %369, %372 : vector<4x16x16xf32>
    %374 = arith.addf %368, %373 : vector<4x16x16xf32>
    %c4_447 = arith.constant 4 : index
    %c0_448 = arith.constant 0 : index
    %c0_449 = arith.constant 0 : index
    %c0_450 = arith.constant 0 : index
    %c0_451 = arith.constant 0 : index
    %375 = vector.load %arg3[%c4_447, %c0_448, %c0_449, %c0_450, %c0_451] : memref<5x5x4x1x1xf32, #tpu.memory_space<vmem>>, vector<1x1x4x1x1xf32>
    %376 = vector.shape_cast %375 : vector<1x1x4x1x1xf32> to vector<4x1x1xf32>
    %377 = vector.broadcast %376 : vector<4x1x1xf32> to vector<4x16x16xf32>
    %378 = arith.mulf %369, %377 : vector<4x16x16xf32>
    %379 = arith.addf %356, %378 : vector<4x16x16xf32>
    %c0_452 = arith.constant 0 : index
    %c5_453 = arith.constant 5 : index
    %c2_454 = arith.constant 2 : index
    %380 = vector.load %arg9[%c0_452, %c5_453, %c2_454] : memref<4x22x22xf32, #tpu.memory_space<vmem>>, vector<4x16x16xf32>
    %c5_455 = arith.constant 5 : index
    %c2_456 = arith.constant 2 : index
    %c0_457 = arith.constant 0 : index
    %c0_458 = arith.constant 0 : index
    %c0_459 = arith.constant 0 : index
    %381 = vector.load %arg4[%c5_455, %c2_456, %c0_457, %c0_458, %c0_459] : memref<7x7x4x1x1xf32, #tpu.memory_space<vmem>>, vector<1x1x4x1x1xf32>
    %382 = vector.shape_cast %381 : vector<1x1x4x1x1xf32> to vector<4x1x1xf32>
    %383 = vector.broadcast %382 : vector<4x1x1xf32> to vector<4x16x16xf32>
    %384 = arith.mulf %380, %383 : vector<4x16x16xf32>
    %385 = arith.addf %374, %384 : vector<4x16x16xf32>
    %c4_460 = arith.constant 4 : index
    %c1_461 = arith.constant 1 : index
    %c0_462 = arith.constant 0 : index
    %c0_463 = arith.constant 0 : index
    %c0_464 = arith.constant 0 : index
    %386 = vector.load %arg3[%c4_460, %c1_461, %c0_462, %c0_463, %c0_464] : memref<5x5x4x1x1xf32, #tpu.memory_space<vmem>>, vector<1x1x4x1x1xf32>
    %387 = vector.shape_cast %386 : vector<1x1x4x1x1xf32> to vector<4x1x1xf32>
    %388 = vector.broadcast %387 : vector<4x1x1xf32> to vector<4x16x16xf32>
    %389 = arith.mulf %380, %388 : vector<4x16x16xf32>
    %390 = arith.addf %379, %389 : vector<4x16x16xf32>
    %c0_465 = arith.constant 0 : index
    %c5_466 = arith.constant 5 : index
    %c3_467 = arith.constant 3 : index
    %391 = vector.load %arg9[%c0_465, %c5_466, %c3_467] : memref<4x22x22xf32, #tpu.memory_space<vmem>>, vector<4x16x16xf32>
    %c5_468 = arith.constant 5 : index
    %c3_469 = arith.constant 3 : index
    %c0_470 = arith.constant 0 : index
    %c0_471 = arith.constant 0 : index
    %c0_472 = arith.constant 0 : index
    %392 = vector.load %arg4[%c5_468, %c3_469, %c0_470, %c0_471, %c0_472] : memref<7x7x4x1x1xf32, #tpu.memory_space<vmem>>, vector<1x1x4x1x1xf32>
    %393 = vector.shape_cast %392 : vector<1x1x4x1x1xf32> to vector<4x1x1xf32>
    %394 = vector.broadcast %393 : vector<4x1x1xf32> to vector<4x16x16xf32>
    %395 = arith.mulf %391, %394 : vector<4x16x16xf32>
    %396 = arith.addf %385, %395 : vector<4x16x16xf32>
    %c4_473 = arith.constant 4 : index
    %c2_474 = arith.constant 2 : index
    %c0_475 = arith.constant 0 : index
    %c0_476 = arith.constant 0 : index
    %c0_477 = arith.constant 0 : index
    %397 = vector.load %arg3[%c4_473, %c2_474, %c0_475, %c0_476, %c0_477] : memref<5x5x4x1x1xf32, #tpu.memory_space<vmem>>, vector<1x1x4x1x1xf32>
    %398 = vector.shape_cast %397 : vector<1x1x4x1x1xf32> to vector<4x1x1xf32>
    %399 = vector.broadcast %398 : vector<4x1x1xf32> to vector<4x16x16xf32>
    %400 = arith.mulf %391, %399 : vector<4x16x16xf32>
    %401 = arith.addf %390, %400 : vector<4x16x16xf32>
    %c0_478 = arith.constant 0 : index
    %c5_479 = arith.constant 5 : index
    %c4_480 = arith.constant 4 : index
    %402 = vector.load %arg9[%c0_478, %c5_479, %c4_480] : memref<4x22x22xf32, #tpu.memory_space<vmem>>, vector<4x16x16xf32>
    %c5_481 = arith.constant 5 : index
    %c4_482 = arith.constant 4 : index
    %c0_483 = arith.constant 0 : index
    %c0_484 = arith.constant 0 : index
    %c0_485 = arith.constant 0 : index
    %403 = vector.load %arg4[%c5_481, %c4_482, %c0_483, %c0_484, %c0_485] : memref<7x7x4x1x1xf32, #tpu.memory_space<vmem>>, vector<1x1x4x1x1xf32>
    %404 = vector.shape_cast %403 : vector<1x1x4x1x1xf32> to vector<4x1x1xf32>
    %405 = vector.broadcast %404 : vector<4x1x1xf32> to vector<4x16x16xf32>
    %406 = arith.mulf %402, %405 : vector<4x16x16xf32>
    %407 = arith.addf %396, %406 : vector<4x16x16xf32>
    %c4_486 = arith.constant 4 : index
    %c3_487 = arith.constant 3 : index
    %c0_488 = arith.constant 0 : index
    %c0_489 = arith.constant 0 : index
    %c0_490 = arith.constant 0 : index
    %408 = vector.load %arg3[%c4_486, %c3_487, %c0_488, %c0_489, %c0_490] : memref<5x5x4x1x1xf32, #tpu.memory_space<vmem>>, vector<1x1x4x1x1xf32>
    %409 = vector.shape_cast %408 : vector<1x1x4x1x1xf32> to vector<4x1x1xf32>
    %410 = vector.broadcast %409 : vector<4x1x1xf32> to vector<4x16x16xf32>
    %411 = arith.mulf %402, %410 : vector<4x16x16xf32>
    %412 = arith.addf %401, %411 : vector<4x16x16xf32>
    %c0_491 = arith.constant 0 : index
    %c5_492 = arith.constant 5 : index
    %c5_493 = arith.constant 5 : index
    %413 = vector.load %arg9[%c0_491, %c5_492, %c5_493] : memref<4x22x22xf32, #tpu.memory_space<vmem>>, vector<4x16x16xf32>
    %c5_494 = arith.constant 5 : index
    %c5_495 = arith.constant 5 : index
    %c0_496 = arith.constant 0 : index
    %c0_497 = arith.constant 0 : index
    %c0_498 = arith.constant 0 : index
    %414 = vector.load %arg4[%c5_494, %c5_495, %c0_496, %c0_497, %c0_498] : memref<7x7x4x1x1xf32, #tpu.memory_space<vmem>>, vector<1x1x4x1x1xf32>
    %415 = vector.shape_cast %414 : vector<1x1x4x1x1xf32> to vector<4x1x1xf32>
    %416 = vector.broadcast %415 : vector<4x1x1xf32> to vector<4x16x16xf32>
    %417 = arith.mulf %413, %416 : vector<4x16x16xf32>
    %418 = arith.addf %407, %417 : vector<4x16x16xf32>
    %c4_499 = arith.constant 4 : index
    %c4_500 = arith.constant 4 : index
    %c0_501 = arith.constant 0 : index
    %c0_502 = arith.constant 0 : index
    %c0_503 = arith.constant 0 : index
    %419 = vector.load %arg3[%c4_499, %c4_500, %c0_501, %c0_502, %c0_503] : memref<5x5x4x1x1xf32, #tpu.memory_space<vmem>>, vector<1x1x4x1x1xf32>
    %420 = vector.shape_cast %419 : vector<1x1x4x1x1xf32> to vector<4x1x1xf32>
    %421 = vector.broadcast %420 : vector<4x1x1xf32> to vector<4x16x16xf32>
    %422 = arith.mulf %413, %421 : vector<4x16x16xf32>
    %423 = arith.addf %412, %422 : vector<4x16x16xf32>
    %c0_504 = arith.constant 0 : index
    %c5_505 = arith.constant 5 : index
    %c6_506 = arith.constant 6 : index
    %424 = vector.load %arg9[%c0_504, %c5_505, %c6_506] : memref<4x22x22xf32, #tpu.memory_space<vmem>>, vector<4x16x16xf32>
    %c5_507 = arith.constant 5 : index
    %c6_508 = arith.constant 6 : index
    %c0_509 = arith.constant 0 : index
    %c0_510 = arith.constant 0 : index
    %c0_511 = arith.constant 0 : index
    %425 = vector.load %arg4[%c5_507, %c6_508, %c0_509, %c0_510, %c0_511] : memref<7x7x4x1x1xf32, #tpu.memory_space<vmem>>, vector<1x1x4x1x1xf32>
    %426 = vector.shape_cast %425 : vector<1x1x4x1x1xf32> to vector<4x1x1xf32>
    %427 = vector.broadcast %426 : vector<4x1x1xf32> to vector<4x16x16xf32>
    %428 = arith.mulf %424, %427 : vector<4x16x16xf32>
    %429 = arith.addf %418, %428 : vector<4x16x16xf32>
    %c0_512 = arith.constant 0 : index
    %c6_513 = arith.constant 6 : index
    %c0_514 = arith.constant 0 : index
    %430 = vector.load %arg9[%c0_512, %c6_513, %c0_514] : memref<4x22x22xf32, #tpu.memory_space<vmem>>, vector<4x16x16xf32>
    %c6_515 = arith.constant 6 : index
    %c0_516 = arith.constant 0 : index
    %c0_517 = arith.constant 0 : index
    %c0_518 = arith.constant 0 : index
    %c0_519 = arith.constant 0 : index
    %431 = vector.load %arg4[%c6_515, %c0_516, %c0_517, %c0_518, %c0_519] : memref<7x7x4x1x1xf32, #tpu.memory_space<vmem>>, vector<1x1x4x1x1xf32>
    %432 = vector.shape_cast %431 : vector<1x1x4x1x1xf32> to vector<4x1x1xf32>
    %433 = vector.broadcast %432 : vector<4x1x1xf32> to vector<4x16x16xf32>
    %434 = arith.mulf %430, %433 : vector<4x16x16xf32>
    %435 = arith.addf %429, %434 : vector<4x16x16xf32>
    %c0_520 = arith.constant 0 : index
    %c6_521 = arith.constant 6 : index
    %c1_522 = arith.constant 1 : index
    %436 = vector.load %arg9[%c0_520, %c6_521, %c1_522] : memref<4x22x22xf32, #tpu.memory_space<vmem>>, vector<4x16x16xf32>
    %c6_523 = arith.constant 6 : index
    %c1_524 = arith.constant 1 : index
    %c0_525 = arith.constant 0 : index
    %c0_526 = arith.constant 0 : index
    %c0_527 = arith.constant 0 : index
    %437 = vector.load %arg4[%c6_523, %c1_524, %c0_525, %c0_526, %c0_527] : memref<7x7x4x1x1xf32, #tpu.memory_space<vmem>>, vector<1x1x4x1x1xf32>
    %438 = vector.shape_cast %437 : vector<1x1x4x1x1xf32> to vector<4x1x1xf32>
    %439 = vector.broadcast %438 : vector<4x1x1xf32> to vector<4x16x16xf32>
    %440 = arith.mulf %436, %439 : vector<4x16x16xf32>
    %441 = arith.addf %435, %440 : vector<4x16x16xf32>
    %c0_528 = arith.constant 0 : index
    %c6_529 = arith.constant 6 : index
    %c2_530 = arith.constant 2 : index
    %442 = vector.load %arg9[%c0_528, %c6_529, %c2_530] : memref<4x22x22xf32, #tpu.memory_space<vmem>>, vector<4x16x16xf32>
    %c6_531 = arith.constant 6 : index
    %c2_532 = arith.constant 2 : index
    %c0_533 = arith.constant 0 : index
    %c0_534 = arith.constant 0 : index
    %c0_535 = arith.constant 0 : index
    %443 = vector.load %arg4[%c6_531, %c2_532, %c0_533, %c0_534, %c0_535] : memref<7x7x4x1x1xf32, #tpu.memory_space<vmem>>, vector<1x1x4x1x1xf32>
    %444 = vector.shape_cast %443 : vector<1x1x4x1x1xf32> to vector<4x1x1xf32>
    %445 = vector.broadcast %444 : vector<4x1x1xf32> to vector<4x16x16xf32>
    %446 = arith.mulf %442, %445 : vector<4x16x16xf32>
    %447 = arith.addf %441, %446 : vector<4x16x16xf32>
    %c0_536 = arith.constant 0 : index
    %c6_537 = arith.constant 6 : index
    %c3_538 = arith.constant 3 : index
    %448 = vector.load %arg9[%c0_536, %c6_537, %c3_538] : memref<4x22x22xf32, #tpu.memory_space<vmem>>, vector<4x16x16xf32>
    %c6_539 = arith.constant 6 : index
    %c3_540 = arith.constant 3 : index
    %c0_541 = arith.constant 0 : index
    %c0_542 = arith.constant 0 : index
    %c0_543 = arith.constant 0 : index
    %449 = vector.load %arg4[%c6_539, %c3_540, %c0_541, %c0_542, %c0_543] : memref<7x7x4x1x1xf32, #tpu.memory_space<vmem>>, vector<1x1x4x1x1xf32>
    %450 = vector.shape_cast %449 : vector<1x1x4x1x1xf32> to vector<4x1x1xf32>
    %451 = vector.broadcast %450 : vector<4x1x1xf32> to vector<4x16x16xf32>
    %452 = arith.mulf %448, %451 : vector<4x16x16xf32>
    %453 = arith.addf %447, %452 : vector<4x16x16xf32>
    %c0_544 = arith.constant 0 : index
    %c6_545 = arith.constant 6 : index
    %c4_546 = arith.constant 4 : index
    %454 = vector.load %arg9[%c0_544, %c6_545, %c4_546] : memref<4x22x22xf32, #tpu.memory_space<vmem>>, vector<4x16x16xf32>
    %c6_547 = arith.constant 6 : index
    %c4_548 = arith.constant 4 : index
    %c0_549 = arith.constant 0 : index
    %c0_550 = arith.constant 0 : index
    %c0_551 = arith.constant 0 : index
    %455 = vector.load %arg4[%c6_547, %c4_548, %c0_549, %c0_550, %c0_551] : memref<7x7x4x1x1xf32, #tpu.memory_space<vmem>>, vector<1x1x4x1x1xf32>
    %456 = vector.shape_cast %455 : vector<1x1x4x1x1xf32> to vector<4x1x1xf32>
    %457 = vector.broadcast %456 : vector<4x1x1xf32> to vector<4x16x16xf32>
    %458 = arith.mulf %454, %457 : vector<4x16x16xf32>
    %459 = arith.addf %453, %458 : vector<4x16x16xf32>
    %c0_552 = arith.constant 0 : index
    %c6_553 = arith.constant 6 : index
    %c5_554 = arith.constant 5 : index
    %460 = vector.load %arg9[%c0_552, %c6_553, %c5_554] : memref<4x22x22xf32, #tpu.memory_space<vmem>>, vector<4x16x16xf32>
    %c6_555 = arith.constant 6 : index
    %c5_556 = arith.constant 5 : index
    %c0_557 = arith.constant 0 : index
    %c0_558 = arith.constant 0 : index
    %c0_559 = arith.constant 0 : index
    %461 = vector.load %arg4[%c6_555, %c5_556, %c0_557, %c0_558, %c0_559] : memref<7x7x4x1x1xf32, #tpu.memory_space<vmem>>, vector<1x1x4x1x1xf32>
    %462 = vector.shape_cast %461 : vector<1x1x4x1x1xf32> to vector<4x1x1xf32>
    %463 = vector.broadcast %462 : vector<4x1x1xf32> to vector<4x16x16xf32>
    %464 = arith.mulf %460, %463 : vector<4x16x16xf32>
    %465 = arith.addf %459, %464 : vector<4x16x16xf32>
    %c0_560 = arith.constant 0 : index
    %c6_561 = arith.constant 6 : index
    %c6_562 = arith.constant 6 : index
    %466 = vector.load %arg9[%c0_560, %c6_561, %c6_562] : memref<4x22x22xf32, #tpu.memory_space<vmem>>, vector<4x16x16xf32>
    %c6_563 = arith.constant 6 : index
    %c6_564 = arith.constant 6 : index
    %c0_565 = arith.constant 0 : index
    %c0_566 = arith.constant 0 : index
    %c0_567 = arith.constant 0 : index
    %467 = vector.load %arg4[%c6_563, %c6_564, %c0_565, %c0_566, %c0_567] : memref<7x7x4x1x1xf32, #tpu.memory_space<vmem>>, vector<1x1x4x1x1xf32>
    %468 = vector.shape_cast %467 : vector<1x1x4x1x1xf32> to vector<4x1x1xf32>
    %469 = vector.broadcast %468 : vector<4x1x1xf32> to vector<4x16x16xf32>
    %470 = arith.mulf %466, %469 : vector<4x16x16xf32>
    %471 = arith.addf %465, %470 : vector<4x16x16xf32>
    %c0_568 = arith.constant 0 : index
    %c0_569 = arith.constant 0 : index
    %c0_570 = arith.constant 0 : index
    %c0_571 = arith.constant 0 : index
    %472 = vector.load %arg5[%c0_568, %c0_569, %c0_570, %c0_571] : memref<4x4x1x1xf32, #tpu.memory_space<vmem>>, vector<4x1x1x1xf32>
    %473 = vector.shape_cast %472 : vector<4x1x1x1xf32> to vector<4x1x1xf32>
    %474 = vector.broadcast %473 : vector<4x1x1xf32> to vector<4x16x16xf32>
    %475 = arith.mulf %345, %474 : vector<4x16x16xf32>
    %c0_572 = arith.constant 0 : index
    %c0_573 = arith.constant 0 : index
    %c0_574 = arith.constant 0 : index
    %c0_575 = arith.constant 0 : index
    %476 = vector.load %arg6[%c0_572, %c0_573, %c0_574, %c0_575] : memref<4x4x1x1xf32, #tpu.memory_space<vmem>>, vector<4x1x1x1xf32>
    %477 = vector.shape_cast %476 : vector<4x1x1x1xf32> to vector<4x1x1xf32>
    %478 = vector.broadcast %477 : vector<4x1x1xf32> to vector<4x16x16xf32>
    %479 = arith.mulf %423, %478 : vector<4x16x16xf32>
    %480 = arith.addf %475, %479 : vector<4x16x16xf32>
    %c0_576 = arith.constant 0 : index
    %c0_577 = arith.constant 0 : index
    %c0_578 = arith.constant 0 : index
    %c0_579 = arith.constant 0 : index
    %481 = vector.load %arg7[%c0_576, %c0_577, %c0_578, %c0_579] : memref<4x4x1x1xf32, #tpu.memory_space<vmem>>, vector<4x1x1x1xf32>
    %482 = vector.shape_cast %481 : vector<4x1x1x1xf32> to vector<4x1x1xf32>
    %483 = vector.broadcast %482 : vector<4x1x1xf32> to vector<4x16x16xf32>
    %484 = arith.mulf %471, %483 : vector<4x16x16xf32>
    %485 = arith.addf %480, %484 : vector<4x16x16xf32>
    %cst_580 = arith.constant dense<0.000000e+00> : vector<16x16xf32>
    %486 = vector.multi_reduction <add>, %485, %cst_580 [0] : vector<4x16x16xf32> to vector<16x16xf32>
    %c0_581 = arith.constant 0 : index
    %c0_582 = arith.constant 0 : index
    %c0_583 = arith.constant 0 : index
    %c0_584 = arith.constant 0 : index
    %487 = vector.load %arg8[%c0_581, %c0_582, %c0_583, %c0_584] : memref<1x4x16x16xf32, #tpu.memory_space<vmem>>, vector<1x1x16x16xf32>
    %488 = vector.shape_cast %487 : vector<1x1x16x16xf32> to vector<16x16xf32>
    %489 = vector.shape_cast %486 : vector<16x16xf32> to vector<1x1x16x16xf32>
    tpu.vector_store %arg8[%c0_581, %c0_582, %c0_583, %c0_584], %489 {strides = array<i32>} : memref<1x4x16x16xf32, #tpu.memory_space<vmem>>, vector<1x1x16x16xf32>,
    %c0_585 = arith.constant 0 : index
    %c1_586 = arith.constant 1 : index
    %c0_587 = arith.constant 0 : index
    %c0_588 = arith.constant 0 : index
    %490 = vector.load %arg5[%c0_585, %c1_586, %c0_587, %c0_588] : memref<4x4x1x1xf32, #tpu.memory_space<vmem>>, vector<4x1x1x1xf32>
    %491 = vector.shape_cast %490 : vector<4x1x1x1xf32> to vector<4x1x1xf32>
    %492 = vector.broadcast %491 : vector<4x1x1xf32> to vector<4x16x16xf32>
    %493 = arith.mulf %345, %492 : vector<4x16x16xf32>
    %c0_589 = arith.constant 0 : index
    %c1_590 = arith.constant 1 : index
    %c0_591 = arith.constant 0 : index
    %c0_592 = arith.constant 0 : index
    %494 = vector.load %arg6[%c0_589, %c1_590, %c0_591, %c0_592] : memref<4x4x1x1xf32, #tpu.memory_space<vmem>>, vector<4x1x1x1xf32>
    %495 = vector.shape_cast %494 : vector<4x1x1x1xf32> to vector<4x1x1xf32>
    %496 = vector.broadcast %495 : vector<4x1x1xf32> to vector<4x16x16xf32>
    %497 = arith.mulf %423, %496 : vector<4x16x16xf32>
    %498 = arith.addf %493, %497 : vector<4x16x16xf32>
    %c0_593 = arith.constant 0 : index
    %c1_594 = arith.constant 1 : index
    %c0_595 = arith.constant 0 : index
    %c0_596 = arith.constant 0 : index
    %499 = vector.load %arg7[%c0_593, %c1_594, %c0_595, %c0_596] : memref<4x4x1x1xf32, #tpu.memory_space<vmem>>, vector<4x1x1x1xf32>
    %500 = vector.shape_cast %499 : vector<4x1x1x1xf32> to vector<4x1x1xf32>
    %501 = vector.broadcast %500 : vector<4x1x1xf32> to vector<4x16x16xf32>
    %502 = arith.mulf %471, %501 : vector<4x16x16xf32>
    %503 = arith.addf %498, %502 : vector<4x16x16xf32>
    %cst_597 = arith.constant dense<0.000000e+00> : vector<16x16xf32>
    %504 = vector.multi_reduction <add>, %503, %cst_597 [0] : vector<4x16x16xf32> to vector<16x16xf32>
    %c0_598 = arith.constant 0 : index
    %c1_599 = arith.constant 1 : index
    %c0_600 = arith.constant 0 : index
    %c0_601 = arith.constant 0 : index
    %505 = vector.load %arg8[%c0_598, %c1_599, %c0_600, %c0_601] : memref<1x4x16x16xf32, #tpu.memory_space<vmem>>, vector<1x1x16x16xf32>
    %506 = vector.shape_cast %505 : vector<1x1x16x16xf32> to vector<16x16xf32>
    %507 = vector.shape_cast %504 : vector<16x16xf32> to vector<1x1x16x16xf32>
    tpu.vector_store %arg8[%c0_598, %c1_599, %c0_600, %c0_601], %507 {strides = array<i32>} : memref<1x4x16x16xf32, #tpu.memory_space<vmem>>, vector<1x1x16x16xf32>,
    %c0_602 = arith.constant 0 : index
    %c2_603 = arith.constant 2 : index
    %c0_604 = arith.constant 0 : index
    %c0_605 = arith.constant 0 : index
    %508 = vector.load %arg5[%c0_602, %c2_603, %c0_604, %c0_605] : memref<4x4x1x1xf32, #tpu.memory_space<vmem>>, vector<4x1x1x1xf32>
    %509 = vector.shape_cast %508 : vector<4x1x1x1xf32> to vector<4x1x1xf32>
    %510 = vector.broadcast %509 : vector<4x1x1xf32> to vector<4x16x16xf32>
    %511 = arith.mulf %345, %510 : vector<4x16x16xf32>
    %c0_606 = arith.constant 0 : index
    %c2_607 = arith.constant 2 : index
    %c0_608 = arith.constant 0 : index
    %c0_609 = arith.constant 0 : index
    %512 = vector.load %arg6[%c0_606, %c2_607, %c0_608, %c0_609] : memref<4x4x1x1xf32, #tpu.memory_space<vmem>>, vector<4x1x1x1xf32>
    %513 = vector.shape_cast %512 : vector<4x1x1x1xf32> to vector<4x1x1xf32>
    %514 = vector.broadcast %513 : vector<4x1x1xf32> to vector<4x16x16xf32>
    %515 = arith.mulf %423, %514 : vector<4x16x16xf32>
    %516 = arith.addf %511, %515 : vector<4x16x16xf32>
    %c0_610 = arith.constant 0 : index
    %c2_611 = arith.constant 2 : index
    %c0_612 = arith.constant 0 : index
    %c0_613 = arith.constant 0 : index
    %517 = vector.load %arg7[%c0_610, %c2_611, %c0_612, %c0_613] : memref<4x4x1x1xf32, #tpu.memory_space<vmem>>, vector<4x1x1x1xf32>
    %518 = vector.shape_cast %517 : vector<4x1x1x1xf32> to vector<4x1x1xf32>
    %519 = vector.broadcast %518 : vector<4x1x1xf32> to vector<4x16x16xf32>
    %520 = arith.mulf %471, %519 : vector<4x16x16xf32>
    %521 = arith.addf %516, %520 : vector<4x16x16xf32>
    %cst_614 = arith.constant dense<0.000000e+00> : vector<16x16xf32>
    %522 = vector.multi_reduction <add>, %521, %cst_614 [0] : vector<4x16x16xf32> to vector<16x16xf32>
    %c0_615 = arith.constant 0 : index
    %c2_616 = arith.constant 2 : index
    %c0_617 = arith.constant 0 : index
    %c0_618 = arith.constant 0 : index
    %523 = vector.load %arg8[%c0_615, %c2_616, %c0_617, %c0_618] : memref<1x4x16x16xf32, #tpu.memory_space<vmem>>, vector<1x1x16x16xf32>
    %524 = vector.shape_cast %523 : vector<1x1x16x16xf32> to vector<16x16xf32>
    %525 = vector.shape_cast %522 : vector<16x16xf32> to vector<1x1x16x16xf32>
    tpu.vector_store %arg8[%c0_615, %c2_616, %c0_617, %c0_618], %525 {strides = array<i32>} : memref<1x4x16x16xf32, #tpu.memory_space<vmem>>, vector<1x1x16x16xf32>,
    %c0_619 = arith.constant 0 : index
    %c3_620 = arith.constant 3 : index
    %c0_621 = arith.constant 0 : index
    %c0_622 = arith.constant 0 : index
    %526 = vector.load %arg5[%c0_619, %c3_620, %c0_621, %c0_622] : memref<4x4x1x1xf32, #tpu.memory_space<vmem>>, vector<4x1x1x1xf32>
    %527 = vector.shape_cast %526 : vector<4x1x1x1xf32> to vector<4x1x1xf32>
    %528 = vector.broadcast %527 : vector<4x1x1xf32> to vector<4x16x16xf32>
    %529 = arith.mulf %345, %528 : vector<4x16x16xf32>
    %c0_623 = arith.constant 0 : index
    %c3_624 = arith.constant 3 : index
    %c0_625 = arith.constant 0 : index
    %c0_626 = arith.constant 0 : index
    %530 = vector.load %arg6[%c0_623, %c3_624, %c0_625, %c0_626] : memref<4x4x1x1xf32, #tpu.memory_space<vmem>>, vector<4x1x1x1xf32>
    %531 = vector.shape_cast %530 : vector<4x1x1x1xf32> to vector<4x1x1xf32>
    %532 = vector.broadcast %531 : vector<4x1x1xf32> to vector<4x16x16xf32>
    %533 = arith.mulf %423, %532 : vector<4x16x16xf32>
    %534 = arith.addf %529, %533 : vector<4x16x16xf32>
    %c0_627 = arith.constant 0 : index
    %c3_628 = arith.constant 3 : index
    %c0_629 = arith.constant 0 : index
    %c0_630 = arith.constant 0 : index
    %535 = vector.load %arg7[%c0_627, %c3_628, %c0_629, %c0_630] : memref<4x4x1x1xf32, #tpu.memory_space<vmem>>, vector<4x1x1x1xf32>
    %536 = vector.shape_cast %535 : vector<4x1x1x1xf32> to vector<4x1x1xf32>
    %537 = vector.broadcast %536 : vector<4x1x1xf32> to vector<4x16x16xf32>
    %538 = arith.mulf %471, %537 : vector<4x16x16xf32>
    %539 = arith.addf %534, %538 : vector<4x16x16xf32>
    %cst_631 = arith.constant dense<0.000000e+00> : vector<16x16xf32>
    %540 = vector.multi_reduction <add>, %539, %cst_631 [0] : vector<4x16x16xf32> to vector<16x16xf32>
    %c0_632 = arith.constant 0 : index
    %c3_633 = arith.constant 3 : index
    %c0_634 = arith.constant 0 : index
    %c0_635 = arith.constant 0 : index
    %541 = vector.load %arg8[%c0_632, %c3_633, %c0_634, %c0_635] : memref<1x4x16x16xf32, #tpu.memory_space<vmem>>, vector<1x1x16x16xf32>
    %542 = vector.shape_cast %541 : vector<1x1x16x16xf32> to vector<16x16xf32>
    %543 = vector.shape_cast %540 : vector<16x16xf32> to vector<1x1x16x16xf32>
    tpu.vector_store %arg8[%c0_632, %c3_633, %c0_634, %c0_635], %543 {strides = array<i32>} : memref<1x4x16x16xf32, #tpu.memory_space<vmem>>, vector<1x1x16x16xf32>,
    return
  }
  func.func @transform_0(%arg0: i32) -> (i32, i32, i32, i32) {
    %c0_i32 = arith.constant 0 : i32
    %c0_i32_0 = arith.constant 0 : i32
    %c0_i32_1 = arith.constant 0 : i32
    %c0_i32_2 = arith.constant 0 : i32
    return %arg0, %c0_i32, %c0_i32_0, %c0_i32_1 : i32, i32, i32, i32
  }
  func.func @transform_1(%arg0: i32) -> (i32, i32, i32, i32, i32) {
    %c0_i32 = arith.constant 0 : i32
    %c0_i32_0 = arith.constant 0 : i32
    %c0_i32_1 = arith.constant 0 : i32
    %c0_i32_2 = arith.constant 0 : i32
    %c0_i32_3 = arith.constant 0 : i32
    %c0_i32_4 = arith.constant 0 : i32
    return %c0_i32, %c0_i32_0, %c0_i32_1, %c0_i32_2, %c0_i32_3 : i32, i32, i32, i32, i32
  }
  func.func @transform_2(%arg0: i32) -> (i32, i32, i32, i32, i32) {
    %c0_i32 = arith.constant 0 : i32
    %c0_i32_0 = arith.constant 0 : i32
    %c0_i32_1 = arith.constant 0 : i32
    %c0_i32_2 = arith.constant 0 : i32
    %c0_i32_3 = arith.constant 0 : i32
    %c0_i32_4 = arith.constant 0 : i32
    return %c0_i32, %c0_i32_0, %c0_i32_1, %c0_i32_2, %c0_i32_3 : i32, i32, i32, i32, i32
  }
  func.func @transform_3(%arg0: i32) -> (i32, i32, i32, i32, i32) {
    %c0_i32 = arith.constant 0 : i32
    %c0_i32_0 = arith.constant 0 : i32
    %c0_i32_1 = arith.constant 0 : i32
    %c0_i32_2 = arith.constant 0 : i32
    %c0_i32_3 = arith.constant 0 : i32
    %c0_i32_4 = arith.constant 0 : i32
    return %c0_i32, %c0_i32_0, %c0_i32_1, %c0_i32_2, %c0_i32_3 : i32, i32, i32, i32, i32
  }
  func.func @transform_4(%arg0: i32) -> (i32, i32, i32, i32) {
    %c0_i32 = arith.constant 0 : i32
    %c0_i32_0 = arith.constant 0 : i32
    %c0_i32_1 = arith.constant 0 : i32
    %c0_i32_2 = arith.constant 0 : i32
    %c0_i32_3 = arith.constant 0 : i32
    return %c0_i32, %c0_i32_0, %c0_i32_1, %c0_i32_2 : i32, i32, i32, i32
  }
  func.func @transform_5(%arg0: i32) -> (i32, i32, i32, i32) {
    %c0_i32 = arith.constant 0 : i32
    %c0_i32_0 = arith.constant 0 : i32
    %c0_i32_1 = arith.constant 0 : i32
    %c0_i32_2 = arith.constant 0 : i32
    %c0_i32_3 = arith.constant 0 : i32
    return %c0_i32, %c0_i32_0, %c0_i32_1, %c0_i32_2 : i32, i32, i32, i32
  }
  func.func @transform_6(%arg0: i32) -> (i32, i32, i32, i32) {
    %c0_i32 = arith.constant 0 : i32
    %c0_i32_0 = arith.constant 0 : i32
    %c0_i32_1 = arith.constant 0 : i32
    %c0_i32_2 = arith.constant 0 : i32
    %c0_i32_3 = arith.constant 0 : i32
    return %c0_i32, %c0_i32_0, %c0_i32_1, %c0_i32_2 : i32, i32, i32, i32
  }
  func.func @transform_7(%arg0: i32) -> (i32, i32, i32, i32) {
    %c0_i32 = arith.constant 0 : i32
    %c0_i32_0 = arith.constant 0 : i32
    %c0_i32_1 = arith.constant 0 : i32
    %c0_i32_2 = arith.constant 0 : i32
    return %arg0, %c0_i32, %c0_i32_0, %c0_i32_1 : i32, i32, i32, i32
  }
}

</mosaic_0001>

<llo_original>
// kernel: tpu_custom_call.1
$region0: #{tpu_custom_call.1}
  #allocation0 [shape = 'u32[]', space=smem, size = 0x4, offset = 0x4, fixed_abs, tag = 'smem constant byte address 0x4 - core index']
  #allocation1 [shape = 'u32[144,128]{1,0:T(1,128)}', space=vmem, size = 0x12000, scoped, tag = 'internal scratch']
  #allocation2 [shape = 'f32[4,22,22]{2,1,0:T(8,128)}', space=vmem, size = 0xc000, scoped, tag = 'scratch operand']
  %s0 = inlined_call_operand.vmem [shape: f32[2,4,16,16], index: 0, kind: input, shape index: {}]
  %s1 = inlined_call_operand.vmem [shape: f32[3,3,4,1,1], index: 1, kind: input, shape index: {}]
  %s2 = inlined_call_operand.vmem [shape: f32[5,5,4,1,1], index: 2, kind: input, shape index: {}]
  %s3 = inlined_call_operand.vmem [shape: f32[7,7,4,1,1], index: 3, kind: input, shape index: {}]
  %s4 = inlined_call_operand.vmem [shape: f32[4,4,1,1], index: 4, kind: input, shape index: {}]
  %s5 = inlined_call_operand.vmem [shape: f32[4,4,1,1], index: 5, kind: input, shape index: {}]
  %s6 = inlined_call_operand.vmem [shape: f32[4,4,1,1], index: 6, kind: input, shape index: {}]
  %s7 = inlined_call_operand.hbm [shape: f32[2,4,16,16], index: 7, kind: output, shape index: {}]
  %s8 = sld [smem:[#allocation0]]
  $region61: #{tpu_custom_call.1} parent=0
    _
  %s10 = ssub.s32 1, %s8
  %s11 = scalar_select 0, %s10, %s8
  $region1: #{tpu_custom_call.1} parent=0
    #allocation3 [shape = 'u8[65536]{0}', space=vmem, size = 0x10000, scoped, tag = 'output window, operand 0']
    #allocation4 [shape = 's32[2]{0}', space=sflag, size = 0x8, scoped, tag = 'scoped memory for tpu_custom_call.1']
    %12 = vsyncpa [#allocation4], 0
    %s13 = scalar_lea.sflag [#allocation4], 1
    %14 = vsyncpa %s13, 0
    loop: start=0, step=1, limit=4
    $region2: #{tpu_custom_call.1} parent=1 // loop_pre_header
      _
    $region3: #{tpu_custom_call.1} parent=1 // loop_header
      %s16 = sphi 0, %s20
      %p17 = scmp.ge.s32.totalorder %s16, 4
      %s26 = sphi 0, %s28
      %s29 = sphi 0, %s26
      %s30 = sphi 0, %s29
      %s46 = sphi 0, %s30
      %s50 = sphi 0, %s50
      %s52 = sphi 0, %s50
      %s53 = sphi 0, %s52
      %s67 = sphi 0, %s53
      %s71 = sphi 0, %s71
      %s73 = sphi 0, %s71
      %s74 = sphi 0, %s73
      %s88 = sphi 0, %s74
      %s92 = sphi 0, %s92
      %s94 = sphi 0, %s92
      %s95 = sphi 0, %s94
      %s109 = sphi 0, %s95
      %s113 = sphi 0, %s113
      %s115 = sphi 0, %s113
      %s116 = sphi 0, %s115
      %s130 = sphi 0, %s116
      %s134 = sphi 0, %s134
      %s136 = sphi 0, %s134
      %s137 = sphi 0, %s136
      %s151 = sphi 0, %s137
      %s155 = sphi 0, %s155
      %s157 = sphi 0, %s155
      %s158 = sphi 0, %s157
      %s172 = sphi 0, %s158
      %s178 = sphi 0, %s180
      %s181 = sphi 0, %s178
      %s182 = sphi 0, %s181
      %s198 = sphi 0, %s182
    $region4: #{tpu_custom_call.1} parent=1 // loop_header_branch
      %19 = sbr.rel (%p17) target = $region8
    $region5: #{tpu_custom_call.1} parent=1 // loop_body
      %s21 = ssub.s32 %s16, 1
      %s22 = ssub.s32 %s16, 2
      %s23 = sadd.s32 %s16, 1
      %s24 = ssub.s32 %s16, %s23
      %p25 = scmp.eq.s32.totalorder %s24, 0
      %s27 = sadd.s32 %s26, 1
      %s28 = scalar_select %p25, %s26, %s27
      %p31 = pneg %p25
      %p32 = scmp.eq.s32.totalorder %s16, 1
      %p33 = por %p31, %p32
      %p34 = scmp.ne.s32.totalorder %s26, %s29
      %p35 = scmp.eq.s32.totalorder %s16, 0
      %p36 = por %p34, %p35
      %p37 = scmp.ne.s32.totalorder %s26, %s29
      %p38 = scmp.eq.s32.totalorder %s21, 1
      %p39 = por %p37, %p38
      %p40 = scmp.ne.s32.totalorder %s29, %s30
      %p41 = scmp.eq.s32.totalorder %s21, 0
      %p42 = por %p40, %p41
      %p43 = scmp.ne.s32.totalorder %s29, %s30
      %p44 = scmp.eq.s32.totalorder %s22, 1
      %p45 = por %p43, %p44
      %p47 = scmp.ne.s32.totalorder %s30, %s46
      %p48 = scmp.eq.s32.totalorder %s22, 0
      %p49 = por %p47, %p48
      %s51 = sadd.s32 %s50, 1
      %p54 = scmp.eq.s32.totalorder %s16, 1
      %p55 = scmp.ne.s32.totalorder %s50, %s52
      %p56 = scmp.eq.s32.totalorder %s16, 0
      %p57 = por %p55, %p56
      %p58 = scmp.ne.s32.totalorder %s50, %s52
      %p59 = scmp.eq.s32.totalorder %s21, 1
      %p60 = por %p58, %p59
      %p61 = scmp.ne.s32.totalorder %s52, %s53
      %p62 = scmp.eq.s32.totalorder %s21, 0
      %p63 = por %p61, %p62
      %p64 = scmp.ne.s32.totalorder %s52, %s53
      %p65 = scmp.eq.s32.totalorder %s22, 1
      %p66 = por %p64, %p65
      %p68 = scmp.ne.s32.totalorder %s53, %s67
      %p69 = scmp.eq.s32.totalorder %s22, 0
      %p70 = por %p68, %p69
      %s72 = sadd.s32 %s71, 1
      %p75 = scmp.eq.s32.totalorder %s16, 1
      %p76 = scmp.ne.s32.totalorder %s71, %s73
      %p77 = scmp.eq.s32.totalorder %s16, 0
      %p78 = por %p76, %p77
      %p79 = scmp.ne.s32.totalorder %s71, %s73
      %p80 = scmp.eq.s32.totalorder %s21, 1
      %p81 = por %p79, %p80
      %p82 = scmp.ne.s32.totalorder %s73, %s74
      %p83 = scmp.eq.s32.totalorder %s21, 0
      %p84 = por %p82, %p83
      %p85 = scmp.ne.s32.totalorder %s73, %s74
      %p86 = scmp.eq.s32.totalorder %s22, 1
      %p87 = por %p85, %p86
      %p89 = scmp.ne.s32.totalorder %s74, %s88
      %p90 = scmp.eq.s32.totalorder %s22, 0
      %p91 = por %p89, %p90
      %s93 = sadd.s32 %s92, 1
      %p96 = scmp.eq.s32.totalorder %s16, 1
      %p97 = scmp.ne.s32.totalorder %s92, %s94
      %p98 = scmp.eq.s32.totalorder %s16, 0
      %p99 = por %p97, %p98
      %p100 = scmp.ne.s32.totalorder %s92, %s94
      %p101 = scmp.eq.s32.totalorder %s21, 1
      %p102 = por %p100, %p101
      %p103 = scmp.ne.s32.totalorder %s94, %s95
      %p104 = scmp.eq.s32.totalorder %s21, 0
      %p105 = por %p103, %p104
      %p106 = scmp.ne.s32.totalorder %s94, %s95
      %p107 = scmp.eq.s32.totalorder %s22, 1
      %p108 = por %p106, %p107
      %p110 = scmp.ne.s32.totalorder %s95, %s109
      %p111 = scmp.eq.s32.totalorder %s22, 0
      %p112 = por %p110, %p111
      %s114 = sadd.s32 %s113, 1
      %p117 = scmp.eq.s32.totalorder %s16, 1
      %p118 = scmp.ne.s32.totalorder %s113, %s115
      %p119 = scmp.eq.s32.totalorder %s16, 0
      %p120 = por %p118, %p119
      %p121 = scmp.ne.s32.totalorder %s113, %s115
      %p122 = scmp.eq.s32.totalorder %s21, 1
      %p123 = por %p121, %p122
      %p124 = scmp.ne.s32.totalorder %s115, %s116
      %p125 = scmp.eq.s32.totalorder %s21, 0
      %p126 = por %p124, %p125
      %p127 = scmp.ne.s32.totalorder %s115, %s116
      %p128 = scmp.eq.s32.totalorder %s22, 1
      %p129 = por %p127, %p128
      %p131 = scmp.ne.s32.totalorder %s116, %s130
      %p132 = scmp.eq.s32.totalorder %s22, 0
      %p133 = por %p131, %p132
      %s135 = sadd.s32 %s134, 1
      %p138 = scmp.eq.s32.totalorder %s16, 1
      %p139 = scmp.ne.s32.totalorder %s134, %s136
      %p140 = scmp.eq.s32.totalorder %s16, 0
      %p141 = por %p139, %p140
      %p142 = scmp.ne.s32.totalorder %s134, %s136
      %p143 = scmp.eq.s32.totalorder %s21, 1
      %p144 = por %p142, %p143
      %p145 = scmp.ne.s32.totalorder %s136, %s137
      %p146 = scmp.eq.s32.totalorder %s21, 0
      %p147 = por %p145, %p146
      %p148 = scmp.ne.s32.totalorder %s136, %s137
      %p149 = scmp.eq.s32.totalorder %s22, 1
      %p150 = por %p148, %p149
      %p152 = scmp.ne.s32.totalorder %s137, %s151
      %p153 = scmp.eq.s32.totalorder %s22, 0
      %p154 = por %p152, %p153
      %s156 = sadd.s32 %s155, 1
      %p159 = scmp.eq.s32.totalorder %s16, 1
      %p160 = scmp.ne.s32.totalorder %s155, %s157
      %p161 = scmp.eq.s32.totalorder %s16, 0
      %p162 = por %p160, %p161
      %p163 = scmp.ne.s32.totalorder %s155, %s157
      %p164 = scmp.eq.s32.totalorder %s21, 1
      %p165 = por %p163, %p164
      %p166 = scmp.ne.s32.totalorder %s157, %s158
      %p167 = scmp.eq.s32.totalorder %s21, 0
      %p168 = por %p166, %p167
      %p169 = scmp.ne.s32.totalorder %s157, %s158
      %p170 = scmp.eq.s32.totalorder %s22, 1
      %p171 = por %p169, %p170
      %p173 = scmp.ne.s32.totalorder %s158, %s172
      %p174 = scmp.eq.s32.totalorder %s22, 0
      %p175 = por %p173, %p174
      %s176 = ssub.s32 %s16, %s23
      %p177 = scmp.eq.s32.totalorder %s176, 0
      %s179 = sadd.s32 %s178, 1
      %s180 = scalar_select %p177, %s178, %s179
      %p183 = pneg %p177
      %p184 = scmp.eq.s32.totalorder %s16, 1
      %p185 = por %p183, %p184
      %p186 = scmp.ne.s32.totalorder %s178, %s181
      %p187 = scmp.eq.s32.totalorder %s16, 0
      %p188 = por %p186, %p187
      %p189 = scmp.ne.s32.totalorder %s178, %s181
      %p190 = scmp.eq.s32.totalorder %s21, 1
      %p191 = por %p189, %p190
      %p192 = scmp.ne.s32.totalorder %s181, %s182
      %p193 = scmp.eq.s32.totalorder %s21, 0
      %p194 = por %p192, %p193
      %p195 = scmp.ne.s32.totalorder %s181, %s182
      %p196 = scmp.eq.s32.totalorder %s22, 1
      %p197 = por %p195, %p196
      %p199 = scmp.ne.s32.totalorder %s182, %s198
      %p200 = scmp.eq.s32.totalorder %s22, 0
      %p201 = por %p199, %p200
      %p202 = scmp.le.s32.totalorder 1, %s16
      %p203 = scmp.lt.s32.totalorder %s16, 3
      %p204 = pnand %p202, %p203
      %p205 = pneg %p204
      // Predicated region
      $region9: #{tpu_custom_call.1} parent=5 // pred_check
        _
      $region10: #{tpu_custom_call.1} parent=5 // pred_check_branch
        %207 = sbr.rel (%p204) target = $region12
      $region11: #{tpu_custom_call.1} parent=5 // pred_region
        %s208 = ssub.s32 %s16, 1
        // Predicated region
        $region13: #{tpu_custom_call.1} parent=11 // pred_check
          %p209 = pneg %p63
        $region14: #{tpu_custom_call.1} parent=11 // pred_check_branch
          %211 = sbr.rel (%p209) target = $region16
        $region15: #{tpu_custom_call.1} parent=11 // pred_region
          _
        $region16: #{tpu_custom_call.1} parent=11 // pred_fallthru
          _
        // Predicated region
        $region17: #{tpu_custom_call.1} parent=11 // pred_check
          %p212 = pneg %p84
        $region18: #{tpu_custom_call.1} parent=11 // pred_check_branch
          %214 = sbr.rel (%p212) target = $region20
        $region19: #{tpu_custom_call.1} parent=11 // pred_region
          _
        $region20: #{tpu_custom_call.1} parent=11 // pred_fallthru
          _
        // Predicated region
        $region21: #{tpu_custom_call.1} parent=11 // pred_check
          %p215 = pneg %p105
        $region22: #{tpu_custom_call.1} parent=11 // pred_check_branch
          %217 = sbr.rel (%p215) target = $region24
        $region23: #{tpu_custom_call.1} parent=11 // pred_region
          _
        $region24: #{tpu_custom_call.1} parent=11 // pred_fallthru
          _
        // Predicated region
        $region25: #{tpu_custom_call.1} parent=11 // pred_check
          %p218 = pneg %p126
        $region26: #{tpu_custom_call.1} parent=11 // pred_check_branch
          %220 = sbr.rel (%p218) target = $region28
        $region27: #{tpu_custom_call.1} parent=11 // pred_region
          _
        $region28: #{tpu_custom_call.1} parent=11 // pred_fallthru
          _
        // Predicated region
        $region29: #{tpu_custom_call.1} parent=11 // pred_check
          %p221 = pneg %p147
        $region30: #{tpu_custom_call.1} parent=11 // pred_check_branch
          %223 = sbr.rel (%p221) target = $region32
        $region31: #{tpu_custom_call.1} parent=11 // pred_region
          _
        $region32: #{tpu_custom_call.1} parent=11 // pred_fallthru
          _
        // Predicated region
        $region33: #{tpu_custom_call.1} parent=11 // pred_check
          %p224 = pneg %p168
        $region34: #{tpu_custom_call.1} parent=11 // pred_check_branch
          %226 = sbr.rel (%p224) target = $region36
        $region35: #{tpu_custom_call.1} parent=11 // pred_region
          _
        $region36: #{tpu_custom_call.1} parent=11 // pred_fallthru
          _
      $region12: #{tpu_custom_call.1} parent=5 // pred_fallthru
        _
      %p227 = scmp.lt.s32.totalorder %s16, 2
      // Predicated region
      $region37: #{tpu_custom_call.1} parent=5 // pred_check
        %p228 = pneg %p227
      $region38: #{tpu_custom_call.1} parent=5 // pred_check_branch
        %230 = sbr.rel (%p228) target = $region40
      $region39: #{tpu_custom_call.1} parent=5 // pred_region
        // Predicated region
        $region41: #{tpu_custom_call.1} parent=39 // pred_check
          %p231 = pneg %p36
        $region42: #{tpu_custom_call.1} parent=39 // pred_check_branch
          %233 = sbr.rel (%p231) target = $region44
        $region43: #{tpu_custom_call.1} parent=39 // pred_region
          %p234 = scmp.lt.s32.totalorder %s16, 1
          %s235 = scalar_select %p234, %s16, 1
          %s236 = smul.addr %s235, 8
          %s237 = smul.addr %s236, 8
          %s238 = scalar_lea.vmem %s0, %s237
        $region44: #{tpu_custom_call.1} parent=39 // pred_fallthru
          _
      $region40: #{tpu_custom_call.1} parent=5 // pred_fallthru
        _
      %p239 = scmp.le.s32.totalorder 1, %s16
      %p240 = scmp.lt.s32.totalorder %s16, 3
      %p241 = pnand %p239, %p240
      %p242 = pneg %p241
      // Predicated region
      $region45: #{tpu_custom_call.1} parent=5 // pred_check
        _
      $region46: #{tpu_custom_call.1} parent=5 // pred_check_branch
        %244 = sbr.rel (%p241) target = $region48
      $region47: #{tpu_custom_call.1} parent=5 // pred_region
        %s245 = ssub.s32 %s16, 1
        %p246 = scmp.lt.s32.totalorder %s21, 1
        %s247 = scalar_select %p246, %s21, 1
        %s248 = smul.addr %s247, 8
        %s249 = smul.addr %s248, 8
        %s250 = scalar_lea.vmem %s0, %s249
        %p251 = pneg %p42
        %p252 = pneg %p39
        %p253 = pneg %p63
        %p254 = pneg %p60
        %p255 = pneg %p84
        %p256 = pneg %p81
        %p257 = pneg %p105
        %p258 = pneg %p102
        %p259 = pneg %p126
        %p260 = pneg %p123
        %p261 = pneg %p147
        %p262 = pneg %p144
        %p263 = pneg %p168
        %p264 = pneg %p165
        %p265 = pneg %p194
        %p266 = pneg %p191
        %s267 = sand.u32 %s181, 1
        %s268 = scalar_lea.sflag [#allocation4], %s267
        %s269 = sand.u32 %s181, 1
        %s270 = smul.addr %s269, 64
        %s271 = scalar_lea.vmem [#allocation3], %s270
        %p272 = scmp.lt.s32.totalorder %s21, 1
        %s273 = scalar_select %p272, %s21, 1
        %s274 = smul.addr %s273, 8
        %s275 = smul.addr %s274, 8
        %s276 = scalar_lea.vmem %s0, %s275
        %vm277 = vcmask 179200
        %278 = vst.msk [vmem:[#allocation2] sm:$0xff] %vm277, 0.0
        %279 = vst.msk [vmem:[#allocation2 + $0x8] sm:$0xff] %vm277, 0.0
        %vm280 = vcmask 177152
        %281 = vst.msk [vmem:[#allocation2 + $0x10] sm:$0x3f] %vm280, 0.0
        %282 = vst.msk [vmem:[#allocation2 + $0x18] sm:$0xff] %vm277, 0.0
        %283 = vst.msk [vmem:[#allocation2 + $0x20] sm:$0xff] %vm277, 0.0
        %284 = vst.msk [vmem:[#allocation2 + $0x28] sm:$0x3f] %vm280, 0.0
        %285 = vst.msk [vmem:[#allocation2 + $0x30] sm:$0xff] %vm277, 0.0
        %286 = vst.msk [vmem:[#allocation2 + $0x38] sm:$0xff] %vm277, 0.0
        %287 = vst.msk [vmem:[#allocation2 + $0x40] sm:$0x3f] %vm280, 0.0
        %288 = vst.msk [vmem:[#allocation2 + $0x48] sm:$0xff] %vm277, 0.0
        %289 = vst.msk [vmem:[#allocation2 + $0x50] sm:$0xff] %vm277, 0.0
        %290 = vst.msk [vmem:[#allocation2 + $0x58] sm:$0x3f] %vm280, 0.0
        %v291 = vld [vmem:[%s276] sm:$0xff]
        %v292 = vld [vmem:[%s276 + $0x8] sm:$0xff]
        %v293 = vld [vmem:[%s276 + $0x10] sm:$0xff]
        %v294 = vld [vmem:[%s276 + $0x18] sm:$0xff]
        %v295 = vld [vmem:[%s276 + $0x20] sm:$0xff]
        %v296 = vld [vmem:[%s276 + $0x28] sm:$0xff]
        %v297 = vld [vmem:[%s276 + $0x30] sm:$0xff]
        %v298 = vld [vmem:[%s276 + $0x38] sm:$0xff]
        %307 = vrot.lane.b32.xlu0 %v291, 3
        %v308 = vpop.permute.xlu0 %307
        %309 = vrot.lane.b32.xlu0 %v292, 3
        %v310 = vpop.permute.xlu0 %309
        %311 = vrot.lane.b32.xlu0 %v293, 3
        %v312 = vpop.permute.xlu0 %311
        %313 = vrot.lane.b32.xlu0 %v294, 3
        %v314 = vpop.permute.xlu0 %313
        %315 = vrot.lane.b32.xlu0 %v295, 3
        %v316 = vpop.permute.xlu0 %315
        %317 = vrot.lane.b32.xlu0 %v296, 3
        %v318 = vpop.permute.xlu0 %317
        %319 = vrot.lane.b32.xlu0 %v297, 3
        %v320 = vpop.permute.xlu0 %319
        %321 = vrot.lane.b32.xlu0 %v298, 3
        %v322 = vpop.permute.xlu0 %321
        %vm331 = vcmask 154648
        %332 = vst.msk [vmem:[#allocation2 + $0x3] sm:$0xff] %vm331, %v308
        %333 = vst.msk [vmem:[#allocation2 + $0xb] sm:$0xff] %vm331, %v310
        %334 = vst.msk [vmem:[#allocation2 + $0x1b] sm:$0xff] %vm331, %v312
        %335 = vst.msk [vmem:[#allocation2 + $0x23] sm:$0xff] %vm331, %v314
        %336 = vst.msk [vmem:[#allocation2 + $0x33] sm:$0xff] %vm331, %v316
        %337 = vst.msk [vmem:[#allocation2 + $0x3b] sm:$0xff] %vm331, %v318
        %338 = vst.msk [vmem:[#allocation2 + $0x4b] sm:$0xff] %vm331, %v320
        %339 = vst.msk [vmem:[#allocation2 + $0x53] sm:$0xff] %vm331, %v322
        %v340 = vld [vmem:[#allocation2] sm:$0xff]
        %v341 = vld [vmem:[#allocation2 + $0x8] sm:$0xff]
        %v342 = vld [vmem:[#allocation2 + $0x18] sm:$0xff]
        %v343 = vld [vmem:[#allocation2 + $0x20] sm:$0xff]
        %v344 = vld [vmem:[#allocation2 + $0x30] sm:$0xff]
        %v345 = vld [vmem:[#allocation2 + $0x38] sm:$0xff]
        %v346 = vld [vmem:[#allocation2 + $0x48] sm:$0xff]
        %v347 = vld [vmem:[#allocation2 + $0x50] sm:$0xff]
        %v348 = vld [vmem:[%s3] sm:$0x1]
        %v349 = vld [vmem:[%s3 + $0x1] sm:$0x1]
        %v350 = vld [vmem:[%s3 + $0x2] sm:$0x1]
        %v351 = vld [vmem:[%s3 + $0x3] sm:$0x1]
        %v356 = vlaneseq
        %v357 = vshrl.u32 %v356, 7
        %v358 = vsub.s32 0, %v357
        %v359 = vrot.slane %v348, %v358
        %v360 = vlaneseq
        %v361 = vshrl.u32 %v360, 7
        %v362 = vsub.s32 0, %v361
        %v363 = vrot.slane %v349, %v362
        %v364 = vlaneseq
        %v365 = vshrl.u32 %v364, 7
        %v366 = vsub.s32 0, %v365
        %v367 = vrot.slane %v350, %v366
        %v368 = vlaneseq
        %v369 = vshrl.u32 %v368, 7
        %v370 = vsub.s32 0, %v369
        %v371 = vrot.slane %v351, %v370
        %372 = vset.pattern.permute.xlu0 0
        %373 = vperm.xlu0 %372, %v359
        %v374 = vpop.permute.xlu0 %373
        %376 = vset.pattern.permute.xlu0 0
        %377 = vperm.xlu0 %376, %v363
        %v378 = vpop.permute.xlu0 %377
        %380 = vset.pattern.permute.xlu0 0
        %381 = vperm.xlu0 %380, %v367
        %v382 = vpop.permute.xlu0 %381
        %384 = vset.pattern.permute.xlu0 0
        %385 = vperm.xlu0 %384, %v371
        %v386 = vpop.permute.xlu0 %385
        %v388 = vmul.f32 %v340, %v374
        %v389 = vmul.f32 %v341, %v374
        %v390 = vmul.f32 %v342, %v378
        %v391 = vmul.f32 %v343, %v378
        %v392 = vmul.f32 %v344, %v382
        %v393 = vmul.f32 %v345, %v382
        %v394 = vmul.f32 %v346, %v386
        %v395 = vmul.f32 %v347, %v386
        %v396 = vadd.f32 %v388, 0.0
        %v397 = vadd.f32 %v389, 0.0
        %v398 = vadd.f32 %v390, 0.0
        %v399 = vadd.f32 %v391, 0.0
        %v400 = vadd.f32 %v392, 0.0
        %v401 = vadd.f32 %v393, 0.0
        %v402 = vadd.f32 %v394, 0.0
        %v403 = vadd.f32 %v395, 0.0
        %s404 = scalar_lea.vmem %s3, 4
        %v405 = vld [vmem:[%s404] sm:$0x1]
        %v406 = vld [vmem:[%s404 + $0x1] sm:$0x1]
        %v407 = vld [vmem:[%s404 + $0x2] sm:$0x1]
        %v408 = vld [vmem:[%s404 + $0x3] sm:$0x1]
        %v413 = vlaneseq
        %v414 = vshrl.u32 %v413, 7
        %v415 = vsub.s32 0, %v414
        %v416 = vrot.slane %v405, %v415
        %v417 = vlaneseq
        %v418 = vshrl.u32 %v417, 7
        %v419 = vsub.s32 0, %v418
        %v420 = vrot.slane %v406, %v419
        %v421 = vlaneseq
        %v422 = vshrl.u32 %v421, 7
        %v423 = vsub.s32 0, %v422
        %v424 = vrot.slane %v407, %v423
        %v425 = vlaneseq
        %v426 = vshrl.u32 %v425, 7
        %v427 = vsub.s32 0, %v426
        %v428 = vrot.slane %v408, %v427
        %429 = vset.pattern.permute.xlu0 0
        %430 = vperm.xlu0 %429, %v416
        %v431 = vpop.permute.xlu0 %430
        %433 = vset.pattern.permute.xlu0 0
        %434 = vperm.xlu0 %433, %v420
        %v435 = vpop.permute.xlu0 %434
        %437 = vset.pattern.permute.xlu0 0
        %438 = vperm.xlu0 %437, %v424
        %v439 = vpop.permute.xlu0 %438
        %441 = vset.pattern.permute.xlu0 0
        %442 = vperm.xlu0 %441, %v428
        %v443 = vpop.permute.xlu0 %442
        %v445 = vmul.f32 %v340, %v431
        %v446 = vmul.f32 %v341, %v431
        %v447 = vmul.f32 %v342, %v435
        %v448 = vmul.f32 %v343, %v435
        %v449 = vmul.f32 %v344, %v439
        %v450 = vmul.f32 %v345, %v439
        %v451 = vmul.f32 %v346, %v443
        %v452 = vmul.f32 %v347, %v443
        %461 = vrot.lane.b32.xlu0 %v445, 127
        %v462 = vpop.permute.xlu0 %461
        %463 = vrot.lane.b32.xlu0 %v446, 127
        %v464 = vpop.permute.xlu0 %463
        %465 = vrot.lane.b32.xlu0 %v447, 127
        %v466 = vpop.permute.xlu0 %465
        %467 = vrot.lane.b32.xlu0 %v448, 127
        %v468 = vpop.permute.xlu0 %467
        %469 = vrot.lane.b32.xlu0 %v449, 127
        %v470 = vpop.permute.xlu0 %469
        %471 = vrot.lane.b32.xlu0 %v450, 127
        %v472 = vpop.permute.xlu0 %471
        %473 = vrot.lane.b32.xlu0 %v451, 127
        %v474 = vpop.permute.xlu0 %473
        %475 = vrot.lane.b32.xlu0 %v452, 127
        %v476 = vpop.permute.xlu0 %475
        %v485 = vadd.f32 %v396, %v462
        %v486 = vadd.f32 %v397, %v464
        %v487 = vadd.f32 %v398, %v466
        %v488 = vadd.f32 %v399, %v468
        %v489 = vadd.f32 %v400, %v470
        %v490 = vadd.f32 %v401, %v472
        %v491 = vadd.f32 %v402, %v474
        %v492 = vadd.f32 %v403, %v476
        %s493 = scalar_lea.vmem %s3, 8
        %v494 = vld [vmem:[%s493] sm:$0x1]
        %v495 = vld [vmem:[%s493 + $0x1] sm:$0x1]
        %v496 = vld [vmem:[%s493 + $0x2] sm:$0x1]
        %v497 = vld [vmem:[%s493 + $0x3] sm:$0x1]
        %v502 = vlaneseq
        %v503 = vshrl.u32 %v502, 7
        %v504 = vsub.s32 0, %v503
        %v505 = vrot.slane %v494, %v504
        %v506 = vlaneseq
        %v507 = vshrl.u32 %v506, 7
        %v508 = vsub.s32 0, %v507
        %v509 = vrot.slane %v495, %v508
        %v510 = vlaneseq
        %v511 = vshrl.u32 %v510, 7
        %v512 = vsub.s32 0, %v511
        %v513 = vrot.slane %v496, %v512
        %v514 = vlaneseq
        %v515 = vshrl.u32 %v514, 7
        %v516 = vsub.s32 0, %v515
        %v517 = vrot.slane %v497, %v516
        %518 = vset.pattern.permute.xlu0 0
        %519 = vperm.xlu0 %518, %v505
        %v520 = vpop.permute.xlu0 %519
        %522 = vset.pattern.permute.xlu0 0
        %523 = vperm.xlu0 %522, %v509
        %v524 = vpop.permute.xlu0 %523
        %526 = vset.pattern.permute.xlu0 0
        %527 = vperm.xlu0 %526, %v513
        %v528 = vpop.permute.xlu0 %527
        %530 = vset.pattern.permute.xlu0 0
        %531 = vperm.xlu0 %530, %v517
        %v532 = vpop.permute.xlu0 %531
        %v534 = vmul.f32 %v340, %v520
        %v535 = vmul.f32 %v341, %v520
        %v536 = vmul.f32 %v342, %v524
        %v537 = vmul.f32 %v343, %v524
        %v538 = vmul.f32 %v344, %v528
        %v539 = vmul.f32 %v345, %v528
        %v540 = vmul.f32 %v346, %v532
        %v541 = vmul.f32 %v347, %v532
        %550 = vrot.lane.b32.xlu0 %v534, 126
        %v551 = vpop.permute.xlu0 %550
        %552 = vrot.lane.b32.xlu0 %v535, 126
        %v553 = vpop.permute.xlu0 %552
        %554 = vrot.lane.b32.xlu0 %v536, 126
        %v555 = vpop.permute.xlu0 %554
        %556 = vrot.lane.b32.xlu0 %v537, 126
        %v557 = vpop.permute.xlu0 %556
        %558 = vrot.lane.b32.xlu0 %v538, 126
        %v559 = vpop.permute.xlu0 %558
        %560 = vrot.lane.b32.xlu0 %v539, 126
        %v561 = vpop.permute.xlu0 %560
        %562 = vrot.lane.b32.xlu0 %v540, 126
        %v563 = vpop.permute.xlu0 %562
        %564 = vrot.lane.b32.xlu0 %v541, 126
        %v565 = vpop.permute.xlu0 %564
        %v574 = vadd.f32 %v485, %v551
        %v575 = vadd.f32 %v486, %v553
        %v576 = vadd.f32 %v487, %v555
        %v577 = vadd.f32 %v488, %v557
        %v578 = vadd.f32 %v489, %v559
        %v579 = vadd.f32 %v490, %v561
        %v580 = vadd.f32 %v491, %v563
        %v581 = vadd.f32 %v492, %v565
        %s582 = scalar_lea.vmem %s3, 12
        %v583 = vld [vmem:[%s582] sm:$0x1]
        %v584 = vld [vmem:[%s582 + $0x1] sm:$0x1]
        %v585 = vld [vmem:[%s582 + $0x2] sm:$0x1]
        %v586 = vld [vmem:[%s582 + $0x3] sm:$0x1]
        %v591 = vlaneseq
        %v592 = vshrl.u32 %v591, 7
        %v593 = vsub.s32 0, %v592
        %v594 = vrot.slane %v583, %v593
        %v595 = vlaneseq
        %v596 = vshrl.u32 %v595, 7
        %v597 = vsub.s32 0, %v596
        %v598 = vrot.slane %v584, %v597
        %v599 = vlaneseq
        %v600 = vshrl.u32 %v599, 7
        %v601 = vsub.s32 0, %v600
        %v602 = vrot.slane %v585, %v601
        %v603 = vlaneseq
        %v604 = vshrl.u32 %v603, 7
        %v605 = vsub.s32 0, %v604
        %v606 = vrot.slane %v586, %v605
        %607 = vset.pattern.permute.xlu0 0
        %608 = vperm.xlu0 %607, %v594
        %v609 = vpop.permute.xlu0 %608
        %611 = vset.pattern.permute.xlu0 0
        %612 = vperm.xlu0 %611, %v598
        %v613 = vpop.permute.xlu0 %612
        %615 = vset.pattern.permute.xlu0 0
        %616 = vperm.xlu0 %615, %v602
        %v617 = vpop.permute.xlu0 %616
        %619 = vset.pattern.permute.xlu0 0
        %620 = vperm.xlu0 %619, %v606
        %v621 = vpop.permute.xlu0 %620
        %v623 = vmul.f32 %v340, %v609
        %v624 = vmul.f32 %v341, %v609
        %v625 = vmul.f32 %v342, %v613
        %v626 = vmul.f32 %v343, %v613
        %v627 = vmul.f32 %v344, %v617
        %v628 = vmul.f32 %v345, %v617
        %v629 = vmul.f32 %v346, %v621
        %v630 = vmul.f32 %v347, %v621
        %639 = vrot.lane.b32.xlu0 %v623, 125
        %v640 = vpop.permute.xlu0 %639
        %641 = vrot.lane.b32.xlu0 %v624, 125
        %v642 = vpop.permute.xlu0 %641
        %643 = vrot.lane.b32.xlu0 %v625, 125
        %v644 = vpop.permute.xlu0 %643
        %645 = vrot.lane.b32.xlu0 %v626, 125
        %v646 = vpop.permute.xlu0 %645
        %647 = vrot.lane.b32.xlu0 %v627, 125
        %v648 = vpop.permute.xlu0 %647
        %649 = vrot.lane.b32.xlu0 %v628, 125
        %v650 = vpop.permute.xlu0 %649
        %651 = vrot.lane.b32.xlu0 %v629, 125
        %v652 = vpop.permute.xlu0 %651
        %653 = vrot.lane.b32.xlu0 %v630, 125
        %v654 = vpop.permute.xlu0 %653
        %v663 = vadd.f32 %v574, %v640
        %v664 = vadd.f32 %v575, %v642
        %v665 = vadd.f32 %v576, %v644
        %v666 = vadd.f32 %v577, %v646
        %v667 = vadd.f32 %v578, %v648
        %v668 = vadd.f32 %v579, %v650
        %v669 = vadd.f32 %v580, %v652
        %v670 = vadd.f32 %v581, %v654
        %s671 = scalar_lea.vmem %s3, 16
        %v672 = vld [vmem:[%s671] sm:$0x1]
        %v673 = vld [vmem:[%s671 + $0x1] sm:$0x1]
        %v674 = vld [vmem:[%s671 + $0x2] sm:$0x1]
        %v675 = vld [vmem:[%s671 + $0x3] sm:$0x1]
        %v680 = vlaneseq
        %v681 = vshrl.u32 %v680, 7
        %v682 = vsub.s32 0, %v681
        %v683 = vrot.slane %v672, %v682
        %v684 = vlaneseq
        %v685 = vshrl.u32 %v684, 7
        %v686 = vsub.s32 0, %v685
        %v687 = vrot.slane %v673, %v686
        %v688 = vlaneseq
        %v689 = vshrl.u32 %v688, 7
        %v690 = vsub.s32 0, %v689
        %v691 = vrot.slane %v674, %v690
        %v692 = vlaneseq
        %v693 = vshrl.u32 %v692, 7
        %v694 = vsub.s32 0, %v693
        %v695 = vrot.slane %v675, %v694
        %696 = vset.pattern.permute.xlu0 0
        %697 = vperm.xlu0 %696, %v683
        %v698 = vpop.permute.xlu0 %697
        %700 = vset.pattern.permute.xlu0 0
        %701 = vperm.xlu0 %700, %v687
        %v702 = vpop.permute.xlu0 %701
        %704 = vset.pattern.permute.xlu0 0
        %705 = vperm.xlu0 %704, %v691
        %v706 = vpop.permute.xlu0 %705
        %708 = vset.pattern.permute.xlu0 0
        %709 = vperm.xlu0 %708, %v695
        %v710 = vpop.permute.xlu0 %709
        %v712 = vmul.f32 %v340, %v698
        %v713 = vmul.f32 %v341, %v698
        %v714 = vmul.f32 %v342, %v702
        %v715 = vmul.f32 %v343, %v702
        %v716 = vmul.f32 %v344, %v706
        %v717 = vmul.f32 %v345, %v706
        %v718 = vmul.f32 %v346, %v710
        %v719 = vmul.f32 %v347, %v710
        %728 = vrot.lane.b32.xlu0 %v712, 124
        %v729 = vpop.permute.xlu0 %728
        %730 = vrot.lane.b32.xlu0 %v713, 124
        %v731 = vpop.permute.xlu0 %730
        %732 = vrot.lane.b32.xlu0 %v714, 124
        %v733 = vpop.permute.xlu0 %732
        %734 = vrot.lane.b32.xlu0 %v715, 124
        %v735 = vpop.permute.xlu0 %734
        %736 = vrot.lane.b32.xlu0 %v716, 124
        %v737 = vpop.permute.xlu0 %736
        %738 = vrot.lane.b32.xlu0 %v717, 124
        %v739 = vpop.permute.xlu0 %738
        %740 = vrot.lane.b32.xlu0 %v718, 124
        %v741 = vpop.permute.xlu0 %740
        %742 = vrot.lane.b32.xlu0 %v719, 124
        %v743 = vpop.permute.xlu0 %742
        %v752 = vadd.f32 %v663, %v729
        %v753 = vadd.f32 %v664, %v731
        %v754 = vadd.f32 %v665, %v733
        %v755 = vadd.f32 %v666, %v735
        %v756 = vadd.f32 %v667, %v737
        %v757 = vadd.f32 %v668, %v739
        %v758 = vadd.f32 %v669, %v741
        %v759 = vadd.f32 %v670, %v743
        %s760 = scalar_lea.vmem %s3, 20
        %v761 = vld [vmem:[%s760] sm:$0x1]
        %v762 = vld [vmem:[%s760 + $0x1] sm:$0x1]
        %v763 = vld [vmem:[%s760 + $0x2] sm:$0x1]
        %v764 = vld [vmem:[%s760 + $0x3] sm:$0x1]
        %v769 = vlaneseq
        %v770 = vshrl.u32 %v769, 7
        %v771 = vsub.s32 0, %v770
        %v772 = vrot.slane %v761, %v771
        %v773 = vlaneseq
        %v774 = vshrl.u32 %v773, 7
        %v775 = vsub.s32 0, %v774
        %v776 = vrot.slane %v762, %v775
        %v777 = vlaneseq
        %v778 = vshrl.u32 %v777, 7
        %v779 = vsub.s32 0, %v778
        %v780 = vrot.slane %v763, %v779
        %v781 = vlaneseq
        %v782 = vshrl.u32 %v781, 7
        %v783 = vsub.s32 0, %v782
        %v784 = vrot.slane %v764, %v783
        %785 = vset.pattern.permute.xlu0 0
        %786 = vperm.xlu0 %785, %v772
        %v787 = vpop.permute.xlu0 %786
        %789 = vset.pattern.permute.xlu0 0
        %790 = vperm.xlu0 %789, %v776
        %v791 = vpop.permute.xlu0 %790
        %793 = vset.pattern.permute.xlu0 0
        %794 = vperm.xlu0 %793, %v780
        %v795 = vpop.permute.xlu0 %794
        %797 = vset.pattern.permute.xlu0 0
        %798 = vperm.xlu0 %797, %v784
        %v799 = vpop.permute.xlu0 %798
        %v801 = vmul.f32 %v340, %v787
        %v802 = vmul.f32 %v341, %v787
        %v803 = vmul.f32 %v342, %v791
        %v804 = vmul.f32 %v343, %v791
        %v805 = vmul.f32 %v344, %v795
        %v806 = vmul.f32 %v345, %v795
        %v807 = vmul.f32 %v346, %v799
        %v808 = vmul.f32 %v347, %v799
        %817 = vrot.lane.b32.xlu0 %v801, 123
        %v818 = vpop.permute.xlu0 %817
        %819 = vrot.lane.b32.xlu0 %v802, 123
        %v820 = vpop.permute.xlu0 %819
        %821 = vrot.lane.b32.xlu0 %v803, 123
        %v822 = vpop.permute.xlu0 %821
        %823 = vrot.lane.b32.xlu0 %v804, 123
        %v824 = vpop.permute.xlu0 %823
        %825 = vrot.lane.b32.xlu0 %v805, 123
        %v826 = vpop.permute.xlu0 %825
        %827 = vrot.lane.b32.xlu0 %v806, 123
        %v828 = vpop.permute.xlu0 %827
        %829 = vrot.lane.b32.xlu0 %v807, 123
        %v830 = vpop.permute.xlu0 %829
        %831 = vrot.lane.b32.xlu0 %v808, 123
        %v832 = vpop.permute.xlu0 %831
        %v841 = vadd.f32 %v752, %v818
        %v842 = vadd.f32 %v753, %v820
        %v843 = vadd.f32 %v754, %v822
        %v844 = vadd.f32 %v755, %v824
        %v845 = vadd.f32 %v756, %v826
        %v846 = vadd.f32 %v757, %v828
        %v847 = vadd.f32 %v758, %v830
        %v848 = vadd.f32 %v759, %v832
        %s849 = scalar_lea.vmem %s3, 24
        %v850 = vld [vmem:[%s849] sm:$0x1]
        %v851 = vld [vmem:[%s849 + $0x1] sm:$0x1]
        %v852 = vld [vmem:[%s849 + $0x2] sm:$0x1]
        %v853 = vld [vmem:[%s849 + $0x3] sm:$0x1]
        %v858 = vlaneseq
        %v859 = vshrl.u32 %v858, 7
        %v860 = vsub.s32 0, %v859
        %v861 = vrot.slane %v850, %v860
        %v862 = vlaneseq
        %v863 = vshrl.u32 %v862, 7
        %v864 = vsub.s32 0, %v863
        %v865 = vrot.slane %v851, %v864
        %v866 = vlaneseq
        %v867 = vshrl.u32 %v866, 7
        %v868 = vsub.s32 0, %v867
        %v869 = vrot.slane %v852, %v868
        %v870 = vlaneseq
        %v871 = vshrl.u32 %v870, 7
        %v872 = vsub.s32 0, %v871
        %v873 = vrot.slane %v853, %v872
        %874 = vset.pattern.permute.xlu0 0
        %875 = vperm.xlu0 %874, %v861
        %v876 = vpop.permute.xlu0 %875
        %878 = vset.pattern.permute.xlu0 0
        %879 = vperm.xlu0 %878, %v865
        %v880 = vpop.permute.xlu0 %879
        %882 = vset.pattern.permute.xlu0 0
        %883 = vperm.xlu0 %882, %v869
        %v884 = vpop.permute.xlu0 %883
        %886 = vset.pattern.permute.xlu0 0
        %887 = vperm.xlu0 %886, %v873
        %v888 = vpop.permute.xlu0 %887
        %v890 = vmul.f32 %v340, %v876
        %v891 = vmul.f32 %v341, %v876
        %v892 = vmul.f32 %v342, %v880
        %v893 = vmul.f32 %v343, %v880
        %v894 = vmul.f32 %v344, %v884
        %v895 = vmul.f32 %v345, %v884
        %v896 = vmul.f32 %v346, %v888
        %v897 = vmul.f32 %v347, %v888
        %906 = vrot.lane.b32.xlu0 %v890, 122
        %v907 = vpop.permute.xlu0 %906
        %908 = vrot.lane.b32.xlu0 %v891, 122
        %v909 = vpop.permute.xlu0 %908
        %910 = vrot.lane.b32.xlu0 %v892, 122
        %v911 = vpop.permute.xlu0 %910
        %912 = vrot.lane.b32.xlu0 %v893, 122
        %v913 = vpop.permute.xlu0 %912
        %914 = vrot.lane.b32.xlu0 %v894, 122
        %v915 = vpop.permute.xlu0 %914
        %916 = vrot.lane.b32.xlu0 %v895, 122
        %v917 = vpop.permute.xlu0 %916
        %918 = vrot.lane.b32.xlu0 %v896, 122
        %v919 = vpop.permute.xlu0 %918
        %920 = vrot.lane.b32.xlu0 %v897, 122
        %v921 = vpop.permute.xlu0 %920
        %v930 = vadd.f32 %v841, %v907
        %v931 = vadd.f32 %v842, %v909
        %v932 = vadd.f32 %v843, %v911
        %v933 = vadd.f32 %v844, %v913
        %v934 = vadd.f32 %v845, %v915
        %v935 = vadd.f32 %v846, %v917
        %v936 = vadd.f32 %v847, %v919
        %v937 = vadd.f32 %v848, %v921
        %v938 = vld [vmem:[#allocation2 + $0x1] sm:$0xff]
        %v939 = vld [vmem:[#allocation2 + $0x9] sm:$0xff]
        %v940 = vld [vmem:[#allocation2 + $0x19] sm:$0xff]
        %v941 = vld [vmem:[#allocation2 + $0x21] sm:$0xff]
        %v942 = vld [vmem:[#allocation2 + $0x31] sm:$0xff]
        %v943 = vld [vmem:[#allocation2 + $0x39] sm:$0xff]
        %v944 = vld [vmem:[#allocation2 + $0x49] sm:$0xff]
        %v945 = vld [vmem:[#allocation2 + $0x51] sm:$0xff]
        %s946 = scalar_lea.vmem %s3, 28
        %v947 = vld [vmem:[%s946] sm:$0x1]
        %v948 = vld [vmem:[%s946 + $0x1] sm:$0x1]
        %v949 = vld [vmem:[%s946 + $0x2] sm:$0x1]
        %v950 = vld [vmem:[%s946 + $0x3] sm:$0x1]
        %v955 = vlaneseq
        %v956 = vshrl.u32 %v955, 7
        %v957 = vsub.s32 0, %v956
        %v958 = vrot.slane %v947, %v957
        %v959 = vlaneseq
        %v960 = vshrl.u32 %v959, 7
        %v961 = vsub.s32 0, %v960
        %v962 = vrot.slane %v948, %v961
        %v963 = vlaneseq
        %v964 = vshrl.u32 %v963, 7
        %v965 = vsub.s32 0, %v964
        %v966 = vrot.slane %v949, %v965
        %v967 = vlaneseq
        %v968 = vshrl.u32 %v967, 7
        %v969 = vsub.s32 0, %v968
        %v970 = vrot.slane %v950, %v969
        %971 = vset.pattern.permute.xlu0 0
        %972 = vperm.xlu0 %971, %v958
        %v973 = vpop.permute.xlu0 %972
        %975 = vset.pattern.permute.xlu0 0
        %976 = vperm.xlu0 %975, %v962
        %v977 = vpop.permute.xlu0 %976
        %979 = vset.pattern.permute.xlu0 0
        %980 = vperm.xlu0 %979, %v966
        %v981 = vpop.permute.xlu0 %980
        %983 = vset.pattern.permute.xlu0 0
        %984 = vperm.xlu0 %983, %v970
        %v985 = vpop.permute.xlu0 %984
        %v987 = vmul.f32 %v938, %v973
        %v988 = vmul.f32 %v939, %v973
        %v989 = vmul.f32 %v940, %v977
        %v990 = vmul.f32 %v941, %v977
        %v991 = vmul.f32 %v942, %v981
        %v992 = vmul.f32 %v943, %v981
        %v993 = vmul.f32 %v944, %v985
        %v994 = vmul.f32 %v945, %v985
        %v995 = vadd.f32 %v930, %v987
        %v996 = vadd.f32 %v931, %v988
        %v997 = vadd.f32 %v932, %v989
        %v998 = vadd.f32 %v933, %v990
        %v999 = vadd.f32 %v934, %v991
        %v1000 = vadd.f32 %v935, %v992
        %v1001 = vadd.f32 %v936, %v993
        %v1002 = vadd.f32 %v937, %v994
        %s1003 = scalar_lea.vmem %s3, 32
        %v1004 = vld [vmem:[%s1003] sm:$0x1]
        %v1005 = vld [vmem:[%s1003 + $0x1] sm:$0x1]
        %v1006 = vld [vmem:[%s1003 + $0x2] sm:$0x1]
        %v1007 = vld [vmem:[%s1003 + $0x3] sm:$0x1]
        %v1012 = vlaneseq
        %v1013 = vshrl.u32 %v1012, 7
        %v1014 = vsub.s32 0, %v1013
        %v1015 = vrot.slane %v1004, %v1014
        %v1016 = vlaneseq
        %v1017 = vshrl.u32 %v1016, 7
        %v1018 = vsub.s32 0, %v1017
        %v1019 = vrot.slane %v1005, %v1018
        %v1020 = vlaneseq
        %v1021 = vshrl.u32 %v1020, 7
        %v1022 = vsub.s32 0, %v1021
        %v1023 = vrot.slane %v1006, %v1022
        %v1024 = vlaneseq
        %v1025 = vshrl.u32 %v1024, 7
        %v1026 = vsub.s32 0, %v1025
        %v1027 = vrot.slane %v1007, %v1026
        %1028 = vset.pattern.permute.xlu0 0
        %1029 = vperm.xlu0 %1028, %v1015
        %v1030 = vpop.permute.xlu0 %1029
        %1032 = vset.pattern.permute.xlu0 0
        %1033 = vperm.xlu0 %1032, %v1019
        %v1034 = vpop.permute.xlu0 %1033
        %1036 = vset.pattern.permute.xlu0 0
        %1037 = vperm.xlu0 %1036, %v1023
        %v1038 = vpop.permute.xlu0 %1037
        %1040 = vset.pattern.permute.xlu0 0
        %1041 = vperm.xlu0 %1040, %v1027
        %v1042 = vpop.permute.xlu0 %1041
        %v1044 = vmul.f32 %v938, %v1030
        %v1045 = vmul.f32 %v939, %v1030
        %v1046 = vmul.f32 %v940, %v1034
        %v1047 = vmul.f32 %v941, %v1034
        %v1048 = vmul.f32 %v942, %v1038
        %v1049 = vmul.f32 %v943, %v1038
        %v1050 = vmul.f32 %v944, %v1042
        %v1051 = vmul.f32 %v945, %v1042
        %1060 = vrot.lane.b32.xlu0 %v1044, 127
        %v1061 = vpop.permute.xlu0 %1060
        %1062 = vrot.lane.b32.xlu0 %v1045, 127
        %v1063 = vpop.permute.xlu0 %1062
        %1064 = vrot.lane.b32.xlu0 %v1046, 127
        %v1065 = vpop.permute.xlu0 %1064
        %1066 = vrot.lane.b32.xlu0 %v1047, 127
        %v1067 = vpop.permute.xlu0 %1066
        %1068 = vrot.lane.b32.xlu0 %v1048, 127
        %v1069 = vpop.permute.xlu0 %1068
        %1070 = vrot.lane.b32.xlu0 %v1049, 127
        %v1071 = vpop.permute.xlu0 %1070
        %1072 = vrot.lane.b32.xlu0 %v1050, 127
        %v1073 = vpop.permute.xlu0 %1072
        %1074 = vrot.lane.b32.xlu0 %v1051, 127
        %v1075 = vpop.permute.xlu0 %1074
        %v1084 = vadd.f32 %v995, %v1061
        %v1085 = vadd.f32 %v996, %v1063
        %v1086 = vadd.f32 %v997, %v1065
        %v1087 = vadd.f32 %v998, %v1067
        %v1088 = vadd.f32 %v999, %v1069
        %v1089 = vadd.f32 %v1000, %v1071
        %v1090 = vadd.f32 %v1001, %v1073
        %v1091 = vadd.f32 %v1002, %v1075
        %v1092 = vld [vmem:[%s2] sm:$0x1]
        %v1093 = vld [vmem:[%s2 + $0x1] sm:$0x1]
        %v1094 = vld [vmem:[%s2 + $0x2] sm:$0x1]
        %v1095 = vld [vmem:[%s2 + $0x3] sm:$0x1]
        %v1100 = vlaneseq
        %v1101 = vshrl.u32 %v1100, 7
        %v1102 = vsub.s32 0, %v1101
        %v1103 = vrot.slane %v1092, %v1102
        %v1104 = vlaneseq
        %v1105 = vshrl.u32 %v1104, 7
        %v1106 = vsub.s32 0, %v1105
        %v1107 = vrot.slane %v1093, %v1106
        %v1108 = vlaneseq
        %v1109 = vshrl.u32 %v1108, 7
        %v1110 = vsub.s32 0, %v1109
        %v1111 = vrot.slane %v1094, %v1110
        %v1112 = vlaneseq
        %v1113 = vshrl.u32 %v1112, 7
        %v1114 = vsub.s32 0, %v1113
        %v1115 = vrot.slane %v1095, %v1114
        %1116 = vset.pattern.permute.xlu0 0
        %1117 = vperm.xlu0 %1116, %v1103
        %v1118 = vpop.permute.xlu0 %1117
        %1120 = vset.pattern.permute.xlu0 0
        %1121 = vperm.xlu0 %1120, %v1107
        %v1122 = vpop.permute.xlu0 %1121
        %1124 = vset.pattern.permute.xlu0 0
        %1125 = vperm.xlu0 %1124, %v1111
        %v1126 = vpop.permute.xlu0 %1125
        %1128 = vset.pattern.permute.xlu0 0
        %1129 = vperm.xlu0 %1128, %v1115
        %v1130 = vpop.permute.xlu0 %1129
        %v1132 = vmul.f32 %v938, %v1118
        %v1133 = vmul.f32 %v939, %v1118
        %v1134 = vmul.f32 %v940, %v1122
        %v1135 = vmul.f32 %v941, %v1122
        %v1136 = vmul.f32 %v942, %v1126
        %v1137 = vmul.f32 %v943, %v1126
        %v1138 = vmul.f32 %v944, %v1130
        %v1139 = vmul.f32 %v945, %v1130
        %v1140 = vadd.f32 %v1132, 0.0
        %v1141 = vadd.f32 %v1133, 0.0
        %v1142 = vadd.f32 %v1134, 0.0
        %v1143 = vadd.f32 %v1135, 0.0
        %v1144 = vadd.f32 %v1136, 0.0
        %v1145 = vadd.f32 %v1137, 0.0
        %v1146 = vadd.f32 %v1138, 0.0
        %v1147 = vadd.f32 %v1139, 0.0
        %s1148 = scalar_lea.vmem %s3, 36
        %v1149 = vld [vmem:[%s1148] sm:$0x1]
        %v1150 = vld [vmem:[%s1148 + $0x1] sm:$0x1]
        %v1151 = vld [vmem:[%s1148 + $0x2] sm:$0x1]
        %v1152 = vld [vmem:[%s1148 + $0x3] sm:$0x1]
        %v1157 = vlaneseq
        %v1158 = vshrl.u32 %v1157, 7
        %v1159 = vsub.s32 0, %v1158
        %v1160 = vrot.slane %v1149, %v1159
        %v1161 = vlaneseq
        %v1162 = vshrl.u32 %v1161, 7
        %v1163 = vsub.s32 0, %v1162
        %v1164 = vrot.slane %v1150, %v1163
        %v1165 = vlaneseq
        %v1166 = vshrl.u32 %v1165, 7
        %v1167 = vsub.s32 0, %v1166
        %v1168 = vrot.slane %v1151, %v1167
        %v1169 = vlaneseq
        %v1170 = vshrl.u32 %v1169, 7
        %v1171 = vsub.s32 0, %v1170
        %v1172 = vrot.slane %v1152, %v1171
        %1173 = vset.pattern.permute.xlu0 0
        %1174 = vperm.xlu0 %1173, %v1160
        %v1175 = vpop.permute.xlu0 %1174
        %1177 = vset.pattern.permute.xlu0 0
        %1178 = vperm.xlu0 %1177, %v1164
        %v1179 = vpop.permute.xlu0 %1178
        %1181 = vset.pattern.permute.xlu0 0
        %1182 = vperm.xlu0 %1181, %v1168
        %v1183 = vpop.permute.xlu0 %1182
        %1185 = vset.pattern.permute.xlu0 0
        %1186 = vperm.xlu0 %1185, %v1172
        %v1187 = vpop.permute.xlu0 %1186
        %v1189 = vmul.f32 %v938, %v1175
        %v1190 = vmul.f32 %v939, %v1175
        %v1191 = vmul.f32 %v940, %v1179
        %v1192 = vmul.f32 %v941, %v1179
        %v1193 = vmul.f32 %v942, %v1183
        %v1194 = vmul.f32 %v943, %v1183
        %v1195 = vmul.f32 %v944, %v1187
        %v1196 = vmul.f32 %v945, %v1187
        %1205 = vrot.lane.b32.xlu0 %v1189, 126
        %v1206 = vpop.permute.xlu0 %1205
        %1207 = vrot.lane.b32.xlu0 %v1190, 126
        %v1208 = vpop.permute.xlu0 %1207
        %1209 = vrot.lane.b32.xlu0 %v1191, 126
        %v1210 = vpop.permute.xlu0 %1209
        %1211 = vrot.lane.b32.xlu0 %v1192, 126
        %v1212 = vpop.permute.xlu0 %1211
        %1213 = vrot.lane.b32.xlu0 %v1193, 126
        %v1214 = vpop.permute.xlu0 %1213
        %1215 = vrot.lane.b32.xlu0 %v1194, 126
        %v1216 = vpop.permute.xlu0 %1215
        %1217 = vrot.lane.b32.xlu0 %v1195, 126
        %v1218 = vpop.permute.xlu0 %1217
        %1219 = vrot.lane.b32.xlu0 %v1196, 126
        %v1220 = vpop.permute.xlu0 %1219
        %v1229 = vadd.f32 %v1084, %v1206
        %v1230 = vadd.f32 %v1085, %v1208
        %v1231 = vadd.f32 %v1086, %v1210
        %v1232 = vadd.f32 %v1087, %v1212
        %v1233 = vadd.f32 %v1088, %v1214
        %v1234 = vadd.f32 %v1089, %v1216
        %v1235 = vadd.f32 %v1090, %v1218
        %v1236 = vadd.f32 %v1091, %v1220
        %s1237 = scalar_lea.vmem %s2, 4
        %v1238 = vld [vmem:[%s1237] sm:$0x1]
        %v1239 = vld [vmem:[%s1237 + $0x1] sm:$0x1]
        %v1240 = vld [vmem:[%s1237 + $0x2] sm:$0x1]
        %v1241 = vld [vmem:[%s1237 + $0x3] sm:$0x1]
        %v1246 = vlaneseq
        %v1247 = vshrl.u32 %v1246, 7
        %v1248 = vsub.s32 0, %v1247
        %v1249 = vrot.slane %v1238, %v1248
        %v1250 = vlaneseq
        %v1251 = vshrl.u32 %v1250, 7
        %v1252 = vsub.s32 0, %v1251
        %v1253 = vrot.slane %v1239, %v1252
        %v1254 = vlaneseq
        %v1255 = vshrl.u32 %v1254, 7
        %v1256 = vsub.s32 0, %v1255
        %v1257 = vrot.slane %v1240, %v1256
        %v1258 = vlaneseq
        %v1259 = vshrl.u32 %v1258, 7
        %v1260 = vsub.s32 0, %v1259
        %v1261 = vrot.slane %v1241, %v1260
        %1262 = vset.pattern.permute.xlu0 0
        %1263 = vperm.xlu0 %1262, %v1249
        %v1264 = vpop.permute.xlu0 %1263
        %1266 = vset.pattern.permute.xlu0 0
        %1267 = vperm.xlu0 %1266, %v1253
        %v1268 = vpop.permute.xlu0 %1267
        %1270 = vset.pattern.permute.xlu0 0
        %1271 = vperm.xlu0 %1270, %v1257
        %v1272 = vpop.permute.xlu0 %1271
        %1274 = vset.pattern.permute.xlu0 0
        %1275 = vperm.xlu0 %1274, %v1261
        %v1276 = vpop.permute.xlu0 %1275
        %v1278 = vmul.f32 %v938, %v1264
        %v1279 = vmul.f32 %v939, %v1264
        %v1280 = vmul.f32 %v940, %v1268
        %v1281 = vmul.f32 %v941, %v1268
        %v1282 = vmul.f32 %v942, %v1272
        %v1283 = vmul.f32 %v943, %v1272
        %v1284 = vmul.f32 %v944, %v1276
        %v1285 = vmul.f32 %v945, %v1276
        %1294 = vrot.lane.b32.xlu0 %v1278, 127
        %v1295 = vpop.permute.xlu0 %1294
        %1296 = vrot.lane.b32.xlu0 %v1279, 127
        %v1297 = vpop.permute.xlu0 %1296
        %1298 = vrot.lane.b32.xlu0 %v1280, 127
        %v1299 = vpop.permute.xlu0 %1298
        %1300 = vrot.lane.b32.xlu0 %v1281, 127
        %v1301 = vpop.permute.xlu0 %1300
        %1302 = vrot.lane.b32.xlu0 %v1282, 127
        %v1303 = vpop.permute.xlu0 %1302
        %1304 = vrot.lane.b32.xlu0 %v1283, 127
        %v1305 = vpop.permute.xlu0 %1304
        %1306 = vrot.lane.b32.xlu0 %v1284, 127
        %v1307 = vpop.permute.xlu0 %1306
        %1308 = vrot.lane.b32.xlu0 %v1285, 127
        %v1309 = vpop.permute.xlu0 %1308
        %v1318 = vadd.f32 %v1140, %v1295
        %v1319 = vadd.f32 %v1141, %v1297
        %v1320 = vadd.f32 %v1142, %v1299
        %v1321 = vadd.f32 %v1143, %v1301
        %v1322 = vadd.f32 %v1144, %v1303
        %v1323 = vadd.f32 %v1145, %v1305
        %v1324 = vadd.f32 %v1146, %v1307
        %v1325 = vadd.f32 %v1147, %v1309
        %s1326 = scalar_lea.vmem %s3, 40
        %v1327 = vld [vmem:[%s1326] sm:$0x1]
        %v1328 = vld [vmem:[%s1326 + $0x1] sm:$0x1]
        %v1329 = vld [vmem:[%s1326 + $0x2] sm:$0x1]
        %v1330 = vld [vmem:[%s1326 + $0x3] sm:$0x1]
        %v1335 = vlaneseq
        %v1336 = vshrl.u32 %v1335, 7
        %v1337 = vsub.s32 0, %v1336
        %v1338 = vrot.slane %v1327, %v1337
        %v1339 = vlaneseq
        %v1340 = vshrl.u32 %v1339, 7
        %v1341 = vsub.s32 0, %v1340
        %v1342 = vrot.slane %v1328, %v1341
        %v1343 = vlaneseq
        %v1344 = vshrl.u32 %v1343, 7
        %v1345 = vsub.s32 0, %v1344
        %v1346 = vrot.slane %v1329, %v1345
        %v1347 = vlaneseq
        %v1348 = vshrl.u32 %v1347, 7
        %v1349 = vsub.s32 0, %v1348
        %v1350 = vrot.slane %v1330, %v1349
        %1351 = vset.pattern.permute.xlu0 0
        %1352 = vperm.xlu0 %1351, %v1338
        %v1353 = vpop.permute.xlu0 %1352
        %1355 = vset.pattern.permute.xlu0 0
        %1356 = vperm.xlu0 %1355, %v1342
        %v1357 = vpop.permute.xlu0 %1356
        %1359 = vset.pattern.permute.xlu0 0
        %1360 = vperm.xlu0 %1359, %v1346
        %v1361 = vpop.permute.xlu0 %1360
        %1363 = vset.pattern.permute.xlu0 0
        %1364 = vperm.xlu0 %1363, %v1350
        %v1365 = vpop.permute.xlu0 %1364
        %v1367 = vmul.f32 %v938, %v1353
        %v1368 = vmul.f32 %v939, %v1353
        %v1369 = vmul.f32 %v940, %v1357
        %v1370 = vmul.f32 %v941, %v1357
        %v1371 = vmul.f32 %v942, %v1361
        %v1372 = vmul.f32 %v943, %v1361
        %v1373 = vmul.f32 %v944, %v1365
        %v1374 = vmul.f32 %v945, %v1365
        %1383 = vrot.lane.b32.xlu0 %v1367, 125
        %v1384 = vpop.permute.xlu0 %1383
        %1385 = vrot.lane.b32.xlu0 %v1368, 125
        %v1386 = vpop.permute.xlu0 %1385
        %1387 = vrot.lane.b32.xlu0 %v1369, 125
        %v1388 = vpop.permute.xlu0 %1387
        %1389 = vrot.lane.b32.xlu0 %v1370, 125
        %v1390 = vpop.permute.xlu0 %1389
        %1391 = vrot.lane.b32.xlu0 %v1371, 125
        %v1392 = vpop.permute.xlu0 %1391
        %1393 = vrot.lane.b32.xlu0 %v1372, 125
        %v1394 = vpop.permute.xlu0 %1393
        %1395 = vrot.lane.b32.xlu0 %v1373, 125
        %v1396 = vpop.permute.xlu0 %1395
        %1397 = vrot.lane.b32.xlu0 %v1374, 125
        %v1398 = vpop.permute.xlu0 %1397
        %v1407 = vadd.f32 %v1229, %v1384
        %v1408 = vadd.f32 %v1230, %v1386
        %v1409 = vadd.f32 %v1231, %v1388
        %v1410 = vadd.f32 %v1232, %v1390
        %v1411 = vadd.f32 %v1233, %v1392
        %v1412 = vadd.f32 %v1234, %v1394
        %v1413 = vadd.f32 %v1235, %v1396
        %v1414 = vadd.f32 %v1236, %v1398
        %s1415 = scalar_lea.vmem %s2, 8
        %v1416 = vld [vmem:[%s1415] sm:$0x1]
        %v1417 = vld [vmem:[%s1415 + $0x1] sm:$0x1]
        %v1418 = vld [vmem:[%s1415 + $0x2] sm:$0x1]
        %v1419 = vld [vmem:[%s1415 + $0x3] sm:$0x1]
        %v1424 = vlaneseq
        %v1425 = vshrl.u32 %v1424, 7
        %v1426 = vsub.s32 0, %v1425
        %v1427 = vrot.slane %v1416, %v1426
        %v1428 = vlaneseq
        %v1429 = vshrl.u32 %v1428, 7
        %v1430 = vsub.s32 0, %v1429
        %v1431 = vrot.slane %v1417, %v1430
        %v1432 = vlaneseq
        %v1433 = vshrl.u32 %v1432, 7
        %v1434 = vsub.s32 0, %v1433
        %v1435 = vrot.slane %v1418, %v1434
        %v1436 = vlaneseq
        %v1437 = vshrl.u32 %v1436, 7
        %v1438 = vsub.s32 0, %v1437
        %v1439 = vrot.slane %v1419, %v1438
        %1440 = vset.pattern.permute.xlu0 0
        %1441 = vperm.xlu0 %1440, %v1427
        %v1442 = vpop.permute.xlu0 %1441
        %1444 = vset.pattern.permute.xlu0 0
        %1445 = vperm.xlu0 %1444, %v1431
        %v1446 = vpop.permute.xlu0 %1445
        %1448 = vset.pattern.permute.xlu0 0
        %1449 = vperm.xlu0 %1448, %v1435
        %v1450 = vpop.permute.xlu0 %1449
        %1452 = vset.pattern.permute.xlu0 0
        %1453 = vperm.xlu0 %1452, %v1439
        %v1454 = vpop.permute.xlu0 %1453
        %v1456 = vmul.f32 %v938, %v1442
        %v1457 = vmul.f32 %v939, %v1442
        %v1458 = vmul.f32 %v940, %v1446
        %v1459 = vmul.f32 %v941, %v1446
        %v1460 = vmul.f32 %v942, %v1450
        %v1461 = vmul.f32 %v943, %v1450
        %v1462 = vmul.f32 %v944, %v1454
        %v1463 = vmul.f32 %v945, %v1454
        %1472 = vrot.lane.b32.xlu0 %v1456, 126
        %v1473 = vpop.permute.xlu0 %1472
        %1474 = vrot.lane.b32.xlu0 %v1457, 126
        %v1475 = vpop.permute.xlu0 %1474
        %1476 = vrot.lane.b32.xlu0 %v1458, 126
        %v1477 = vpop.permute.xlu0 %1476
        %1478 = vrot.lane.b32.xlu0 %v1459, 126
        %v1479 = vpop.permute.xlu0 %1478
        %1480 = vrot.lane.b32.xlu0 %v1460, 126
        %v1481 = vpop.permute.xlu0 %1480
        %1482 = vrot.lane.b32.xlu0 %v1461, 126
        %v1483 = vpop.permute.xlu0 %1482
        %1484 = vrot.lane.b32.xlu0 %v1462, 126
        %v1485 = vpop.permute.xlu0 %1484
        %1486 = vrot.lane.b32.xlu0 %v1463, 126
        %v1487 = vpop.permute.xlu0 %1486
        %v1496 = vadd.f32 %v1318, %v1473
        %v1497 = vadd.f32 %v1319, %v1475
        %v1498 = vadd.f32 %v1320, %v1477
        %v1499 = vadd.f32 %v1321, %v1479
        %v1500 = vadd.f32 %v1322, %v1481
        %v1501 = vadd.f32 %v1323, %v1483
        %v1502 = vadd.f32 %v1324, %v1485
        %v1503 = vadd.f32 %v1325, %v1487
        %s1504 = scalar_lea.vmem %s3, 44
        %v1505 = vld [vmem:[%s1504] sm:$0x1]
        %v1506 = vld [vmem:[%s1504 + $0x1] sm:$0x1]
        %v1507 = vld [vmem:[%s1504 + $0x2] sm:$0x1]
        %v1508 = vld [vmem:[%s1504 + $0x3] sm:$0x1]
        %v1513 = vlaneseq
        %v1514 = vshrl.u32 %v1513, 7
        %v1515 = vsub.s32 0, %v1514
        %v1516 = vrot.slane %v1505, %v1515
        %v1517 = vlaneseq
        %v1518 = vshrl.u32 %v1517, 7
        %v1519 = vsub.s32 0, %v1518
        %v1520 = vrot.slane %v1506, %v1519
        %v1521 = vlaneseq
        %v1522 = vshrl.u32 %v1521, 7
        %v1523 = vsub.s32 0, %v1522
        %v1524 = vrot.slane %v1507, %v1523
        %v1525 = vlaneseq
        %v1526 = vshrl.u32 %v1525, 7
        %v1527 = vsub.s32 0, %v1526
        %v1528 = vrot.slane %v1508, %v1527
        %1529 = vset.pattern.permute.xlu0 0
        %1530 = vperm.xlu0 %1529, %v1516
        %v1531 = vpop.permute.xlu0 %1530
        %1533 = vset.pattern.permute.xlu0 0
        %1534 = vperm.xlu0 %1533, %v1520
        %v1535 = vpop.permute.xlu0 %1534
        %1537 = vset.pattern.permute.xlu0 0
        %1538 = vperm.xlu0 %1537, %v1524
        %v1539 = vpop.permute.xlu0 %1538
        %1541 = vset.pattern.permute.xlu0 0
        %1542 = vperm.xlu0 %1541, %v1528
        %v1543 = vpop.permute.xlu0 %1542
        %v1545 = vmul.f32 %v938, %v1531
        %v1546 = vmul.f32 %v939, %v1531
        %v1547 = vmul.f32 %v940, %v1535
        %v1548 = vmul.f32 %v941, %v1535
        %v1549 = vmul.f32 %v942, %v1539
        %v1550 = vmul.f32 %v943, %v1539
        %v1551 = vmul.f32 %v944, %v1543
        %v1552 = vmul.f32 %v945, %v1543
        %1561 = vrot.lane.b32.xlu0 %v1545, 124
        %v1562 = vpop.permute.xlu0 %1561
        %1563 = vrot.lane.b32.xlu0 %v1546, 124
        %v1564 = vpop.permute.xlu0 %1563
        %1565 = vrot.lane.b32.xlu0 %v1547, 124
        %v1566 = vpop.permute.xlu0 %1565
        %1567 = vrot.lane.b32.xlu0 %v1548, 124
        %v1568 = vpop.permute.xlu0 %1567
        %1569 = vrot.lane.b32.xlu0 %v1549, 124
        %v1570 = vpop.permute.xlu0 %1569
        %1571 = vrot.lane.b32.xlu0 %v1550, 124
        %v1572 = vpop.permute.xlu0 %1571
        %1573 = vrot.lane.b32.xlu0 %v1551, 124
        %v1574 = vpop.permute.xlu0 %1573
        %1575 = vrot.lane.b32.xlu0 %v1552, 124
        %v1576 = vpop.permute.xlu0 %1575
        %v1585 = vadd.f32 %v1407, %v1562
        %v1586 = vadd.f32 %v1408, %v1564
        %v1587 = vadd.f32 %v1409, %v1566
        %v1588 = vadd.f32 %v1410, %v1568
        %v1589 = vadd.f32 %v1411, %v1570
        %v1590 = vadd.f32 %v1412, %v1572
        %v1591 = vadd.f32 %v1413, %v1574
        %v1592 = vadd.f32 %v1414, %v1576
        %s1593 = scalar_lea.vmem %s2, 12
        %v1594 = vld [vmem:[%s1593] sm:$0x1]
        %v1595 = vld [vmem:[%s1593 + $0x1] sm:$0x1]
        %v1596 = vld [vmem:[%s1593 + $0x2] sm:$0x1]
        %v1597 = vld [vmem:[%s1593 + $0x3] sm:$0x1]
        %v1602 = vlaneseq
        %v1603 = vshrl.u32 %v1602, 7
        %v1604 = vsub.s32 0, %v1603
        %v1605 = vrot.slane %v1594, %v1604
        %v1606 = vlaneseq
        %v1607 = vshrl.u32 %v1606, 7
        %v1608 = vsub.s32 0, %v1607
        %v1609 = vrot.slane %v1595, %v1608
        %v1610 = vlaneseq
        %v1611 = vshrl.u32 %v1610, 7
        %v1612 = vsub.s32 0, %v1611
        %v1613 = vrot.slane %v1596, %v1612
        %v1614 = vlaneseq
        %v1615 = vshrl.u32 %v1614, 7
        %v1616 = vsub.s32 0, %v1615
        %v1617 = vrot.slane %v1597, %v1616
        %1618 = vset.pattern.permute.xlu0 0
        %1619 = vperm.xlu0 %1618, %v1605
        %v1620 = vpop.permute.xlu0 %1619
        %1622 = vset.pattern.permute.xlu0 0
        %1623 = vperm.xlu0 %1622, %v1609
        %v1624 = vpop.permute.xlu0 %1623
        %1626 = vset.pattern.permute.xlu0 0
        %1627 = vperm.xlu0 %1626, %v1613
        %v1628 = vpop.permute.xlu0 %1627
        %1630 = vset.pattern.permute.xlu0 0
        %1631 = vperm.xlu0 %1630, %v1617
        %v1632 = vpop.permute.xlu0 %1631
        %v1634 = vmul.f32 %v938, %v1620
        %v1635 = vmul.f32 %v939, %v1620
        %v1636 = vmul.f32 %v940, %v1624
        %v1637 = vmul.f32 %v941, %v1624
        %v1638 = vmul.f32 %v942, %v1628
        %v1639 = vmul.f32 %v943, %v1628
        %v1640 = vmul.f32 %v944, %v1632
        %v1641 = vmul.f32 %v945, %v1632
        %1650 = vrot.lane.b32.xlu0 %v1634, 125
        %v1651 = vpop.permute.xlu0 %1650
        %1652 = vrot.lane.b32.xlu0 %v1635, 125
        %v1653 = vpop.permute.xlu0 %1652
        %1654 = vrot.lane.b32.xlu0 %v1636, 125
        %v1655 = vpop.permute.xlu0 %1654
        %1656 = vrot.lane.b32.xlu0 %v1637, 125
        %v1657 = vpop.permute.xlu0 %1656
        %1658 = vrot.lane.b32.xlu0 %v1638, 125
        %v1659 = vpop.permute.xlu0 %1658
        %1660 = vrot.lane.b32.xlu0 %v1639, 125
        %v1661 = vpop.permute.xlu0 %1660
        %1662 = vrot.lane.b32.xlu0 %v1640, 125
        %v1663 = vpop.permute.xlu0 %1662
        %1664 = vrot.lane.b32.xlu0 %v1641, 125
        %v1665 = vpop.permute.xlu0 %1664
        %v1674 = vadd.f32 %v1496, %v1651
        %v1675 = vadd.f32 %v1497, %v1653
        %v1676 = vadd.f32 %v1498, %v1655
        %v1677 = vadd.f32 %v1499, %v1657
        %v1678 = vadd.f32 %v1500, %v1659
        %v1679 = vadd.f32 %v1501, %v1661
        %v1680 = vadd.f32 %v1502, %v1663
        %v1681 = vadd.f32 %v1503, %v1665
        %s1682 = scalar_lea.vmem %s3, 48
        %v1683 = vld [vmem:[%s1682] sm:$0x1]
        %v1684 = vld [vmem:[%s1682 + $0x1] sm:$0x1]
        %v1685 = vld [vmem:[%s1682 + $0x2] sm:$0x1]
        %v1686 = vld [vmem:[%s1682 + $0x3] sm:$0x1]
        %v1691 = vlaneseq
        %v1692 = vshrl.u32 %v1691, 7
        %v1693 = vsub.s32 0, %v1692
        %v1694 = vrot.slane %v1683, %v1693
        %v1695 = vlaneseq
        %v1696 = vshrl.u32 %v1695, 7
        %v1697 = vsub.s32 0, %v1696
        %v1698 = vrot.slane %v1684, %v1697
        %v1699 = vlaneseq
        %v1700 = vshrl.u32 %v1699, 7
        %v1701 = vsub.s32 0, %v1700
        %v1702 = vrot.slane %v1685, %v1701
        %v1703 = vlaneseq
        %v1704 = vshrl.u32 %v1703, 7
        %v1705 = vsub.s32 0, %v1704
        %v1706 = vrot.slane %v1686, %v1705
        %1707 = vset.pattern.permute.xlu0 0
        %1708 = vperm.xlu0 %1707, %v1694
        %v1709 = vpop.permute.xlu0 %1708
        %1711 = vset.pattern.permute.xlu0 0
        %1712 = vperm.xlu0 %1711, %v1698
        %v1713 = vpop.permute.xlu0 %1712
        %1715 = vset.pattern.permute.xlu0 0
        %1716 = vperm.xlu0 %1715, %v1702
        %v1717 = vpop.permute.xlu0 %1716
        %1719 = vset.pattern.permute.xlu0 0
        %1720 = vperm.xlu0 %1719, %v1706
        %v1721 = vpop.permute.xlu0 %1720
        %v1723 = vmul.f32 %v938, %v1709
        %v1724 = vmul.f32 %v939, %v1709
        %v1725 = vmul.f32 %v940, %v1713
        %v1726 = vmul.f32 %v941, %v1713
        %v1727 = vmul.f32 %v942, %v1717
        %v1728 = vmul.f32 %v943, %v1717
        %v1729 = vmul.f32 %v944, %v1721
        %v1730 = vmul.f32 %v945, %v1721
        %1739 = vrot.lane.b32.xlu0 %v1723, 123
        %v1740 = vpop.permute.xlu0 %1739
        %1741 = vrot.lane.b32.xlu0 %v1724, 123
        %v1742 = vpop.permute.xlu0 %1741
        %1743 = vrot.lane.b32.xlu0 %v1725, 123
        %v1744 = vpop.permute.xlu0 %1743
        %1745 = vrot.lane.b32.xlu0 %v1726, 123
        %v1746 = vpop.permute.xlu0 %1745
        %1747 = vrot.lane.b32.xlu0 %v1727, 123
        %v1748 = vpop.permute.xlu0 %1747
        %1749 = vrot.lane.b32.xlu0 %v1728, 123
        %v1750 = vpop.permute.xlu0 %1749
        %1751 = vrot.lane.b32.xlu0 %v1729, 123
        %v1752 = vpop.permute.xlu0 %1751
        %1753 = vrot.lane.b32.xlu0 %v1730, 123
        %v1754 = vpop.permute.xlu0 %1753
        %v1763 = vadd.f32 %v1585, %v1740
        %v1764 = vadd.f32 %v1586, %v1742
        %v1765 = vadd.f32 %v1587, %v1744
        %v1766 = vadd.f32 %v1588, %v1746
        %v1767 = vadd.f32 %v1589, %v1748
        %v1768 = vadd.f32 %v1590, %v1750
        %v1769 = vadd.f32 %v1591, %v1752
        %v1770 = vadd.f32 %v1592, %v1754
        %s1771 = scalar_lea.vmem %s2, 16
        %v1772 = vld [vmem:[%s1771] sm:$0x1]
        %v1773 = vld [vmem:[%s1771 + $0x1] sm:$0x1]
        %v1774 = vld [vmem:[%s1771 + $0x2] sm:$0x1]
        %v1775 = vld [vmem:[%s1771 + $0x3] sm:$0x1]
        %v1780 = vlaneseq
        %v1781 = vshrl.u32 %v1780, 7
        %v1782 = vsub.s32 0, %v1781
        %v1783 = vrot.slane %v1772, %v1782
        %v1784 = vlaneseq
        %v1785 = vshrl.u32 %v1784, 7
        %v1786 = vsub.s32 0, %v1785
        %v1787 = vrot.slane %v1773, %v1786
        %v1788 = vlaneseq
        %v1789 = vshrl.u32 %v1788, 7
        %v1790 = vsub.s32 0, %v1789
        %v1791 = vrot.slane %v1774, %v1790
        %v1792 = vlaneseq
        %v1793 = vshrl.u32 %v1792, 7
        %v1794 = vsub.s32 0, %v1793
        %v1795 = vrot.slane %v1775, %v1794
        %1796 = vset.pattern.permute.xlu0 0
        %1797 = vperm.xlu0 %1796, %v1783
        %v1798 = vpop.permute.xlu0 %1797
        %1800 = vset.pattern.permute.xlu0 0
        %1801 = vperm.xlu0 %1800, %v1787
        %v1802 = vpop.permute.xlu0 %1801
        %1804 = vset.pattern.permute.xlu0 0
        %1805 = vperm.xlu0 %1804, %v1791
        %v1806 = vpop.permute.xlu0 %1805
        %1808 = vset.pattern.permute.xlu0 0
        %1809 = vperm.xlu0 %1808, %v1795
        %v1810 = vpop.permute.xlu0 %1809
        %v1812 = vmul.f32 %v938, %v1798
        %v1813 = vmul.f32 %v939, %v1798
        %v1814 = vmul.f32 %v940, %v1802
        %v1815 = vmul.f32 %v941, %v1802
        %v1816 = vmul.f32 %v942, %v1806
        %v1817 = vmul.f32 %v943, %v1806
        %v1818 = vmul.f32 %v944, %v1810
        %v1819 = vmul.f32 %v945, %v1810
        %1828 = vrot.lane.b32.xlu0 %v1812, 124
        %v1829 = vpop.permute.xlu0 %1828
        %1830 = vrot.lane.b32.xlu0 %v1813, 124
        %v1831 = vpop.permute.xlu0 %1830
        %1832 = vrot.lane.b32.xlu0 %v1814, 124
        %v1833 = vpop.permute.xlu0 %1832
        %1834 = vrot.lane.b32.xlu0 %v1815, 124
        %v1835 = vpop.permute.xlu0 %1834
        %1836 = vrot.lane.b32.xlu0 %v1816, 124
        %v1837 = vpop.permute.xlu0 %1836
        %1838 = vrot.lane.b32.xlu0 %v1817, 124
        %v1839 = vpop.permute.xlu0 %1838
        %1840 = vrot.lane.b32.xlu0 %v1818, 124
        %v1841 = vpop.permute.xlu0 %1840
        %1842 = vrot.lane.b32.xlu0 %v1819, 124
        %v1843 = vpop.permute.xlu0 %1842
        %v1852 = vadd.f32 %v1674, %v1829
        %v1853 = vadd.f32 %v1675, %v1831
        %v1854 = vadd.f32 %v1676, %v1833
        %v1855 = vadd.f32 %v1677, %v1835
        %v1856 = vadd.f32 %v1678, %v1837
        %v1857 = vadd.f32 %v1679, %v1839
        %v1858 = vadd.f32 %v1680, %v1841
        %v1859 = vadd.f32 %v1681, %v1843
        %s1860 = scalar_lea.vmem %s3, 52
        %v1861 = vld [vmem:[%s1860] sm:$0x1]
        %v1862 = vld [vmem:[%s1860 + $0x1] sm:$0x1]
        %v1863 = vld [vmem:[%s1860 + $0x2] sm:$0x1]
        %v1864 = vld [vmem:[%s1860 + $0x3] sm:$0x1]
        %v1869 = vlaneseq
        %v1870 = vshrl.u32 %v1869, 7
        %v1871 = vsub.s32 0, %v1870
        %v1872 = vrot.slane %v1861, %v1871
        %v1873 = vlaneseq
        %v1874 = vshrl.u32 %v1873, 7
        %v1875 = vsub.s32 0, %v1874
        %v1876 = vrot.slane %v1862, %v1875
        %v1877 = vlaneseq
        %v1878 = vshrl.u32 %v1877, 7
        %v1879 = vsub.s32 0, %v1878
        %v1880 = vrot.slane %v1863, %v1879
        %v1881 = vlaneseq
        %v1882 = vshrl.u32 %v1881, 7
        %v1883 = vsub.s32 0, %v1882
        %v1884 = vrot.slane %v1864, %v1883
        %1885 = vset.pattern.permute.xlu0 0
        %1886 = vperm.xlu0 %1885, %v1872
        %v1887 = vpop.permute.xlu0 %1886
        %1889 = vset.pattern.permute.xlu0 0
        %1890 = vperm.xlu0 %1889, %v1876
        %v1891 = vpop.permute.xlu0 %1890
        %1893 = vset.pattern.permute.xlu0 0
        %1894 = vperm.xlu0 %1893, %v1880
        %v1895 = vpop.permute.xlu0 %1894
        %1897 = vset.pattern.permute.xlu0 0
        %1898 = vperm.xlu0 %1897, %v1884
        %v1899 = vpop.permute.xlu0 %1898
        %v1901 = vmul.f32 %v938, %v1887
        %v1902 = vmul.f32 %v939, %v1887
        %v1903 = vmul.f32 %v940, %v1891
        %v1904 = vmul.f32 %v941, %v1891
        %v1905 = vmul.f32 %v942, %v1895
        %v1906 = vmul.f32 %v943, %v1895
        %v1907 = vmul.f32 %v944, %v1899
        %v1908 = vmul.f32 %v945, %v1899
        %1917 = vrot.lane.b32.xlu0 %v1901, 122
        %v1918 = vpop.permute.xlu0 %1917
        %1919 = vrot.lane.b32.xlu0 %v1902, 122
        %v1920 = vpop.permute.xlu0 %1919
        %1921 = vrot.lane.b32.xlu0 %v1903, 122
        %v1922 = vpop.permute.xlu0 %1921
        %1923 = vrot.lane.b32.xlu0 %v1904, 122
        %v1924 = vpop.permute.xlu0 %1923
        %1925 = vrot.lane.b32.xlu0 %v1905, 122
        %v1926 = vpop.permute.xlu0 %1925
        %1927 = vrot.lane.b32.xlu0 %v1906, 122
        %v1928 = vpop.permute.xlu0 %1927
        %1929 = vrot.lane.b32.xlu0 %v1907, 122
        %v1930 = vpop.permute.xlu0 %1929
        %1931 = vrot.lane.b32.xlu0 %v1908, 122
        %v1932 = vpop.permute.xlu0 %1931
        %v1941 = vadd.f32 %v1763, %v1918
        %v1942 = vadd.f32 %v1764, %v1920
        %v1943 = vadd.f32 %v1765, %v1922
        %v1944 = vadd.f32 %v1766, %v1924
        %v1945 = vadd.f32 %v1767, %v1926
        %v1946 = vadd.f32 %v1768, %v1928
        %v1947 = vadd.f32 %v1769, %v1930
        %v1948 = vadd.f32 %v1770, %v1932
        %v1949 = vld [vmem:[#allocation2 + $0x2] sm:$0xff]
        %v1950 = vld [vmem:[#allocation2 + $0xa] sm:$0xff]
        %v1951 = vld [vmem:[#allocation2 + $0x1a] sm:$0xff]
        %v1952 = vld [vmem:[#allocation2 + $0x22] sm:$0xff]
        %v1953 = vld [vmem:[#allocation2 + $0x32] sm:$0xff]
        %v1954 = vld [vmem:[#allocation2 + $0x3a] sm:$0xff]
        %v1955 = vld [vmem:[#allocation2 + $0x4a] sm:$0xff]
        %v1956 = vld [vmem:[#allocation2 + $0x52] sm:$0xff]
        %s1957 = scalar_lea.vmem %s3, 56
        %v1958 = vld [vmem:[%s1957] sm:$0x1]
        %v1959 = vld [vmem:[%s1957 + $0x1] sm:$0x1]
        %v1960 = vld [vmem:[%s1957 + $0x2] sm:$0x1]
        %v1961 = vld [vmem:[%s1957 + $0x3] sm:$0x1]
        %v1966 = vlaneseq
        %v1967 = vshrl.u32 %v1966, 7
        %v1968 = vsub.s32 0, %v1967
        %v1969 = vrot.slane %v1958, %v1968
        %v1970 = vlaneseq
        %v1971 = vshrl.u32 %v1970, 7
        %v1972 = vsub.s32 0, %v1971
        %v1973 = vrot.slane %v1959, %v1972
        %v1974 = vlaneseq
        %v1975 = vshrl.u32 %v1974, 7
        %v1976 = vsub.s32 0, %v1975
        %v1977 = vrot.slane %v1960, %v1976
        %v1978 = vlaneseq
        %v1979 = vshrl.u32 %v1978, 7
        %v1980 = vsub.s32 0, %v1979
        %v1981 = vrot.slane %v1961, %v1980
        %1982 = vset.pattern.permute.xlu0 0
        %1983 = vperm.xlu0 %1982, %v1969
        %v1984 = vpop.permute.xlu0 %1983
        %1986 = vset.pattern.permute.xlu0 0
        %1987 = vperm.xlu0 %1986, %v1973
        %v1988 = vpop.permute.xlu0 %1987
        %1990 = vset.pattern.permute.xlu0 0
        %1991 = vperm.xlu0 %1990, %v1977
        %v1992 = vpop.permute.xlu0 %1991
        %1994 = vset.pattern.permute.xlu0 0
        %1995 = vperm.xlu0 %1994, %v1981
        %v1996 = vpop.permute.xlu0 %1995
        %v1998 = vmul.f32 %v1949, %v1984
        %v1999 = vmul.f32 %v1950, %v1984
        %v2000 = vmul.f32 %v1951, %v1988
        %v2001 = vmul.f32 %v1952, %v1988
        %v2002 = vmul.f32 %v1953, %v1992
        %v2003 = vmul.f32 %v1954, %v1992
        %v2004 = vmul.f32 %v1955, %v1996
        %v2005 = vmul.f32 %v1956, %v1996
        %v2006 = vadd.f32 %v1941, %v1998
        %v2007 = vadd.f32 %v1942, %v1999
        %v2008 = vadd.f32 %v1943, %v2000
        %v2009 = vadd.f32 %v1944, %v2001
        %v2010 = vadd.f32 %v1945, %v2002
        %v2011 = vadd.f32 %v1946, %v2003
        %v2012 = vadd.f32 %v1947, %v2004
        %v2013 = vadd.f32 %v1948, %v2005
        %s2014 = scalar_lea.vmem %s3, 60
        %v2015 = vld [vmem:[%s2014] sm:$0x1]
        %v2016 = vld [vmem:[%s2014 + $0x1] sm:$0x1]
        %v2017 = vld [vmem:[%s2014 + $0x2] sm:$0x1]
        %v2018 = vld [vmem:[%s2014 + $0x3] sm:$0x1]
        %v2023 = vlaneseq
        %v2024 = vshrl.u32 %v2023, 7
        %v2025 = vsub.s32 0, %v2024
        %v2026 = vrot.slane %v2015, %v2025
        %v2027 = vlaneseq
        %v2028 = vshrl.u32 %v2027, 7
        %v2029 = vsub.s32 0, %v2028
        %v2030 = vrot.slane %v2016, %v2029
        %v2031 = vlaneseq
        %v2032 = vshrl.u32 %v2031, 7
        %v2033 = vsub.s32 0, %v2032
        %v2034 = vrot.slane %v2017, %v2033
        %v2035 = vlaneseq
        %v2036 = vshrl.u32 %v2035, 7
        %v2037 = vsub.s32 0, %v2036
        %v2038 = vrot.slane %v2018, %v2037
        %2039 = vset.pattern.permute.xlu0 0
        %2040 = vperm.xlu0 %2039, %v2026
        %v2041 = vpop.permute.xlu0 %2040
        %2043 = vset.pattern.permute.xlu0 0
        %2044 = vperm.xlu0 %2043, %v2030
        %v2045 = vpop.permute.xlu0 %2044
        %2047 = vset.pattern.permute.xlu0 0
        %2048 = vperm.xlu0 %2047, %v2034
        %v2049 = vpop.permute.xlu0 %2048
        %2051 = vset.pattern.permute.xlu0 0
        %2052 = vperm.xlu0 %2051, %v2038
        %v2053 = vpop.permute.xlu0 %2052
        %v2055 = vmul.f32 %v1949, %v2041
        %v2056 = vmul.f32 %v1950, %v2041
        %v2057 = vmul.f32 %v1951, %v2045
        %v2058 = vmul.f32 %v1952, %v2045
        %v2059 = vmul.f32 %v1953, %v2049
        %v2060 = vmul.f32 %v1954, %v2049
        %v2061 = vmul.f32 %v1955, %v2053
        %v2062 = vmul.f32 %v1956, %v2053
        %2071 = vrot.lane.b32.xlu0 %v2055, 127
        %v2072 = vpop.permute.xlu0 %2071
        %2073 = vrot.lane.b32.xlu0 %v2056, 127
        %v2074 = vpop.permute.xlu0 %2073
        %2075 = vrot.lane.b32.xlu0 %v2057, 127
        %v2076 = vpop.permute.xlu0 %2075
        %2077 = vrot.lane.b32.xlu0 %v2058, 127
        %v2078 = vpop.permute.xlu0 %2077
        %2079 = vrot.lane.b32.xlu0 %v2059, 127
        %v2080 = vpop.permute.xlu0 %2079
        %2081 = vrot.lane.b32.xlu0 %v2060, 127
        %v2082 = vpop.permute.xlu0 %2081
        %2083 = vrot.lane.b32.xlu0 %v2061, 127
        %v2084 = vpop.permute.xlu0 %2083
        %2085 = vrot.lane.b32.xlu0 %v2062, 127
        %v2086 = vpop.permute.xlu0 %2085
        %v2095 = vadd.f32 %v2006, %v2072
        %v2096 = vadd.f32 %v2007, %v2074
        %v2097 = vadd.f32 %v2008, %v2076
        %v2098 = vadd.f32 %v2009, %v2078
        %v2099 = vadd.f32 %v2010, %v2080
        %v2100 = vadd.f32 %v2011, %v2082
        %v2101 = vadd.f32 %v2012, %v2084
        %v2102 = vadd.f32 %v2013, %v2086
        %s2103 = scalar_lea.vmem %s2, 20
        %v2104 = vld [vmem:[%s2103] sm:$0x1]
        %v2105 = vld [vmem:[%s2103 + $0x1] sm:$0x1]
        %v2106 = vld [vmem:[%s2103 + $0x2] sm:$0x1]
        %v2107 = vld [vmem:[%s2103 + $0x3] sm:$0x1]
        %v2112 = vlaneseq
        %v2113 = vshrl.u32 %v2112, 7
        %v2114 = vsub.s32 0, %v2113
        %v2115 = vrot.slane %v2104, %v2114
        %v2116 = vlaneseq
        %v2117 = vshrl.u32 %v2116, 7
        %v2118 = vsub.s32 0, %v2117
        %v2119 = vrot.slane %v2105, %v2118
        %v2120 = vlaneseq
        %v2121 = vshrl.u32 %v2120, 7
        %v2122 = vsub.s32 0, %v2121
        %v2123 = vrot.slane %v2106, %v2122
        %v2124 = vlaneseq
        %v2125 = vshrl.u32 %v2124, 7
        %v2126 = vsub.s32 0, %v2125
        %v2127 = vrot.slane %v2107, %v2126
        %2128 = vset.pattern.permute.xlu0 0
        %2129 = vperm.xlu0 %2128, %v2115
        %v2130 = vpop.permute.xlu0 %2129
        %2132 = vset.pattern.permute.xlu0 0
        %2133 = vperm.xlu0 %2132, %v2119
        %v2134 = vpop.permute.xlu0 %2133
        %2136 = vset.pattern.permute.xlu0 0
        %2137 = vperm.xlu0 %2136, %v2123
        %v2138 = vpop.permute.xlu0 %2137
        %2140 = vset.pattern.permute.xlu0 0
        %2141 = vperm.xlu0 %2140, %v2127
        %v2142 = vpop.permute.xlu0 %2141
        %v2144 = vmul.f32 %v1949, %v2130
        %v2145 = vmul.f32 %v1950, %v2130
        %v2146 = vmul.f32 %v1951, %v2134
        %v2147 = vmul.f32 %v1952, %v2134
        %v2148 = vmul.f32 %v1953, %v2138
        %v2149 = vmul.f32 %v1954, %v2138
        %v2150 = vmul.f32 %v1955, %v2142
        %v2151 = vmul.f32 %v1956, %v2142
        %v2152 = vadd.f32 %v1852, %v2144
        %v2153 = vadd.f32 %v1853, %v2145
        %v2154 = vadd.f32 %v1854, %v2146
        %v2155 = vadd.f32 %v1855, %v2147
        %v2156 = vadd.f32 %v1856, %v2148
        %v2157 = vadd.f32 %v1857, %v2149
        %v2158 = vadd.f32 %v1858, %v2150
        %v2159 = vadd.f32 %v1859, %v2151
        %s2160 = scalar_lea.vmem %s3, 64
        %v2161 = vld [vmem:[%s2160] sm:$0x1]
        %v2162 = vld [vmem:[%s2160 + $0x1] sm:$0x1]
        %v2163 = vld [vmem:[%s2160 + $0x2] sm:$0x1]
        %v2164 = vld [vmem:[%s2160 + $0x3] sm:$0x1]
        %v2169 = vlaneseq
        %v2170 = vshrl.u32 %v2169, 7
        %v2171 = vsub.s32 0, %v2170
        %v2172 = vrot.slane %v2161, %v2171
        %v2173 = vlaneseq
        %v2174 = vshrl.u32 %v2173, 7
        %v2175 = vsub.s32 0, %v2174
        %v2176 = vrot.slane %v2162, %v2175
        %v2177 = vlaneseq
        %v2178 = vshrl.u32 %v2177, 7
        %v2179 = vsub.s32 0, %v2178
        %v2180 = vrot.slane %v2163, %v2179
        %v2181 = vlaneseq
        %v2182 = vshrl.u32 %v2181, 7
        %v2183 = vsub.s32 0, %v2182
        %v2184 = vrot.slane %v2164, %v2183
        %2185 = vset.pattern.permute.xlu0 0
        %2186 = vperm.xlu0 %2185, %v2172
        %v2187 = vpop.permute.xlu0 %2186
        %2189 = vset.pattern.permute.xlu0 0
        %2190 = vperm.xlu0 %2189, %v2176
        %v2191 = vpop.permute.xlu0 %2190
        %2193 = vset.pattern.permute.xlu0 0
        %2194 = vperm.xlu0 %2193, %v2180
        %v2195 = vpop.permute.xlu0 %2194
        %2197 = vset.pattern.permute.xlu0 0
        %2198 = vperm.xlu0 %2197, %v2184
        %v2199 = vpop.permute.xlu0 %2198
        %v2201 = vmul.f32 %v1949, %v2187
        %v2202 = vmul.f32 %v1950, %v2187
        %v2203 = vmul.f32 %v1951, %v2191
        %v2204 = vmul.f32 %v1952, %v2191
        %v2205 = vmul.f32 %v1953, %v2195
        %v2206 = vmul.f32 %v1954, %v2195
        %v2207 = vmul.f32 %v1955, %v2199
        %v2208 = vmul.f32 %v1956, %v2199
        %2217 = vrot.lane.b32.xlu0 %v2201, 126
        %v2218 = vpop.permute.xlu0 %2217
        %2219 = vrot.lane.b32.xlu0 %v2202, 126
        %v2220 = vpop.permute.xlu0 %2219
        %2221 = vrot.lane.b32.xlu0 %v2203, 126
        %v2222 = vpop.permute.xlu0 %2221
        %2223 = vrot.lane.b32.xlu0 %v2204, 126
        %v2224 = vpop.permute.xlu0 %2223
        %2225 = vrot.lane.b32.xlu0 %v2205, 126
        %v2226 = vpop.permute.xlu0 %2225
        %2227 = vrot.lane.b32.xlu0 %v2206, 126
        %v2228 = vpop.permute.xlu0 %2227
        %2229 = vrot.lane.b32.xlu0 %v2207, 126
        %v2230 = vpop.permute.xlu0 %2229
        %2231 = vrot.lane.b32.xlu0 %v2208, 126
        %v2232 = vpop.permute.xlu0 %2231
        %v2241 = vadd.f32 %v2095, %v2218
        %v2242 = vadd.f32 %v2096, %v2220
        %v2243 = vadd.f32 %v2097, %v2222
        %v2244 = vadd.f32 %v2098, %v2224
        %v2245 = vadd.f32 %v2099, %v2226
        %v2246 = vadd.f32 %v2100, %v2228
        %v2247 = vadd.f32 %v2101, %v2230
        %v2248 = vadd.f32 %v2102, %v2232
        %s2249 = scalar_lea.vmem %s2, 24
        %v2250 = vld [vmem:[%s2249] sm:$0x1]
        %v2251 = vld [vmem:[%s2249 + $0x1] sm:$0x1]
        %v2252 = vld [vmem:[%s2249 + $0x2] sm:$0x1]
        %v2253 = vld [vmem:[%s2249 + $0x3] sm:$0x1]
        %v2258 = vlaneseq
        %v2259 = vshrl.u32 %v2258, 7
        %v2260 = vsub.s32 0, %v2259
        %v2261 = vrot.slane %v2250, %v2260
        %v2262 = vlaneseq
        %v2263 = vshrl.u32 %v2262, 7
        %v2264 = vsub.s32 0, %v2263
        %v2265 = vrot.slane %v2251, %v2264
        %v2266 = vlaneseq
        %v2267 = vshrl.u32 %v2266, 7
        %v2268 = vsub.s32 0, %v2267
        %v2269 = vrot.slane %v2252, %v2268
        %v2270 = vlaneseq
        %v2271 = vshrl.u32 %v2270, 7
        %v2272 = vsub.s32 0, %v2271
        %v2273 = vrot.slane %v2253, %v2272
        %2274 = vset.pattern.permute.xlu0 0
        %2275 = vperm.xlu0 %2274, %v2261
        %v2276 = vpop.permute.xlu0 %2275
        %2278 = vset.pattern.permute.xlu0 0
        %2279 = vperm.xlu0 %2278, %v2265
        %v2280 = vpop.permute.xlu0 %2279
        %2282 = vset.pattern.permute.xlu0 0
        %2283 = vperm.xlu0 %2282, %v2269
        %v2284 = vpop.permute.xlu0 %2283
        %2286 = vset.pattern.permute.xlu0 0
        %2287 = vperm.xlu0 %2286, %v2273
        %v2288 = vpop.permute.xlu0 %2287
        %v2290 = vmul.f32 %v1949, %v2276
        %v2291 = vmul.f32 %v1950, %v2276
        %v2292 = vmul.f32 %v1951, %v2280
        %v2293 = vmul.f32 %v1952, %v2280
        %v2294 = vmul.f32 %v1953, %v2284
        %v2295 = vmul.f32 %v1954, %v2284
        %v2296 = vmul.f32 %v1955, %v2288
        %v2297 = vmul.f32 %v1956, %v2288
        %2306 = vrot.lane.b32.xlu0 %v2290, 127
        %v2307 = vpop.permute.xlu0 %2306
        %2308 = vrot.lane.b32.xlu0 %v2291, 127
        %v2309 = vpop.permute.xlu0 %2308
        %2310 = vrot.lane.b32.xlu0 %v2292, 127
        %v2311 = vpop.permute.xlu0 %2310
        %2312 = vrot.lane.b32.xlu0 %v2293, 127
        %v2313 = vpop.permute.xlu0 %2312
        %2314 = vrot.lane.b32.xlu0 %v2294, 127
        %v2315 = vpop.permute.xlu0 %2314
        %2316 = vrot.lane.b32.xlu0 %v2295, 127
        %v2317 = vpop.permute.xlu0 %2316
        %2318 = vrot.lane.b32.xlu0 %v2296, 127
        %v2319 = vpop.permute.xlu0 %2318
        %2320 = vrot.lane.b32.xlu0 %v2297, 127
        %v2321 = vpop.permute.xlu0 %2320
        %v2330 = vadd.f32 %v2152, %v2307
        %v2331 = vadd.f32 %v2153, %v2309
        %v2332 = vadd.f32 %v2154, %v2311
        %v2333 = vadd.f32 %v2155, %v2313
        %v2334 = vadd.f32 %v2156, %v2315
        %v2335 = vadd.f32 %v2157, %v2317
        %v2336 = vadd.f32 %v2158, %v2319
        %v2337 = vadd.f32 %v2159, %v2321
        %v2338 = vld [vmem:[%s1] sm:$0x1]
        %v2339 = vld [vmem:[%s1 + $0x1] sm:$0x1]
        %v2340 = vld [vmem:[%s1 + $0x2] sm:$0x1]
        %v2341 = vld [vmem:[%s1 + $0x3] sm:$0x1]
        %v2346 = vlaneseq
        %v2347 = vshrl.u32 %v2346, 7
        %v2348 = vsub.s32 0, %v2347
        %v2349 = vrot.slane %v2338, %v2348
        %v2350 = vlaneseq
        %v2351 = vshrl.u32 %v2350, 7
        %v2352 = vsub.s32 0, %v2351
        %v2353 = vrot.slane %v2339, %v2352
        %v2354 = vlaneseq
        %v2355 = vshrl.u32 %v2354, 7
        %v2356 = vsub.s32 0, %v2355
        %v2357 = vrot.slane %v2340, %v2356
        %v2358 = vlaneseq
        %v2359 = vshrl.u32 %v2358, 7
        %v2360 = vsub.s32 0, %v2359
        %v2361 = vrot.slane %v2341, %v2360
        %2362 = vset.pattern.permute.xlu0 0
        %2363 = vperm.xlu0 %2362, %v2349
        %v2364 = vpop.permute.xlu0 %2363
        %2366 = vset.pattern.permute.xlu0 0
        %2367 = vperm.xlu0 %2366, %v2353
        %v2368 = vpop.permute.xlu0 %2367
        %2370 = vset.pattern.permute.xlu0 0
        %2371 = vperm.xlu0 %2370, %v2357
        %v2372 = vpop.permute.xlu0 %2371
        %2374 = vset.pattern.permute.xlu0 0
        %2375 = vperm.xlu0 %2374, %v2361
        %v2376 = vpop.permute.xlu0 %2375
        %v2378 = vmul.f32 %v1949, %v2364
        %v2379 = vmul.f32 %v1950, %v2364
        %v2380 = vmul.f32 %v1951, %v2368
        %v2381 = vmul.f32 %v1952, %v2368
        %v2382 = vmul.f32 %v1953, %v2372
        %v2383 = vmul.f32 %v1954, %v2372
        %v2384 = vmul.f32 %v1955, %v2376
        %v2385 = vmul.f32 %v1956, %v2376
        %v2386 = vadd.f32 %v2378, 0.0
        %v2387 = vadd.f32 %v2379, 0.0
        %v2388 = vadd.f32 %v2380, 0.0
        %v2389 = vadd.f32 %v2381, 0.0
        %v2390 = vadd.f32 %v2382, 0.0
        %v2391 = vadd.f32 %v2383, 0.0
        %v2392 = vadd.f32 %v2384, 0.0
        %v2393 = vadd.f32 %v2385, 0.0
        %s2394 = scalar_lea.vmem %s3, 68
        %v2395 = vld [vmem:[%s2394] sm:$0x1]
        %v2396 = vld [vmem:[%s2394 + $0x1] sm:$0x1]
        %v2397 = vld [vmem:[%s2394 + $0x2] sm:$0x1]
        %v2398 = vld [vmem:[%s2394 + $0x3] sm:$0x1]
        %v2403 = vlaneseq
        %v2404 = vshrl.u32 %v2403, 7
        %v2405 = vsub.s32 0, %v2404
        %v2406 = vrot.slane %v2395, %v2405
        %v2407 = vlaneseq
        %v2408 = vshrl.u32 %v2407, 7
        %v2409 = vsub.s32 0, %v2408
        %v2410 = vrot.slane %v2396, %v2409
        %v2411 = vlaneseq
        %v2412 = vshrl.u32 %v2411, 7
        %v2413 = vsub.s32 0, %v2412
        %v2414 = vrot.slane %v2397, %v2413
        %v2415 = vlaneseq
        %v2416 = vshrl.u32 %v2415, 7
        %v2417 = vsub.s32 0, %v2416
        %v2418 = vrot.slane %v2398, %v2417
        %2419 = vset.pattern.permute.xlu0 0
        %2420 = vperm.xlu0 %2419, %v2406
        %v2421 = vpop.permute.xlu0 %2420
        %2423 = vset.pattern.permute.xlu0 0
        %2424 = vperm.xlu0 %2423, %v2410
        %v2425 = vpop.permute.xlu0 %2424
        %2427 = vset.pattern.permute.xlu0 0
        %2428 = vperm.xlu0 %2427, %v2414
        %v2429 = vpop.permute.xlu0 %2428
        %2431 = vset.pattern.permute.xlu0 0
        %2432 = vperm.xlu0 %2431, %v2418
        %v2433 = vpop.permute.xlu0 %2432
        %v2435 = vmul.f32 %v1949, %v2421
        %v2436 = vmul.f32 %v1950, %v2421
        %v2437 = vmul.f32 %v1951, %v2425
        %v2438 = vmul.f32 %v1952, %v2425
        %v2439 = vmul.f32 %v1953, %v2429
        %v2440 = vmul.f32 %v1954, %v2429
        %v2441 = vmul.f32 %v1955, %v2433
        %v2442 = vmul.f32 %v1956, %v2433
        %2451 = vrot.lane.b32.xlu0 %v2435, 125
        %v2452 = vpop.permute.xlu0 %2451
        %2453 = vrot.lane.b32.xlu0 %v2436, 125
        %v2454 = vpop.permute.xlu0 %2453
        %2455 = vrot.lane.b32.xlu0 %v2437, 125
        %v2456 = vpop.permute.xlu0 %2455
        %2457 = vrot.lane.b32.xlu0 %v2438, 125
        %v2458 = vpop.permute.xlu0 %2457
        %2459 = vrot.lane.b32.xlu0 %v2439, 125
        %v2460 = vpop.permute.xlu0 %2459
        %2461 = vrot.lane.b32.xlu0 %v2440, 125
        %v2462 = vpop.permute.xlu0 %2461
        %2463 = vrot.lane.b32.xlu0 %v2441, 125
        %v2464 = vpop.permute.xlu0 %2463
        %2465 = vrot.lane.b32.xlu0 %v2442, 125
        %v2466 = vpop.permute.xlu0 %2465
        %v2475 = vadd.f32 %v2241, %v2452
        %v2476 = vadd.f32 %v2242, %v2454
        %v2477 = vadd.f32 %v2243, %v2456
        %v2478 = vadd.f32 %v2244, %v2458
        %v2479 = vadd.f32 %v2245, %v2460
        %v2480 = vadd.f32 %v2246, %v2462
        %v2481 = vadd.f32 %v2247, %v2464
        %v2482 = vadd.f32 %v2248, %v2466
        %s2483 = scalar_lea.vmem %s2, 28
        %v2484 = vld [vmem:[%s2483] sm:$0x1]
        %v2485 = vld [vmem:[%s2483 + $0x1] sm:$0x1]
        %v2486 = vld [vmem:[%s2483 + $0x2] sm:$0x1]
        %v2487 = vld [vmem:[%s2483 + $0x3] sm:$0x1]
        %v2492 = vlaneseq
        %v2493 = vshrl.u32 %v2492, 7
        %v2494 = vsub.s32 0, %v2493
        %v2495 = vrot.slane %v2484, %v2494
        %v2496 = vlaneseq
        %v2497 = vshrl.u32 %v2496, 7
        %v2498 = vsub.s32 0, %v2497
        %v2499 = vrot.slane %v2485, %v2498
        %v2500 = vlaneseq
        %v2501 = vshrl.u32 %v2500, 7
        %v2502 = vsub.s32 0, %v2501
        %v2503 = vrot.slane %v2486, %v2502
        %v2504 = vlaneseq
        %v2505 = vshrl.u32 %v2504, 7
        %v2506 = vsub.s32 0, %v2505
        %v2507 = vrot.slane %v2487, %v2506
        %2508 = vset.pattern.permute.xlu0 0
        %2509 = vperm.xlu0 %2508, %v2495
        %v2510 = vpop.permute.xlu0 %2509
        %2512 = vset.pattern.permute.xlu0 0
        %2513 = vperm.xlu0 %2512, %v2499
        %v2514 = vpop.permute.xlu0 %2513
        %2516 = vset.pattern.permute.xlu0 0
        %2517 = vperm.xlu0 %2516, %v2503
        %v2518 = vpop.permute.xlu0 %2517
        %2520 = vset.pattern.permute.xlu0 0
        %2521 = vperm.xlu0 %2520, %v2507
        %v2522 = vpop.permute.xlu0 %2521
        %v2524 = vmul.f32 %v1949, %v2510
        %v2525 = vmul.f32 %v1950, %v2510
        %v2526 = vmul.f32 %v1951, %v2514
        %v2527 = vmul.f32 %v1952, %v2514
        %v2528 = vmul.f32 %v1953, %v2518
        %v2529 = vmul.f32 %v1954, %v2518
        %v2530 = vmul.f32 %v1955, %v2522
        %v2531 = vmul.f32 %v1956, %v2522
        %2540 = vrot.lane.b32.xlu0 %v2524, 126
        %v2541 = vpop.permute.xlu0 %2540
        %2542 = vrot.lane.b32.xlu0 %v2525, 126
        %v2543 = vpop.permute.xlu0 %2542
        %2544 = vrot.lane.b32.xlu0 %v2526, 126
        %v2545 = vpop.permute.xlu0 %2544
        %2546 = vrot.lane.b32.xlu0 %v2527, 126
        %v2547 = vpop.permute.xlu0 %2546
        %2548 = vrot.lane.b32.xlu0 %v2528, 126
        %v2549 = vpop.permute.xlu0 %2548
        %2550 = vrot.lane.b32.xlu0 %v2529, 126
        %v2551 = vpop.permute.xlu0 %2550
        %2552 = vrot.lane.b32.xlu0 %v2530, 126
        %v2553 = vpop.permute.xlu0 %2552
        %2554 = vrot.lane.b32.xlu0 %v2531, 126
        %v2555 = vpop.permute.xlu0 %2554
        %v2564 = vadd.f32 %v2330, %v2541
        %v2565 = vadd.f32 %v2331, %v2543
        %v2566 = vadd.f32 %v2332, %v2545
        %v2567 = vadd.f32 %v2333, %v2547
        %v2568 = vadd.f32 %v2334, %v2549
        %v2569 = vadd.f32 %v2335, %v2551
        %v2570 = vadd.f32 %v2336, %v2553
        %v2571 = vadd.f32 %v2337, %v2555
        %s2572 = scalar_lea.vmem %s1, 4
        %v2573 = vld [vmem:[%s2572] sm:$0x1]
        %v2574 = vld [vmem:[%s2572 + $0x1] sm:$0x1]
        %v2575 = vld [vmem:[%s2572 + $0x2] sm:$0x1]
        %v2576 = vld [vmem:[%s2572 + $0x3] sm:$0x1]
        %v2581 = vlaneseq
        %v2582 = vshrl.u32 %v2581, 7
        %v2583 = vsub.s32 0, %v2582
        %v2584 = vrot.slane %v2573, %v2583
        %v2585 = vlaneseq
        %v2586 = vshrl.u32 %v2585, 7
        %v2587 = vsub.s32 0, %v2586
        %v2588 = vrot.slane %v2574, %v2587
        %v2589 = vlaneseq
        %v2590 = vshrl.u32 %v2589, 7
        %v2591 = vsub.s32 0, %v2590
        %v2592 = vrot.slane %v2575, %v2591
        %v2593 = vlaneseq
        %v2594 = vshrl.u32 %v2593, 7
        %v2595 = vsub.s32 0, %v2594
        %v2596 = vrot.slane %v2576, %v2595
        %2597 = vset.pattern.permute.xlu0 0
        %2598 = vperm.xlu0 %2597, %v2584
        %v2599 = vpop.permute.xlu0 %2598
        %2601 = vset.pattern.permute.xlu0 0
        %2602 = vperm.xlu0 %2601, %v2588
        %v2603 = vpop.permute.xlu0 %2602
        %2605 = vset.pattern.permute.xlu0 0
        %2606 = vperm.xlu0 %2605, %v2592
        %v2607 = vpop.permute.xlu0 %2606
        %2609 = vset.pattern.permute.xlu0 0
        %2610 = vperm.xlu0 %2609, %v2596
        %v2611 = vpop.permute.xlu0 %2610
        %v2613 = vmul.f32 %v1949, %v2599
        %v2614 = vmul.f32 %v1950, %v2599
        %v2615 = vmul.f32 %v1951, %v2603
        %v2616 = vmul.f32 %v1952, %v2603
        %v2617 = vmul.f32 %v1953, %v2607
        %v2618 = vmul.f32 %v1954, %v2607
        %v2619 = vmul.f32 %v1955, %v2611
        %v2620 = vmul.f32 %v1956, %v2611
        %2629 = vrot.lane.b32.xlu0 %v2613, 127
        %v2630 = vpop.permute.xlu0 %2629
        %2631 = vrot.lane.b32.xlu0 %v2614, 127
        %v2632 = vpop.permute.xlu0 %2631
        %2633 = vrot.lane.b32.xlu0 %v2615, 127
        %v2634 = vpop.permute.xlu0 %2633
        %2635 = vrot.lane.b32.xlu0 %v2616, 127
        %v2636 = vpop.permute.xlu0 %2635
        %2637 = vrot.lane.b32.xlu0 %v2617, 127
        %v2638 = vpop.permute.xlu0 %2637
        %2639 = vrot.lane.b32.xlu0 %v2618, 127
        %v2640 = vpop.permute.xlu0 %2639
        %2641 = vrot.lane.b32.xlu0 %v2619, 127
        %v2642 = vpop.permute.xlu0 %2641
        %2643 = vrot.lane.b32.xlu0 %v2620, 127
        %v2644 = vpop.permute.xlu0 %2643
        %v2653 = vadd.f32 %v2386, %v2630
        %v2654 = vadd.f32 %v2387, %v2632
        %v2655 = vadd.f32 %v2388, %v2634
        %v2656 = vadd.f32 %v2389, %v2636
        %v2657 = vadd.f32 %v2390, %v2638
        %v2658 = vadd.f32 %v2391, %v2640
        %v2659 = vadd.f32 %v2392, %v2642
        %v2660 = vadd.f32 %v2393, %v2644
        %s2661 = scalar_lea.vmem %s3, 72
        %v2662 = vld [vmem:[%s2661] sm:$0x1]
        %v2663 = vld [vmem:[%s2661 + $0x1] sm:$0x1]
        %v2664 = vld [vmem:[%s2661 + $0x2] sm:$0x1]
        %v2665 = vld [vmem:[%s2661 + $0x3] sm:$0x1]
        %v2670 = vlaneseq
        %v2671 = vshrl.u32 %v2670, 7
        %v2672 = vsub.s32 0, %v2671
        %v2673 = vrot.slane %v2662, %v2672
        %v2674 = vlaneseq
        %v2675 = vshrl.u32 %v2674, 7
        %v2676 = vsub.s32 0, %v2675
        %v2677 = vrot.slane %v2663, %v2676
        %v2678 = vlaneseq
        %v2679 = vshrl.u32 %v2678, 7
        %v2680 = vsub.s32 0, %v2679
        %v2681 = vrot.slane %v2664, %v2680
        %v2682 = vlaneseq
        %v2683 = vshrl.u32 %v2682, 7
        %v2684 = vsub.s32 0, %v2683
        %v2685 = vrot.slane %v2665, %v2684
        %2686 = vset.pattern.permute.xlu0 0
        %2687 = vperm.xlu0 %2686, %v2673
        %v2688 = vpop.permute.xlu0 %2687
        %2690 = vset.pattern.permute.xlu0 0
        %2691 = vperm.xlu0 %2690, %v2677
        %v2692 = vpop.permute.xlu0 %2691
        %2694 = vset.pattern.permute.xlu0 0
        %2695 = vperm.xlu0 %2694, %v2681
        %v2696 = vpop.permute.xlu0 %2695
        %2698 = vset.pattern.permute.xlu0 0
        %2699 = vperm.xlu0 %2698, %v2685
        %v2700 = vpop.permute.xlu0 %2699
        %v2702 = vmul.f32 %v1949, %v2688
        %v2703 = vmul.f32 %v1950, %v2688
        %v2704 = vmul.f32 %v1951, %v2692
        %v2705 = vmul.f32 %v1952, %v2692
        %v2706 = vmul.f32 %v1953, %v2696
        %v2707 = vmul.f32 %v1954, %v2696
        %v2708 = vmul.f32 %v1955, %v2700
        %v2709 = vmul.f32 %v1956, %v2700
        %2718 = vrot.lane.b32.xlu0 %v2702, 124
        %v2719 = vpop.permute.xlu0 %2718
        %2720 = vrot.lane.b32.xlu0 %v2703, 124
        %v2721 = vpop.permute.xlu0 %2720
        %2722 = vrot.lane.b32.xlu0 %v2704, 124
        %v2723 = vpop.permute.xlu0 %2722
        %2724 = vrot.lane.b32.xlu0 %v2705, 124
        %v2725 = vpop.permute.xlu0 %2724
        %2726 = vrot.lane.b32.xlu0 %v2706, 124
        %v2727 = vpop.permute.xlu0 %2726
        %2728 = vrot.lane.b32.xlu0 %v2707, 124
        %v2729 = vpop.permute.xlu0 %2728
        %2730 = vrot.lane.b32.xlu0 %v2708, 124
        %v2731 = vpop.permute.xlu0 %2730
        %2732 = vrot.lane.b32.xlu0 %v2709, 124
        %v2733 = vpop.permute.xlu0 %2732
        %v2742 = vadd.f32 %v2475, %v2719
        %v2743 = vadd.f32 %v2476, %v2721
        %v2744 = vadd.f32 %v2477, %v2723
        %v2745 = vadd.f32 %v2478, %v2725
        %v2746 = vadd.f32 %v2479, %v2727
        %v2747 = vadd.f32 %v2480, %v2729
        %v2748 = vadd.f32 %v2481, %v2731
        %v2749 = vadd.f32 %v2482, %v2733
        %s2750 = scalar_lea.vmem %s2, 32
        %v2751 = vld [vmem:[%s2750] sm:$0x1]
        %v2752 = vld [vmem:[%s2750 + $0x1] sm:$0x1]
        %v2753 = vld [vmem:[%s2750 + $0x2] sm:$0x1]
        %v2754 = vld [vmem:[%s2750 + $0x3] sm:$0x1]
        %v2759 = vlaneseq
        %v2760 = vshrl.u32 %v2759, 7
        %v2761 = vsub.s32 0, %v2760
        %v2762 = vrot.slane %v2751, %v2761
        %v2763 = vlaneseq
        %v2764 = vshrl.u32 %v2763, 7
        %v2765 = vsub.s32 0, %v2764
        %v2766 = vrot.slane %v2752, %v2765
        %v2767 = vlaneseq
        %v2768 = vshrl.u32 %v2767, 7
        %v2769 = vsub.s32 0, %v2768
        %v2770 = vrot.slane %v2753, %v2769
        %v2771 = vlaneseq
        %v2772 = vshrl.u32 %v2771, 7
        %v2773 = vsub.s32 0, %v2772
        %v2774 = vrot.slane %v2754, %v2773
        %2775 = vset.pattern.permute.xlu0 0
        %2776 = vperm.xlu0 %2775, %v2762
        %v2777 = vpop.permute.xlu0 %2776
        %2779 = vset.pattern.permute.xlu0 0
        %2780 = vperm.xlu0 %2779, %v2766
        %v2781 = vpop.permute.xlu0 %2780
        %2783 = vset.pattern.permute.xlu0 0
        %2784 = vperm.xlu0 %2783, %v2770
        %v2785 = vpop.permute.xlu0 %2784
        %2787 = vset.pattern.permute.xlu0 0
        %2788 = vperm.xlu0 %2787, %v2774
        %v2789 = vpop.permute.xlu0 %2788
        %v2791 = vmul.f32 %v1949, %v2777
        %v2792 = vmul.f32 %v1950, %v2777
        %v2793 = vmul.f32 %v1951, %v2781
        %v2794 = vmul.f32 %v1952, %v2781
        %v2795 = vmul.f32 %v1953, %v2785
        %v2796 = vmul.f32 %v1954, %v2785
        %v2797 = vmul.f32 %v1955, %v2789
        %v2798 = vmul.f32 %v1956, %v2789
        %2807 = vrot.lane.b32.xlu0 %v2791, 125
        %v2808 = vpop.permute.xlu0 %2807
        %2809 = vrot.lane.b32.xlu0 %v2792, 125
        %v2810 = vpop.permute.xlu0 %2809
        %2811 = vrot.lane.b32.xlu0 %v2793, 125
        %v2812 = vpop.permute.xlu0 %2811
        %2813 = vrot.lane.b32.xlu0 %v2794, 125
        %v2814 = vpop.permute.xlu0 %2813
        %2815 = vrot.lane.b32.xlu0 %v2795, 125
        %v2816 = vpop.permute.xlu0 %2815
        %2817 = vrot.lane.b32.xlu0 %v2796, 125
        %v2818 = vpop.permute.xlu0 %2817
        %2819 = vrot.lane.b32.xlu0 %v2797, 125
        %v2820 = vpop.permute.xlu0 %2819
        %2821 = vrot.lane.b32.xlu0 %v2798, 125
        %v2822 = vpop.permute.xlu0 %2821
        %v2831 = vadd.f32 %v2564, %v2808
        %v2832 = vadd.f32 %v2565, %v2810
        %v2833 = vadd.f32 %v2566, %v2812
        %v2834 = vadd.f32 %v2567, %v2814
        %v2835 = vadd.f32 %v2568, %v2816
        %v2836 = vadd.f32 %v2569, %v2818
        %v2837 = vadd.f32 %v2570, %v2820
        %v2838 = vadd.f32 %v2571, %v2822
        %s2839 = scalar_lea.vmem %s1, 8
        %v2840 = vld [vmem:[%s2839] sm:$0x1]
        %v2841 = vld [vmem:[%s2839 + $0x1] sm:$0x1]
        %v2842 = vld [vmem:[%s2839 + $0x2] sm:$0x1]
        %v2843 = vld [vmem:[%s2839 + $0x3] sm:$0x1]
        %v2848 = vlaneseq
        %v2849 = vshrl.u32 %v2848, 7
        %v2850 = vsub.s32 0, %v2849
        %v2851 = vrot.slane %v2840, %v2850
        %v2852 = vlaneseq
        %v2853 = vshrl.u32 %v2852, 7
        %v2854 = vsub.s32 0, %v2853
        %v2855 = vrot.slane %v2841, %v2854
        %v2856 = vlaneseq
        %v2857 = vshrl.u32 %v2856, 7
        %v2858 = vsub.s32 0, %v2857
        %v2859 = vrot.slane %v2842, %v2858
        %v2860 = vlaneseq
        %v2861 = vshrl.u32 %v2860, 7
        %v2862 = vsub.s32 0, %v2861
        %v2863 = vrot.slane %v2843, %v2862
        %2864 = vset.pattern.permute.xlu0 0
        %2865 = vperm.xlu0 %2864, %v2851
        %v2866 = vpop.permute.xlu0 %2865
        %2868 = vset.pattern.permute.xlu0 0
        %2869 = vperm.xlu0 %2868, %v2855
        %v2870 = vpop.permute.xlu0 %2869
        %2872 = vset.pattern.permute.xlu0 0
        %2873 = vperm.xlu0 %2872, %v2859
        %v2874 = vpop.permute.xlu0 %2873
        %2876 = vset.pattern.permute.xlu0 0
        %2877 = vperm.xlu0 %2876, %v2863
        %v2878 = vpop.permute.xlu0 %2877
        %v2880 = vmul.f32 %v1949, %v2866
        %v2881 = vmul.f32 %v1950, %v2866
        %v2882 = vmul.f32 %v1951, %v2870
        %v2883 = vmul.f32 %v1952, %v2870
        %v2884 = vmul.f32 %v1953, %v2874
        %v2885 = vmul.f32 %v1954, %v2874
        %v2886 = vmul.f32 %v1955, %v2878
        %v2887 = vmul.f32 %v1956, %v2878
        %2896 = vrot.lane.b32.xlu0 %v2880, 126
        %v2897 = vpop.permute.xlu0 %2896
        %2898 = vrot.lane.b32.xlu0 %v2881, 126
        %v2899 = vpop.permute.xlu0 %2898
        %2900 = vrot.lane.b32.xlu0 %v2882, 126
        %v2901 = vpop.permute.xlu0 %2900
        %2902 = vrot.lane.b32.xlu0 %v2883, 126
        %v2903 = vpop.permute.xlu0 %2902
        %2904 = vrot.lane.b32.xlu0 %v2884, 126
        %v2905 = vpop.permute.xlu0 %2904
        %2906 = vrot.lane.b32.xlu0 %v2885, 126
        %v2907 = vpop.permute.xlu0 %2906
        %2908 = vrot.lane.b32.xlu0 %v2886, 126
        %v2909 = vpop.permute.xlu0 %2908
        %2910 = vrot.lane.b32.xlu0 %v2887, 126
        %v2911 = vpop.permute.xlu0 %2910
        %v2920 = vadd.f32 %v2653, %v2897
        %v2921 = vadd.f32 %v2654, %v2899
        %v2922 = vadd.f32 %v2655, %v2901
        %v2923 = vadd.f32 %v2656, %v2903
        %v2924 = vadd.f32 %v2657, %v2905
        %v2925 = vadd.f32 %v2658, %v2907
        %v2926 = vadd.f32 %v2659, %v2909
        %v2927 = vadd.f32 %v2660, %v2911
        %s2928 = scalar_lea.vmem %s3, 76
        %v2929 = vld [vmem:[%s2928] sm:$0x1]
        %v2930 = vld [vmem:[%s2928 + $0x1] sm:$0x1]
        %v2931 = vld [vmem:[%s2928 + $0x2] sm:$0x1]
        %v2932 = vld [vmem:[%s2928 + $0x3] sm:$0x1]
        %v2937 = vlaneseq
        %v2938 = vshrl.u32 %v2937, 7
        %v2939 = vsub.s32 0, %v2938
        %v2940 = vrot.slane %v2929, %v2939
        %v2941 = vlaneseq
        %v2942 = vshrl.u32 %v2941, 7
        %v2943 = vsub.s32 0, %v2942
        %v2944 = vrot.slane %v2930, %v2943
        %v2945 = vlaneseq
        %v2946 = vshrl.u32 %v2945, 7
        %v2947 = vsub.s32 0, %v2946
        %v2948 = vrot.slane %v2931, %v2947
        %v2949 = vlaneseq
        %v2950 = vshrl.u32 %v2949, 7
        %v2951 = vsub.s32 0, %v2950
        %v2952 = vrot.slane %v2932, %v2951
        %2953 = vset.pattern.permute.xlu0 0
        %2954 = vperm.xlu0 %2953, %v2940
        %v2955 = vpop.permute.xlu0 %2954
        %2957 = vset.pattern.permute.xlu0 0
        %2958 = vperm.xlu0 %2957, %v2944
        %v2959 = vpop.permute.xlu0 %2958
        %2961 = vset.pattern.permute.xlu0 0
        %2962 = vperm.xlu0 %2961, %v2948
        %v2963 = vpop.permute.xlu0 %2962
        %2965 = vset.pattern.permute.xlu0 0
        %2966 = vperm.xlu0 %2965, %v2952
        %v2967 = vpop.permute.xlu0 %2966
        %v2969 = vmul.f32 %v1949, %v2955
        %v2970 = vmul.f32 %v1950, %v2955
        %v2971 = vmul.f32 %v1951, %v2959
        %v2972 = vmul.f32 %v1952, %v2959
        %v2973 = vmul.f32 %v1953, %v2963
        %v2974 = vmul.f32 %v1954, %v2963
        %v2975 = vmul.f32 %v1955, %v2967
        %v2976 = vmul.f32 %v1956, %v2967
        %2985 = vrot.lane.b32.xlu0 %v2969, 123
        %v2986 = vpop.permute.xlu0 %2985
        %2987 = vrot.lane.b32.xlu0 %v2970, 123
        %v2988 = vpop.permute.xlu0 %2987
        %2989 = vrot.lane.b32.xlu0 %v2971, 123
        %v2990 = vpop.permute.xlu0 %2989
        %2991 = vrot.lane.b32.xlu0 %v2972, 123
        %v2992 = vpop.permute.xlu0 %2991
        %2993 = vrot.lane.b32.xlu0 %v2973, 123
        %v2994 = vpop.permute.xlu0 %2993
        %2995 = vrot.lane.b32.xlu0 %v2974, 123
        %v2996 = vpop.permute.xlu0 %2995
        %2997 = vrot.lane.b32.xlu0 %v2975, 123
        %v2998 = vpop.permute.xlu0 %2997
        %2999 = vrot.lane.b32.xlu0 %v2976, 123
        %v3000 = vpop.permute.xlu0 %2999
        %v3009 = vadd.f32 %v2742, %v2986
        %v3010 = vadd.f32 %v2743, %v2988
        %v3011 = vadd.f32 %v2744, %v2990
        %v3012 = vadd.f32 %v2745, %v2992
        %v3013 = vadd.f32 %v2746, %v2994
        %v3014 = vadd.f32 %v2747, %v2996
        %v3015 = vadd.f32 %v2748, %v2998
        %v3016 = vadd.f32 %v2749, %v3000
        %s3017 = scalar_lea.vmem %s2, 36
        %v3018 = vld [vmem:[%s3017] sm:$0x1]
        %v3019 = vld [vmem:[%s3017 + $0x1] sm:$0x1]
        %v3020 = vld [vmem:[%s3017 + $0x2] sm:$0x1]
        %v3021 = vld [vmem:[%s3017 + $0x3] sm:$0x1]
        %v3026 = vlaneseq
        %v3027 = vshrl.u32 %v3026, 7
        %v3028 = vsub.s32 0, %v3027
        %v3029 = vrot.slane %v3018, %v3028
        %v3030 = vlaneseq
        %v3031 = vshrl.u32 %v3030, 7
        %v3032 = vsub.s32 0, %v3031
        %v3033 = vrot.slane %v3019, %v3032
        %v3034 = vlaneseq
        %v3035 = vshrl.u32 %v3034, 7
        %v3036 = vsub.s32 0, %v3035
        %v3037 = vrot.slane %v3020, %v3036
        %v3038 = vlaneseq
        %v3039 = vshrl.u32 %v3038, 7
        %v3040 = vsub.s32 0, %v3039
        %v3041 = vrot.slane %v3021, %v3040
        %3042 = vset.pattern.permute.xlu0 0
        %3043 = vperm.xlu0 %3042, %v3029
        %v3044 = vpop.permute.xlu0 %3043
        %3046 = vset.pattern.permute.xlu0 0
        %3047 = vperm.xlu0 %3046, %v3033
        %v3048 = vpop.permute.xlu0 %3047
        %3050 = vset.pattern.permute.xlu0 0
        %3051 = vperm.xlu0 %3050, %v3037
        %v3052 = vpop.permute.xlu0 %3051
        %3054 = vset.pattern.permute.xlu0 0
        %3055 = vperm.xlu0 %3054, %v3041
        %v3056 = vpop.permute.xlu0 %3055
        %v3058 = vmul.f32 %v1949, %v3044
        %v3059 = vmul.f32 %v1950, %v3044
        %v3060 = vmul.f32 %v1951, %v3048
        %v3061 = vmul.f32 %v1952, %v3048
        %v3062 = vmul.f32 %v1953, %v3052
        %v3063 = vmul.f32 %v1954, %v3052
        %v3064 = vmul.f32 %v1955, %v3056
        %v3065 = vmul.f32 %v1956, %v3056
        %3074 = vrot.lane.b32.xlu0 %v3058, 124
        %v3075 = vpop.permute.xlu0 %3074
        %3076 = vrot.lane.b32.xlu0 %v3059, 124
        %v3077 = vpop.permute.xlu0 %3076
        %3078 = vrot.lane.b32.xlu0 %v3060, 124
        %v3079 = vpop.permute.xlu0 %3078
        %3080 = vrot.lane.b32.xlu0 %v3061, 124
        %v3081 = vpop.permute.xlu0 %3080
        %3082 = vrot.lane.b32.xlu0 %v3062, 124
        %v3083 = vpop.permute.xlu0 %3082
        %3084 = vrot.lane.b32.xlu0 %v3063, 124
        %v3085 = vpop.permute.xlu0 %3084
        %3086 = vrot.lane.b32.xlu0 %v3064, 124
        %v3087 = vpop.permute.xlu0 %3086
        %3088 = vrot.lane.b32.xlu0 %v3065, 124
        %v3089 = vpop.permute.xlu0 %3088
        %v3098 = vadd.f32 %v2831, %v3075
        %v3099 = vadd.f32 %v2832, %v3077
        %v3100 = vadd.f32 %v2833, %v3079
        %v3101 = vadd.f32 %v2834, %v3081
        %v3102 = vadd.f32 %v2835, %v3083
        %v3103 = vadd.f32 %v2836, %v3085
        %v3104 = vadd.f32 %v2837, %v3087
        %v3105 = vadd.f32 %v2838, %v3089
        %s3106 = scalar_lea.vmem %s3, 80
        %v3107 = vld [vmem:[%s3106] sm:$0x1]
        %v3108 = vld [vmem:[%s3106 + $0x1] sm:$0x1]
        %v3109 = vld [vmem:[%s3106 + $0x2] sm:$0x1]
        %v3110 = vld [vmem:[%s3106 + $0x3] sm:$0x1]
        %v3115 = vlaneseq
        %v3116 = vshrl.u32 %v3115, 7
        %v3117 = vsub.s32 0, %v3116
        %v3118 = vrot.slane %v3107, %v3117
        %v3119 = vlaneseq
        %v3120 = vshrl.u32 %v3119, 7
        %v3121 = vsub.s32 0, %v3120
        %v3122 = vrot.slane %v3108, %v3121
        %v3123 = vlaneseq
        %v3124 = vshrl.u32 %v3123, 7
        %v3125 = vsub.s32 0, %v3124
        %v3126 = vrot.slane %v3109, %v3125
        %v3127 = vlaneseq
        %v3128 = vshrl.u32 %v3127, 7
        %v3129 = vsub.s32 0, %v3128
        %v3130 = vrot.slane %v3110, %v3129
        %3131 = vset.pattern.permute.xlu0 0
        %3132 = vperm.xlu0 %3131, %v3118
        %v3133 = vpop.permute.xlu0 %3132
        %3135 = vset.pattern.permute.xlu0 0
        %3136 = vperm.xlu0 %3135, %v3122
        %v3137 = vpop.permute.xlu0 %3136
        %3139 = vset.pattern.permute.xlu0 0
        %3140 = vperm.xlu0 %3139, %v3126
        %v3141 = vpop.permute.xlu0 %3140
        %3143 = vset.pattern.permute.xlu0 0
        %3144 = vperm.xlu0 %3143, %v3130
        %v3145 = vpop.permute.xlu0 %3144
        %v3147 = vmul.f32 %v1949, %v3133
        %v3148 = vmul.f32 %v1950, %v3133
        %v3149 = vmul.f32 %v1951, %v3137
        %v3150 = vmul.f32 %v1952, %v3137
        %v3151 = vmul.f32 %v1953, %v3141
        %v3152 = vmul.f32 %v1954, %v3141
        %v3153 = vmul.f32 %v1955, %v3145
        %v3154 = vmul.f32 %v1956, %v3145
        %3163 = vrot.lane.b32.xlu0 %v3147, 122
        %v3164 = vpop.permute.xlu0 %3163
        %3165 = vrot.lane.b32.xlu0 %v3148, 122
        %v3166 = vpop.permute.xlu0 %3165
        %3167 = vrot.lane.b32.xlu0 %v3149, 122
        %v3168 = vpop.permute.xlu0 %3167
        %3169 = vrot.lane.b32.xlu0 %v3150, 122
        %v3170 = vpop.permute.xlu0 %3169
        %3171 = vrot.lane.b32.xlu0 %v3151, 122
        %v3172 = vpop.permute.xlu0 %3171
        %3173 = vrot.lane.b32.xlu0 %v3152, 122
        %v3174 = vpop.permute.xlu0 %3173
        %3175 = vrot.lane.b32.xlu0 %v3153, 122
        %v3176 = vpop.permute.xlu0 %3175
        %3177 = vrot.lane.b32.xlu0 %v3154, 122
        %v3178 = vpop.permute.xlu0 %3177
        %v3187 = vadd.f32 %v3009, %v3164
        %v3188 = vadd.f32 %v3010, %v3166
        %v3189 = vadd.f32 %v3011, %v3168
        %v3190 = vadd.f32 %v3012, %v3170
        %v3191 = vadd.f32 %v3013, %v3172
        %v3192 = vadd.f32 %v3014, %v3174
        %v3193 = vadd.f32 %v3015, %v3176
        %v3194 = vadd.f32 %v3016, %v3178
        %v3195 = vld [vmem:[#allocation2 + $0x3] sm:$0xff]
        %v3196 = vld [vmem:[#allocation2 + $0xb] sm:$0xff]
        %v3197 = vld [vmem:[#allocation2 + $0x1b] sm:$0xff]
        %v3198 = vld [vmem:[#allocation2 + $0x23] sm:$0xff]
        %v3199 = vld [vmem:[#allocation2 + $0x33] sm:$0xff]
        %v3200 = vld [vmem:[#allocation2 + $0x3b] sm:$0xff]
        %v3201 = vld [vmem:[#allocation2 + $0x4b] sm:$0xff]
        %v3202 = vld [vmem:[#allocation2 + $0x53] sm:$0xff]
        %s3203 = scalar_lea.vmem %s3, 84
        %v3204 = vld [vmem:[%s3203] sm:$0x1]
        %v3205 = vld [vmem:[%s3203 + $0x1] sm:$0x1]
        %v3206 = vld [vmem:[%s3203 + $0x2] sm:$0x1]
        %v3207 = vld [vmem:[%s3203 + $0x3] sm:$0x1]
        %v3212 = vlaneseq
        %v3213 = vshrl.u32 %v3212, 7
        %v3214 = vsub.s32 0, %v3213
        %v3215 = vrot.slane %v3204, %v3214
        %v3216 = vlaneseq
        %v3217 = vshrl.u32 %v3216, 7
        %v3218 = vsub.s32 0, %v3217
        %v3219 = vrot.slane %v3205, %v3218
        %v3220 = vlaneseq
        %v3221 = vshrl.u32 %v3220, 7
        %v3222 = vsub.s32 0, %v3221
        %v3223 = vrot.slane %v3206, %v3222
        %v3224 = vlaneseq
        %v3225 = vshrl.u32 %v3224, 7
        %v3226 = vsub.s32 0, %v3225
        %v3227 = vrot.slane %v3207, %v3226
        %3228 = vset.pattern.permute.xlu0 0
        %3229 = vperm.xlu0 %3228, %v3215
        %v3230 = vpop.permute.xlu0 %3229
        %3232 = vset.pattern.permute.xlu0 0
        %3233 = vperm.xlu0 %3232, %v3219
        %v3234 = vpop.permute.xlu0 %3233
        %3236 = vset.pattern.permute.xlu0 0
        %3237 = vperm.xlu0 %3236, %v3223
        %v3238 = vpop.permute.xlu0 %3237
        %3240 = vset.pattern.permute.xlu0 0
        %3241 = vperm.xlu0 %3240, %v3227
        %v3242 = vpop.permute.xlu0 %3241
        %v3244 = vmul.f32 %v3195, %v3230
        %v3245 = vmul.f32 %v3196, %v3230
        %v3246 = vmul.f32 %v3197, %v3234
        %v3247 = vmul.f32 %v3198, %v3234
        %v3248 = vmul.f32 %v3199, %v3238
        %v3249 = vmul.f32 %v3200, %v3238
        %v3250 = vmul.f32 %v3201, %v3242
        %v3251 = vmul.f32 %v3202, %v3242
        %v3252 = vadd.f32 %v3187, %v3244
        %v3253 = vadd.f32 %v3188, %v3245
        %v3254 = vadd.f32 %v3189, %v3246
        %v3255 = vadd.f32 %v3190, %v3247
        %v3256 = vadd.f32 %v3191, %v3248
        %v3257 = vadd.f32 %v3192, %v3249
        %v3258 = vadd.f32 %v3193, %v3250
        %v3259 = vadd.f32 %v3194, %v3251
        %s3260 = scalar_lea.vmem %s3, 88
        %v3261 = vld [vmem:[%s3260] sm:$0x1]
        %v3262 = vld [vmem:[%s3260 + $0x1] sm:$0x1]
        %v3263 = vld [vmem:[%s3260 + $0x2] sm:$0x1]
        %v3264 = vld [vmem:[%s3260 + $0x3] sm:$0x1]
        %v3269 = vlaneseq
        %v3270 = vshrl.u32 %v3269, 7
        %v3271 = vsub.s32 0, %v3270
        %v3272 = vrot.slane %v3261, %v3271
        %v3273 = vlaneseq
        %v3274 = vshrl.u32 %v3273, 7
        %v3275 = vsub.s32 0, %v3274
        %v3276 = vrot.slane %v3262, %v3275
        %v3277 = vlaneseq
        %v3278 = vshrl.u32 %v3277, 7
        %v3279 = vsub.s32 0, %v3278
        %v3280 = vrot.slane %v3263, %v3279
        %v3281 = vlaneseq
        %v3282 = vshrl.u32 %v3281, 7
        %v3283 = vsub.s32 0, %v3282
        %v3284 = vrot.slane %v3264, %v3283
        %3285 = vset.pattern.permute.xlu0 0
        %3286 = vperm.xlu0 %3285, %v3272
        %v3287 = vpop.permute.xlu0 %3286
        %3289 = vset.pattern.permute.xlu0 0
        %3290 = vperm.xlu0 %3289, %v3276
        %v3291 = vpop.permute.xlu0 %3290
        %3293 = vset.pattern.permute.xlu0 0
        %3294 = vperm.xlu0 %3293, %v3280
        %v3295 = vpop.permute.xlu0 %3294
        %3297 = vset.pattern.permute.xlu0 0
        %3298 = vperm.xlu0 %3297, %v3284
        %v3299 = vpop.permute.xlu0 %3298
        %v3301 = vmul.f32 %v3195, %v3287
        %v3302 = vmul.f32 %v3196, %v3287
        %v3303 = vmul.f32 %v3197, %v3291
        %v3304 = vmul.f32 %v3198, %v3291
        %v3305 = vmul.f32 %v3199, %v3295
        %v3306 = vmul.f32 %v3200, %v3295
        %v3307 = vmul.f32 %v3201, %v3299
        %v3308 = vmul.f32 %v3202, %v3299
        %3317 = vrot.lane.b32.xlu0 %v3301, 127
        %v3318 = vpop.permute.xlu0 %3317
        %3319 = vrot.lane.b32.xlu0 %v3302, 127
        %v3320 = vpop.permute.xlu0 %3319
        %3321 = vrot.lane.b32.xlu0 %v3303, 127
        %v3322 = vpop.permute.xlu0 %3321
        %3323 = vrot.lane.b32.xlu0 %v3304, 127
        %v3324 = vpop.permute.xlu0 %3323
        %3325 = vrot.lane.b32.xlu0 %v3305, 127
        %v3326 = vpop.permute.xlu0 %3325
        %3327 = vrot.lane.b32.xlu0 %v3306, 127
        %v3328 = vpop.permute.xlu0 %3327
        %3329 = vrot.lane.b32.xlu0 %v3307, 127
        %v3330 = vpop.permute.xlu0 %3329
        %3331 = vrot.lane.b32.xlu0 %v3308, 127
        %v3332 = vpop.permute.xlu0 %3331
        %v3341 = vadd.f32 %v3252, %v3318
        %v3342 = vadd.f32 %v3253, %v3320
        %v3343 = vadd.f32 %v3254, %v3322
        %v3344 = vadd.f32 %v3255, %v3324
        %v3345 = vadd.f32 %v3256, %v3326
        %v3346 = vadd.f32 %v3257, %v3328
        %v3347 = vadd.f32 %v3258, %v3330
        %v3348 = vadd.f32 %v3259, %v3332
        %s3349 = scalar_lea.vmem %s2, 40
        %v3350 = vld [vmem:[%s3349] sm:$0x1]
        %v3351 = vld [vmem:[%s3349 + $0x1] sm:$0x1]
        %v3352 = vld [vmem:[%s3349 + $0x2] sm:$0x1]
        %v3353 = vld [vmem:[%s3349 + $0x3] sm:$0x1]
        %v3358 = vlaneseq
        %v3359 = vshrl.u32 %v3358, 7
        %v3360 = vsub.s32 0, %v3359
        %v3361 = vrot.slane %v3350, %v3360
        %v3362 = vlaneseq
        %v3363 = vshrl.u32 %v3362, 7
        %v3364 = vsub.s32 0, %v3363
        %v3365 = vrot.slane %v3351, %v3364
        %v3366 = vlaneseq
        %v3367 = vshrl.u32 %v3366, 7
        %v3368 = vsub.s32 0, %v3367
        %v3369 = vrot.slane %v3352, %v3368
        %v3370 = vlaneseq
        %v3371 = vshrl.u32 %v3370, 7
        %v3372 = vsub.s32 0, %v3371
        %v3373 = vrot.slane %v3353, %v3372
        %3374 = vset.pattern.permute.xlu0 0
        %3375 = vperm.xlu0 %3374, %v3361
        %v3376 = vpop.permute.xlu0 %3375
        %3378 = vset.pattern.permute.xlu0 0
        %3379 = vperm.xlu0 %3378, %v3365
        %v3380 = vpop.permute.xlu0 %3379
        %3382 = vset.pattern.permute.xlu0 0
        %3383 = vperm.xlu0 %3382, %v3369
        %v3384 = vpop.permute.xlu0 %3383
        %3386 = vset.pattern.permute.xlu0 0
        %3387 = vperm.xlu0 %3386, %v3373
        %v3388 = vpop.permute.xlu0 %3387
        %v3390 = vmul.f32 %v3195, %v3376
        %v3391 = vmul.f32 %v3196, %v3376
        %v3392 = vmul.f32 %v3197, %v3380
        %v3393 = vmul.f32 %v3198, %v3380
        %v3394 = vmul.f32 %v3199, %v3384
        %v3395 = vmul.f32 %v3200, %v3384
        %v3396 = vmul.f32 %v3201, %v3388
        %v3397 = vmul.f32 %v3202, %v3388
        %v3398 = vadd.f32 %v3098, %v3390
        %v3399 = vadd.f32 %v3099, %v3391
        %v3400 = vadd.f32 %v3100, %v3392
        %v3401 = vadd.f32 %v3101, %v3393
        %v3402 = vadd.f32 %v3102, %v3394
        %v3403 = vadd.f32 %v3103, %v3395
        %v3404 = vadd.f32 %v3104, %v3396
        %v3405 = vadd.f32 %v3105, %v3397
        %s3406 = scalar_lea.vmem %s3, 92
        %v3407 = vld [vmem:[%s3406] sm:$0x1]
        %v3408 = vld [vmem:[%s3406 + $0x1] sm:$0x1]
        %v3409 = vld [vmem:[%s3406 + $0x2] sm:$0x1]
        %v3410 = vld [vmem:[%s3406 + $0x3] sm:$0x1]
        %v3415 = vlaneseq
        %v3416 = vshrl.u32 %v3415, 7
        %v3417 = vsub.s32 0, %v3416
        %v3418 = vrot.slane %v3407, %v3417
        %v3419 = vlaneseq
        %v3420 = vshrl.u32 %v3419, 7
        %v3421 = vsub.s32 0, %v3420
        %v3422 = vrot.slane %v3408, %v3421
        %v3423 = vlaneseq
        %v3424 = vshrl.u32 %v3423, 7
        %v3425 = vsub.s32 0, %v3424
        %v3426 = vrot.slane %v3409, %v3425
        %v3427 = vlaneseq
        %v3428 = vshrl.u32 %v3427, 7
        %v3429 = vsub.s32 0, %v3428
        %v3430 = vrot.slane %v3410, %v3429
        %3431 = vset.pattern.permute.xlu0 0
        %3432 = vperm.xlu0 %3431, %v3418
        %v3433 = vpop.permute.xlu0 %3432
        %3435 = vset.pattern.permute.xlu0 0
        %3436 = vperm.xlu0 %3435, %v3422
        %v3437 = vpop.permute.xlu0 %3436
        %3439 = vset.pattern.permute.xlu0 0
        %3440 = vperm.xlu0 %3439, %v3426
        %v3441 = vpop.permute.xlu0 %3440
        %3443 = vset.pattern.permute.xlu0 0
        %3444 = vperm.xlu0 %3443, %v3430
        %v3445 = vpop.permute.xlu0 %3444
        %v3447 = vmul.f32 %v3195, %v3433
        %v3448 = vmul.f32 %v3196, %v3433
        %v3449 = vmul.f32 %v3197, %v3437
        %v3450 = vmul.f32 %v3198, %v3437
        %v3451 = vmul.f32 %v3199, %v3441
        %v3452 = vmul.f32 %v3200, %v3441
        %v3453 = vmul.f32 %v3201, %v3445
        %v3454 = vmul.f32 %v3202, %v3445
        %3463 = vrot.lane.b32.xlu0 %v3447, 126
        %v3464 = vpop.permute.xlu0 %3463
        %3465 = vrot.lane.b32.xlu0 %v3448, 126
        %v3466 = vpop.permute.xlu0 %3465
        %3467 = vrot.lane.b32.xlu0 %v3449, 126
        %v3468 = vpop.permute.xlu0 %3467
        %3469 = vrot.lane.b32.xlu0 %v3450, 126
        %v3470 = vpop.permute.xlu0 %3469
        %3471 = vrot.lane.b32.xlu0 %v3451, 126
        %v3472 = vpop.permute.xlu0 %3471
        %3473 = vrot.lane.b32.xlu0 %v3452, 126
        %v3474 = vpop.permute.xlu0 %3473
        %3475 = vrot.lane.b32.xlu0 %v3453, 126
        %v3476 = vpop.permute.xlu0 %3475
        %3477 = vrot.lane.b32.xlu0 %v3454, 126
        %v3478 = vpop.permute.xlu0 %3477
        %v3487 = vadd.f32 %v3341, %v3464
        %v3488 = vadd.f32 %v3342, %v3466
        %v3489 = vadd.f32 %v3343, %v3468
        %v3490 = vadd.f32 %v3344, %v3470
        %v3491 = vadd.f32 %v3345, %v3472
        %v3492 = vadd.f32 %v3346, %v3474
        %v3493 = vadd.f32 %v3347, %v3476
        %v3494 = vadd.f32 %v3348, %v3478
        %s3495 = scalar_lea.vmem %s2, 44
        %v3496 = vld [vmem:[%s3495] sm:$0x1]
        %v3497 = vld [vmem:[%s3495 + $0x1] sm:$0x1]
        %v3498 = vld [vmem:[%s3495 + $0x2] sm:$0x1]
        %v3499 = vld [vmem:[%s3495 + $0x3] sm:$0x1]
        %v3504 = vlaneseq
        %v3505 = vshrl.u32 %v3504, 7
        %v3506 = vsub.s32 0, %v3505
        %v3507 = vrot.slane %v3496, %v3506
        %v3508 = vlaneseq
        %v3509 = vshrl.u32 %v3508, 7
        %v3510 = vsub.s32 0, %v3509
        %v3511 = vrot.slane %v3497, %v3510
        %v3512 = vlaneseq
        %v3513 = vshrl.u32 %v3512, 7
        %v3514 = vsub.s32 0, %v3513
        %v3515 = vrot.slane %v3498, %v3514
        %v3516 = vlaneseq
        %v3517 = vshrl.u32 %v3516, 7
        %v3518 = vsub.s32 0, %v3517
        %v3519 = vrot.slane %v3499, %v3518
        %3520 = vset.pattern.permute.xlu0 0
        %3521 = vperm.xlu0 %3520, %v3507
        %v3522 = vpop.permute.xlu0 %3521
        %3524 = vset.pattern.permute.xlu0 0
        %3525 = vperm.xlu0 %3524, %v3511
        %v3526 = vpop.permute.xlu0 %3525
        %3528 = vset.pattern.permute.xlu0 0
        %3529 = vperm.xlu0 %3528, %v3515
        %v3530 = vpop.permute.xlu0 %3529
        %3532 = vset.pattern.permute.xlu0 0
        %3533 = vperm.xlu0 %3532, %v3519
        %v3534 = vpop.permute.xlu0 %3533
        %v3536 = vmul.f32 %v3195, %v3522
        %v3537 = vmul.f32 %v3196, %v3522
        %v3538 = vmul.f32 %v3197, %v3526
        %v3539 = vmul.f32 %v3198, %v3526
        %v3540 = vmul.f32 %v3199, %v3530
        %v3541 = vmul.f32 %v3200, %v3530
        %v3542 = vmul.f32 %v3201, %v3534
        %v3543 = vmul.f32 %v3202, %v3534
        %3552 = vrot.lane.b32.xlu0 %v3536, 127
        %v3553 = vpop.permute.xlu0 %3552
        %3554 = vrot.lane.b32.xlu0 %v3537, 127
        %v3555 = vpop.permute.xlu0 %3554
        %3556 = vrot.lane.b32.xlu0 %v3538, 127
        %v3557 = vpop.permute.xlu0 %3556
        %3558 = vrot.lane.b32.xlu0 %v3539, 127
        %v3559 = vpop.permute.xlu0 %3558
        %3560 = vrot.lane.b32.xlu0 %v3540, 127
        %v3561 = vpop.permute.xlu0 %3560
        %3562 = vrot.lane.b32.xlu0 %v3541, 127
        %v3563 = vpop.permute.xlu0 %3562
        %3564 = vrot.lane.b32.xlu0 %v3542, 127
        %v3565 = vpop.permute.xlu0 %3564
        %3566 = vrot.lane.b32.xlu0 %v3543, 127
        %v3567 = vpop.permute.xlu0 %3566
        %v3576 = vadd.f32 %v3398, %v3553
        %v3577 = vadd.f32 %v3399, %v3555
        %v3578 = vadd.f32 %v3400, %v3557
        %v3579 = vadd.f32 %v3401, %v3559
        %v3580 = vadd.f32 %v3402, %v3561
        %v3581 = vadd.f32 %v3403, %v3563
        %v3582 = vadd.f32 %v3404, %v3565
        %v3583 = vadd.f32 %v3405, %v3567
        %s3584 = scalar_lea.vmem %s1, 12
        %v3585 = vld [vmem:[%s3584] sm:$0x1]
        %v3586 = vld [vmem:[%s3584 + $0x1] sm:$0x1]
        %v3587 = vld [vmem:[%s3584 + $0x2] sm:$0x1]
        %v3588 = vld [vmem:[%s3584 + $0x3] sm:$0x1]
        %v3593 = vlaneseq
        %v3594 = vshrl.u32 %v3593, 7
        %v3595 = vsub.s32 0, %v3594
        %v3596 = vrot.slane %v3585, %v3595
        %v3597 = vlaneseq
        %v3598 = vshrl.u32 %v3597, 7
        %v3599 = vsub.s32 0, %v3598
        %v3600 = vrot.slane %v3586, %v3599
        %v3601 = vlaneseq
        %v3602 = vshrl.u32 %v3601, 7
        %v3603 = vsub.s32 0, %v3602
        %v3604 = vrot.slane %v3587, %v3603
        %v3605 = vlaneseq
        %v3606 = vshrl.u32 %v3605, 7
        %v3607 = vsub.s32 0, %v3606
        %v3608 = vrot.slane %v3588, %v3607
        %3609 = vset.pattern.permute.xlu0 0
        %3610 = vperm.xlu0 %3609, %v3596
        %v3611 = vpop.permute.xlu0 %3610
        %3613 = vset.pattern.permute.xlu0 0
        %3614 = vperm.xlu0 %3613, %v3600
        %v3615 = vpop.permute.xlu0 %3614
        %3617 = vset.pattern.permute.xlu0 0
        %3618 = vperm.xlu0 %3617, %v3604
        %v3619 = vpop.permute.xlu0 %3618
        %3621 = vset.pattern.permute.xlu0 0
        %3622 = vperm.xlu0 %3621, %v3608
        %v3623 = vpop.permute.xlu0 %3622
        %v3625 = vmul.f32 %v3195, %v3611
        %v3626 = vmul.f32 %v3196, %v3611
        %v3627 = vmul.f32 %v3197, %v3615
        %v3628 = vmul.f32 %v3198, %v3615
        %v3629 = vmul.f32 %v3199, %v3619
        %v3630 = vmul.f32 %v3200, %v3619
        %v3631 = vmul.f32 %v3201, %v3623
        %v3632 = vmul.f32 %v3202, %v3623
        %v3633 = vadd.f32 %v2920, %v3625
        %v3634 = vadd.f32 %v2921, %v3626
        %v3635 = vadd.f32 %v2922, %v3627
        %v3636 = vadd.f32 %v2923, %v3628
        %v3637 = vadd.f32 %v2924, %v3629
        %v3638 = vadd.f32 %v2925, %v3630
        %v3639 = vadd.f32 %v2926, %v3631
        %v3640 = vadd.f32 %v2927, %v3632
        %s3641 = scalar_lea.vmem %s3, 96
        %v3642 = vld [vmem:[%s3641] sm:$0x1]
        %v3643 = vld [vmem:[%s3641 + $0x1] sm:$0x1]
        %v3644 = vld [vmem:[%s3641 + $0x2] sm:$0x1]
        %v3645 = vld [vmem:[%s3641 + $0x3] sm:$0x1]
        %v3650 = vlaneseq
        %v3651 = vshrl.u32 %v3650, 7
        %v3652 = vsub.s32 0, %v3651
        %v3653 = vrot.slane %v3642, %v3652
        %v3654 = vlaneseq
        %v3655 = vshrl.u32 %v3654, 7
        %v3656 = vsub.s32 0, %v3655
        %v3657 = vrot.slane %v3643, %v3656
        %v3658 = vlaneseq
        %v3659 = vshrl.u32 %v3658, 7
        %v3660 = vsub.s32 0, %v3659
        %v3661 = vrot.slane %v3644, %v3660
        %v3662 = vlaneseq
        %v3663 = vshrl.u32 %v3662, 7
        %v3664 = vsub.s32 0, %v3663
        %v3665 = vrot.slane %v3645, %v3664
        %3666 = vset.pattern.permute.xlu0 0
        %3667 = vperm.xlu0 %3666, %v3653
        %v3668 = vpop.permute.xlu0 %3667
        %3670 = vset.pattern.permute.xlu0 0
        %3671 = vperm.xlu0 %3670, %v3657
        %v3672 = vpop.permute.xlu0 %3671
        %3674 = vset.pattern.permute.xlu0 0
        %3675 = vperm.xlu0 %3674, %v3661
        %v3676 = vpop.permute.xlu0 %3675
        %3678 = vset.pattern.permute.xlu0 0
        %3679 = vperm.xlu0 %3678, %v3665
        %v3680 = vpop.permute.xlu0 %3679
        %v3682 = vmul.f32 %v3195, %v3668
        %v3683 = vmul.f32 %v3196, %v3668
        %v3684 = vmul.f32 %v3197, %v3672
        %v3685 = vmul.f32 %v3198, %v3672
        %v3686 = vmul.f32 %v3199, %v3676
        %v3687 = vmul.f32 %v3200, %v3676
        %v3688 = vmul.f32 %v3201, %v3680
        %v3689 = vmul.f32 %v3202, %v3680
        %3698 = vrot.lane.b32.xlu0 %v3682, 125
        %v3699 = vpop.permute.xlu0 %3698
        %3700 = vrot.lane.b32.xlu0 %v3683, 125
        %v3701 = vpop.permute.xlu0 %3700
        %3702 = vrot.lane.b32.xlu0 %v3684, 125
        %v3703 = vpop.permute.xlu0 %3702
        %3704 = vrot.lane.b32.xlu0 %v3685, 125
        %v3705 = vpop.permute.xlu0 %3704
        %3706 = vrot.lane.b32.xlu0 %v3686, 125
        %v3707 = vpop.permute.xlu0 %3706
        %3708 = vrot.lane.b32.xlu0 %v3687, 125
        %v3709 = vpop.permute.xlu0 %3708
        %3710 = vrot.lane.b32.xlu0 %v3688, 125
        %v3711 = vpop.permute.xlu0 %3710
        %3712 = vrot.lane.b32.xlu0 %v3689, 125
        %v3713 = vpop.permute.xlu0 %3712
        %v3722 = vadd.f32 %v3487, %v3699
        %v3723 = vadd.f32 %v3488, %v3701
        %v3724 = vadd.f32 %v3489, %v3703
        %v3725 = vadd.f32 %v3490, %v3705
        %v3726 = vadd.f32 %v3491, %v3707
        %v3727 = vadd.f32 %v3492, %v3709
        %v3728 = vadd.f32 %v3493, %v3711
        %v3729 = vadd.f32 %v3494, %v3713
        %s3730 = scalar_lea.vmem %s2, 48
        %v3731 = vld [vmem:[%s3730] sm:$0x1]
        %v3732 = vld [vmem:[%s3730 + $0x1] sm:$0x1]
        %v3733 = vld [vmem:[%s3730 + $0x2] sm:$0x1]
        %v3734 = vld [vmem:[%s3730 + $0x3] sm:$0x1]
        %v3739 = vlaneseq
        %v3740 = vshrl.u32 %v3739, 7
        %v3741 = vsub.s32 0, %v3740
        %v3742 = vrot.slane %v3731, %v3741
        %v3743 = vlaneseq
        %v3744 = vshrl.u32 %v3743, 7
        %v3745 = vsub.s32 0, %v3744
        %v3746 = vrot.slane %v3732, %v3745
        %v3747 = vlaneseq
        %v3748 = vshrl.u32 %v3747, 7
        %v3749 = vsub.s32 0, %v3748
        %v3750 = vrot.slane %v3733, %v3749
        %v3751 = vlaneseq
        %v3752 = vshrl.u32 %v3751, 7
        %v3753 = vsub.s32 0, %v3752
        %v3754 = vrot.slane %v3734, %v3753
        %3755 = vset.pattern.permute.xlu0 0
        %3756 = vperm.xlu0 %3755, %v3742
        %v3757 = vpop.permute.xlu0 %3756
        %3759 = vset.pattern.permute.xlu0 0
        %3760 = vperm.xlu0 %3759, %v3746
        %v3761 = vpop.permute.xlu0 %3760
        %3763 = vset.pattern.permute.xlu0 0
        %3764 = vperm.xlu0 %3763, %v3750
        %v3765 = vpop.permute.xlu0 %3764
        %3767 = vset.pattern.permute.xlu0 0
        %3768 = vperm.xlu0 %3767, %v3754
        %v3769 = vpop.permute.xlu0 %3768
        %v3771 = vmul.f32 %v3195, %v3757
        %v3772 = vmul.f32 %v3196, %v3757
        %v3773 = vmul.f32 %v3197, %v3761
        %v3774 = vmul.f32 %v3198, %v3761
        %v3775 = vmul.f32 %v3199, %v3765
        %v3776 = vmul.f32 %v3200, %v3765
        %v3777 = vmul.f32 %v3201, %v3769
        %v3778 = vmul.f32 %v3202, %v3769
        %3787 = vrot.lane.b32.xlu0 %v3771, 126
        %v3788 = vpop.permute.xlu0 %3787
        %3789 = vrot.lane.b32.xlu0 %v3772, 126
        %v3790 = vpop.permute.xlu0 %3789
        %3791 = vrot.lane.b32.xlu0 %v3773, 126
        %v3792 = vpop.permute.xlu0 %3791
        %3793 = vrot.lane.b32.xlu0 %v3774, 126
        %v3794 = vpop.permute.xlu0 %3793
        %3795 = vrot.lane.b32.xlu0 %v3775, 126
        %v3796 = vpop.permute.xlu0 %3795
        %3797 = vrot.lane.b32.xlu0 %v3776, 126
        %v3798 = vpop.permute.xlu0 %3797
        %3799 = vrot.lane.b32.xlu0 %v3777, 126
        %v3800 = vpop.permute.xlu0 %3799
        %3801 = vrot.lane.b32.xlu0 %v3778, 126
        %v3802 = vpop.permute.xlu0 %3801
        %v3811 = vadd.f32 %v3576, %v3788
        %v3812 = vadd.f32 %v3577, %v3790
        %v3813 = vadd.f32 %v3578, %v3792
        %v3814 = vadd.f32 %v3579, %v3794
        %v3815 = vadd.f32 %v3580, %v3796
        %v3816 = vadd.f32 %v3581, %v3798
        %v3817 = vadd.f32 %v3582, %v3800
        %v3818 = vadd.f32 %v3583, %v3802
        %s3819 = scalar_lea.vmem %s1, 16
        %v3820 = vld [vmem:[%s3819] sm:$0x1]
        %v3821 = vld [vmem:[%s3819 + $0x1] sm:$0x1]
        %v3822 = vld [vmem:[%s3819 + $0x2] sm:$0x1]
        %v3823 = vld [vmem:[%s3819 + $0x3] sm:$0x1]
        %v3828 = vlaneseq
        %v3829 = vshrl.u32 %v3828, 7
        %v3830 = vsub.s32 0, %v3829
        %v3831 = vrot.slane %v3820, %v3830
        %v3832 = vlaneseq
        %v3833 = vshrl.u32 %v3832, 7
        %v3834 = vsub.s32 0, %v3833
        %v3835 = vrot.slane %v3821, %v3834
        %v3836 = vlaneseq
        %v3837 = vshrl.u32 %v3836, 7
        %v3838 = vsub.s32 0, %v3837
        %v3839 = vrot.slane %v3822, %v3838
        %v3840 = vlaneseq
        %v3841 = vshrl.u32 %v3840, 7
        %v3842 = vsub.s32 0, %v3841
        %v3843 = vrot.slane %v3823, %v3842
        %3844 = vset.pattern.permute.xlu0 0
        %3845 = vperm.xlu0 %3844, %v3831
        %v3846 = vpop.permute.xlu0 %3845
        %3848 = vset.pattern.permute.xlu0 0
        %3849 = vperm.xlu0 %3848, %v3835
        %v3850 = vpop.permute.xlu0 %3849
        %3852 = vset.pattern.permute.xlu0 0
        %3853 = vperm.xlu0 %3852, %v3839
        %v3854 = vpop.permute.xlu0 %3853
        %3856 = vset.pattern.permute.xlu0 0
        %3857 = vperm.xlu0 %3856, %v3843
        %v3858 = vpop.permute.xlu0 %3857
        %v3860 = vmul.f32 %v3195, %v3846
        %v3861 = vmul.f32 %v3196, %v3846
        %v3862 = vmul.f32 %v3197, %v3850
        %v3863 = vmul.f32 %v3198, %v3850
        %v3864 = vmul.f32 %v3199, %v3854
        %v3865 = vmul.f32 %v3200, %v3854
        %v3866 = vmul.f32 %v3201, %v3858
        %v3867 = vmul.f32 %v3202, %v3858
        %3876 = vrot.lane.b32.xlu0 %v3860, 127
        %v3877 = vpop.permute.xlu0 %3876
        %3878 = vrot.lane.b32.xlu0 %v3861, 127
        %v3879 = vpop.permute.xlu0 %3878
        %3880 = vrot.lane.b32.xlu0 %v3862, 127
        %v3881 = vpop.permute.xlu0 %3880
        %3882 = vrot.lane.b32.xlu0 %v3863, 127
        %v3883 = vpop.permute.xlu0 %3882
        %3884 = vrot.lane.b32.xlu0 %v3864, 127
        %v3885 = vpop.permute.xlu0 %3884
        %3886 = vrot.lane.b32.xlu0 %v3865, 127
        %v3887 = vpop.permute.xlu0 %3886
        %3888 = vrot.lane.b32.xlu0 %v3866, 127
        %v3889 = vpop.permute.xlu0 %3888
        %3890 = vrot.lane.b32.xlu0 %v3867, 127
        %v3891 = vpop.permute.xlu0 %3890
        %v3900 = vadd.f32 %v3633, %v3877
        %v3901 = vadd.f32 %v3634, %v3879
        %v3902 = vadd.f32 %v3635, %v3881
        %v3903 = vadd.f32 %v3636, %v3883
        %v3904 = vadd.f32 %v3637, %v3885
        %v3905 = vadd.f32 %v3638, %v3887
        %v3906 = vadd.f32 %v3639, %v3889
        %v3907 = vadd.f32 %v3640, %v3891
        %s3908 = scalar_lea.vmem %s3, 100
        %v3909 = vld [vmem:[%s3908] sm:$0x1]
        %v3910 = vld [vmem:[%s3908 + $0x1] sm:$0x1]
        %v3911 = vld [vmem:[%s3908 + $0x2] sm:$0x1]
        %v3912 = vld [vmem:[%s3908 + $0x3] sm:$0x1]
        %v3917 = vlaneseq
        %v3918 = vshrl.u32 %v3917, 7
        %v3919 = vsub.s32 0, %v3918
        %v3920 = vrot.slane %v3909, %v3919
        %v3921 = vlaneseq
        %v3922 = vshrl.u32 %v3921, 7
        %v3923 = vsub.s32 0, %v3922
        %v3924 = vrot.slane %v3910, %v3923
        %v3925 = vlaneseq
        %v3926 = vshrl.u32 %v3925, 7
        %v3927 = vsub.s32 0, %v3926
        %v3928 = vrot.slane %v3911, %v3927
        %v3929 = vlaneseq
        %v3930 = vshrl.u32 %v3929, 7
        %v3931 = vsub.s32 0, %v3930
        %v3932 = vrot.slane %v3912, %v3931
        %3933 = vset.pattern.permute.xlu0 0
        %3934 = vperm.xlu0 %3933, %v3920
        %v3935 = vpop.permute.xlu0 %3934
        %3937 = vset.pattern.permute.xlu0 0
        %3938 = vperm.xlu0 %3937, %v3924
        %v3939 = vpop.permute.xlu0 %3938
        %3941 = vset.pattern.permute.xlu0 0
        %3942 = vperm.xlu0 %3941, %v3928
        %v3943 = vpop.permute.xlu0 %3942
        %3945 = vset.pattern.permute.xlu0 0
        %3946 = vperm.xlu0 %3945, %v3932
        %v3947 = vpop.permute.xlu0 %3946
        %v3949 = vmul.f32 %v3195, %v3935
        %v3950 = vmul.f32 %v3196, %v3935
        %v3951 = vmul.f32 %v3197, %v3939
        %v3952 = vmul.f32 %v3198, %v3939
        %v3953 = vmul.f32 %v3199, %v3943
        %v3954 = vmul.f32 %v3200, %v3943
        %v3955 = vmul.f32 %v3201, %v3947
        %v3956 = vmul.f32 %v3202, %v3947
        %3965 = vrot.lane.b32.xlu0 %v3949, 124
        %v3966 = vpop.permute.xlu0 %3965
        %3967 = vrot.lane.b32.xlu0 %v3950, 124
        %v3968 = vpop.permute.xlu0 %3967
        %3969 = vrot.lane.b32.xlu0 %v3951, 124
        %v3970 = vpop.permute.xlu0 %3969
        %3971 = vrot.lane.b32.xlu0 %v3952, 124
        %v3972 = vpop.permute.xlu0 %3971
        %3973 = vrot.lane.b32.xlu0 %v3953, 124
        %v3974 = vpop.permute.xlu0 %3973
        %3975 = vrot.lane.b32.xlu0 %v3954, 124
        %v3976 = vpop.permute.xlu0 %3975
        %3977 = vrot.lane.b32.xlu0 %v3955, 124
        %v3978 = vpop.permute.xlu0 %3977
        %3979 = vrot.lane.b32.xlu0 %v3956, 124
        %v3980 = vpop.permute.xlu0 %3979
        %v3989 = vadd.f32 %v3722, %v3966
        %v3990 = vadd.f32 %v3723, %v3968
        %v3991 = vadd.f32 %v3724, %v3970
        %v3992 = vadd.f32 %v3725, %v3972
        %v3993 = vadd.f32 %v3726, %v3974
        %v3994 = vadd.f32 %v3727, %v3976
        %v3995 = vadd.f32 %v3728, %v3978
        %v3996 = vadd.f32 %v3729, %v3980
        %s3997 = scalar_lea.vmem %s2, 52
        %v3998 = vld [vmem:[%s3997] sm:$0x1]
        %v3999 = vld [vmem:[%s3997 + $0x1] sm:$0x1]
        %v4000 = vld [vmem:[%s3997 + $0x2] sm:$0x1]
        %v4001 = vld [vmem:[%s3997 + $0x3] sm:$0x1]
        %v4006 = vlaneseq
        %v4007 = vshrl.u32 %v4006, 7
        %v4008 = vsub.s32 0, %v4007
        %v4009 = vrot.slane %v3998, %v4008
        %v4010 = vlaneseq
        %v4011 = vshrl.u32 %v4010, 7
        %v4012 = vsub.s32 0, %v4011
        %v4013 = vrot.slane %v3999, %v4012
        %v4014 = vlaneseq
        %v4015 = vshrl.u32 %v4014, 7
        %v4016 = vsub.s32 0, %v4015
        %v4017 = vrot.slane %v4000, %v4016
        %v4018 = vlaneseq
        %v4019 = vshrl.u32 %v4018, 7
        %v4020 = vsub.s32 0, %v4019
        %v4021 = vrot.slane %v4001, %v4020
        %4022 = vset.pattern.permute.xlu0 0
        %4023 = vperm.xlu0 %4022, %v4009
        %v4024 = vpop.permute.xlu0 %4023
        %4026 = vset.pattern.permute.xlu0 0
        %4027 = vperm.xlu0 %4026, %v4013
        %v4028 = vpop.permute.xlu0 %4027
        %4030 = vset.pattern.permute.xlu0 0
        %4031 = vperm.xlu0 %4030, %v4017
        %v4032 = vpop.permute.xlu0 %4031
        %4034 = vset.pattern.permute.xlu0 0
        %4035 = vperm.xlu0 %4034, %v4021
        %v4036 = vpop.permute.xlu0 %4035
        %v4038 = vmul.f32 %v3195, %v4024
        %v4039 = vmul.f32 %v3196, %v4024
        %v4040 = vmul.f32 %v3197, %v4028
        %v4041 = vmul.f32 %v3198, %v4028
        %v4042 = vmul.f32 %v3199, %v4032
        %v4043 = vmul.f32 %v3200, %v4032
        %v4044 = vmul.f32 %v3201, %v4036
        %v4045 = vmul.f32 %v3202, %v4036
        %4054 = vrot.lane.b32.xlu0 %v4038, 125
        %v4055 = vpop.permute.xlu0 %4054
        %4056 = vrot.lane.b32.xlu0 %v4039, 125
        %v4057 = vpop.permute.xlu0 %4056
        %4058 = vrot.lane.b32.xlu0 %v4040, 125
        %v4059 = vpop.permute.xlu0 %4058
        %4060 = vrot.lane.b32.xlu0 %v4041, 125
        %v4061 = vpop.permute.xlu0 %4060
        %4062 = vrot.lane.b32.xlu0 %v4042, 125
        %v4063 = vpop.permute.xlu0 %4062
        %4064 = vrot.lane.b32.xlu0 %v4043, 125
        %v4065 = vpop.permute.xlu0 %4064
        %4066 = vrot.lane.b32.xlu0 %v4044, 125
        %v4067 = vpop.permute.xlu0 %4066
        %4068 = vrot.lane.b32.xlu0 %v4045, 125
        %v4069 = vpop.permute.xlu0 %4068
        %v4078 = vadd.f32 %v3811, %v4055
        %v4079 = vadd.f32 %v3812, %v4057
        %v4080 = vadd.f32 %v3813, %v4059
        %v4081 = vadd.f32 %v3814, %v4061
        %v4082 = vadd.f32 %v3815, %v4063
        %v4083 = vadd.f32 %v3816, %v4065
        %v4084 = vadd.f32 %v3817, %v4067
        %v4085 = vadd.f32 %v3818, %v4069
        %s4086 = scalar_lea.vmem %s1, 20
        %v4087 = vld [vmem:[%s4086] sm:$0x1]
        %v4088 = vld [vmem:[%s4086 + $0x1] sm:$0x1]
        %v4089 = vld [vmem:[%s4086 + $0x2] sm:$0x1]
        %v4090 = vld [vmem:[%s4086 + $0x3] sm:$0x1]
        %v4095 = vlaneseq
        %v4096 = vshrl.u32 %v4095, 7
        %v4097 = vsub.s32 0, %v4096
        %v4098 = vrot.slane %v4087, %v4097
        %v4099 = vlaneseq
        %v4100 = vshrl.u32 %v4099, 7
        %v4101 = vsub.s32 0, %v4100
        %v4102 = vrot.slane %v4088, %v4101
        %v4103 = vlaneseq
        %v4104 = vshrl.u32 %v4103, 7
        %v4105 = vsub.s32 0, %v4104
        %v4106 = vrot.slane %v4089, %v4105
        %v4107 = vlaneseq
        %v4108 = vshrl.u32 %v4107, 7
        %v4109 = vsub.s32 0, %v4108
        %v4110 = vrot.slane %v4090, %v4109
        %4111 = vset.pattern.permute.xlu0 0
        %4112 = vperm.xlu0 %4111, %v4098
        %v4113 = vpop.permute.xlu0 %4112
        %4115 = vset.pattern.permute.xlu0 0
        %4116 = vperm.xlu0 %4115, %v4102
        %v4117 = vpop.permute.xlu0 %4116
        %4119 = vset.pattern.permute.xlu0 0
        %4120 = vperm.xlu0 %4119, %v4106
        %v4121 = vpop.permute.xlu0 %4120
        %4123 = vset.pattern.permute.xlu0 0
        %4124 = vperm.xlu0 %4123, %v4110
        %v4125 = vpop.permute.xlu0 %4124
        %v4127 = vmul.f32 %v3195, %v4113
        %v4128 = vmul.f32 %v3196, %v4113
        %v4129 = vmul.f32 %v3197, %v4117
        %v4130 = vmul.f32 %v3198, %v4117
        %v4131 = vmul.f32 %v3199, %v4121
        %v4132 = vmul.f32 %v3200, %v4121
        %v4133 = vmul.f32 %v3201, %v4125
        %v4134 = vmul.f32 %v3202, %v4125
        %4143 = vrot.lane.b32.xlu0 %v4127, 126
        %v4144 = vpop.permute.xlu0 %4143
        %4145 = vrot.lane.b32.xlu0 %v4128, 126
        %v4146 = vpop.permute.xlu0 %4145
        %4147 = vrot.lane.b32.xlu0 %v4129, 126
        %v4148 = vpop.permute.xlu0 %4147
        %4149 = vrot.lane.b32.xlu0 %v4130, 126
        %v4150 = vpop.permute.xlu0 %4149
        %4151 = vrot.lane.b32.xlu0 %v4131, 126
        %v4152 = vpop.permute.xlu0 %4151
        %4153 = vrot.lane.b32.xlu0 %v4132, 126
        %v4154 = vpop.permute.xlu0 %4153
        %4155 = vrot.lane.b32.xlu0 %v4133, 126
        %v4156 = vpop.permute.xlu0 %4155
        %4157 = vrot.lane.b32.xlu0 %v4134, 126
        %v4158 = vpop.permute.xlu0 %4157
        %v4167 = vadd.f32 %v3900, %v4144
        %v4168 = vadd.f32 %v3901, %v4146
        %v4169 = vadd.f32 %v3902, %v4148
        %v4170 = vadd.f32 %v3903, %v4150
        %v4171 = vadd.f32 %v3904, %v4152
        %v4172 = vadd.f32 %v3905, %v4154
        %v4173 = vadd.f32 %v3906, %v4156
        %v4174 = vadd.f32 %v3907, %v4158
        %s4175 = scalar_lea.vmem %s3, 104
        %v4176 = vld [vmem:[%s4175] sm:$0x1]
        %v4177 = vld [vmem:[%s4175 + $0x1] sm:$0x1]
        %v4178 = vld [vmem:[%s4175 + $0x2] sm:$0x1]
        %v4179 = vld [vmem:[%s4175 + $0x3] sm:$0x1]
        %v4184 = vlaneseq
        %v4185 = vshrl.u32 %v4184, 7
        %v4186 = vsub.s32 0, %v4185
        %v4187 = vrot.slane %v4176, %v4186
        %v4188 = vlaneseq
        %v4189 = vshrl.u32 %v4188, 7
        %v4190 = vsub.s32 0, %v4189
        %v4191 = vrot.slane %v4177, %v4190
        %v4192 = vlaneseq
        %v4193 = vshrl.u32 %v4192, 7
        %v4194 = vsub.s32 0, %v4193
        %v4195 = vrot.slane %v4178, %v4194
        %v4196 = vlaneseq
        %v4197 = vshrl.u32 %v4196, 7
        %v4198 = vsub.s32 0, %v4197
        %v4199 = vrot.slane %v4179, %v4198
        %4200 = vset.pattern.permute.xlu0 0
        %4201 = vperm.xlu0 %4200, %v4187
        %v4202 = vpop.permute.xlu0 %4201
        %4204 = vset.pattern.permute.xlu0 0
        %4205 = vperm.xlu0 %4204, %v4191
        %v4206 = vpop.permute.xlu0 %4205
        %4208 = vset.pattern.permute.xlu0 0
        %4209 = vperm.xlu0 %4208, %v4195
        %v4210 = vpop.permute.xlu0 %4209
        %4212 = vset.pattern.permute.xlu0 0
        %4213 = vperm.xlu0 %4212, %v4199
        %v4214 = vpop.permute.xlu0 %4213
        %v4216 = vmul.f32 %v3195, %v4202
        %v4217 = vmul.f32 %v3196, %v4202
        %v4218 = vmul.f32 %v3197, %v4206
        %v4219 = vmul.f32 %v3198, %v4206
        %v4220 = vmul.f32 %v3199, %v4210
        %v4221 = vmul.f32 %v3200, %v4210
        %v4222 = vmul.f32 %v3201, %v4214
        %v4223 = vmul.f32 %v3202, %v4214
        %4232 = vrot.lane.b32.xlu0 %v4216, 123
        %v4233 = vpop.permute.xlu0 %4232
        %4234 = vrot.lane.b32.xlu0 %v4217, 123
        %v4235 = vpop.permute.xlu0 %4234
        %4236 = vrot.lane.b32.xlu0 %v4218, 123
        %v4237 = vpop.permute.xlu0 %4236
        %4238 = vrot.lane.b32.xlu0 %v4219, 123
        %v4239 = vpop.permute.xlu0 %4238
        %4240 = vrot.lane.b32.xlu0 %v4220, 123
        %v4241 = vpop.permute.xlu0 %4240
        %4242 = vrot.lane.b32.xlu0 %v4221, 123
        %v4243 = vpop.permute.xlu0 %4242
        %4244 = vrot.lane.b32.xlu0 %v4222, 123
        %v4245 = vpop.permute.xlu0 %4244
        %4246 = vrot.lane.b32.xlu0 %v4223, 123
        %v4247 = vpop.permute.xlu0 %4246
        %v4256 = vadd.f32 %v3989, %v4233
        %v4257 = vadd.f32 %v3990, %v4235
        %v4258 = vadd.f32 %v3991, %v4237
        %v4259 = vadd.f32 %v3992, %v4239
        %v4260 = vadd.f32 %v3993, %v4241
        %v4261 = vadd.f32 %v3994, %v4243
        %v4262 = vadd.f32 %v3995, %v4245
        %v4263 = vadd.f32 %v3996, %v4247
        %s4264 = scalar_lea.vmem %s2, 56
        %v4265 = vld [vmem:[%s4264] sm:$0x1]
        %v4266 = vld [vmem:[%s4264 + $0x1] sm:$0x1]
        %v4267 = vld [vmem:[%s4264 + $0x2] sm:$0x1]
        %v4268 = vld [vmem:[%s4264 + $0x3] sm:$0x1]
        %v4273 = vlaneseq
        %v4274 = vshrl.u32 %v4273, 7
        %v4275 = vsub.s32 0, %v4274
        %v4276 = vrot.slane %v4265, %v4275
        %v4277 = vlaneseq
        %v4278 = vshrl.u32 %v4277, 7
        %v4279 = vsub.s32 0, %v4278
        %v4280 = vrot.slane %v4266, %v4279
        %v4281 = vlaneseq
        %v4282 = vshrl.u32 %v4281, 7
        %v4283 = vsub.s32 0, %v4282
        %v4284 = vrot.slane %v4267, %v4283
        %v4285 = vlaneseq
        %v4286 = vshrl.u32 %v4285, 7
        %v4287 = vsub.s32 0, %v4286
        %v4288 = vrot.slane %v4268, %v4287
        %4289 = vset.pattern.permute.xlu0 0
        %4290 = vperm.xlu0 %4289, %v4276
        %v4291 = vpop.permute.xlu0 %4290
        %4293 = vset.pattern.permute.xlu0 0
        %4294 = vperm.xlu0 %4293, %v4280
        %v4295 = vpop.permute.xlu0 %4294
        %4297 = vset.pattern.permute.xlu0 0
        %4298 = vperm.xlu0 %4297, %v4284
        %v4299 = vpop.permute.xlu0 %4298
        %4301 = vset.pattern.permute.xlu0 0
        %4302 = vperm.xlu0 %4301, %v4288
        %v4303 = vpop.permute.xlu0 %4302
        %v4305 = vmul.f32 %v3195, %v4291
        %v4306 = vmul.f32 %v3196, %v4291
        %v4307 = vmul.f32 %v3197, %v4295
        %v4308 = vmul.f32 %v3198, %v4295
        %v4309 = vmul.f32 %v3199, %v4299
        %v4310 = vmul.f32 %v3200, %v4299
        %v4311 = vmul.f32 %v3201, %v4303
        %v4312 = vmul.f32 %v3202, %v4303
        %4321 = vrot.lane.b32.xlu0 %v4305, 124
        %v4322 = vpop.permute.xlu0 %4321
        %4323 = vrot.lane.b32.xlu0 %v4306, 124
        %v4324 = vpop.permute.xlu0 %4323
        %4325 = vrot.lane.b32.xlu0 %v4307, 124
        %v4326 = vpop.permute.xlu0 %4325
        %4327 = vrot.lane.b32.xlu0 %v4308, 124
        %v4328 = vpop.permute.xlu0 %4327
        %4329 = vrot.lane.b32.xlu0 %v4309, 124
        %v4330 = vpop.permute.xlu0 %4329
        %4331 = vrot.lane.b32.xlu0 %v4310, 124
        %v4332 = vpop.permute.xlu0 %4331
        %4333 = vrot.lane.b32.xlu0 %v4311, 124
        %v4334 = vpop.permute.xlu0 %4333
        %4335 = vrot.lane.b32.xlu0 %v4312, 124
        %v4336 = vpop.permute.xlu0 %4335
        %v4345 = vadd.f32 %v4078, %v4322
        %v4346 = vadd.f32 %v4079, %v4324
        %v4347 = vadd.f32 %v4080, %v4326
        %v4348 = vadd.f32 %v4081, %v4328
        %v4349 = vadd.f32 %v4082, %v4330
        %v4350 = vadd.f32 %v4083, %v4332
        %v4351 = vadd.f32 %v4084, %v4334
        %v4352 = vadd.f32 %v4085, %v4336
        %s4353 = scalar_lea.vmem %s3, 108
        %v4354 = vld [vmem:[%s4353] sm:$0x1]
        %v4355 = vld [vmem:[%s4353 + $0x1] sm:$0x1]
        %v4356 = vld [vmem:[%s4353 + $0x2] sm:$0x1]
        %v4357 = vld [vmem:[%s4353 + $0x3] sm:$0x1]
        %v4362 = vlaneseq
        %v4363 = vshrl.u32 %v4362, 7
        %v4364 = vsub.s32 0, %v4363
        %v4365 = vrot.slane %v4354, %v4364
        %v4366 = vlaneseq
        %v4367 = vshrl.u32 %v4366, 7
        %v4368 = vsub.s32 0, %v4367
        %v4369 = vrot.slane %v4355, %v4368
        %v4370 = vlaneseq
        %v4371 = vshrl.u32 %v4370, 7
        %v4372 = vsub.s32 0, %v4371
        %v4373 = vrot.slane %v4356, %v4372
        %v4374 = vlaneseq
        %v4375 = vshrl.u32 %v4374, 7
        %v4376 = vsub.s32 0, %v4375
        %v4377 = vrot.slane %v4357, %v4376
        %4378 = vset.pattern.permute.xlu0 0
        %4379 = vperm.xlu0 %4378, %v4365
        %v4380 = vpop.permute.xlu0 %4379
        %4382 = vset.pattern.permute.xlu0 0
        %4383 = vperm.xlu0 %4382, %v4369
        %v4384 = vpop.permute.xlu0 %4383
        %4386 = vset.pattern.permute.xlu0 0
        %4387 = vperm.xlu0 %4386, %v4373
        %v4388 = vpop.permute.xlu0 %4387
        %4390 = vset.pattern.permute.xlu0 0
        %4391 = vperm.xlu0 %4390, %v4377
        %v4392 = vpop.permute.xlu0 %4391
        %v4394 = vmul.f32 %v3195, %v4380
        %v4395 = vmul.f32 %v3196, %v4380
        %v4396 = vmul.f32 %v3197, %v4384
        %v4397 = vmul.f32 %v3198, %v4384
        %v4398 = vmul.f32 %v3199, %v4388
        %v4399 = vmul.f32 %v3200, %v4388
        %v4400 = vmul.f32 %v3201, %v4392
        %v4401 = vmul.f32 %v3202, %v4392
        %4410 = vrot.lane.b32.xlu0 %v4394, 122
        %v4411 = vpop.permute.xlu0 %4410
        %4412 = vrot.lane.b32.xlu0 %v4395, 122
        %v4413 = vpop.permute.xlu0 %4412
        %4414 = vrot.lane.b32.xlu0 %v4396, 122
        %v4415 = vpop.permute.xlu0 %4414
        %4416 = vrot.lane.b32.xlu0 %v4397, 122
        %v4417 = vpop.permute.xlu0 %4416
        %4418 = vrot.lane.b32.xlu0 %v4398, 122
        %v4419 = vpop.permute.xlu0 %4418
        %4420 = vrot.lane.b32.xlu0 %v4399, 122
        %v4421 = vpop.permute.xlu0 %4420
        %4422 = vrot.lane.b32.xlu0 %v4400, 122
        %v4423 = vpop.permute.xlu0 %4422
        %4424 = vrot.lane.b32.xlu0 %v4401, 122
        %v4425 = vpop.permute.xlu0 %4424
        %v4434 = vadd.f32 %v4256, %v4411
        %v4435 = vadd.f32 %v4257, %v4413
        %v4436 = vadd.f32 %v4258, %v4415
        %v4437 = vadd.f32 %v4259, %v4417
        %v4438 = vadd.f32 %v4260, %v4419
        %v4439 = vadd.f32 %v4261, %v4421
        %v4440 = vadd.f32 %v4262, %v4423
        %v4441 = vadd.f32 %v4263, %v4425
        %v4442 = vld [vmem:[#allocation2 + $0x4] sm:$0xff]
        %v4443 = vld [vmem:[#allocation2 + $0xc] sm:$0xff]
        %v4444 = vld [vmem:[#allocation2 + $0x1c] sm:$0xff]
        %v4445 = vld [vmem:[#allocation2 + $0x24] sm:$0xff]
        %v4446 = vld [vmem:[#allocation2 + $0x34] sm:$0xff]
        %v4447 = vld [vmem:[#allocation2 + $0x3c] sm:$0xff]
        %v4448 = vld [vmem:[#allocation2 + $0x4c] sm:$0xff]
        %v4449 = vld [vmem:[#allocation2 + $0x54] sm:$0xff]
        %s4450 = scalar_lea.vmem %s3, 112
        %v4451 = vld [vmem:[%s4450] sm:$0x1]
        %v4452 = vld [vmem:[%s4450 + $0x1] sm:$0x1]
        %v4453 = vld [vmem:[%s4450 + $0x2] sm:$0x1]
        %v4454 = vld [vmem:[%s4450 + $0x3] sm:$0x1]
        %v4459 = vlaneseq
        %v4460 = vshrl.u32 %v4459, 7
        %v4461 = vsub.s32 0, %v4460
        %v4462 = vrot.slane %v4451, %v4461
        %v4463 = vlaneseq
        %v4464 = vshrl.u32 %v4463, 7
        %v4465 = vsub.s32 0, %v4464
        %v4466 = vrot.slane %v4452, %v4465
        %v4467 = vlaneseq
        %v4468 = vshrl.u32 %v4467, 7
        %v4469 = vsub.s32 0, %v4468
        %v4470 = vrot.slane %v4453, %v4469
        %v4471 = vlaneseq
        %v4472 = vshrl.u32 %v4471, 7
        %v4473 = vsub.s32 0, %v4472
        %v4474 = vrot.slane %v4454, %v4473
        %4475 = vset.pattern.permute.xlu0 0
        %4476 = vperm.xlu0 %4475, %v4462
        %v4477 = vpop.permute.xlu0 %4476
        %4479 = vset.pattern.permute.xlu0 0
        %4480 = vperm.xlu0 %4479, %v4466
        %v4481 = vpop.permute.xlu0 %4480
        %4483 = vset.pattern.permute.xlu0 0
        %4484 = vperm.xlu0 %4483, %v4470
        %v4485 = vpop.permute.xlu0 %4484
        %4487 = vset.pattern.permute.xlu0 0
        %4488 = vperm.xlu0 %4487, %v4474
        %v4489 = vpop.permute.xlu0 %4488
        %v4491 = vmul.f32 %v4442, %v4477
        %v4492 = vmul.f32 %v4443, %v4477
        %v4493 = vmul.f32 %v4444, %v4481
        %v4494 = vmul.f32 %v4445, %v4481
        %v4495 = vmul.f32 %v4446, %v4485
        %v4496 = vmul.f32 %v4447, %v4485
        %v4497 = vmul.f32 %v4448, %v4489
        %v4498 = vmul.f32 %v4449, %v4489
        %v4499 = vadd.f32 %v4434, %v4491
        %v4500 = vadd.f32 %v4435, %v4492
        %v4501 = vadd.f32 %v4436, %v4493
        %v4502 = vadd.f32 %v4437, %v4494
        %v4503 = vadd.f32 %v4438, %v4495
        %v4504 = vadd.f32 %v4439, %v4496
        %v4505 = vadd.f32 %v4440, %v4497
        %v4506 = vadd.f32 %v4441, %v4498
        %s4507 = scalar_lea.vmem %s3, 116
        %v4508 = vld [vmem:[%s4507] sm:$0x1]
        %v4509 = vld [vmem:[%s4507 + $0x1] sm:$0x1]
        %v4510 = vld [vmem:[%s4507 + $0x2] sm:$0x1]
        %v4511 = vld [vmem:[%s4507 + $0x3] sm:$0x1]
        %v4516 = vlaneseq
        %v4517 = vshrl.u32 %v4516, 7
        %v4518 = vsub.s32 0, %v4517
        %v4519 = vrot.slane %v4508, %v4518
        %v4520 = vlaneseq
        %v4521 = vshrl.u32 %v4520, 7
        %v4522 = vsub.s32 0, %v4521
        %v4523 = vrot.slane %v4509, %v4522
        %v4524 = vlaneseq
        %v4525 = vshrl.u32 %v4524, 7
        %v4526 = vsub.s32 0, %v4525
        %v4527 = vrot.slane %v4510, %v4526
        %v4528 = vlaneseq
        %v4529 = vshrl.u32 %v4528, 7
        %v4530 = vsub.s32 0, %v4529
        %v4531 = vrot.slane %v4511, %v4530
        %4532 = vset.pattern.permute.xlu0 0
        %4533 = vperm.xlu0 %4532, %v4519
        %v4534 = vpop.permute.xlu0 %4533
        %4536 = vset.pattern.permute.xlu0 0
        %4537 = vperm.xlu0 %4536, %v4523
        %v4538 = vpop.permute.xlu0 %4537
        %4540 = vset.pattern.permute.xlu0 0
        %4541 = vperm.xlu0 %4540, %v4527
        %v4542 = vpop.permute.xlu0 %4541
        %4544 = vset.pattern.permute.xlu0 0
        %4545 = vperm.xlu0 %4544, %v4531
        %v4546 = vpop.permute.xlu0 %4545
        %v4548 = vmul.f32 %v4442, %v4534
        %v4549 = vmul.f32 %v4443, %v4534
        %v4550 = vmul.f32 %v4444, %v4538
        %v4551 = vmul.f32 %v4445, %v4538
        %v4552 = vmul.f32 %v4446, %v4542
        %v4553 = vmul.f32 %v4447, %v4542
        %v4554 = vmul.f32 %v4448, %v4546
        %v4555 = vmul.f32 %v4449, %v4546
        %4564 = vrot.lane.b32.xlu0 %v4548, 127
        %v4565 = vpop.permute.xlu0 %4564
        %4566 = vrot.lane.b32.xlu0 %v4549, 127
        %v4567 = vpop.permute.xlu0 %4566
        %4568 = vrot.lane.b32.xlu0 %v4550, 127
        %v4569 = vpop.permute.xlu0 %4568
        %4570 = vrot.lane.b32.xlu0 %v4551, 127
        %v4571 = vpop.permute.xlu0 %4570
        %4572 = vrot.lane.b32.xlu0 %v4552, 127
        %v4573 = vpop.permute.xlu0 %4572
        %4574 = vrot.lane.b32.xlu0 %v4553, 127
        %v4575 = vpop.permute.xlu0 %4574
        %4576 = vrot.lane.b32.xlu0 %v4554, 127
        %v4577 = vpop.permute.xlu0 %4576
        %4578 = vrot.lane.b32.xlu0 %v4555, 127
        %v4579 = vpop.permute.xlu0 %4578
        %v4588 = vadd.f32 %v4499, %v4565
        %v4589 = vadd.f32 %v4500, %v4567
        %v4590 = vadd.f32 %v4501, %v4569
        %v4591 = vadd.f32 %v4502, %v4571
        %v4592 = vadd.f32 %v4503, %v4573
        %v4593 = vadd.f32 %v4504, %v4575
        %v4594 = vadd.f32 %v4505, %v4577
        %v4595 = vadd.f32 %v4506, %v4579
        %s4596 = scalar_lea.vmem %s2, 60
        %v4597 = vld [vmem:[%s4596] sm:$0x1]
        %v4598 = vld [vmem:[%s4596 + $0x1] sm:$0x1]
        %v4599 = vld [vmem:[%s4596 + $0x2] sm:$0x1]
        %v4600 = vld [vmem:[%s4596 + $0x3] sm:$0x1]
        %v4605 = vlaneseq
        %v4606 = vshrl.u32 %v4605, 7
        %v4607 = vsub.s32 0, %v4606
        %v4608 = vrot.slane %v4597, %v4607
        %v4609 = vlaneseq
        %v4610 = vshrl.u32 %v4609, 7
        %v4611 = vsub.s32 0, %v4610
        %v4612 = vrot.slane %v4598, %v4611
        %v4613 = vlaneseq
        %v4614 = vshrl.u32 %v4613, 7
        %v4615 = vsub.s32 0, %v4614
        %v4616 = vrot.slane %v4599, %v4615
        %v4617 = vlaneseq
        %v4618 = vshrl.u32 %v4617, 7
        %v4619 = vsub.s32 0, %v4618
        %v4620 = vrot.slane %v4600, %v4619
        %4621 = vset.pattern.permute.xlu0 0
        %4622 = vperm.xlu0 %4621, %v4608
        %v4623 = vpop.permute.xlu0 %4622
        %4625 = vset.pattern.permute.xlu0 0
        %4626 = vperm.xlu0 %4625, %v4612
        %v4627 = vpop.permute.xlu0 %4626
        %4629 = vset.pattern.permute.xlu0 0
        %4630 = vperm.xlu0 %4629, %v4616
        %v4631 = vpop.permute.xlu0 %4630
        %4633 = vset.pattern.permute.xlu0 0
        %4634 = vperm.xlu0 %4633, %v4620
        %v4635 = vpop.permute.xlu0 %4634
        %v4637 = vmul.f32 %v4442, %v4623
        %v4638 = vmul.f32 %v4443, %v4623
        %v4639 = vmul.f32 %v4444, %v4627
        %v4640 = vmul.f32 %v4445, %v4627
        %v4641 = vmul.f32 %v4446, %v4631
        %v4642 = vmul.f32 %v4447, %v4631
        %v4643 = vmul.f32 %v4448, %v4635
        %v4644 = vmul.f32 %v4449, %v4635
        %v4645 = vadd.f32 %v4345, %v4637
        %v4646 = vadd.f32 %v4346, %v4638
        %v4647 = vadd.f32 %v4347, %v4639
        %v4648 = vadd.f32 %v4348, %v4640
        %v4649 = vadd.f32 %v4349, %v4641
        %v4650 = vadd.f32 %v4350, %v4642
        %v4651 = vadd.f32 %v4351, %v4643
        %v4652 = vadd.f32 %v4352, %v4644
        %s4653 = scalar_lea.vmem %s3, 120
        %v4654 = vld [vmem:[%s4653] sm:$0x1]
        %v4655 = vld [vmem:[%s4653 + $0x1] sm:$0x1]
        %v4656 = vld [vmem:[%s4653 + $0x2] sm:$0x1]
        %v4657 = vld [vmem:[%s4653 + $0x3] sm:$0x1]
        %v4662 = vlaneseq
        %v4663 = vshrl.u32 %v4662, 7
        %v4664 = vsub.s32 0, %v4663
        %v4665 = vrot.slane %v4654, %v4664
        %v4666 = vlaneseq
        %v4667 = vshrl.u32 %v4666, 7
        %v4668 = vsub.s32 0, %v4667
        %v4669 = vrot.slane %v4655, %v4668
        %v4670 = vlaneseq
        %v4671 = vshrl.u32 %v4670, 7
        %v4672 = vsub.s32 0, %v4671
        %v4673 = vrot.slane %v4656, %v4672
        %v4674 = vlaneseq
        %v4675 = vshrl.u32 %v4674, 7
        %v4676 = vsub.s32 0, %v4675
        %v4677 = vrot.slane %v4657, %v4676
        %4678 = vset.pattern.permute.xlu0 0
        %4679 = vperm.xlu0 %4678, %v4665
        %v4680 = vpop.permute.xlu0 %4679
        %4682 = vset.pattern.permute.xlu0 0
        %4683 = vperm.xlu0 %4682, %v4669
        %v4684 = vpop.permute.xlu0 %4683
        %4686 = vset.pattern.permute.xlu0 0
        %4687 = vperm.xlu0 %4686, %v4673
        %v4688 = vpop.permute.xlu0 %4687
        %4690 = vset.pattern.permute.xlu0 0
        %4691 = vperm.xlu0 %4690, %v4677
        %v4692 = vpop.permute.xlu0 %4691
        %v4694 = vmul.f32 %v4442, %v4680
        %v4695 = vmul.f32 %v4443, %v4680
        %v4696 = vmul.f32 %v4444, %v4684
        %v4697 = vmul.f32 %v4445, %v4684
        %v4698 = vmul.f32 %v4446, %v4688
        %v4699 = vmul.f32 %v4447, %v4688
        %v4700 = vmul.f32 %v4448, %v4692
        %v4701 = vmul.f32 %v4449, %v4692
        %4710 = vrot.lane.b32.xlu0 %v4694, 126
        %v4711 = vpop.permute.xlu0 %4710
        %4712 = vrot.lane.b32.xlu0 %v4695, 126
        %v4713 = vpop.permute.xlu0 %4712
        %4714 = vrot.lane.b32.xlu0 %v4696, 126
        %v4715 = vpop.permute.xlu0 %4714
        %4716 = vrot.lane.b32.xlu0 %v4697, 126
        %v4717 = vpop.permute.xlu0 %4716
        %4718 = vrot.lane.b32.xlu0 %v4698, 126
        %v4719 = vpop.permute.xlu0 %4718
        %4720 = vrot.lane.b32.xlu0 %v4699, 126
        %v4721 = vpop.permute.xlu0 %4720
        %4722 = vrot.lane.b32.xlu0 %v4700, 126
        %v4723 = vpop.permute.xlu0 %4722
        %4724 = vrot.lane.b32.xlu0 %v4701, 126
        %v4725 = vpop.permute.xlu0 %4724
        %v4734 = vadd.f32 %v4588, %v4711
        %v4735 = vadd.f32 %v4589, %v4713
        %v4736 = vadd.f32 %v4590, %v4715
        %v4737 = vadd.f32 %v4591, %v4717
        %v4738 = vadd.f32 %v4592, %v4719
        %v4739 = vadd.f32 %v4593, %v4721
        %v4740 = vadd.f32 %v4594, %v4723
        %v4741 = vadd.f32 %v4595, %v4725
        %s4742 = scalar_lea.vmem %s2, 64
        %v4743 = vld [vmem:[%s4742] sm:$0x1]
        %v4744 = vld [vmem:[%s4742 + $0x1] sm:$0x1]
        %v4745 = vld [vmem:[%s4742 + $0x2] sm:$0x1]
        %v4746 = vld [vmem:[%s4742 + $0x3] sm:$0x1]
        %v4751 = vlaneseq
        %v4752 = vshrl.u32 %v4751, 7
        %v4753 = vsub.s32 0, %v4752
        %v4754 = vrot.slane %v4743, %v4753
        %v4755 = vlaneseq
        %v4756 = vshrl.u32 %v4755, 7
        %v4757 = vsub.s32 0, %v4756
        %v4758 = vrot.slane %v4744, %v4757
        %v4759 = vlaneseq
        %v4760 = vshrl.u32 %v4759, 7
        %v4761 = vsub.s32 0, %v4760
        %v4762 = vrot.slane %v4745, %v4761
        %v4763 = vlaneseq
        %v4764 = vshrl.u32 %v4763, 7
        %v4765 = vsub.s32 0, %v4764
        %v4766 = vrot.slane %v4746, %v4765
        %4767 = vset.pattern.permute.xlu0 0
        %4768 = vperm.xlu0 %4767, %v4754
        %v4769 = vpop.permute.xlu0 %4768
        %4771 = vset.pattern.permute.xlu0 0
        %4772 = vperm.xlu0 %4771, %v4758
        %v4773 = vpop.permute.xlu0 %4772
        %4775 = vset.pattern.permute.xlu0 0
        %4776 = vperm.xlu0 %4775, %v4762
        %v4777 = vpop.permute.xlu0 %4776
        %4779 = vset.pattern.permute.xlu0 0
        %4780 = vperm.xlu0 %4779, %v4766
        %v4781 = vpop.permute.xlu0 %4780
        %v4783 = vmul.f32 %v4442, %v4769
        %v4784 = vmul.f32 %v4443, %v4769
        %v4785 = vmul.f32 %v4444, %v4773
        %v4786 = vmul.f32 %v4445, %v4773
        %v4787 = vmul.f32 %v4446, %v4777
        %v4788 = vmul.f32 %v4447, %v4777
        %v4789 = vmul.f32 %v4448, %v4781
        %v4790 = vmul.f32 %v4449, %v4781
        %4799 = vrot.lane.b32.xlu0 %v4783, 127
        %v4800 = vpop.permute.xlu0 %4799
        %4801 = vrot.lane.b32.xlu0 %v4784, 127
        %v4802 = vpop.permute.xlu0 %4801
        %4803 = vrot.lane.b32.xlu0 %v4785, 127
        %v4804 = vpop.permute.xlu0 %4803
        %4805 = vrot.lane.b32.xlu0 %v4786, 127
        %v4806 = vpop.permute.xlu0 %4805
        %4807 = vrot.lane.b32.xlu0 %v4787, 127
        %v4808 = vpop.permute.xlu0 %4807
        %4809 = vrot.lane.b32.xlu0 %v4788, 127
        %v4810 = vpop.permute.xlu0 %4809
        %4811 = vrot.lane.b32.xlu0 %v4789, 127
        %v4812 = vpop.permute.xlu0 %4811
        %4813 = vrot.lane.b32.xlu0 %v4790, 127
        %v4814 = vpop.permute.xlu0 %4813
        %v4823 = vadd.f32 %v4645, %v4800
        %v4824 = vadd.f32 %v4646, %v4802
        %v4825 = vadd.f32 %v4647, %v4804
        %v4826 = vadd.f32 %v4648, %v4806
        %v4827 = vadd.f32 %v4649, %v4808
        %v4828 = vadd.f32 %v4650, %v4810
        %v4829 = vadd.f32 %v4651, %v4812
        %v4830 = vadd.f32 %v4652, %v4814
        %s4831 = scalar_lea.vmem %s1, 24
        %v4832 = vld [vmem:[%s4831] sm:$0x1]
        %v4833 = vld [vmem:[%s4831 + $0x1] sm:$0x1]
        %v4834 = vld [vmem:[%s4831 + $0x2] sm:$0x1]
        %v4835 = vld [vmem:[%s4831 + $0x3] sm:$0x1]
        %v4840 = vlaneseq
        %v4841 = vshrl.u32 %v4840, 7
        %v4842 = vsub.s32 0, %v4841
        %v4843 = vrot.slane %v4832, %v4842
        %v4844 = vlaneseq
        %v4845 = vshrl.u32 %v4844, 7
        %v4846 = vsub.s32 0, %v4845
        %v4847 = vrot.slane %v4833, %v4846
        %v4848 = vlaneseq
        %v4849 = vshrl.u32 %v4848, 7
        %v4850 = vsub.s32 0, %v4849
        %v4851 = vrot.slane %v4834, %v4850
        %v4852 = vlaneseq
        %v4853 = vshrl.u32 %v4852, 7
        %v4854 = vsub.s32 0, %v4853
        %v4855 = vrot.slane %v4835, %v4854
        %4856 = vset.pattern.permute.xlu0 0
        %4857 = vperm.xlu0 %4856, %v4843
        %v4858 = vpop.permute.xlu0 %4857
        %4860 = vset.pattern.permute.xlu0 0
        %4861 = vperm.xlu0 %4860, %v4847
        %v4862 = vpop.permute.xlu0 %4861
        %4864 = vset.pattern.permute.xlu0 0
        %4865 = vperm.xlu0 %4864, %v4851
        %v4866 = vpop.permute.xlu0 %4865
        %4868 = vset.pattern.permute.xlu0 0
        %4869 = vperm.xlu0 %4868, %v4855
        %v4870 = vpop.permute.xlu0 %4869
        %v4872 = vmul.f32 %v4442, %v4858
        %v4873 = vmul.f32 %v4443, %v4858
        %v4874 = vmul.f32 %v4444, %v4862
        %v4875 = vmul.f32 %v4445, %v4862
        %v4876 = vmul.f32 %v4446, %v4866
        %v4877 = vmul.f32 %v4447, %v4866
        %v4878 = vmul.f32 %v4448, %v4870
        %v4879 = vmul.f32 %v4449, %v4870
        %v4880 = vadd.f32 %v4167, %v4872
        %v4881 = vadd.f32 %v4168, %v4873
        %v4882 = vadd.f32 %v4169, %v4874
        %v4883 = vadd.f32 %v4170, %v4875
        %v4884 = vadd.f32 %v4171, %v4876
        %v4885 = vadd.f32 %v4172, %v4877
        %v4886 = vadd.f32 %v4173, %v4878
        %v4887 = vadd.f32 %v4174, %v4879
        %s4888 = scalar_lea.vmem %s3, 124
        %v4889 = vld [vmem:[%s4888] sm:$0x1]
        %v4890 = vld [vmem:[%s4888 + $0x1] sm:$0x1]
        %v4891 = vld [vmem:[%s4888 + $0x2] sm:$0x1]
        %v4892 = vld [vmem:[%s4888 + $0x3] sm:$0x1]
        %v4897 = vlaneseq
        %v4898 = vshrl.u32 %v4897, 7
        %v4899 = vsub.s32 0, %v4898
        %v4900 = vrot.slane %v4889, %v4899
        %v4901 = vlaneseq
        %v4902 = vshrl.u32 %v4901, 7
        %v4903 = vsub.s32 0, %v4902
        %v4904 = vrot.slane %v4890, %v4903
        %v4905 = vlaneseq
        %v4906 = vshrl.u32 %v4905, 7
        %v4907 = vsub.s32 0, %v4906
        %v4908 = vrot.slane %v4891, %v4907
        %v4909 = vlaneseq
        %v4910 = vshrl.u32 %v4909, 7
        %v4911 = vsub.s32 0, %v4910
        %v4912 = vrot.slane %v4892, %v4911
        %4913 = vset.pattern.permute.xlu0 0
        %4914 = vperm.xlu0 %4913, %v4900
        %v4915 = vpop.permute.xlu0 %4914
        %4917 = vset.pattern.permute.xlu0 0
        %4918 = vperm.xlu0 %4917, %v4904
        %v4919 = vpop.permute.xlu0 %4918
        %4921 = vset.pattern.permute.xlu0 0
        %4922 = vperm.xlu0 %4921, %v4908
        %v4923 = vpop.permute.xlu0 %4922
        %4925 = vset.pattern.permute.xlu0 0
        %4926 = vperm.xlu0 %4925, %v4912
        %v4927 = vpop.permute.xlu0 %4926
        %v4929 = vmul.f32 %v4442, %v4915
        %v4930 = vmul.f32 %v4443, %v4915
        %v4931 = vmul.f32 %v4444, %v4919
        %v4932 = vmul.f32 %v4445, %v4919
        %v4933 = vmul.f32 %v4446, %v4923
        %v4934 = vmul.f32 %v4447, %v4923
        %v4935 = vmul.f32 %v4448, %v4927
        %v4936 = vmul.f32 %v4449, %v4927
        %4945 = vrot.lane.b32.xlu0 %v4929, 125
        %v4946 = vpop.permute.xlu0 %4945
        %4947 = vrot.lane.b32.xlu0 %v4930, 125
        %v4948 = vpop.permute.xlu0 %4947
        %4949 = vrot.lane.b32.xlu0 %v4931, 125
        %v4950 = vpop.permute.xlu0 %4949
        %4951 = vrot.lane.b32.xlu0 %v4932, 125
        %v4952 = vpop.permute.xlu0 %4951
        %4953 = vrot.lane.b32.xlu0 %v4933, 125
        %v4954 = vpop.permute.xlu0 %4953
        %4955 = vrot.lane.b32.xlu0 %v4934, 125
        %v4956 = vpop.permute.xlu0 %4955
        %4957 = vrot.lane.b32.xlu0 %v4935, 125
        %v4958 = vpop.permute.xlu0 %4957
        %4959 = vrot.lane.b32.xlu0 %v4936, 125
        %v4960 = vpop.permute.xlu0 %4959
        %v4969 = vadd.f32 %v4734, %v4946
        %v4970 = vadd.f32 %v4735, %v4948
        %v4971 = vadd.f32 %v4736, %v4950
        %v4972 = vadd.f32 %v4737, %v4952
        %v4973 = vadd.f32 %v4738, %v4954
        %v4974 = vadd.f32 %v4739, %v4956
        %v4975 = vadd.f32 %v4740, %v4958
        %v4976 = vadd.f32 %v4741, %v4960
        %s4977 = scalar_lea.vmem %s2, 68
        %v4978 = vld [vmem:[%s4977] sm:$0x1]
        %v4979 = vld [vmem:[%s4977 + $0x1] sm:$0x1]
        %v4980 = vld [vmem:[%s4977 + $0x2] sm:$0x1]
        %v4981 = vld [vmem:[%s4977 + $0x3] sm:$0x1]
        %v4986 = vlaneseq
        %v4987 = vshrl.u32 %v4986, 7
        %v4988 = vsub.s32 0, %v4987
        %v4989 = vrot.slane %v4978, %v4988
        %v4990 = vlaneseq
        %v4991 = vshrl.u32 %v4990, 7
        %v4992 = vsub.s32 0, %v4991
        %v4993 = vrot.slane %v4979, %v4992
        %v4994 = vlaneseq
        %v4995 = vshrl.u32 %v4994, 7
        %v4996 = vsub.s32 0, %v4995
        %v4997 = vrot.slane %v4980, %v4996
        %v4998 = vlaneseq
        %v4999 = vshrl.u32 %v4998, 7
        %v5000 = vsub.s32 0, %v4999
        %v5001 = vrot.slane %v4981, %v5000
        %5002 = vset.pattern.permute.xlu0 0
        %5003 = vperm.xlu0 %5002, %v4989
        %v5004 = vpop.permute.xlu0 %5003
        %5006 = vset.pattern.permute.xlu0 0
        %5007 = vperm.xlu0 %5006, %v4993
        %v5008 = vpop.permute.xlu0 %5007
        %5010 = vset.pattern.permute.xlu0 0
        %5011 = vperm.xlu0 %5010, %v4997
        %v5012 = vpop.permute.xlu0 %5011
        %5014 = vset.pattern.permute.xlu0 0
        %5015 = vperm.xlu0 %5014, %v5001
        %v5016 = vpop.permute.xlu0 %5015
        %v5018 = vmul.f32 %v4442, %v5004
        %v5019 = vmul.f32 %v4443, %v5004
        %v5020 = vmul.f32 %v4444, %v5008
        %v5021 = vmul.f32 %v4445, %v5008
        %v5022 = vmul.f32 %v4446, %v5012
        %v5023 = vmul.f32 %v4447, %v5012
        %v5024 = vmul.f32 %v4448, %v5016
        %v5025 = vmul.f32 %v4449, %v5016
        %5034 = vrot.lane.b32.xlu0 %v5018, 126
        %v5035 = vpop.permute.xlu0 %5034
        %5036 = vrot.lane.b32.xlu0 %v5019, 126
        %v5037 = vpop.permute.xlu0 %5036
        %5038 = vrot.lane.b32.xlu0 %v5020, 126
        %v5039 = vpop.permute.xlu0 %5038
        %5040 = vrot.lane.b32.xlu0 %v5021, 126
        %v5041 = vpop.permute.xlu0 %5040
        %5042 = vrot.lane.b32.xlu0 %v5022, 126
        %v5043 = vpop.permute.xlu0 %5042
        %5044 = vrot.lane.b32.xlu0 %v5023, 126
        %v5045 = vpop.permute.xlu0 %5044
        %5046 = vrot.lane.b32.xlu0 %v5024, 126
        %v5047 = vpop.permute.xlu0 %5046
        %5048 = vrot.lane.b32.xlu0 %v5025, 126
        %v5049 = vpop.permute.xlu0 %5048
        %v5058 = vadd.f32 %v4823, %v5035
        %v5059 = vadd.f32 %v4824, %v5037
        %v5060 = vadd.f32 %v4825, %v5039
        %v5061 = vadd.f32 %v4826, %v5041
        %v5062 = vadd.f32 %v4827, %v5043
        %v5063 = vadd.f32 %v4828, %v5045
        %v5064 = vadd.f32 %v4829, %v5047
        %v5065 = vadd.f32 %v4830, %v5049
        %s5066 = scalar_lea.vmem %s1, 28
        %v5067 = vld [vmem:[%s5066] sm:$0x1]
        %v5068 = vld [vmem:[%s5066 + $0x1] sm:$0x1]
        %v5069 = vld [vmem:[%s5066 + $0x2] sm:$0x1]
        %v5070 = vld [vmem:[%s5066 + $0x3] sm:$0x1]
        %v5075 = vlaneseq
        %v5076 = vshrl.u32 %v5075, 7
        %v5077 = vsub.s32 0, %v5076
        %v5078 = vrot.slane %v5067, %v5077
        %v5079 = vlaneseq
        %v5080 = vshrl.u32 %v5079, 7
        %v5081 = vsub.s32 0, %v5080
        %v5082 = vrot.slane %v5068, %v5081
        %v5083 = vlaneseq
        %v5084 = vshrl.u32 %v5083, 7
        %v5085 = vsub.s32 0, %v5084
        %v5086 = vrot.slane %v5069, %v5085
        %v5087 = vlaneseq
        %v5088 = vshrl.u32 %v5087, 7
        %v5089 = vsub.s32 0, %v5088
        %v5090 = vrot.slane %v5070, %v5089
        %5091 = vset.pattern.permute.xlu0 0
        %5092 = vperm.xlu0 %5091, %v5078
        %v5093 = vpop.permute.xlu0 %5092
        %5095 = vset.pattern.permute.xlu0 0
        %5096 = vperm.xlu0 %5095, %v5082
        %v5097 = vpop.permute.xlu0 %5096
        %5099 = vset.pattern.permute.xlu0 0
        %5100 = vperm.xlu0 %5099, %v5086
        %v5101 = vpop.permute.xlu0 %5100
        %5103 = vset.pattern.permute.xlu0 0
        %5104 = vperm.xlu0 %5103, %v5090
        %v5105 = vpop.permute.xlu0 %5104
        %v5107 = vmul.f32 %v4442, %v5093
        %v5108 = vmul.f32 %v4443, %v5093
        %v5109 = vmul.f32 %v4444, %v5097
        %v5110 = vmul.f32 %v4445, %v5097
        %v5111 = vmul.f32 %v4446, %v5101
        %v5112 = vmul.f32 %v4447, %v5101
        %v5113 = vmul.f32 %v4448, %v5105
        %v5114 = vmul.f32 %v4449, %v5105
        %5123 = vrot.lane.b32.xlu0 %v5107, 127
        %v5124 = vpop.permute.xlu0 %5123
        %5125 = vrot.lane.b32.xlu0 %v5108, 127
        %v5126 = vpop.permute.xlu0 %5125
        %5127 = vrot.lane.b32.xlu0 %v5109, 127
        %v5128 = vpop.permute.xlu0 %5127
        %5129 = vrot.lane.b32.xlu0 %v5110, 127
        %v5130 = vpop.permute.xlu0 %5129
        %5131 = vrot.lane.b32.xlu0 %v5111, 127
        %v5132 = vpop.permute.xlu0 %5131
        %5133 = vrot.lane.b32.xlu0 %v5112, 127
        %v5134 = vpop.permute.xlu0 %5133
        %5135 = vrot.lane.b32.xlu0 %v5113, 127
        %v5136 = vpop.permute.xlu0 %5135
        %5137 = vrot.lane.b32.xlu0 %v5114, 127
        %v5138 = vpop.permute.xlu0 %5137
        %v5147 = vadd.f32 %v4880, %v5124
        %v5148 = vadd.f32 %v4881, %v5126
        %v5149 = vadd.f32 %v4882, %v5128
        %v5150 = vadd.f32 %v4883, %v5130
        %v5151 = vadd.f32 %v4884, %v5132
        %v5152 = vadd.f32 %v4885, %v5134
        %v5153 = vadd.f32 %v4886, %v5136
        %v5154 = vadd.f32 %v4887, %v5138
        %s5155 = scalar_lea.vmem %s3, 128
        %v5156 = vld [vmem:[%s5155] sm:$0x1]
        %v5157 = vld [vmem:[%s5155 + $0x1] sm:$0x1]
        %v5158 = vld [vmem:[%s5155 + $0x2] sm:$0x1]
        %v5159 = vld [vmem:[%s5155 + $0x3] sm:$0x1]
        %v5164 = vlaneseq
        %v5165 = vshrl.u32 %v5164, 7
        %v5166 = vsub.s32 0, %v5165
        %v5167 = vrot.slane %v5156, %v5166
        %v5168 = vlaneseq
        %v5169 = vshrl.u32 %v5168, 7
        %v5170 = vsub.s32 0, %v5169
        %v5171 = vrot.slane %v5157, %v5170
        %v5172 = vlaneseq
        %v5173 = vshrl.u32 %v5172, 7
        %v5174 = vsub.s32 0, %v5173
        %v5175 = vrot.slane %v5158, %v5174
        %v5176 = vlaneseq
        %v5177 = vshrl.u32 %v5176, 7
        %v5178 = vsub.s32 0, %v5177
        %v5179 = vrot.slane %v5159, %v5178
        %5180 = vset.pattern.permute.xlu0 0
        %5181 = vperm.xlu0 %5180, %v5167
        %v5182 = vpop.permute.xlu0 %5181
        %5184 = vset.pattern.permute.xlu0 0
        %5185 = vperm.xlu0 %5184, %v5171
        %v5186 = vpop.permute.xlu0 %5185
        %5188 = vset.pattern.permute.xlu0 0
        %5189 = vperm.xlu0 %5188, %v5175
        %v5190 = vpop.permute.xlu0 %5189
        %5192 = vset.pattern.permute.xlu0 0
        %5193 = vperm.xlu0 %5192, %v5179
        %v5194 = vpop.permute.xlu0 %5193
        %v5196 = vmul.f32 %v4442, %v5182
        %v5197 = vmul.f32 %v4443, %v5182
        %v5198 = vmul.f32 %v4444, %v5186
        %v5199 = vmul.f32 %v4445, %v5186
        %v5200 = vmul.f32 %v4446, %v5190
        %v5201 = vmul.f32 %v4447, %v5190
        %v5202 = vmul.f32 %v4448, %v5194
        %v5203 = vmul.f32 %v4449, %v5194
        %5212 = vrot.lane.b32.xlu0 %v5196, 124
        %v5213 = vpop.permute.xlu0 %5212
        %5214 = vrot.lane.b32.xlu0 %v5197, 124
        %v5215 = vpop.permute.xlu0 %5214
        %5216 = vrot.lane.b32.xlu0 %v5198, 124
        %v5217 = vpop.permute.xlu0 %5216
        %5218 = vrot.lane.b32.xlu0 %v5199, 124
        %v5219 = vpop.permute.xlu0 %5218
        %5220 = vrot.lane.b32.xlu0 %v5200, 124
        %v5221 = vpop.permute.xlu0 %5220
        %5222 = vrot.lane.b32.xlu0 %v5201, 124
        %v5223 = vpop.permute.xlu0 %5222
        %5224 = vrot.lane.b32.xlu0 %v5202, 124
        %v5225 = vpop.permute.xlu0 %5224
        %5226 = vrot.lane.b32.xlu0 %v5203, 124
        %v5227 = vpop.permute.xlu0 %5226
        %v5236 = vadd.f32 %v4969, %v5213
        %v5237 = vadd.f32 %v4970, %v5215
        %v5238 = vadd.f32 %v4971, %v5217
        %v5239 = vadd.f32 %v4972, %v5219
        %v5240 = vadd.f32 %v4973, %v5221
        %v5241 = vadd.f32 %v4974, %v5223
        %v5242 = vadd.f32 %v4975, %v5225
        %v5243 = vadd.f32 %v4976, %v5227
        %s5244 = scalar_lea.vmem %s2, 72
        %v5245 = vld [vmem:[%s5244] sm:$0x1]
        %v5246 = vld [vmem:[%s5244 + $0x1] sm:$0x1]
        %v5247 = vld [vmem:[%s5244 + $0x2] sm:$0x1]
        %v5248 = vld [vmem:[%s5244 + $0x3] sm:$0x1]
        %v5253 = vlaneseq
        %v5254 = vshrl.u32 %v5253, 7
        %v5255 = vsub.s32 0, %v5254
        %v5256 = vrot.slane %v5245, %v5255
        %v5257 = vlaneseq
        %v5258 = vshrl.u32 %v5257, 7
        %v5259 = vsub.s32 0, %v5258
        %v5260 = vrot.slane %v5246, %v5259
        %v5261 = vlaneseq
        %v5262 = vshrl.u32 %v5261, 7
        %v5263 = vsub.s32 0, %v5262
        %v5264 = vrot.slane %v5247, %v5263
        %v5265 = vlaneseq
        %v5266 = vshrl.u32 %v5265, 7
        %v5267 = vsub.s32 0, %v5266
        %v5268 = vrot.slane %v5248, %v5267
        %5269 = vset.pattern.permute.xlu0 0
        %5270 = vperm.xlu0 %5269, %v5256
        %v5271 = vpop.permute.xlu0 %5270
        %5273 = vset.pattern.permute.xlu0 0
        %5274 = vperm.xlu0 %5273, %v5260
        %v5275 = vpop.permute.xlu0 %5274
        %5277 = vset.pattern.permute.xlu0 0
        %5278 = vperm.xlu0 %5277, %v5264
        %v5279 = vpop.permute.xlu0 %5278
        %5281 = vset.pattern.permute.xlu0 0
        %5282 = vperm.xlu0 %5281, %v5268
        %v5283 = vpop.permute.xlu0 %5282
        %v5285 = vmul.f32 %v4442, %v5271
        %v5286 = vmul.f32 %v4443, %v5271
        %v5287 = vmul.f32 %v4444, %v5275
        %v5288 = vmul.f32 %v4445, %v5275
        %v5289 = vmul.f32 %v4446, %v5279
        %v5290 = vmul.f32 %v4447, %v5279
        %v5291 = vmul.f32 %v4448, %v5283
        %v5292 = vmul.f32 %v4449, %v5283
        %5301 = vrot.lane.b32.xlu0 %v5285, 125
        %v5302 = vpop.permute.xlu0 %5301
        %5303 = vrot.lane.b32.xlu0 %v5286, 125
        %v5304 = vpop.permute.xlu0 %5303
        %5305 = vrot.lane.b32.xlu0 %v5287, 125
        %v5306 = vpop.permute.xlu0 %5305
        %5307 = vrot.lane.b32.xlu0 %v5288, 125
        %v5308 = vpop.permute.xlu0 %5307
        %5309 = vrot.lane.b32.xlu0 %v5289, 125
        %v5310 = vpop.permute.xlu0 %5309
        %5311 = vrot.lane.b32.xlu0 %v5290, 125
        %v5312 = vpop.permute.xlu0 %5311
        %5313 = vrot.lane.b32.xlu0 %v5291, 125
        %v5314 = vpop.permute.xlu0 %5313
        %5315 = vrot.lane.b32.xlu0 %v5292, 125
        %v5316 = vpop.permute.xlu0 %5315
        %v5325 = vadd.f32 %v5058, %v5302
        %v5326 = vadd.f32 %v5059, %v5304
        %v5327 = vadd.f32 %v5060, %v5306
        %v5328 = vadd.f32 %v5061, %v5308
        %v5329 = vadd.f32 %v5062, %v5310
        %v5330 = vadd.f32 %v5063, %v5312
        %v5331 = vadd.f32 %v5064, %v5314
        %v5332 = vadd.f32 %v5065, %v5316
        %s5333 = scalar_lea.vmem %s1, 32
        %v5334 = vld [vmem:[%s5333] sm:$0x1]
        %v5335 = vld [vmem:[%s5333 + $0x1] sm:$0x1]
        %v5336 = vld [vmem:[%s5333 + $0x2] sm:$0x1]
        %v5337 = vld [vmem:[%s5333 + $0x3] sm:$0x1]
        %v5342 = vlaneseq
        %v5343 = vshrl.u32 %v5342, 7
        %v5344 = vsub.s32 0, %v5343
        %v5345 = vrot.slane %v5334, %v5344
        %v5346 = vlaneseq
        %v5347 = vshrl.u32 %v5346, 7
        %v5348 = vsub.s32 0, %v5347
        %v5349 = vrot.slane %v5335, %v5348
        %v5350 = vlaneseq
        %v5351 = vshrl.u32 %v5350, 7
        %v5352 = vsub.s32 0, %v5351
        %v5353 = vrot.slane %v5336, %v5352
        %v5354 = vlaneseq
        %v5355 = vshrl.u32 %v5354, 7
        %v5356 = vsub.s32 0, %v5355
        %v5357 = vrot.slane %v5337, %v5356
        %5358 = vset.pattern.permute.xlu0 0
        %5359 = vperm.xlu0 %5358, %v5345
        %v5360 = vpop.permute.xlu0 %5359
        %5362 = vset.pattern.permute.xlu0 0
        %5363 = vperm.xlu0 %5362, %v5349
        %v5364 = vpop.permute.xlu0 %5363
        %5366 = vset.pattern.permute.xlu0 0
        %5367 = vperm.xlu0 %5366, %v5353
        %v5368 = vpop.permute.xlu0 %5367
        %5370 = vset.pattern.permute.xlu0 0
        %5371 = vperm.xlu0 %5370, %v5357
        %v5372 = vpop.permute.xlu0 %5371
        %v5374 = vmul.f32 %v4442, %v5360
        %v5375 = vmul.f32 %v4443, %v5360
        %v5376 = vmul.f32 %v4444, %v5364
        %v5377 = vmul.f32 %v4445, %v5364
        %v5378 = vmul.f32 %v4446, %v5368
        %v5379 = vmul.f32 %v4447, %v5368
        %v5380 = vmul.f32 %v4448, %v5372
        %v5381 = vmul.f32 %v4449, %v5372
        %5390 = vrot.lane.b32.xlu0 %v5374, 126
        %v5391 = vpop.permute.xlu0 %5390
        %5392 = vrot.lane.b32.xlu0 %v5375, 126
        %v5393 = vpop.permute.xlu0 %5392
        %5394 = vrot.lane.b32.xlu0 %v5376, 126
        %v5395 = vpop.permute.xlu0 %5394
        %5396 = vrot.lane.b32.xlu0 %v5377, 126
        %v5397 = vpop.permute.xlu0 %5396
        %5398 = vrot.lane.b32.xlu0 %v5378, 126
        %v5399 = vpop.permute.xlu0 %5398
        %5400 = vrot.lane.b32.xlu0 %v5379, 126
        %v5401 = vpop.permute.xlu0 %5400
        %5402 = vrot.lane.b32.xlu0 %v5380, 126
        %v5403 = vpop.permute.xlu0 %5402
        %5404 = vrot.lane.b32.xlu0 %v5381, 126
        %v5405 = vpop.permute.xlu0 %5404
        %v5414 = vadd.f32 %v5147, %v5391
        %v5415 = vadd.f32 %v5148, %v5393
        %v5416 = vadd.f32 %v5149, %v5395
        %v5417 = vadd.f32 %v5150, %v5397
        %v5418 = vadd.f32 %v5151, %v5399
        %v5419 = vadd.f32 %v5152, %v5401
        %v5420 = vadd.f32 %v5153, %v5403
        %v5421 = vadd.f32 %v5154, %v5405
        %s5422 = scalar_lea.vmem %s3, 132
        %v5423 = vld [vmem:[%s5422] sm:$0x1]
        %v5424 = vld [vmem:[%s5422 + $0x1] sm:$0x1]
        %v5425 = vld [vmem:[%s5422 + $0x2] sm:$0x1]
        %v5426 = vld [vmem:[%s5422 + $0x3] sm:$0x1]
        %v5431 = vlaneseq
        %v5432 = vshrl.u32 %v5431, 7
        %v5433 = vsub.s32 0, %v5432
        %v5434 = vrot.slane %v5423, %v5433
        %v5435 = vlaneseq
        %v5436 = vshrl.u32 %v5435, 7
        %v5437 = vsub.s32 0, %v5436
        %v5438 = vrot.slane %v5424, %v5437
        %v5439 = vlaneseq
        %v5440 = vshrl.u32 %v5439, 7
        %v5441 = vsub.s32 0, %v5440
        %v5442 = vrot.slane %v5425, %v5441
        %v5443 = vlaneseq
        %v5444 = vshrl.u32 %v5443, 7
        %v5445 = vsub.s32 0, %v5444
        %v5446 = vrot.slane %v5426, %v5445
        %5447 = vset.pattern.permute.xlu0 0
        %5448 = vperm.xlu0 %5447, %v5434
        %v5449 = vpop.permute.xlu0 %5448
        %5451 = vset.pattern.permute.xlu0 0
        %5452 = vperm.xlu0 %5451, %v5438
        %v5453 = vpop.permute.xlu0 %5452
        %5455 = vset.pattern.permute.xlu0 0
        %5456 = vperm.xlu0 %5455, %v5442
        %v5457 = vpop.permute.xlu0 %5456
        %5459 = vset.pattern.permute.xlu0 0
        %5460 = vperm.xlu0 %5459, %v5446
        %v5461 = vpop.permute.xlu0 %5460
        %v5463 = vmul.f32 %v4442, %v5449
        %v5464 = vmul.f32 %v4443, %v5449
        %v5465 = vmul.f32 %v4444, %v5453
        %v5466 = vmul.f32 %v4445, %v5453
        %v5467 = vmul.f32 %v4446, %v5457
        %v5468 = vmul.f32 %v4447, %v5457
        %v5469 = vmul.f32 %v4448, %v5461
        %v5470 = vmul.f32 %v4449, %v5461
        %5479 = vrot.lane.b32.xlu0 %v5463, 123
        %v5480 = vpop.permute.xlu0 %5479
        %5481 = vrot.lane.b32.xlu0 %v5464, 123
        %v5482 = vpop.permute.xlu0 %5481
        %5483 = vrot.lane.b32.xlu0 %v5465, 123
        %v5484 = vpop.permute.xlu0 %5483
        %5485 = vrot.lane.b32.xlu0 %v5466, 123
        %v5486 = vpop.permute.xlu0 %5485
        %5487 = vrot.lane.b32.xlu0 %v5467, 123
        %v5488 = vpop.permute.xlu0 %5487
        %5489 = vrot.lane.b32.xlu0 %v5468, 123
        %v5490 = vpop.permute.xlu0 %5489
        %5491 = vrot.lane.b32.xlu0 %v5469, 123
        %v5492 = vpop.permute.xlu0 %5491
        %5493 = vrot.lane.b32.xlu0 %v5470, 123
        %v5494 = vpop.permute.xlu0 %5493
        %v5503 = vadd.f32 %v5236, %v5480
        %v5504 = vadd.f32 %v5237, %v5482
        %v5505 = vadd.f32 %v5238, %v5484
        %v5506 = vadd.f32 %v5239, %v5486
        %v5507 = vadd.f32 %v5240, %v5488
        %v5508 = vadd.f32 %v5241, %v5490
        %v5509 = vadd.f32 %v5242, %v5492
        %v5510 = vadd.f32 %v5243, %v5494
        %s5511 = scalar_lea.vmem %s2, 76
        %v5512 = vld [vmem:[%s5511] sm:$0x1]
        %v5513 = vld [vmem:[%s5511 + $0x1] sm:$0x1]
        %v5514 = vld [vmem:[%s5511 + $0x2] sm:$0x1]
        %v5515 = vld [vmem:[%s5511 + $0x3] sm:$0x1]
        %v5520 = vlaneseq
        %v5521 = vshrl.u32 %v5520, 7
        %v5522 = vsub.s32 0, %v5521
        %v5523 = vrot.slane %v5512, %v5522
        %v5524 = vlaneseq
        %v5525 = vshrl.u32 %v5524, 7
        %v5526 = vsub.s32 0, %v5525
        %v5527 = vrot.slane %v5513, %v5526
        %v5528 = vlaneseq
        %v5529 = vshrl.u32 %v5528, 7
        %v5530 = vsub.s32 0, %v5529
        %v5531 = vrot.slane %v5514, %v5530
        %v5532 = vlaneseq
        %v5533 = vshrl.u32 %v5532, 7
        %v5534 = vsub.s32 0, %v5533
        %v5535 = vrot.slane %v5515, %v5534
        %5536 = vset.pattern.permute.xlu0 0
        %5537 = vperm.xlu0 %5536, %v5523
        %v5538 = vpop.permute.xlu0 %5537
        %5540 = vset.pattern.permute.xlu0 0
        %5541 = vperm.xlu0 %5540, %v5527
        %v5542 = vpop.permute.xlu0 %5541
        %5544 = vset.pattern.permute.xlu0 0
        %5545 = vperm.xlu0 %5544, %v5531
        %v5546 = vpop.permute.xlu0 %5545
        %5548 = vset.pattern.permute.xlu0 0
        %5549 = vperm.xlu0 %5548, %v5535
        %v5550 = vpop.permute.xlu0 %5549
        %v5552 = vmul.f32 %v4442, %v5538
        %v5553 = vmul.f32 %v4443, %v5538
        %v5554 = vmul.f32 %v4444, %v5542
        %v5555 = vmul.f32 %v4445, %v5542
        %v5556 = vmul.f32 %v4446, %v5546
        %v5557 = vmul.f32 %v4447, %v5546
        %v5558 = vmul.f32 %v4448, %v5550
        %v5559 = vmul.f32 %v4449, %v5550
        %5568 = vrot.lane.b32.xlu0 %v5552, 124
        %v5569 = vpop.permute.xlu0 %5568
        %5570 = vrot.lane.b32.xlu0 %v5553, 124
        %v5571 = vpop.permute.xlu0 %5570
        %5572 = vrot.lane.b32.xlu0 %v5554, 124
        %v5573 = vpop.permute.xlu0 %5572
        %5574 = vrot.lane.b32.xlu0 %v5555, 124
        %v5575 = vpop.permute.xlu0 %5574
        %5576 = vrot.lane.b32.xlu0 %v5556, 124
        %v5577 = vpop.permute.xlu0 %5576
        %5578 = vrot.lane.b32.xlu0 %v5557, 124
        %v5579 = vpop.permute.xlu0 %5578
        %5580 = vrot.lane.b32.xlu0 %v5558, 124
        %v5581 = vpop.permute.xlu0 %5580
        %5582 = vrot.lane.b32.xlu0 %v5559, 124
        %v5583 = vpop.permute.xlu0 %5582
        %v5592 = vadd.f32 %v5325, %v5569
        %v5593 = vadd.f32 %v5326, %v5571
        %v5594 = vadd.f32 %v5327, %v5573
        %v5595 = vadd.f32 %v5328, %v5575
        %v5596 = vadd.f32 %v5329, %v5577
        %v5597 = vadd.f32 %v5330, %v5579
        %v5598 = vadd.f32 %v5331, %v5581
        %v5599 = vadd.f32 %v5332, %v5583
        %s5600 = scalar_lea.vmem %s3, 136
        %v5601 = vld [vmem:[%s5600] sm:$0x1]
        %v5602 = vld [vmem:[%s5600 + $0x1] sm:$0x1]
        %v5603 = vld [vmem:[%s5600 + $0x2] sm:$0x1]
        %v5604 = vld [vmem:[%s5600 + $0x3] sm:$0x1]
        %v5609 = vlaneseq
        %v5610 = vshrl.u32 %v5609, 7
        %v5611 = vsub.s32 0, %v5610
        %v5612 = vrot.slane %v5601, %v5611
        %v5613 = vlaneseq
        %v5614 = vshrl.u32 %v5613, 7
        %v5615 = vsub.s32 0, %v5614
        %v5616 = vrot.slane %v5602, %v5615
        %v5617 = vlaneseq
        %v5618 = vshrl.u32 %v5617, 7
        %v5619 = vsub.s32 0, %v5618
        %v5620 = vrot.slane %v5603, %v5619
        %v5621 = vlaneseq
        %v5622 = vshrl.u32 %v5621, 7
        %v5623 = vsub.s32 0, %v5622
        %v5624 = vrot.slane %v5604, %v5623
        %5625 = vset.pattern.permute.xlu0 0
        %5626 = vperm.xlu0 %5625, %v5612
        %v5627 = vpop.permute.xlu0 %5626
        %5629 = vset.pattern.permute.xlu0 0
        %5630 = vperm.xlu0 %5629, %v5616
        %v5631 = vpop.permute.xlu0 %5630
        %5633 = vset.pattern.permute.xlu0 0
        %5634 = vperm.xlu0 %5633, %v5620
        %v5635 = vpop.permute.xlu0 %5634
        %5637 = vset.pattern.permute.xlu0 0
        %5638 = vperm.xlu0 %5637, %v5624
        %v5639 = vpop.permute.xlu0 %5638
        %v5641 = vmul.f32 %v4442, %v5627
        %v5642 = vmul.f32 %v4443, %v5627
        %v5643 = vmul.f32 %v4444, %v5631
        %v5644 = vmul.f32 %v4445, %v5631
        %v5645 = vmul.f32 %v4446, %v5635
        %v5646 = vmul.f32 %v4447, %v5635
        %v5647 = vmul.f32 %v4448, %v5639
        %v5648 = vmul.f32 %v4449, %v5639
        %5657 = vrot.lane.b32.xlu0 %v5641, 122
        %v5658 = vpop.permute.xlu0 %5657
        %5659 = vrot.lane.b32.xlu0 %v5642, 122
        %v5660 = vpop.permute.xlu0 %5659
        %5661 = vrot.lane.b32.xlu0 %v5643, 122
        %v5662 = vpop.permute.xlu0 %5661
        %5663 = vrot.lane.b32.xlu0 %v5644, 122
        %v5664 = vpop.permute.xlu0 %5663
        %5665 = vrot.lane.b32.xlu0 %v5645, 122
        %v5666 = vpop.permute.xlu0 %5665
        %5667 = vrot.lane.b32.xlu0 %v5646, 122
        %v5668 = vpop.permute.xlu0 %5667
        %5669 = vrot.lane.b32.xlu0 %v5647, 122
        %v5670 = vpop.permute.xlu0 %5669
        %5671 = vrot.lane.b32.xlu0 %v5648, 122
        %v5672 = vpop.permute.xlu0 %5671
        %v5681 = vadd.f32 %v5503, %v5658
        %v5682 = vadd.f32 %v5504, %v5660
        %v5683 = vadd.f32 %v5505, %v5662
        %v5684 = vadd.f32 %v5506, %v5664
        %v5685 = vadd.f32 %v5507, %v5666
        %v5686 = vadd.f32 %v5508, %v5668
        %v5687 = vadd.f32 %v5509, %v5670
        %v5688 = vadd.f32 %v5510, %v5672
        %v5689 = vld [vmem:[#allocation2 + $0x5] sm:$0xff]
        %v5690 = vld [vmem:[#allocation2 + $0xd] sm:$0xff]
        %v5691 = vld [vmem:[#allocation2 + $0x1d] sm:$0xff]
        %v5692 = vld [vmem:[#allocation2 + $0x25] sm:$0xff]
        %v5693 = vld [vmem:[#allocation2 + $0x35] sm:$0xff]
        %v5694 = vld [vmem:[#allocation2 + $0x3d] sm:$0xff]
        %v5695 = vld [vmem:[#allocation2 + $0x4d] sm:$0xff]
        %v5696 = vld [vmem:[#allocation2 + $0x55] sm:$0xff]
        %s5697 = scalar_lea.vmem %s3, 140
        %v5698 = vld [vmem:[%s5697] sm:$0x1]
        %v5699 = vld [vmem:[%s5697 + $0x1] sm:$0x1]
        %v5700 = vld [vmem:[%s5697 + $0x2] sm:$0x1]
        %v5701 = vld [vmem:[%s5697 + $0x3] sm:$0x1]
        %v5706 = vlaneseq
        %v5707 = vshrl.u32 %v5706, 7
        %v5708 = vsub.s32 0, %v5707
        %v5709 = vrot.slane %v5698, %v5708
        %v5710 = vlaneseq
        %v5711 = vshrl.u32 %v5710, 7
        %v5712 = vsub.s32 0, %v5711
        %v5713 = vrot.slane %v5699, %v5712
        %v5714 = vlaneseq
        %v5715 = vshrl.u32 %v5714, 7
        %v5716 = vsub.s32 0, %v5715
        %v5717 = vrot.slane %v5700, %v5716
        %v5718 = vlaneseq
        %v5719 = vshrl.u32 %v5718, 7
        %v5720 = vsub.s32 0, %v5719
        %v5721 = vrot.slane %v5701, %v5720
        %5722 = vset.pattern.permute.xlu0 0
        %5723 = vperm.xlu0 %5722, %v5709
        %v5724 = vpop.permute.xlu0 %5723
        %5726 = vset.pattern.permute.xlu0 0
        %5727 = vperm.xlu0 %5726, %v5713
        %v5728 = vpop.permute.xlu0 %5727
        %5730 = vset.pattern.permute.xlu0 0
        %5731 = vperm.xlu0 %5730, %v5717
        %v5732 = vpop.permute.xlu0 %5731
        %5734 = vset.pattern.permute.xlu0 0
        %5735 = vperm.xlu0 %5734, %v5721
        %v5736 = vpop.permute.xlu0 %5735
        %v5738 = vmul.f32 %v5689, %v5724
        %v5739 = vmul.f32 %v5690, %v5724
        %v5740 = vmul.f32 %v5691, %v5728
        %v5741 = vmul.f32 %v5692, %v5728
        %v5742 = vmul.f32 %v5693, %v5732
        %v5743 = vmul.f32 %v5694, %v5732
        %v5744 = vmul.f32 %v5695, %v5736
        %v5745 = vmul.f32 %v5696, %v5736
        %v5746 = vadd.f32 %v5681, %v5738
        %v5747 = vadd.f32 %v5682, %v5739
        %v5748 = vadd.f32 %v5683, %v5740
        %v5749 = vadd.f32 %v5684, %v5741
        %v5750 = vadd.f32 %v5685, %v5742
        %v5751 = vadd.f32 %v5686, %v5743
        %v5752 = vadd.f32 %v5687, %v5744
        %v5753 = vadd.f32 %v5688, %v5745
        %s5754 = scalar_lea.vmem %s3, 144
        %v5755 = vld [vmem:[%s5754] sm:$0x1]
        %v5756 = vld [vmem:[%s5754 + $0x1] sm:$0x1]
        %v5757 = vld [vmem:[%s5754 + $0x2] sm:$0x1]
        %v5758 = vld [vmem:[%s5754 + $0x3] sm:$0x1]
        %v5763 = vlaneseq
        %v5764 = vshrl.u32 %v5763, 7
        %v5765 = vsub.s32 0, %v5764
        %v5766 = vrot.slane %v5755, %v5765
        %v5767 = vlaneseq
        %v5768 = vshrl.u32 %v5767, 7
        %v5769 = vsub.s32 0, %v5768
        %v5770 = vrot.slane %v5756, %v5769
        %v5771 = vlaneseq
        %v5772 = vshrl.u32 %v5771, 7
        %v5773 = vsub.s32 0, %v5772
        %v5774 = vrot.slane %v5757, %v5773
        %v5775 = vlaneseq
        %v5776 = vshrl.u32 %v5775, 7
        %v5777 = vsub.s32 0, %v5776
        %v5778 = vrot.slane %v5758, %v5777
        %5779 = vset.pattern.permute.xlu0 0
        %5780 = vperm.xlu0 %5779, %v5766
        %v5781 = vpop.permute.xlu0 %5780
        %5783 = vset.pattern.permute.xlu0 0
        %5784 = vperm.xlu0 %5783, %v5770
        %v5785 = vpop.permute.xlu0 %5784
        %5787 = vset.pattern.permute.xlu0 0
        %5788 = vperm.xlu0 %5787, %v5774
        %v5789 = vpop.permute.xlu0 %5788
        %5791 = vset.pattern.permute.xlu0 0
        %5792 = vperm.xlu0 %5791, %v5778
        %v5793 = vpop.permute.xlu0 %5792
        %v5795 = vmul.f32 %v5689, %v5781
        %v5796 = vmul.f32 %v5690, %v5781
        %v5797 = vmul.f32 %v5691, %v5785
        %v5798 = vmul.f32 %v5692, %v5785
        %v5799 = vmul.f32 %v5693, %v5789
        %v5800 = vmul.f32 %v5694, %v5789
        %v5801 = vmul.f32 %v5695, %v5793
        %v5802 = vmul.f32 %v5696, %v5793
        %5811 = vrot.lane.b32.xlu0 %v5795, 127
        %v5812 = vpop.permute.xlu0 %5811
        %5813 = vrot.lane.b32.xlu0 %v5796, 127
        %v5814 = vpop.permute.xlu0 %5813
        %5815 = vrot.lane.b32.xlu0 %v5797, 127
        %v5816 = vpop.permute.xlu0 %5815
        %5817 = vrot.lane.b32.xlu0 %v5798, 127
        %v5818 = vpop.permute.xlu0 %5817
        %5819 = vrot.lane.b32.xlu0 %v5799, 127
        %v5820 = vpop.permute.xlu0 %5819
        %5821 = vrot.lane.b32.xlu0 %v5800, 127
        %v5822 = vpop.permute.xlu0 %5821
        %5823 = vrot.lane.b32.xlu0 %v5801, 127
        %v5824 = vpop.permute.xlu0 %5823
        %5825 = vrot.lane.b32.xlu0 %v5802, 127
        %v5826 = vpop.permute.xlu0 %5825
        %v5835 = vadd.f32 %v5746, %v5812
        %v5836 = vadd.f32 %v5747, %v5814
        %v5837 = vadd.f32 %v5748, %v5816
        %v5838 = vadd.f32 %v5749, %v5818
        %v5839 = vadd.f32 %v5750, %v5820
        %v5840 = vadd.f32 %v5751, %v5822
        %v5841 = vadd.f32 %v5752, %v5824
        %v5842 = vadd.f32 %v5753, %v5826
        %s5843 = scalar_lea.vmem %s2, 80
        %v5844 = vld [vmem:[%s5843] sm:$0x1]
        %v5845 = vld [vmem:[%s5843 + $0x1] sm:$0x1]
        %v5846 = vld [vmem:[%s5843 + $0x2] sm:$0x1]
        %v5847 = vld [vmem:[%s5843 + $0x3] sm:$0x1]
        %v5852 = vlaneseq
        %v5853 = vshrl.u32 %v5852, 7
        %v5854 = vsub.s32 0, %v5853
        %v5855 = vrot.slane %v5844, %v5854
        %v5856 = vlaneseq
        %v5857 = vshrl.u32 %v5856, 7
        %v5858 = vsub.s32 0, %v5857
        %v5859 = vrot.slane %v5845, %v5858
        %v5860 = vlaneseq
        %v5861 = vshrl.u32 %v5860, 7
        %v5862 = vsub.s32 0, %v5861
        %v5863 = vrot.slane %v5846, %v5862
        %v5864 = vlaneseq
        %v5865 = vshrl.u32 %v5864, 7
        %v5866 = vsub.s32 0, %v5865
        %v5867 = vrot.slane %v5847, %v5866
        %5868 = vset.pattern.permute.xlu0 0
        %5869 = vperm.xlu0 %5868, %v5855
        %v5870 = vpop.permute.xlu0 %5869
        %5872 = vset.pattern.permute.xlu0 0
        %5873 = vperm.xlu0 %5872, %v5859
        %v5874 = vpop.permute.xlu0 %5873
        %5876 = vset.pattern.permute.xlu0 0
        %5877 = vperm.xlu0 %5876, %v5863
        %v5878 = vpop.permute.xlu0 %5877
        %5880 = vset.pattern.permute.xlu0 0
        %5881 = vperm.xlu0 %5880, %v5867
        %v5882 = vpop.permute.xlu0 %5881
        %v5884 = vmul.f32 %v5689, %v5870
        %v5885 = vmul.f32 %v5690, %v5870
        %v5886 = vmul.f32 %v5691, %v5874
        %v5887 = vmul.f32 %v5692, %v5874
        %v5888 = vmul.f32 %v5693, %v5878
        %v5889 = vmul.f32 %v5694, %v5878
        %v5890 = vmul.f32 %v5695, %v5882
        %v5891 = vmul.f32 %v5696, %v5882
        %v5892 = vadd.f32 %v5592, %v5884
        %v5893 = vadd.f32 %v5593, %v5885
        %v5894 = vadd.f32 %v5594, %v5886
        %v5895 = vadd.f32 %v5595, %v5887
        %v5896 = vadd.f32 %v5596, %v5888
        %v5897 = vadd.f32 %v5597, %v5889
        %v5898 = vadd.f32 %v5598, %v5890
        %v5899 = vadd.f32 %v5599, %v5891
        %s5900 = scalar_lea.vmem %s3, 148
        %v5901 = vld [vmem:[%s5900] sm:$0x1]
        %v5902 = vld [vmem:[%s5900 + $0x1] sm:$0x1]
        %v5903 = vld [vmem:[%s5900 + $0x2] sm:$0x1]
        %v5904 = vld [vmem:[%s5900 + $0x3] sm:$0x1]
        %v5909 = vlaneseq
        %v5910 = vshrl.u32 %v5909, 7
        %v5911 = vsub.s32 0, %v5910
        %v5912 = vrot.slane %v5901, %v5911
        %v5913 = vlaneseq
        %v5914 = vshrl.u32 %v5913, 7
        %v5915 = vsub.s32 0, %v5914
        %v5916 = vrot.slane %v5902, %v5915
        %v5917 = vlaneseq
        %v5918 = vshrl.u32 %v5917, 7
        %v5919 = vsub.s32 0, %v5918
        %v5920 = vrot.slane %v5903, %v5919
        %v5921 = vlaneseq
        %v5922 = vshrl.u32 %v5921, 7
        %v5923 = vsub.s32 0, %v5922
        %v5924 = vrot.slane %v5904, %v5923
        %5925 = vset.pattern.permute.xlu0 0
        %5926 = vperm.xlu0 %5925, %v5912
        %v5927 = vpop.permute.xlu0 %5926
        %5929 = vset.pattern.permute.xlu0 0
        %5930 = vperm.xlu0 %5929, %v5916
        %v5931 = vpop.permute.xlu0 %5930
        %5933 = vset.pattern.permute.xlu0 0
        %5934 = vperm.xlu0 %5933, %v5920
        %v5935 = vpop.permute.xlu0 %5934
        %5937 = vset.pattern.permute.xlu0 0
        %5938 = vperm.xlu0 %5937, %v5924
        %v5939 = vpop.permute.xlu0 %5938
        %v5941 = vmul.f32 %v5689, %v5927
        %v5942 = vmul.f32 %v5690, %v5927
        %v5943 = vmul.f32 %v5691, %v5931
        %v5944 = vmul.f32 %v5692, %v5931
        %v5945 = vmul.f32 %v5693, %v5935
        %v5946 = vmul.f32 %v5694, %v5935
        %v5947 = vmul.f32 %v5695, %v5939
        %v5948 = vmul.f32 %v5696, %v5939
        %5957 = vrot.lane.b32.xlu0 %v5941, 126
        %v5958 = vpop.permute.xlu0 %5957
        %5959 = vrot.lane.b32.xlu0 %v5942, 126
        %v5960 = vpop.permute.xlu0 %5959
        %5961 = vrot.lane.b32.xlu0 %v5943, 126
        %v5962 = vpop.permute.xlu0 %5961
        %5963 = vrot.lane.b32.xlu0 %v5944, 126
        %v5964 = vpop.permute.xlu0 %5963
        %5965 = vrot.lane.b32.xlu0 %v5945, 126
        %v5966 = vpop.permute.xlu0 %5965
        %5967 = vrot.lane.b32.xlu0 %v5946, 126
        %v5968 = vpop.permute.xlu0 %5967
        %5969 = vrot.lane.b32.xlu0 %v5947, 126
        %v5970 = vpop.permute.xlu0 %5969
        %5971 = vrot.lane.b32.xlu0 %v5948, 126
        %v5972 = vpop.permute.xlu0 %5971
        %v5981 = vadd.f32 %v5835, %v5958
        %v5982 = vadd.f32 %v5836, %v5960
        %v5983 = vadd.f32 %v5837, %v5962
        %v5984 = vadd.f32 %v5838, %v5964
        %v5985 = vadd.f32 %v5839, %v5966
        %v5986 = vadd.f32 %v5840, %v5968
        %v5987 = vadd.f32 %v5841, %v5970
        %v5988 = vadd.f32 %v5842, %v5972
        %s5989 = scalar_lea.vmem %s2, 84
        %v5990 = vld [vmem:[%s5989] sm:$0x1]
        %v5991 = vld [vmem:[%s5989 + $0x1] sm:$0x1]
        %v5992 = vld [vmem:[%s5989 + $0x2] sm:$0x1]
        %v5993 = vld [vmem:[%s5989 + $0x3] sm:$0x1]
        %v5998 = vlaneseq
        %v5999 = vshrl.u32 %v5998, 7
        %v6000 = vsub.s32 0, %v5999
        %v6001 = vrot.slane %v5990, %v6000
        %v6002 = vlaneseq
        %v6003 = vshrl.u32 %v6002, 7
        %v6004 = vsub.s32 0, %v6003
        %v6005 = vrot.slane %v5991, %v6004
        %v6006 = vlaneseq
        %v6007 = vshrl.u32 %v6006, 7
        %v6008 = vsub.s32 0, %v6007
        %v6009 = vrot.slane %v5992, %v6008
        %v6010 = vlaneseq
        %v6011 = vshrl.u32 %v6010, 7
        %v6012 = vsub.s32 0, %v6011
        %v6013 = vrot.slane %v5993, %v6012
        %6014 = vset.pattern.permute.xlu0 0
        %6015 = vperm.xlu0 %6014, %v6001
        %v6016 = vpop.permute.xlu0 %6015
        %6018 = vset.pattern.permute.xlu0 0
        %6019 = vperm.xlu0 %6018, %v6005
        %v6020 = vpop.permute.xlu0 %6019
        %6022 = vset.pattern.permute.xlu0 0
        %6023 = vperm.xlu0 %6022, %v6009
        %v6024 = vpop.permute.xlu0 %6023
        %6026 = vset.pattern.permute.xlu0 0
        %6027 = vperm.xlu0 %6026, %v6013
        %v6028 = vpop.permute.xlu0 %6027
        %v6030 = vmul.f32 %v5689, %v6016
        %v6031 = vmul.f32 %v5690, %v6016
        %v6032 = vmul.f32 %v5691, %v6020
        %v6033 = vmul.f32 %v5692, %v6020
        %v6034 = vmul.f32 %v5693, %v6024
        %v6035 = vmul.f32 %v5694, %v6024
        %v6036 = vmul.f32 %v5695, %v6028
        %v6037 = vmul.f32 %v5696, %v6028
        %6046 = vrot.lane.b32.xlu0 %v6030, 127
        %v6047 = vpop.permute.xlu0 %6046
        %6048 = vrot.lane.b32.xlu0 %v6031, 127
        %v6049 = vpop.permute.xlu0 %6048
        %6050 = vrot.lane.b32.xlu0 %v6032, 127
        %v6051 = vpop.permute.xlu0 %6050
        %6052 = vrot.lane.b32.xlu0 %v6033, 127
        %v6053 = vpop.permute.xlu0 %6052
        %6054 = vrot.lane.b32.xlu0 %v6034, 127
        %v6055 = vpop.permute.xlu0 %6054
        %6056 = vrot.lane.b32.xlu0 %v6035, 127
        %v6057 = vpop.permute.xlu0 %6056
        %6058 = vrot.lane.b32.xlu0 %v6036, 127
        %v6059 = vpop.permute.xlu0 %6058
        %6060 = vrot.lane.b32.xlu0 %v6037, 127
        %v6061 = vpop.permute.xlu0 %6060
        %v6070 = vadd.f32 %v5892, %v6047
        %v6071 = vadd.f32 %v5893, %v6049
        %v6072 = vadd.f32 %v5894, %v6051
        %v6073 = vadd.f32 %v5895, %v6053
        %v6074 = vadd.f32 %v5896, %v6055
        %v6075 = vadd.f32 %v5897, %v6057
        %v6076 = vadd.f32 %v5898, %v6059
        %v6077 = vadd.f32 %v5899, %v6061
        %s6078 = scalar_lea.vmem %s3, 152
        %v6079 = vld [vmem:[%s6078] sm:$0x1]
        %v6080 = vld [vmem:[%s6078 + $0x1] sm:$0x1]
        %v6081 = vld [vmem:[%s6078 + $0x2] sm:$0x1]
        %v6082 = vld [vmem:[%s6078 + $0x3] sm:$0x1]
        %v6087 = vlaneseq
        %v6088 = vshrl.u32 %v6087, 7
        %v6089 = vsub.s32 0, %v6088
        %v6090 = vrot.slane %v6079, %v6089
        %v6091 = vlaneseq
        %v6092 = vshrl.u32 %v6091, 7
        %v6093 = vsub.s32 0, %v6092
        %v6094 = vrot.slane %v6080, %v6093
        %v6095 = vlaneseq
        %v6096 = vshrl.u32 %v6095, 7
        %v6097 = vsub.s32 0, %v6096
        %v6098 = vrot.slane %v6081, %v6097
        %v6099 = vlaneseq
        %v6100 = vshrl.u32 %v6099, 7
        %v6101 = vsub.s32 0, %v6100
        %v6102 = vrot.slane %v6082, %v6101
        %6103 = vset.pattern.permute.xlu0 0
        %6104 = vperm.xlu0 %6103, %v6090
        %v6105 = vpop.permute.xlu0 %6104
        %6107 = vset.pattern.permute.xlu0 0
        %6108 = vperm.xlu0 %6107, %v6094
        %v6109 = vpop.permute.xlu0 %6108
        %6111 = vset.pattern.permute.xlu0 0
        %6112 = vperm.xlu0 %6111, %v6098
        %v6113 = vpop.permute.xlu0 %6112
        %6115 = vset.pattern.permute.xlu0 0
        %6116 = vperm.xlu0 %6115, %v6102
        %v6117 = vpop.permute.xlu0 %6116
        %v6119 = vmul.f32 %v5689, %v6105
        %v6120 = vmul.f32 %v5690, %v6105
        %v6121 = vmul.f32 %v5691, %v6109
        %v6122 = vmul.f32 %v5692, %v6109
        %v6123 = vmul.f32 %v5693, %v6113
        %v6124 = vmul.f32 %v5694, %v6113
        %v6125 = vmul.f32 %v5695, %v6117
        %v6126 = vmul.f32 %v5696, %v6117
        %6135 = vrot.lane.b32.xlu0 %v6119, 125
        %v6136 = vpop.permute.xlu0 %6135
        %6137 = vrot.lane.b32.xlu0 %v6120, 125
        %v6138 = vpop.permute.xlu0 %6137
        %6139 = vrot.lane.b32.xlu0 %v6121, 125
        %v6140 = vpop.permute.xlu0 %6139
        %6141 = vrot.lane.b32.xlu0 %v6122, 125
        %v6142 = vpop.permute.xlu0 %6141
        %6143 = vrot.lane.b32.xlu0 %v6123, 125
        %v6144 = vpop.permute.xlu0 %6143
        %6145 = vrot.lane.b32.xlu0 %v6124, 125
        %v6146 = vpop.permute.xlu0 %6145
        %6147 = vrot.lane.b32.xlu0 %v6125, 125
        %v6148 = vpop.permute.xlu0 %6147
        %6149 = vrot.lane.b32.xlu0 %v6126, 125
        %v6150 = vpop.permute.xlu0 %6149
        %v6159 = vadd.f32 %v5981, %v6136
        %v6160 = vadd.f32 %v5982, %v6138
        %v6161 = vadd.f32 %v5983, %v6140
        %v6162 = vadd.f32 %v5984, %v6142
        %v6163 = vadd.f32 %v5985, %v6144
        %v6164 = vadd.f32 %v5986, %v6146
        %v6165 = vadd.f32 %v5987, %v6148
        %v6166 = vadd.f32 %v5988, %v6150
        %s6167 = scalar_lea.vmem %s2, 88
        %v6168 = vld [vmem:[%s6167] sm:$0x1]
        %v6169 = vld [vmem:[%s6167 + $0x1] sm:$0x1]
        %v6170 = vld [vmem:[%s6167 + $0x2] sm:$0x1]
        %v6171 = vld [vmem:[%s6167 + $0x3] sm:$0x1]
        %v6176 = vlaneseq
        %v6177 = vshrl.u32 %v6176, 7
        %v6178 = vsub.s32 0, %v6177
        %v6179 = vrot.slane %v6168, %v6178
        %v6180 = vlaneseq
        %v6181 = vshrl.u32 %v6180, 7
        %v6182 = vsub.s32 0, %v6181
        %v6183 = vrot.slane %v6169, %v6182
        %v6184 = vlaneseq
        %v6185 = vshrl.u32 %v6184, 7
        %v6186 = vsub.s32 0, %v6185
        %v6187 = vrot.slane %v6170, %v6186
        %v6188 = vlaneseq
        %v6189 = vshrl.u32 %v6188, 7
        %v6190 = vsub.s32 0, %v6189
        %v6191 = vrot.slane %v6171, %v6190
        %6192 = vset.pattern.permute.xlu0 0
        %6193 = vperm.xlu0 %6192, %v6179
        %v6194 = vpop.permute.xlu0 %6193
        %6196 = vset.pattern.permute.xlu0 0
        %6197 = vperm.xlu0 %6196, %v6183
        %v6198 = vpop.permute.xlu0 %6197
        %6200 = vset.pattern.permute.xlu0 0
        %6201 = vperm.xlu0 %6200, %v6187
        %v6202 = vpop.permute.xlu0 %6201
        %6204 = vset.pattern.permute.xlu0 0
        %6205 = vperm.xlu0 %6204, %v6191
        %v6206 = vpop.permute.xlu0 %6205
        %v6208 = vmul.f32 %v5689, %v6194
        %v6209 = vmul.f32 %v5690, %v6194
        %v6210 = vmul.f32 %v5691, %v6198
        %v6211 = vmul.f32 %v5692, %v6198
        %v6212 = vmul.f32 %v5693, %v6202
        %v6213 = vmul.f32 %v5694, %v6202
        %v6214 = vmul.f32 %v5695, %v6206
        %v6215 = vmul.f32 %v5696, %v6206
        %6224 = vrot.lane.b32.xlu0 %v6208, 126
        %v6225 = vpop.permute.xlu0 %6224
        %6226 = vrot.lane.b32.xlu0 %v6209, 126
        %v6227 = vpop.permute.xlu0 %6226
        %6228 = vrot.lane.b32.xlu0 %v6210, 126
        %v6229 = vpop.permute.xlu0 %6228
        %6230 = vrot.lane.b32.xlu0 %v6211, 126
        %v6231 = vpop.permute.xlu0 %6230
        %6232 = vrot.lane.b32.xlu0 %v6212, 126
        %v6233 = vpop.permute.xlu0 %6232
        %6234 = vrot.lane.b32.xlu0 %v6213, 126
        %v6235 = vpop.permute.xlu0 %6234
        %6236 = vrot.lane.b32.xlu0 %v6214, 126
        %v6237 = vpop.permute.xlu0 %6236
        %6238 = vrot.lane.b32.xlu0 %v6215, 126
        %v6239 = vpop.permute.xlu0 %6238
        %v6248 = vadd.f32 %v6070, %v6225
        %v6249 = vadd.f32 %v6071, %v6227
        %v6250 = vadd.f32 %v6072, %v6229
        %v6251 = vadd.f32 %v6073, %v6231
        %v6252 = vadd.f32 %v6074, %v6233
        %v6253 = vadd.f32 %v6075, %v6235
        %v6254 = vadd.f32 %v6076, %v6237
        %v6255 = vadd.f32 %v6077, %v6239
        %s6256 = scalar_lea.vmem %s3, 156
        %v6257 = vld [vmem:[%s6256] sm:$0x1]
        %v6258 = vld [vmem:[%s6256 + $0x1] sm:$0x1]
        %v6259 = vld [vmem:[%s6256 + $0x2] sm:$0x1]
        %v6260 = vld [vmem:[%s6256 + $0x3] sm:$0x1]
        %v6265 = vlaneseq
        %v6266 = vshrl.u32 %v6265, 7
        %v6267 = vsub.s32 0, %v6266
        %v6268 = vrot.slane %v6257, %v6267
        %v6269 = vlaneseq
        %v6270 = vshrl.u32 %v6269, 7
        %v6271 = vsub.s32 0, %v6270
        %v6272 = vrot.slane %v6258, %v6271
        %v6273 = vlaneseq
        %v6274 = vshrl.u32 %v6273, 7
        %v6275 = vsub.s32 0, %v6274
        %v6276 = vrot.slane %v6259, %v6275
        %v6277 = vlaneseq
        %v6278 = vshrl.u32 %v6277, 7
        %v6279 = vsub.s32 0, %v6278
        %v6280 = vrot.slane %v6260, %v6279
        %6281 = vset.pattern.permute.xlu0 0
        %6282 = vperm.xlu0 %6281, %v6268
        %v6283 = vpop.permute.xlu0 %6282
        %6285 = vset.pattern.permute.xlu0 0
        %6286 = vperm.xlu0 %6285, %v6272
        %v6287 = vpop.permute.xlu0 %6286
        %6289 = vset.pattern.permute.xlu0 0
        %6290 = vperm.xlu0 %6289, %v6276
        %v6291 = vpop.permute.xlu0 %6290
        %6293 = vset.pattern.permute.xlu0 0
        %6294 = vperm.xlu0 %6293, %v6280
        %v6295 = vpop.permute.xlu0 %6294
        %v6297 = vmul.f32 %v5689, %v6283
        %v6298 = vmul.f32 %v5690, %v6283
        %v6299 = vmul.f32 %v5691, %v6287
        %v6300 = vmul.f32 %v5692, %v6287
        %v6301 = vmul.f32 %v5693, %v6291
        %v6302 = vmul.f32 %v5694, %v6291
        %v6303 = vmul.f32 %v5695, %v6295
        %v6304 = vmul.f32 %v5696, %v6295
        %6313 = vrot.lane.b32.xlu0 %v6297, 124
        %v6314 = vpop.permute.xlu0 %6313
        %6315 = vrot.lane.b32.xlu0 %v6298, 124
        %v6316 = vpop.permute.xlu0 %6315
        %6317 = vrot.lane.b32.xlu0 %v6299, 124
        %v6318 = vpop.permute.xlu0 %6317
        %6319 = vrot.lane.b32.xlu0 %v6300, 124
        %v6320 = vpop.permute.xlu0 %6319
        %6321 = vrot.lane.b32.xlu0 %v6301, 124
        %v6322 = vpop.permute.xlu0 %6321
        %6323 = vrot.lane.b32.xlu0 %v6302, 124
        %v6324 = vpop.permute.xlu0 %6323
        %6325 = vrot.lane.b32.xlu0 %v6303, 124
        %v6326 = vpop.permute.xlu0 %6325
        %6327 = vrot.lane.b32.xlu0 %v6304, 124
        %v6328 = vpop.permute.xlu0 %6327
        %v6337 = vadd.f32 %v6159, %v6314
        %v6338 = vadd.f32 %v6160, %v6316
        %v6339 = vadd.f32 %v6161, %v6318
        %v6340 = vadd.f32 %v6162, %v6320
        %v6341 = vadd.f32 %v6163, %v6322
        %v6342 = vadd.f32 %v6164, %v6324
        %v6343 = vadd.f32 %v6165, %v6326
        %v6344 = vadd.f32 %v6166, %v6328
        %s6345 = scalar_lea.vmem %s2, 92
        %v6346 = vld [vmem:[%s6345] sm:$0x1]
        %v6347 = vld [vmem:[%s6345 + $0x1] sm:$0x1]
        %v6348 = vld [vmem:[%s6345 + $0x2] sm:$0x1]
        %v6349 = vld [vmem:[%s6345 + $0x3] sm:$0x1]
        %v6354 = vlaneseq
        %v6355 = vshrl.u32 %v6354, 7
        %v6356 = vsub.s32 0, %v6355
        %v6357 = vrot.slane %v6346, %v6356
        %v6358 = vlaneseq
        %v6359 = vshrl.u32 %v6358, 7
        %v6360 = vsub.s32 0, %v6359
        %v6361 = vrot.slane %v6347, %v6360
        %v6362 = vlaneseq
        %v6363 = vshrl.u32 %v6362, 7
        %v6364 = vsub.s32 0, %v6363
        %v6365 = vrot.slane %v6348, %v6364
        %v6366 = vlaneseq
        %v6367 = vshrl.u32 %v6366, 7
        %v6368 = vsub.s32 0, %v6367
        %v6369 = vrot.slane %v6349, %v6368
        %6370 = vset.pattern.permute.xlu0 0
        %6371 = vperm.xlu0 %6370, %v6357
        %v6372 = vpop.permute.xlu0 %6371
        %6374 = vset.pattern.permute.xlu0 0
        %6375 = vperm.xlu0 %6374, %v6361
        %v6376 = vpop.permute.xlu0 %6375
        %6378 = vset.pattern.permute.xlu0 0
        %6379 = vperm.xlu0 %6378, %v6365
        %v6380 = vpop.permute.xlu0 %6379
        %6382 = vset.pattern.permute.xlu0 0
        %6383 = vperm.xlu0 %6382, %v6369
        %v6384 = vpop.permute.xlu0 %6383
        %v6386 = vmul.f32 %v5689, %v6372
        %v6387 = vmul.f32 %v5690, %v6372
        %v6388 = vmul.f32 %v5691, %v6376
        %v6389 = vmul.f32 %v5692, %v6376
        %v6390 = vmul.f32 %v5693, %v6380
        %v6391 = vmul.f32 %v5694, %v6380
        %v6392 = vmul.f32 %v5695, %v6384
        %v6393 = vmul.f32 %v5696, %v6384
        %6402 = vrot.lane.b32.xlu0 %v6386, 125
        %v6403 = vpop.permute.xlu0 %6402
        %6404 = vrot.lane.b32.xlu0 %v6387, 125
        %v6405 = vpop.permute.xlu0 %6404
        %6406 = vrot.lane.b32.xlu0 %v6388, 125
        %v6407 = vpop.permute.xlu0 %6406
        %6408 = vrot.lane.b32.xlu0 %v6389, 125
        %v6409 = vpop.permute.xlu0 %6408
        %6410 = vrot.lane.b32.xlu0 %v6390, 125
        %v6411 = vpop.permute.xlu0 %6410
        %6412 = vrot.lane.b32.xlu0 %v6391, 125
        %v6413 = vpop.permute.xlu0 %6412
        %6414 = vrot.lane.b32.xlu0 %v6392, 125
        %v6415 = vpop.permute.xlu0 %6414
        %6416 = vrot.lane.b32.xlu0 %v6393, 125
        %v6417 = vpop.permute.xlu0 %6416
        %v6426 = vadd.f32 %v6248, %v6403
        %v6427 = vadd.f32 %v6249, %v6405
        %v6428 = vadd.f32 %v6250, %v6407
        %v6429 = vadd.f32 %v6251, %v6409
        %v6430 = vadd.f32 %v6252, %v6411
        %v6431 = vadd.f32 %v6253, %v6413
        %v6432 = vadd.f32 %v6254, %v6415
        %v6433 = vadd.f32 %v6255, %v6417
        %s6434 = scalar_lea.vmem %s3, 160
        %v6435 = vld [vmem:[%s6434] sm:$0x1]
        %v6436 = vld [vmem:[%s6434 + $0x1] sm:$0x1]
        %v6437 = vld [vmem:[%s6434 + $0x2] sm:$0x1]
        %v6438 = vld [vmem:[%s6434 + $0x3] sm:$0x1]
        %v6443 = vlaneseq
        %v6444 = vshrl.u32 %v6443, 7
        %v6445 = vsub.s32 0, %v6444
        %v6446 = vrot.slane %v6435, %v6445
        %v6447 = vlaneseq
        %v6448 = vshrl.u32 %v6447, 7
        %v6449 = vsub.s32 0, %v6448
        %v6450 = vrot.slane %v6436, %v6449
        %v6451 = vlaneseq
        %v6452 = vshrl.u32 %v6451, 7
        %v6453 = vsub.s32 0, %v6452
        %v6454 = vrot.slane %v6437, %v6453
        %v6455 = vlaneseq
        %v6456 = vshrl.u32 %v6455, 7
        %v6457 = vsub.s32 0, %v6456
        %v6458 = vrot.slane %v6438, %v6457
        %6459 = vset.pattern.permute.xlu0 0
        %6460 = vperm.xlu0 %6459, %v6446
        %v6461 = vpop.permute.xlu0 %6460
        %6463 = vset.pattern.permute.xlu0 0
        %6464 = vperm.xlu0 %6463, %v6450
        %v6465 = vpop.permute.xlu0 %6464
        %6467 = vset.pattern.permute.xlu0 0
        %6468 = vperm.xlu0 %6467, %v6454
        %v6469 = vpop.permute.xlu0 %6468
        %6471 = vset.pattern.permute.xlu0 0
        %6472 = vperm.xlu0 %6471, %v6458
        %v6473 = vpop.permute.xlu0 %6472
        %v6475 = vmul.f32 %v5689, %v6461
        %v6476 = vmul.f32 %v5690, %v6461
        %v6477 = vmul.f32 %v5691, %v6465
        %v6478 = vmul.f32 %v5692, %v6465
        %v6479 = vmul.f32 %v5693, %v6469
        %v6480 = vmul.f32 %v5694, %v6469
        %v6481 = vmul.f32 %v5695, %v6473
        %v6482 = vmul.f32 %v5696, %v6473
        %6491 = vrot.lane.b32.xlu0 %v6475, 123
        %v6492 = vpop.permute.xlu0 %6491
        %6493 = vrot.lane.b32.xlu0 %v6476, 123
        %v6494 = vpop.permute.xlu0 %6493
        %6495 = vrot.lane.b32.xlu0 %v6477, 123
        %v6496 = vpop.permute.xlu0 %6495
        %6497 = vrot.lane.b32.xlu0 %v6478, 123
        %v6498 = vpop.permute.xlu0 %6497
        %6499 = vrot.lane.b32.xlu0 %v6479, 123
        %v6500 = vpop.permute.xlu0 %6499
        %6501 = vrot.lane.b32.xlu0 %v6480, 123
        %v6502 = vpop.permute.xlu0 %6501
        %6503 = vrot.lane.b32.xlu0 %v6481, 123
        %v6504 = vpop.permute.xlu0 %6503
        %6505 = vrot.lane.b32.xlu0 %v6482, 123
        %v6506 = vpop.permute.xlu0 %6505
        %v6515 = vadd.f32 %v6337, %v6492
        %v6516 = vadd.f32 %v6338, %v6494
        %v6517 = vadd.f32 %v6339, %v6496
        %v6518 = vadd.f32 %v6340, %v6498
        %v6519 = vadd.f32 %v6341, %v6500
        %v6520 = vadd.f32 %v6342, %v6502
        %v6521 = vadd.f32 %v6343, %v6504
        %v6522 = vadd.f32 %v6344, %v6506
        %s6523 = scalar_lea.vmem %s2, 96
        %v6524 = vld [vmem:[%s6523] sm:$0x1]
        %v6525 = vld [vmem:[%s6523 + $0x1] sm:$0x1]
        %v6526 = vld [vmem:[%s6523 + $0x2] sm:$0x1]
        %v6527 = vld [vmem:[%s6523 + $0x3] sm:$0x1]
        %v6532 = vlaneseq
        %v6533 = vshrl.u32 %v6532, 7
        %v6534 = vsub.s32 0, %v6533
        %v6535 = vrot.slane %v6524, %v6534
        %v6536 = vlaneseq
        %v6537 = vshrl.u32 %v6536, 7
        %v6538 = vsub.s32 0, %v6537
        %v6539 = vrot.slane %v6525, %v6538
        %v6540 = vlaneseq
        %v6541 = vshrl.u32 %v6540, 7
        %v6542 = vsub.s32 0, %v6541
        %v6543 = vrot.slane %v6526, %v6542
        %v6544 = vlaneseq
        %v6545 = vshrl.u32 %v6544, 7
        %v6546 = vsub.s32 0, %v6545
        %v6547 = vrot.slane %v6527, %v6546
        %6548 = vset.pattern.permute.xlu0 0
        %6549 = vperm.xlu0 %6548, %v6535
        %v6550 = vpop.permute.xlu0 %6549
        %6552 = vset.pattern.permute.xlu0 0
        %6553 = vperm.xlu0 %6552, %v6539
        %v6554 = vpop.permute.xlu0 %6553
        %6556 = vset.pattern.permute.xlu0 0
        %6557 = vperm.xlu0 %6556, %v6543
        %v6558 = vpop.permute.xlu0 %6557
        %6560 = vset.pattern.permute.xlu0 0
        %6561 = vperm.xlu0 %6560, %v6547
        %v6562 = vpop.permute.xlu0 %6561
        %v6564 = vmul.f32 %v5689, %v6550
        %v6565 = vmul.f32 %v5690, %v6550
        %v6566 = vmul.f32 %v5691, %v6554
        %v6567 = vmul.f32 %v5692, %v6554
        %v6568 = vmul.f32 %v5693, %v6558
        %v6569 = vmul.f32 %v5694, %v6558
        %v6570 = vmul.f32 %v5695, %v6562
        %v6571 = vmul.f32 %v5696, %v6562
        %6580 = vrot.lane.b32.xlu0 %v6564, 124
        %v6581 = vpop.permute.xlu0 %6580
        %6582 = vrot.lane.b32.xlu0 %v6565, 124
        %v6583 = vpop.permute.xlu0 %6582
        %6584 = vrot.lane.b32.xlu0 %v6566, 124
        %v6585 = vpop.permute.xlu0 %6584
        %6586 = vrot.lane.b32.xlu0 %v6567, 124
        %v6587 = vpop.permute.xlu0 %6586
        %6588 = vrot.lane.b32.xlu0 %v6568, 124
        %v6589 = vpop.permute.xlu0 %6588
        %6590 = vrot.lane.b32.xlu0 %v6569, 124
        %v6591 = vpop.permute.xlu0 %6590
        %6592 = vrot.lane.b32.xlu0 %v6570, 124
        %v6593 = vpop.permute.xlu0 %6592
        %6594 = vrot.lane.b32.xlu0 %v6571, 124
        %v6595 = vpop.permute.xlu0 %6594
        %v6604 = vadd.f32 %v6426, %v6581
        %v6605 = vadd.f32 %v6427, %v6583
        %v6606 = vadd.f32 %v6428, %v6585
        %v6607 = vadd.f32 %v6429, %v6587
        %v6608 = vadd.f32 %v6430, %v6589
        %v6609 = vadd.f32 %v6431, %v6591
        %v6610 = vadd.f32 %v6432, %v6593
        %v6611 = vadd.f32 %v6433, %v6595
        %s6612 = scalar_lea.vmem %s3, 164
        %v6613 = vld [vmem:[%s6612] sm:$0x1]
        %v6614 = vld [vmem:[%s6612 + $0x1] sm:$0x1]
        %v6615 = vld [vmem:[%s6612 + $0x2] sm:$0x1]
        %v6616 = vld [vmem:[%s6612 + $0x3] sm:$0x1]
        %v6621 = vlaneseq
        %v6622 = vshrl.u32 %v6621, 7
        %v6623 = vsub.s32 0, %v6622
        %v6624 = vrot.slane %v6613, %v6623
        %v6625 = vlaneseq
        %v6626 = vshrl.u32 %v6625, 7
        %v6627 = vsub.s32 0, %v6626
        %v6628 = vrot.slane %v6614, %v6627
        %v6629 = vlaneseq
        %v6630 = vshrl.u32 %v6629, 7
        %v6631 = vsub.s32 0, %v6630
        %v6632 = vrot.slane %v6615, %v6631
        %v6633 = vlaneseq
        %v6634 = vshrl.u32 %v6633, 7
        %v6635 = vsub.s32 0, %v6634
        %v6636 = vrot.slane %v6616, %v6635
        %6637 = vset.pattern.permute.xlu0 0
        %6638 = vperm.xlu0 %6637, %v6624
        %v6639 = vpop.permute.xlu0 %6638
        %6641 = vset.pattern.permute.xlu0 0
        %6642 = vperm.xlu0 %6641, %v6628
        %v6643 = vpop.permute.xlu0 %6642
        %6645 = vset.pattern.permute.xlu0 0
        %6646 = vperm.xlu0 %6645, %v6632
        %v6647 = vpop.permute.xlu0 %6646
        %6649 = vset.pattern.permute.xlu0 0
        %6650 = vperm.xlu0 %6649, %v6636
        %v6651 = vpop.permute.xlu0 %6650
        %v6653 = vmul.f32 %v5689, %v6639
        %v6654 = vmul.f32 %v5690, %v6639
        %v6655 = vmul.f32 %v5691, %v6643
        %v6656 = vmul.f32 %v5692, %v6643
        %v6657 = vmul.f32 %v5693, %v6647
        %v6658 = vmul.f32 %v5694, %v6647
        %v6659 = vmul.f32 %v5695, %v6651
        %v6660 = vmul.f32 %v5696, %v6651
        %6669 = vrot.lane.b32.xlu0 %v6653, 122
        %v6670 = vpop.permute.xlu0 %6669
        %6671 = vrot.lane.b32.xlu0 %v6654, 122
        %v6672 = vpop.permute.xlu0 %6671
        %6673 = vrot.lane.b32.xlu0 %v6655, 122
        %v6674 = vpop.permute.xlu0 %6673
        %6675 = vrot.lane.b32.xlu0 %v6656, 122
        %v6676 = vpop.permute.xlu0 %6675
        %6677 = vrot.lane.b32.xlu0 %v6657, 122
        %v6678 = vpop.permute.xlu0 %6677
        %6679 = vrot.lane.b32.xlu0 %v6658, 122
        %v6680 = vpop.permute.xlu0 %6679
        %6681 = vrot.lane.b32.xlu0 %v6659, 122
        %v6682 = vpop.permute.xlu0 %6681
        %6683 = vrot.lane.b32.xlu0 %v6660, 122
        %v6684 = vpop.permute.xlu0 %6683
        %v6693 = vadd.f32 %v6515, %v6670
        %v6694 = vadd.f32 %v6516, %v6672
        %v6695 = vadd.f32 %v6517, %v6674
        %v6696 = vadd.f32 %v6518, %v6676
        %v6697 = vadd.f32 %v6519, %v6678
        %v6698 = vadd.f32 %v6520, %v6680
        %v6699 = vadd.f32 %v6521, %v6682
        %v6700 = vadd.f32 %v6522, %v6684
        %v6701 = vld [vmem:[#allocation2 + $0x6] sm:$0xff]
        %v6702 = vld [vmem:[#allocation2 + $0xe] sm:$0xff]
        %v6703 = vld [vmem:[#allocation2 + $0x1e] sm:$0xff]
        %v6704 = vld [vmem:[#allocation2 + $0x26] sm:$0xff]
        %v6705 = vld [vmem:[#allocation2 + $0x36] sm:$0xff]
        %v6706 = vld [vmem:[#allocation2 + $0x3e] sm:$0xff]
        %v6707 = vld [vmem:[#allocation2 + $0x4e] sm:$0xff]
        %v6708 = vld [vmem:[#allocation2 + $0x56] sm:$0xff]
        %s6709 = scalar_lea.vmem %s3, 168
        %v6710 = vld [vmem:[%s6709] sm:$0x1]
        %v6711 = vld [vmem:[%s6709 + $0x1] sm:$0x1]
        %v6712 = vld [vmem:[%s6709 + $0x2] sm:$0x1]
        %v6713 = vld [vmem:[%s6709 + $0x3] sm:$0x1]
        %v6718 = vlaneseq
        %v6719 = vshrl.u32 %v6718, 7
        %v6720 = vsub.s32 0, %v6719
        %v6721 = vrot.slane %v6710, %v6720
        %v6722 = vlaneseq
        %v6723 = vshrl.u32 %v6722, 7
        %v6724 = vsub.s32 0, %v6723
        %v6725 = vrot.slane %v6711, %v6724
        %v6726 = vlaneseq
        %v6727 = vshrl.u32 %v6726, 7
        %v6728 = vsub.s32 0, %v6727
        %v6729 = vrot.slane %v6712, %v6728
        %v6730 = vlaneseq
        %v6731 = vshrl.u32 %v6730, 7
        %v6732 = vsub.s32 0, %v6731
        %v6733 = vrot.slane %v6713, %v6732
        %6734 = vset.pattern.permute.xlu0 0
        %6735 = vperm.xlu0 %6734, %v6721
        %v6736 = vpop.permute.xlu0 %6735
        %6738 = vset.pattern.permute.xlu0 0
        %6739 = vperm.xlu0 %6738, %v6725
        %v6740 = vpop.permute.xlu0 %6739
        %6742 = vset.pattern.permute.xlu0 0
        %6743 = vperm.xlu0 %6742, %v6729
        %v6744 = vpop.permute.xlu0 %6743
        %6746 = vset.pattern.permute.xlu0 0
        %6747 = vperm.xlu0 %6746, %v6733
        %v6748 = vpop.permute.xlu0 %6747
        %v6750 = vmul.f32 %v6701, %v6736
        %v6751 = vmul.f32 %v6702, %v6736
        %v6752 = vmul.f32 %v6703, %v6740
        %v6753 = vmul.f32 %v6704, %v6740
        %v6754 = vmul.f32 %v6705, %v6744
        %v6755 = vmul.f32 %v6706, %v6744
        %v6756 = vmul.f32 %v6707, %v6748
        %v6757 = vmul.f32 %v6708, %v6748
        %v6758 = vadd.f32 %v6693, %v6750
        %v6759 = vadd.f32 %v6694, %v6751
        %v6760 = vadd.f32 %v6695, %v6752
        %v6761 = vadd.f32 %v6696, %v6753
        %v6762 = vadd.f32 %v6697, %v6754
        %v6763 = vadd.f32 %v6698, %v6755
        %v6764 = vadd.f32 %v6699, %v6756
        %v6765 = vadd.f32 %v6700, %v6757
        %s6766 = scalar_lea.vmem %s3, 172
        %v6767 = vld [vmem:[%s6766] sm:$0x1]
        %v6768 = vld [vmem:[%s6766 + $0x1] sm:$0x1]
        %v6769 = vld [vmem:[%s6766 + $0x2] sm:$0x1]
        %v6770 = vld [vmem:[%s6766 + $0x3] sm:$0x1]
        %v6775 = vlaneseq
        %v6776 = vshrl.u32 %v6775, 7
        %v6777 = vsub.s32 0, %v6776
        %v6778 = vrot.slane %v6767, %v6777
        %v6779 = vlaneseq
        %v6780 = vshrl.u32 %v6779, 7
        %v6781 = vsub.s32 0, %v6780
        %v6782 = vrot.slane %v6768, %v6781
        %v6783 = vlaneseq
        %v6784 = vshrl.u32 %v6783, 7
        %v6785 = vsub.s32 0, %v6784
        %v6786 = vrot.slane %v6769, %v6785
        %v6787 = vlaneseq
        %v6788 = vshrl.u32 %v6787, 7
        %v6789 = vsub.s32 0, %v6788
        %v6790 = vrot.slane %v6770, %v6789
        %6791 = vset.pattern.permute.xlu0 0
        %6792 = vperm.xlu0 %6791, %v6778
        %v6793 = vpop.permute.xlu0 %6792
        %6795 = vset.pattern.permute.xlu0 0
        %6796 = vperm.xlu0 %6795, %v6782
        %v6797 = vpop.permute.xlu0 %6796
        %6799 = vset.pattern.permute.xlu0 0
        %6800 = vperm.xlu0 %6799, %v6786
        %v6801 = vpop.permute.xlu0 %6800
        %6803 = vset.pattern.permute.xlu0 0
        %6804 = vperm.xlu0 %6803, %v6790
        %v6805 = vpop.permute.xlu0 %6804
        %v6807 = vmul.f32 %v6701, %v6793
        %v6808 = vmul.f32 %v6702, %v6793
        %v6809 = vmul.f32 %v6703, %v6797
        %v6810 = vmul.f32 %v6704, %v6797
        %v6811 = vmul.f32 %v6705, %v6801
        %v6812 = vmul.f32 %v6706, %v6801
        %v6813 = vmul.f32 %v6707, %v6805
        %v6814 = vmul.f32 %v6708, %v6805
        %6823 = vrot.lane.b32.xlu0 %v6807, 127
        %v6824 = vpop.permute.xlu0 %6823
        %6825 = vrot.lane.b32.xlu0 %v6808, 127
        %v6826 = vpop.permute.xlu0 %6825
        %6827 = vrot.lane.b32.xlu0 %v6809, 127
        %v6828 = vpop.permute.xlu0 %6827
        %6829 = vrot.lane.b32.xlu0 %v6810, 127
        %v6830 = vpop.permute.xlu0 %6829
        %6831 = vrot.lane.b32.xlu0 %v6811, 127
        %v6832 = vpop.permute.xlu0 %6831
        %6833 = vrot.lane.b32.xlu0 %v6812, 127
        %v6834 = vpop.permute.xlu0 %6833
        %6835 = vrot.lane.b32.xlu0 %v6813, 127
        %v6836 = vpop.permute.xlu0 %6835
        %6837 = vrot.lane.b32.xlu0 %v6814, 127
        %v6838 = vpop.permute.xlu0 %6837
        %v6847 = vadd.f32 %v6758, %v6824
        %v6848 = vadd.f32 %v6759, %v6826
        %v6849 = vadd.f32 %v6760, %v6828
        %v6850 = vadd.f32 %v6761, %v6830
        %v6851 = vadd.f32 %v6762, %v6832
        %v6852 = vadd.f32 %v6763, %v6834
        %v6853 = vadd.f32 %v6764, %v6836
        %v6854 = vadd.f32 %v6765, %v6838
        %s6855 = scalar_lea.vmem %s3, 176
        %v6856 = vld [vmem:[%s6855] sm:$0x1]
        %v6857 = vld [vmem:[%s6855 + $0x1] sm:$0x1]
        %v6858 = vld [vmem:[%s6855 + $0x2] sm:$0x1]
        %v6859 = vld [vmem:[%s6855 + $0x3] sm:$0x1]
        %v6864 = vlaneseq
        %v6865 = vshrl.u32 %v6864, 7
        %v6866 = vsub.s32 0, %v6865
        %v6867 = vrot.slane %v6856, %v6866
        %v6868 = vlaneseq
        %v6869 = vshrl.u32 %v6868, 7
        %v6870 = vsub.s32 0, %v6869
        %v6871 = vrot.slane %v6857, %v6870
        %v6872 = vlaneseq
        %v6873 = vshrl.u32 %v6872, 7
        %v6874 = vsub.s32 0, %v6873
        %v6875 = vrot.slane %v6858, %v6874
        %v6876 = vlaneseq
        %v6877 = vshrl.u32 %v6876, 7
        %v6878 = vsub.s32 0, %v6877
        %v6879 = vrot.slane %v6859, %v6878
        %6880 = vset.pattern.permute.xlu0 0
        %6881 = vperm.xlu0 %6880, %v6867
        %v6882 = vpop.permute.xlu0 %6881
        %6884 = vset.pattern.permute.xlu0 0
        %6885 = vperm.xlu0 %6884, %v6871
        %v6886 = vpop.permute.xlu0 %6885
        %6888 = vset.pattern.permute.xlu0 0
        %6889 = vperm.xlu0 %6888, %v6875
        %v6890 = vpop.permute.xlu0 %6889
        %6892 = vset.pattern.permute.xlu0 0
        %6893 = vperm.xlu0 %6892, %v6879
        %v6894 = vpop.permute.xlu0 %6893
        %v6896 = vmul.f32 %v6701, %v6882
        %v6897 = vmul.f32 %v6702, %v6882
        %v6898 = vmul.f32 %v6703, %v6886
        %v6899 = vmul.f32 %v6704, %v6886
        %v6900 = vmul.f32 %v6705, %v6890
        %v6901 = vmul.f32 %v6706, %v6890
        %v6902 = vmul.f32 %v6707, %v6894
        %v6903 = vmul.f32 %v6708, %v6894
        %6912 = vrot.lane.b32.xlu0 %v6896, 126
        %v6913 = vpop.permute.xlu0 %6912
        %6914 = vrot.lane.b32.xlu0 %v6897, 126
        %v6915 = vpop.permute.xlu0 %6914
        %6916 = vrot.lane.b32.xlu0 %v6898, 126
        %v6917 = vpop.permute.xlu0 %6916
        %6918 = vrot.lane.b32.xlu0 %v6899, 126
        %v6919 = vpop.permute.xlu0 %6918
        %6920 = vrot.lane.b32.xlu0 %v6900, 126
        %v6921 = vpop.permute.xlu0 %6920
        %6922 = vrot.lane.b32.xlu0 %v6901, 126
        %v6923 = vpop.permute.xlu0 %6922
        %6924 = vrot.lane.b32.xlu0 %v6902, 126
        %v6925 = vpop.permute.xlu0 %6924
        %6926 = vrot.lane.b32.xlu0 %v6903, 126
        %v6927 = vpop.permute.xlu0 %6926
        %v6936 = vadd.f32 %v6847, %v6913
        %v6937 = vadd.f32 %v6848, %v6915
        %v6938 = vadd.f32 %v6849, %v6917
        %v6939 = vadd.f32 %v6850, %v6919
        %v6940 = vadd.f32 %v6851, %v6921
        %v6941 = vadd.f32 %v6852, %v6923
        %v6942 = vadd.f32 %v6853, %v6925
        %v6943 = vadd.f32 %v6854, %v6927
        %s6944 = scalar_lea.vmem %s3, 180
        %v6945 = vld [vmem:[%s6944] sm:$0x1]
        %v6946 = vld [vmem:[%s6944 + $0x1] sm:$0x1]
        %v6947 = vld [vmem:[%s6944 + $0x2] sm:$0x1]
        %v6948 = vld [vmem:[%s6944 + $0x3] sm:$0x1]
        %v6953 = vlaneseq
        %v6954 = vshrl.u32 %v6953, 7
        %v6955 = vsub.s32 0, %v6954
        %v6956 = vrot.slane %v6945, %v6955
        %v6957 = vlaneseq
        %v6958 = vshrl.u32 %v6957, 7
        %v6959 = vsub.s32 0, %v6958
        %v6960 = vrot.slane %v6946, %v6959
        %v6961 = vlaneseq
        %v6962 = vshrl.u32 %v6961, 7
        %v6963 = vsub.s32 0, %v6962
        %v6964 = vrot.slane %v6947, %v6963
        %v6965 = vlaneseq
        %v6966 = vshrl.u32 %v6965, 7
        %v6967 = vsub.s32 0, %v6966
        %v6968 = vrot.slane %v6948, %v6967
        %6969 = vset.pattern.permute.xlu0 0
        %6970 = vperm.xlu0 %6969, %v6956
        %v6971 = vpop.permute.xlu0 %6970
        %6973 = vset.pattern.permute.xlu0 0
        %6974 = vperm.xlu0 %6973, %v6960
        %v6975 = vpop.permute.xlu0 %6974
        %6977 = vset.pattern.permute.xlu0 0
        %6978 = vperm.xlu0 %6977, %v6964
        %v6979 = vpop.permute.xlu0 %6978
        %6981 = vset.pattern.permute.xlu0 0
        %6982 = vperm.xlu0 %6981, %v6968
        %v6983 = vpop.permute.xlu0 %6982
        %v6985 = vmul.f32 %v6701, %v6971
        %v6986 = vmul.f32 %v6702, %v6971
        %v6987 = vmul.f32 %v6703, %v6975
        %v6988 = vmul.f32 %v6704, %v6975
        %v6989 = vmul.f32 %v6705, %v6979
        %v6990 = vmul.f32 %v6706, %v6979
        %v6991 = vmul.f32 %v6707, %v6983
        %v6992 = vmul.f32 %v6708, %v6983
        %7001 = vrot.lane.b32.xlu0 %v6985, 125
        %v7002 = vpop.permute.xlu0 %7001
        %7003 = vrot.lane.b32.xlu0 %v6986, 125
        %v7004 = vpop.permute.xlu0 %7003
        %7005 = vrot.lane.b32.xlu0 %v6987, 125
        %v7006 = vpop.permute.xlu0 %7005
        %7007 = vrot.lane.b32.xlu0 %v6988, 125
        %v7008 = vpop.permute.xlu0 %7007
        %7009 = vrot.lane.b32.xlu0 %v6989, 125
        %v7010 = vpop.permute.xlu0 %7009
        %7011 = vrot.lane.b32.xlu0 %v6990, 125
        %v7012 = vpop.permute.xlu0 %7011
        %7013 = vrot.lane.b32.xlu0 %v6991, 125
        %v7014 = vpop.permute.xlu0 %7013
        %7015 = vrot.lane.b32.xlu0 %v6992, 125
        %v7016 = vpop.permute.xlu0 %7015
        %v7025 = vadd.f32 %v6936, %v7002
        %v7026 = vadd.f32 %v6937, %v7004
        %v7027 = vadd.f32 %v6938, %v7006
        %v7028 = vadd.f32 %v6939, %v7008
        %v7029 = vadd.f32 %v6940, %v7010
        %v7030 = vadd.f32 %v6941, %v7012
        %v7031 = vadd.f32 %v6942, %v7014
        %v7032 = vadd.f32 %v6943, %v7016
        %s7033 = scalar_lea.vmem %s3, 184
        %v7034 = vld [vmem:[%s7033] sm:$0x1]
        %v7035 = vld [vmem:[%s7033 + $0x1] sm:$0x1]
        %v7036 = vld [vmem:[%s7033 + $0x2] sm:$0x1]
        %v7037 = vld [vmem:[%s7033 + $0x3] sm:$0x1]
        %v7042 = vlaneseq
        %v7043 = vshrl.u32 %v7042, 7
        %v7044 = vsub.s32 0, %v7043
        %v7045 = vrot.slane %v7034, %v7044
        %v7046 = vlaneseq
        %v7047 = vshrl.u32 %v7046, 7
        %v7048 = vsub.s32 0, %v7047
        %v7049 = vrot.slane %v7035, %v7048
        %v7050 = vlaneseq
        %v7051 = vshrl.u32 %v7050, 7
        %v7052 = vsub.s32 0, %v7051
        %v7053 = vrot.slane %v7036, %v7052
        %v7054 = vlaneseq
        %v7055 = vshrl.u32 %v7054, 7
        %v7056 = vsub.s32 0, %v7055
        %v7057 = vrot.slane %v7037, %v7056
        %7058 = vset.pattern.permute.xlu0 0
        %7059 = vperm.xlu0 %7058, %v7045
        %v7060 = vpop.permute.xlu0 %7059
        %7062 = vset.pattern.permute.xlu0 0
        %7063 = vperm.xlu0 %7062, %v7049
        %v7064 = vpop.permute.xlu0 %7063
        %7066 = vset.pattern.permute.xlu0 0
        %7067 = vperm.xlu0 %7066, %v7053
        %v7068 = vpop.permute.xlu0 %7067
        %7070 = vset.pattern.permute.xlu0 0
        %7071 = vperm.xlu0 %7070, %v7057
        %v7072 = vpop.permute.xlu0 %7071
        %v7074 = vmul.f32 %v6701, %v7060
        %v7075 = vmul.f32 %v6702, %v7060
        %v7076 = vmul.f32 %v6703, %v7064
        %v7077 = vmul.f32 %v6704, %v7064
        %v7078 = vmul.f32 %v6705, %v7068
        %v7079 = vmul.f32 %v6706, %v7068
        %v7080 = vmul.f32 %v6707, %v7072
        %v7081 = vmul.f32 %v6708, %v7072
        %7090 = vrot.lane.b32.xlu0 %v7074, 124
        %v7091 = vpop.permute.xlu0 %7090
        %7092 = vrot.lane.b32.xlu0 %v7075, 124
        %v7093 = vpop.permute.xlu0 %7092
        %7094 = vrot.lane.b32.xlu0 %v7076, 124
        %v7095 = vpop.permute.xlu0 %7094
        %7096 = vrot.lane.b32.xlu0 %v7077, 124
        %v7097 = vpop.permute.xlu0 %7096
        %7098 = vrot.lane.b32.xlu0 %v7078, 124
        %v7099 = vpop.permute.xlu0 %7098
        %7100 = vrot.lane.b32.xlu0 %v7079, 124
        %v7101 = vpop.permute.xlu0 %7100
        %7102 = vrot.lane.b32.xlu0 %v7080, 124
        %v7103 = vpop.permute.xlu0 %7102
        %7104 = vrot.lane.b32.xlu0 %v7081, 124
        %v7105 = vpop.permute.xlu0 %7104
        %v7114 = vadd.f32 %v7025, %v7091
        %v7115 = vadd.f32 %v7026, %v7093
        %v7116 = vadd.f32 %v7027, %v7095
        %v7117 = vadd.f32 %v7028, %v7097
        %v7118 = vadd.f32 %v7029, %v7099
        %v7119 = vadd.f32 %v7030, %v7101
        %v7120 = vadd.f32 %v7031, %v7103
        %v7121 = vadd.f32 %v7032, %v7105
        %s7122 = scalar_lea.vmem %s3, 188
        %v7123 = vld [vmem:[%s7122] sm:$0x1]
        %v7124 = vld [vmem:[%s7122 + $0x1] sm:$0x1]
        %v7125 = vld [vmem:[%s7122 + $0x2] sm:$0x1]
        %v7126 = vld [vmem:[%s7122 + $0x3] sm:$0x1]
        %v7131 = vlaneseq
        %v7132 = vshrl.u32 %v7131, 7
        %v7133 = vsub.s32 0, %v7132
        %v7134 = vrot.slane %v7123, %v7133
        %v7135 = vlaneseq
        %v7136 = vshrl.u32 %v7135, 7
        %v7137 = vsub.s32 0, %v7136
        %v7138 = vrot.slane %v7124, %v7137
        %v7139 = vlaneseq
        %v7140 = vshrl.u32 %v7139, 7
        %v7141 = vsub.s32 0, %v7140
        %v7142 = vrot.slane %v7125, %v7141
        %v7143 = vlaneseq
        %v7144 = vshrl.u32 %v7143, 7
        %v7145 = vsub.s32 0, %v7144
        %v7146 = vrot.slane %v7126, %v7145
        %7147 = vset.pattern.permute.xlu0 0
        %7148 = vperm.xlu0 %7147, %v7134
        %v7149 = vpop.permute.xlu0 %7148
        %7151 = vset.pattern.permute.xlu0 0
        %7152 = vperm.xlu0 %7151, %v7138
        %v7153 = vpop.permute.xlu0 %7152
        %7155 = vset.pattern.permute.xlu0 0
        %7156 = vperm.xlu0 %7155, %v7142
        %v7157 = vpop.permute.xlu0 %7156
        %7159 = vset.pattern.permute.xlu0 0
        %7160 = vperm.xlu0 %7159, %v7146
        %v7161 = vpop.permute.xlu0 %7160
        %v7163 = vmul.f32 %v6701, %v7149
        %v7164 = vmul.f32 %v6702, %v7149
        %v7165 = vmul.f32 %v6703, %v7153
        %v7166 = vmul.f32 %v6704, %v7153
        %v7167 = vmul.f32 %v6705, %v7157
        %v7168 = vmul.f32 %v6706, %v7157
        %v7169 = vmul.f32 %v6707, %v7161
        %v7170 = vmul.f32 %v6708, %v7161
        %7179 = vrot.lane.b32.xlu0 %v7163, 123
        %v7180 = vpop.permute.xlu0 %7179
        %7181 = vrot.lane.b32.xlu0 %v7164, 123
        %v7182 = vpop.permute.xlu0 %7181
        %7183 = vrot.lane.b32.xlu0 %v7165, 123
        %v7184 = vpop.permute.xlu0 %7183
        %7185 = vrot.lane.b32.xlu0 %v7166, 123
        %v7186 = vpop.permute.xlu0 %7185
        %7187 = vrot.lane.b32.xlu0 %v7167, 123
        %v7188 = vpop.permute.xlu0 %7187
        %7189 = vrot.lane.b32.xlu0 %v7168, 123
        %v7190 = vpop.permute.xlu0 %7189
        %7191 = vrot.lane.b32.xlu0 %v7169, 123
        %v7192 = vpop.permute.xlu0 %7191
        %7193 = vrot.lane.b32.xlu0 %v7170, 123
        %v7194 = vpop.permute.xlu0 %7193
        %v7203 = vadd.f32 %v7114, %v7180
        %v7204 = vadd.f32 %v7115, %v7182
        %v7205 = vadd.f32 %v7116, %v7184
        %v7206 = vadd.f32 %v7117, %v7186
        %v7207 = vadd.f32 %v7118, %v7188
        %v7208 = vadd.f32 %v7119, %v7190
        %v7209 = vadd.f32 %v7120, %v7192
        %v7210 = vadd.f32 %v7121, %v7194
        %s7211 = scalar_lea.vmem %s3, 192
        %v7212 = vld [vmem:[%s7211] sm:$0x1]
        %v7213 = vld [vmem:[%s7211 + $0x1] sm:$0x1]
        %v7214 = vld [vmem:[%s7211 + $0x2] sm:$0x1]
        %v7215 = vld [vmem:[%s7211 + $0x3] sm:$0x1]
        %v7220 = vlaneseq
        %v7221 = vshrl.u32 %v7220, 7
        %v7222 = vsub.s32 0, %v7221
        %v7223 = vrot.slane %v7212, %v7222
        %v7224 = vlaneseq
        %v7225 = vshrl.u32 %v7224, 7
        %v7226 = vsub.s32 0, %v7225
        %v7227 = vrot.slane %v7213, %v7226
        %v7228 = vlaneseq
        %v7229 = vshrl.u32 %v7228, 7
        %v7230 = vsub.s32 0, %v7229
        %v7231 = vrot.slane %v7214, %v7230
        %v7232 = vlaneseq
        %v7233 = vshrl.u32 %v7232, 7
        %v7234 = vsub.s32 0, %v7233
        %v7235 = vrot.slane %v7215, %v7234
        %7236 = vset.pattern.permute.xlu0 0
        %7237 = vperm.xlu0 %7236, %v7223
        %v7238 = vpop.permute.xlu0 %7237
        %7240 = vset.pattern.permute.xlu0 0
        %7241 = vperm.xlu0 %7240, %v7227
        %v7242 = vpop.permute.xlu0 %7241
        %7244 = vset.pattern.permute.xlu0 0
        %7245 = vperm.xlu0 %7244, %v7231
        %v7246 = vpop.permute.xlu0 %7245
        %7248 = vset.pattern.permute.xlu0 0
        %7249 = vperm.xlu0 %7248, %v7235
        %v7250 = vpop.permute.xlu0 %7249
        %v7252 = vmul.f32 %v6701, %v7238
        %v7253 = vmul.f32 %v6702, %v7238
        %v7254 = vmul.f32 %v6703, %v7242
        %v7255 = vmul.f32 %v6704, %v7242
        %v7256 = vmul.f32 %v6705, %v7246
        %v7257 = vmul.f32 %v6706, %v7246
        %v7258 = vmul.f32 %v6707, %v7250
        %v7259 = vmul.f32 %v6708, %v7250
        %7268 = vrot.lane.b32.xlu0 %v7252, 122
        %v7269 = vpop.permute.xlu0 %7268
        %7270 = vrot.lane.b32.xlu0 %v7253, 122
        %v7271 = vpop.permute.xlu0 %7270
        %7272 = vrot.lane.b32.xlu0 %v7254, 122
        %v7273 = vpop.permute.xlu0 %7272
        %7274 = vrot.lane.b32.xlu0 %v7255, 122
        %v7275 = vpop.permute.xlu0 %7274
        %7276 = vrot.lane.b32.xlu0 %v7256, 122
        %v7277 = vpop.permute.xlu0 %7276
        %7278 = vrot.lane.b32.xlu0 %v7257, 122
        %v7279 = vpop.permute.xlu0 %7278
        %7280 = vrot.lane.b32.xlu0 %v7258, 122
        %v7281 = vpop.permute.xlu0 %7280
        %7282 = vrot.lane.b32.xlu0 %v7259, 122
        %v7283 = vpop.permute.xlu0 %7282
        %v7292 = vadd.f32 %v7203, %v7269
        %v7293 = vadd.f32 %v7204, %v7271
        %v7294 = vadd.f32 %v7205, %v7273
        %v7295 = vadd.f32 %v7206, %v7275
        %v7296 = vadd.f32 %v7207, %v7277
        %v7297 = vadd.f32 %v7208, %v7279
        %v7298 = vadd.f32 %v7209, %v7281
        %v7299 = vadd.f32 %v7210, %v7283
        %v7300 = vld [vmem:[%s4] sm:$0x1]
        %v7301 = vld [vmem:[%s4 + $0x4] sm:$0x1]
        %v7302 = vld [vmem:[%s4 + $0x8] sm:$0x1]
        %v7303 = vld [vmem:[%s4 + $0xc] sm:$0x1]
        %v7308 = vlaneseq
        %v7309 = vshrl.u32 %v7308, 7
        %v7310 = vsub.s32 0, %v7309
        %v7311 = vrot.slane %v7300, %v7310
        %v7312 = vlaneseq
        %v7313 = vshrl.u32 %v7312, 7
        %v7314 = vsub.s32 0, %v7313
        %v7315 = vrot.slane %v7301, %v7314
        %v7316 = vlaneseq
        %v7317 = vshrl.u32 %v7316, 7
        %v7318 = vsub.s32 0, %v7317
        %v7319 = vrot.slane %v7302, %v7318
        %v7320 = vlaneseq
        %v7321 = vshrl.u32 %v7320, 7
        %v7322 = vsub.s32 0, %v7321
        %v7323 = vrot.slane %v7303, %v7322
        %7324 = vset.pattern.permute.xlu0 0
        %7325 = vperm.xlu0 %7324, %v7311
        %v7326 = vpop.permute.xlu0 %7325
        %7328 = vset.pattern.permute.xlu0 0
        %7329 = vperm.xlu0 %7328, %v7315
        %v7330 = vpop.permute.xlu0 %7329
        %7332 = vset.pattern.permute.xlu0 0
        %7333 = vperm.xlu0 %7332, %v7319
        %v7334 = vpop.permute.xlu0 %7333
        %7336 = vset.pattern.permute.xlu0 0
        %7337 = vperm.xlu0 %7336, %v7323
        %v7338 = vpop.permute.xlu0 %7337
        %v7340 = vmul.f32 %v5414, %v7326
        %v7341 = vmul.f32 %v5415, %v7326
        %v7342 = vmul.f32 %v5416, %v7330
        %v7343 = vmul.f32 %v5417, %v7330
        %v7344 = vmul.f32 %v5418, %v7334
        %v7345 = vmul.f32 %v5419, %v7334
        %v7346 = vmul.f32 %v5420, %v7338
        %v7347 = vmul.f32 %v5421, %v7338
        %v7348 = vld [vmem:[%s5] sm:$0x1]
        %v7349 = vld [vmem:[%s5 + $0x4] sm:$0x1]
        %v7350 = vld [vmem:[%s5 + $0x8] sm:$0x1]
        %v7351 = vld [vmem:[%s5 + $0xc] sm:$0x1]
        %v7356 = vlaneseq
        %v7357 = vshrl.u32 %v7356, 7
        %v7358 = vsub.s32 0, %v7357
        %v7359 = vrot.slane %v7348, %v7358
        %v7360 = vlaneseq
        %v7361 = vshrl.u32 %v7360, 7
        %v7362 = vsub.s32 0, %v7361
        %v7363 = vrot.slane %v7349, %v7362
        %v7364 = vlaneseq
        %v7365 = vshrl.u32 %v7364, 7
        %v7366 = vsub.s32 0, %v7365
        %v7367 = vrot.slane %v7350, %v7366
        %v7368 = vlaneseq
        %v7369 = vshrl.u32 %v7368, 7
        %v7370 = vsub.s32 0, %v7369
        %v7371 = vrot.slane %v7351, %v7370
        %7372 = vset.pattern.permute.xlu0 0
        %7373 = vperm.xlu0 %7372, %v7359
        %v7374 = vpop.permute.xlu0 %7373
        %7376 = vset.pattern.permute.xlu0 0
        %7377 = vperm.xlu0 %7376, %v7363
        %v7378 = vpop.permute.xlu0 %7377
        %7380 = vset.pattern.permute.xlu0 0
        %7381 = vperm.xlu0 %7380, %v7367
        %v7382 = vpop.permute.xlu0 %7381
        %7384 = vset.pattern.permute.xlu0 0
        %7385 = vperm.xlu0 %7384, %v7371
        %v7386 = vpop.permute.xlu0 %7385
        %v7388 = vmul.f32 %v6604, %v7374
        %v7389 = vmul.f32 %v6605, %v7374
        %v7390 = vmul.f32 %v6606, %v7378
        %v7391 = vmul.f32 %v6607, %v7378
        %v7392 = vmul.f32 %v6608, %v7382
        %v7393 = vmul.f32 %v6609, %v7382
        %v7394 = vmul.f32 %v6610, %v7386
        %v7395 = vmul.f32 %v6611, %v7386
        %7404 = vrot.lane.b32.xlu0 %v7388, 1
        %v7405 = vpop.permute.xlu0 %7404
        %7406 = vrot.lane.b32.xlu0 %v7389, 1
        %v7407 = vpop.permute.xlu0 %7406
        %7408 = vrot.lane.b32.xlu0 %v7390, 1
        %v7409 = vpop.permute.xlu0 %7408
        %7410 = vrot.lane.b32.xlu0 %v7391, 1
        %v7411 = vpop.permute.xlu0 %7410
        %7412 = vrot.lane.b32.xlu0 %v7392, 1
        %v7413 = vpop.permute.xlu0 %7412
        %7414 = vrot.lane.b32.xlu0 %v7393, 1
        %v7415 = vpop.permute.xlu0 %7414
        %7416 = vrot.lane.b32.xlu0 %v7394, 1
        %v7417 = vpop.permute.xlu0 %7416
        %7418 = vrot.lane.b32.xlu0 %v7395, 1
        %v7419 = vpop.permute.xlu0 %7418
        %v7428 = vadd.f32 %v7340, %v7405
        %v7429 = vadd.f32 %v7341, %v7407
        %v7430 = vadd.f32 %v7342, %v7409
        %v7431 = vadd.f32 %v7343, %v7411
        %v7432 = vadd.f32 %v7344, %v7413
        %v7433 = vadd.f32 %v7345, %v7415
        %v7434 = vadd.f32 %v7346, %v7417
        %v7435 = vadd.f32 %v7347, %v7419
        %v7436 = vld [vmem:[%s6] sm:$0x1]
        %v7437 = vld [vmem:[%s6 + $0x4] sm:$0x1]
        %v7438 = vld [vmem:[%s6 + $0x8] sm:$0x1]
        %v7439 = vld [vmem:[%s6 + $0xc] sm:$0x1]
        %v7444 = vlaneseq
        %v7445 = vshrl.u32 %v7444, 7
        %v7446 = vsub.s32 0, %v7445
        %v7447 = vrot.slane %v7436, %v7446
        %v7448 = vlaneseq
        %v7449 = vshrl.u32 %v7448, 7
        %v7450 = vsub.s32 0, %v7449
        %v7451 = vrot.slane %v7437, %v7450
        %v7452 = vlaneseq
        %v7453 = vshrl.u32 %v7452, 7
        %v7454 = vsub.s32 0, %v7453
        %v7455 = vrot.slane %v7438, %v7454
        %v7456 = vlaneseq
        %v7457 = vshrl.u32 %v7456, 7
        %v7458 = vsub.s32 0, %v7457
        %v7459 = vrot.slane %v7439, %v7458
        %7460 = vset.pattern.permute.xlu0 0
        %7461 = vperm.xlu0 %7460, %v7447
        %v7462 = vpop.permute.xlu0 %7461
        %7464 = vset.pattern.permute.xlu0 0
        %7465 = vperm.xlu0 %7464, %v7451
        %v7466 = vpop.permute.xlu0 %7465
        %7468 = vset.pattern.permute.xlu0 0
        %7469 = vperm.xlu0 %7468, %v7455
        %v7470 = vpop.permute.xlu0 %7469
        %7472 = vset.pattern.permute.xlu0 0
        %7473 = vperm.xlu0 %7472, %v7459
        %v7474 = vpop.permute.xlu0 %7473
        %v7476 = vmul.f32 %v7292, %v7462
        %v7477 = vmul.f32 %v7293, %v7462
        %v7478 = vmul.f32 %v7294, %v7466
        %v7479 = vmul.f32 %v7295, %v7466
        %v7480 = vmul.f32 %v7296, %v7470
        %v7481 = vmul.f32 %v7297, %v7470
        %v7482 = vmul.f32 %v7298, %v7474
        %v7483 = vmul.f32 %v7299, %v7474
        %7492 = vrot.lane.b32.xlu0 %v7476, 2
        %v7493 = vpop.permute.xlu0 %7492
        %7494 = vrot.lane.b32.xlu0 %v7477, 2
        %v7495 = vpop.permute.xlu0 %7494
        %7496 = vrot.lane.b32.xlu0 %v7478, 2
        %v7497 = vpop.permute.xlu0 %7496
        %7498 = vrot.lane.b32.xlu0 %v7479, 2
        %v7499 = vpop.permute.xlu0 %7498
        %7500 = vrot.lane.b32.xlu0 %v7480, 2
        %v7501 = vpop.permute.xlu0 %7500
        %7502 = vrot.lane.b32.xlu0 %v7481, 2
        %v7503 = vpop.permute.xlu0 %7502
        %7504 = vrot.lane.b32.xlu0 %v7482, 2
        %v7505 = vpop.permute.xlu0 %7504
        %7506 = vrot.lane.b32.xlu0 %v7483, 2
        %v7507 = vpop.permute.xlu0 %7506
        %v7516 = vadd.f32 %v7428, %v7493
        %v7517 = vadd.f32 %v7429, %v7495
        %v7518 = vadd.f32 %v7430, %v7497
        %v7519 = vadd.f32 %v7431, %v7499
        %v7520 = vadd.f32 %v7432, %v7501
        %v7521 = vadd.f32 %v7433, %v7503
        %v7522 = vadd.f32 %v7434, %v7505
        %v7523 = vadd.f32 %v7435, %v7507
        %vm7524 = vcmask 146448
        %v7525 = vsel %vm7524, %v7516, 0.0
        %v7526 = vsel %vm7524, %v7518, 0.0
        %v7527 = vadd.f32 %v7525, %v7526
        %v7528 = vsel %vm7524, %v7520, 0.0
        %v7529 = vadd.f32 %v7527, %v7528
        %v7530 = vsel %vm7524, %v7522, 0.0
        %v7531 = vadd.f32 %v7529, %v7530
        %v7532 = vsel %vm7524, %v7517, 0.0
        %v7533 = vsel %vm7524, %v7519, 0.0
        %v7534 = vadd.f32 %v7532, %v7533
        %v7535 = vsel %vm7524, %v7521, 0.0
        %v7536 = vadd.f32 %v7534, %v7535
        %v7537 = vsel %vm7524, %v7523, 0.0
        %v7538 = vadd.f32 %v7536, %v7537
        %7541 = vrot.lane.b32.xlu0 %v7531, 126
        %v7542 = vpop.permute.xlu0 %7541
        %7543 = vrot.lane.b32.xlu0 %v7538, 126
        %v7544 = vpop.permute.xlu0 %7543
        %vm7547 = vcmask 130048
        %7548 = vst.msk [vmem:[%s271] sm:$0xff] %vm7547, %v7542
        %7549 = vst.msk [vmem:[%s271 + $0x8] sm:$0xff] %vm7547, %v7544
        %s7550 = scalar_lea.vmem %s4, 1
        %v7551 = vld [vmem:[%s7550] sm:$0x1]
        %v7552 = vld [vmem:[%s7550 + $0x4] sm:$0x1]
        %v7553 = vld [vmem:[%s7550 + $0x8] sm:$0x1]
        %v7554 = vld [vmem:[%s7550 + $0xc] sm:$0x1]
        %v7559 = vlaneseq
        %v7560 = vshrl.u32 %v7559, 7
        %v7561 = vsub.s32 0, %v7560
        %v7562 = vrot.slane %v7551, %v7561
        %v7563 = vlaneseq
        %v7564 = vshrl.u32 %v7563, 7
        %v7565 = vsub.s32 0, %v7564
        %v7566 = vrot.slane %v7552, %v7565
        %v7567 = vlaneseq
        %v7568 = vshrl.u32 %v7567, 7
        %v7569 = vsub.s32 0, %v7568
        %v7570 = vrot.slane %v7553, %v7569
        %v7571 = vlaneseq
        %v7572 = vshrl.u32 %v7571, 7
        %v7573 = vsub.s32 0, %v7572
        %v7574 = vrot.slane %v7554, %v7573
        %7575 = vset.pattern.permute.xlu0 0
        %7576 = vperm.xlu0 %7575, %v7562
        %v7577 = vpop.permute.xlu0 %7576
        %7579 = vset.pattern.permute.xlu0 0
        %7580 = vperm.xlu0 %7579, %v7566
        %v7581 = vpop.permute.xlu0 %7580
        %7583 = vset.pattern.permute.xlu0 0
        %7584 = vperm.xlu0 %7583, %v7570
        %v7585 = vpop.permute.xlu0 %7584
        %7587 = vset.pattern.permute.xlu0 0
        %7588 = vperm.xlu0 %7587, %v7574
        %v7589 = vpop.permute.xlu0 %7588
        %v7591 = vmul.f32 %v5414, %v7577
        %v7592 = vmul.f32 %v5415, %v7577
        %v7593 = vmul.f32 %v5416, %v7581
        %v7594 = vmul.f32 %v5417, %v7581
        %v7595 = vmul.f32 %v5418, %v7585
        %v7596 = vmul.f32 %v5419, %v7585
        %v7597 = vmul.f32 %v5420, %v7589
        %v7598 = vmul.f32 %v5421, %v7589
        %s7599 = scalar_lea.vmem %s5, 1
        %v7600 = vld [vmem:[%s7599] sm:$0x1]
        %v7601 = vld [vmem:[%s7599 + $0x4] sm:$0x1]
        %v7602 = vld [vmem:[%s7599 + $0x8] sm:$0x1]
        %v7603 = vld [vmem:[%s7599 + $0xc] sm:$0x1]
        %v7608 = vlaneseq
        %v7609 = vshrl.u32 %v7608, 7
        %v7610 = vsub.s32 0, %v7609
        %v7611 = vrot.slane %v7600, %v7610
        %v7612 = vlaneseq
        %v7613 = vshrl.u32 %v7612, 7
        %v7614 = vsub.s32 0, %v7613
        %v7615 = vrot.slane %v7601, %v7614
        %v7616 = vlaneseq
        %v7617 = vshrl.u32 %v7616, 7
        %v7618 = vsub.s32 0, %v7617
        %v7619 = vrot.slane %v7602, %v7618
        %v7620 = vlaneseq
        %v7621 = vshrl.u32 %v7620, 7
        %v7622 = vsub.s32 0, %v7621
        %v7623 = vrot.slane %v7603, %v7622
        %7624 = vset.pattern.permute.xlu0 0
        %7625 = vperm.xlu0 %7624, %v7611
        %v7626 = vpop.permute.xlu0 %7625
        %7628 = vset.pattern.permute.xlu0 0
        %7629 = vperm.xlu0 %7628, %v7615
        %v7630 = vpop.permute.xlu0 %7629
        %7632 = vset.pattern.permute.xlu0 0
        %7633 = vperm.xlu0 %7632, %v7619
        %v7634 = vpop.permute.xlu0 %7633
        %7636 = vset.pattern.permute.xlu0 0
        %7637 = vperm.xlu0 %7636, %v7623
        %v7638 = vpop.permute.xlu0 %7637
        %v7640 = vmul.f32 %v6604, %v7626
        %v7641 = vmul.f32 %v6605, %v7626
        %v7642 = vmul.f32 %v6606, %v7630
        %v7643 = vmul.f32 %v6607, %v7630
        %v7644 = vmul.f32 %v6608, %v7634
        %v7645 = vmul.f32 %v6609, %v7634
        %v7646 = vmul.f32 %v6610, %v7638
        %v7647 = vmul.f32 %v6611, %v7638
        %7656 = vrot.lane.b32.xlu0 %v7640, 1
        %v7657 = vpop.permute.xlu0 %7656
        %7658 = vrot.lane.b32.xlu0 %v7641, 1
        %v7659 = vpop.permute.xlu0 %7658
        %7660 = vrot.lane.b32.xlu0 %v7642, 1
        %v7661 = vpop.permute.xlu0 %7660
        %7662 = vrot.lane.b32.xlu0 %v7643, 1
        %v7663 = vpop.permute.xlu0 %7662
        %7664 = vrot.lane.b32.xlu0 %v7644, 1
        %v7665 = vpop.permute.xlu0 %7664
        %7666 = vrot.lane.b32.xlu0 %v7645, 1
        %v7667 = vpop.permute.xlu0 %7666
        %7668 = vrot.lane.b32.xlu0 %v7646, 1
        %v7669 = vpop.permute.xlu0 %7668
        %7670 = vrot.lane.b32.xlu0 %v7647, 1
        %v7671 = vpop.permute.xlu0 %7670
        %v7680 = vadd.f32 %v7591, %v7657
        %v7681 = vadd.f32 %v7592, %v7659
        %v7682 = vadd.f32 %v7593, %v7661
        %v7683 = vadd.f32 %v7594, %v7663
        %v7684 = vadd.f32 %v7595, %v7665
        %v7685 = vadd.f32 %v7596, %v7667
        %v7686 = vadd.f32 %v7597, %v7669
        %v7687 = vadd.f32 %v7598, %v7671
        %s7688 = scalar_lea.vmem %s6, 1
        %v7689 = vld [vmem:[%s7688] sm:$0x1]
        %v7690 = vld [vmem:[%s7688 + $0x4] sm:$0x1]
        %v7691 = vld [vmem:[%s7688 + $0x8] sm:$0x1]
        %v7692 = vld [vmem:[%s7688 + $0xc] sm:$0x1]
        %v7697 = vlaneseq
        %v7698 = vshrl.u32 %v7697, 7
        %v7699 = vsub.s32 0, %v7698
        %v7700 = vrot.slane %v7689, %v7699
        %v7701 = vlaneseq
        %v7702 = vshrl.u32 %v7701, 7
        %v7703 = vsub.s32 0, %v7702
        %v7704 = vrot.slane %v7690, %v7703
        %v7705 = vlaneseq
        %v7706 = vshrl.u32 %v7705, 7
        %v7707 = vsub.s32 0, %v7706
        %v7708 = vrot.slane %v7691, %v7707
        %v7709 = vlaneseq
        %v7710 = vshrl.u32 %v7709, 7
        %v7711 = vsub.s32 0, %v7710
        %v7712 = vrot.slane %v7692, %v7711
        %7713 = vset.pattern.permute.xlu0 0
        %7714 = vperm.xlu0 %7713, %v7700
        %v7715 = vpop.permute.xlu0 %7714
        %7717 = vset.pattern.permute.xlu0 0
        %7718 = vperm.xlu0 %7717, %v7704
        %v7719 = vpop.permute.xlu0 %7718
        %7721 = vset.pattern.permute.xlu0 0
        %7722 = vperm.xlu0 %7721, %v7708
        %v7723 = vpop.permute.xlu0 %7722
        %7725 = vset.pattern.permute.xlu0 0
        %7726 = vperm.xlu0 %7725, %v7712
        %v7727 = vpop.permute.xlu0 %7726
        %v7729 = vmul.f32 %v7292, %v7715
        %v7730 = vmul.f32 %v7293, %v7715
        %v7731 = vmul.f32 %v7294, %v7719
        %v7732 = vmul.f32 %v7295, %v7719
        %v7733 = vmul.f32 %v7296, %v7723
        %v7734 = vmul.f32 %v7297, %v7723
        %v7735 = vmul.f32 %v7298, %v7727
        %v7736 = vmul.f32 %v7299, %v7727
        %7745 = vrot.lane.b32.xlu0 %v7729, 2
        %v7746 = vpop.permute.xlu0 %7745
        %7747 = vrot.lane.b32.xlu0 %v7730, 2
        %v7748 = vpop.permute.xlu0 %7747
        %7749 = vrot.lane.b32.xlu0 %v7731, 2
        %v7750 = vpop.permute.xlu0 %7749
        %7751 = vrot.lane.b32.xlu0 %v7732, 2
        %v7752 = vpop.permute.xlu0 %7751
        %7753 = vrot.lane.b32.xlu0 %v7733, 2
        %v7754 = vpop.permute.xlu0 %7753
        %7755 = vrot.lane.b32.xlu0 %v7734, 2
        %v7756 = vpop.permute.xlu0 %7755
        %7757 = vrot.lane.b32.xlu0 %v7735, 2
        %v7758 = vpop.permute.xlu0 %7757
        %7759 = vrot.lane.b32.xlu0 %v7736, 2
        %v7760 = vpop.permute.xlu0 %7759
        %v7769 = vadd.f32 %v7680, %v7746
        %v7770 = vadd.f32 %v7681, %v7748
        %v7771 = vadd.f32 %v7682, %v7750
        %v7772 = vadd.f32 %v7683, %v7752
        %v7773 = vadd.f32 %v7684, %v7754
        %v7774 = vadd.f32 %v7685, %v7756
        %v7775 = vadd.f32 %v7686, %v7758
        %v7776 = vadd.f32 %v7687, %v7760
        %v7777 = vsel %vm7524, %v7769, 0.0
        %v7778 = vsel %vm7524, %v7771, 0.0
        %v7779 = vadd.f32 %v7777, %v7778
        %v7780 = vsel %vm7524, %v7773, 0.0
        %v7781 = vadd.f32 %v7779, %v7780
        %v7782 = vsel %vm7524, %v7775, 0.0
        %v7783 = vadd.f32 %v7781, %v7782
        %v7784 = vsel %vm7524, %v7770, 0.0
        %v7785 = vsel %vm7524, %v7772, 0.0
        %v7786 = vadd.f32 %v7784, %v7785
        %v7787 = vsel %vm7524, %v7774, 0.0
        %v7788 = vadd.f32 %v7786, %v7787
        %v7789 = vsel %vm7524, %v7776, 0.0
        %v7790 = vadd.f32 %v7788, %v7789
        %7793 = vrot.lane.b32.xlu0 %v7783, 126
        %v7794 = vpop.permute.xlu0 %7793
        %7795 = vrot.lane.b32.xlu0 %v7790, 126
        %v7796 = vpop.permute.xlu0 %7795
        %s7799 = scalar_lea.vmem %s271, 16 [#allocation3]
        %7800 = vst.msk [vmem:[%s7799] sm:$0xff] %vm7547, %v7794
        %7801 = vst.msk [vmem:[%s7799 + $0x8] sm:$0xff] %vm7547, %v7796
        %s7802 = scalar_lea.vmem %s4, 2
        %v7803 = vld [vmem:[%s7802] sm:$0x1]
        %v7804 = vld [vmem:[%s7802 + $0x4] sm:$0x1]
        %v7805 = vld [vmem:[%s7802 + $0x8] sm:$0x1]
        %v7806 = vld [vmem:[%s7802 + $0xc] sm:$0x1]
        %v7811 = vlaneseq
        %v7812 = vshrl.u32 %v7811, 7
        %v7813 = vsub.s32 0, %v7812
        %v7814 = vrot.slane %v7803, %v7813
        %v7815 = vlaneseq
        %v7816 = vshrl.u32 %v7815, 7
        %v7817 = vsub.s32 0, %v7816
        %v7818 = vrot.slane %v7804, %v7817
        %v7819 = vlaneseq
        %v7820 = vshrl.u32 %v7819, 7
        %v7821 = vsub.s32 0, %v7820
        %v7822 = vrot.slane %v7805, %v7821
        %v7823 = vlaneseq
        %v7824 = vshrl.u32 %v7823, 7
        %v7825 = vsub.s32 0, %v7824
        %v7826 = vrot.slane %v7806, %v7825
        %7827 = vset.pattern.permute.xlu0 0
        %7828 = vperm.xlu0 %7827, %v7814
        %v7829 = vpop.permute.xlu0 %7828
        %7831 = vset.pattern.permute.xlu0 0
        %7832 = vperm.xlu0 %7831, %v7818
        %v7833 = vpop.permute.xlu0 %7832
        %7835 = vset.pattern.permute.xlu0 0
        %7836 = vperm.xlu0 %7835, %v7822
        %v7837 = vpop.permute.xlu0 %7836
        %7839 = vset.pattern.permute.xlu0 0
        %7840 = vperm.xlu0 %7839, %v7826
        %v7841 = vpop.permute.xlu0 %7840
        %v7843 = vmul.f32 %v5414, %v7829
        %v7844 = vmul.f32 %v5415, %v7829
        %v7845 = vmul.f32 %v5416, %v7833
        %v7846 = vmul.f32 %v5417, %v7833
        %v7847 = vmul.f32 %v5418, %v7837
        %v7848 = vmul.f32 %v5419, %v7837
        %v7849 = vmul.f32 %v5420, %v7841
        %v7850 = vmul.f32 %v5421, %v7841
        %s7851 = scalar_lea.vmem %s5, 2
        %v7852 = vld [vmem:[%s7851] sm:$0x1]
        %v7853 = vld [vmem:[%s7851 + $0x4] sm:$0x1]
        %v7854 = vld [vmem:[%s7851 + $0x8] sm:$0x1]
        %v7855 = vld [vmem:[%s7851 + $0xc] sm:$0x1]
        %v7860 = vlaneseq
        %v7861 = vshrl.u32 %v7860, 7
        %v7862 = vsub.s32 0, %v7861
        %v7863 = vrot.slane %v7852, %v7862
        %v7864 = vlaneseq
        %v7865 = vshrl.u32 %v7864, 7
        %v7866 = vsub.s32 0, %v7865
        %v7867 = vrot.slane %v7853, %v7866
        %v7868 = vlaneseq
        %v7869 = vshrl.u32 %v7868, 7
        %v7870 = vsub.s32 0, %v7869
        %v7871 = vrot.slane %v7854, %v7870
        %v7872 = vlaneseq
        %v7873 = vshrl.u32 %v7872, 7
        %v7874 = vsub.s32 0, %v7873
        %v7875 = vrot.slane %v7855, %v7874
        %7876 = vset.pattern.permute.xlu0 0
        %7877 = vperm.xlu0 %7876, %v7863
        %v7878 = vpop.permute.xlu0 %7877
        %7880 = vset.pattern.permute.xlu0 0
        %7881 = vperm.xlu0 %7880, %v7867
        %v7882 = vpop.permute.xlu0 %7881
        %7884 = vset.pattern.permute.xlu0 0
        %7885 = vperm.xlu0 %7884, %v7871
        %v7886 = vpop.permute.xlu0 %7885
        %7888 = vset.pattern.permute.xlu0 0
        %7889 = vperm.xlu0 %7888, %v7875
        %v7890 = vpop.permute.xlu0 %7889
        %v7892 = vmul.f32 %v6604, %v7878
        %v7893 = vmul.f32 %v6605, %v7878
        %v7894 = vmul.f32 %v6606, %v7882
        %v7895 = vmul.f32 %v6607, %v7882
        %v7896 = vmul.f32 %v6608, %v7886
        %v7897 = vmul.f32 %v6609, %v7886
        %v7898 = vmul.f32 %v6610, %v7890
        %v7899 = vmul.f32 %v6611, %v7890
        %7908 = vrot.lane.b32.xlu0 %v7892, 1
        %v7909 = vpop.permute.xlu0 %7908
        %7910 = vrot.lane.b32.xlu0 %v7893, 1
        %v7911 = vpop.permute.xlu0 %7910
        %7912 = vrot.lane.b32.xlu0 %v7894, 1
        %v7913 = vpop.permute.xlu0 %7912
        %7914 = vrot.lane.b32.xlu0 %v7895, 1
        %v7915 = vpop.permute.xlu0 %7914
        %7916 = vrot.lane.b32.xlu0 %v7896, 1
        %v7917 = vpop.permute.xlu0 %7916
        %7918 = vrot.lane.b32.xlu0 %v7897, 1
        %v7919 = vpop.permute.xlu0 %7918
        %7920 = vrot.lane.b32.xlu0 %v7898, 1
        %v7921 = vpop.permute.xlu0 %7920
        %7922 = vrot.lane.b32.xlu0 %v7899, 1
        %v7923 = vpop.permute.xlu0 %7922
        %v7932 = vadd.f32 %v7843, %v7909
        %v7933 = vadd.f32 %v7844, %v7911
        %v7934 = vadd.f32 %v7845, %v7913
        %v7935 = vadd.f32 %v7846, %v7915
        %v7936 = vadd.f32 %v7847, %v7917
        %v7937 = vadd.f32 %v7848, %v7919
        %v7938 = vadd.f32 %v7849, %v7921
        %v7939 = vadd.f32 %v7850, %v7923
        %s7940 = scalar_lea.vmem %s6, 2
        %v7941 = vld [vmem:[%s7940] sm:$0x1]
        %v7942 = vld [vmem:[%s7940 + $0x4] sm:$0x1]
        %v7943 = vld [vmem:[%s7940 + $0x8] sm:$0x1]
        %v7944 = vld [vmem:[%s7940 + $0xc] sm:$0x1]
        %v7949 = vlaneseq
        %v7950 = vshrl.u32 %v7949, 7
        %v7951 = vsub.s32 0, %v7950
        %v7952 = vrot.slane %v7941, %v7951
        %v7953 = vlaneseq
        %v7954 = vshrl.u32 %v7953, 7
        %v7955 = vsub.s32 0, %v7954
        %v7956 = vrot.slane %v7942, %v7955
        %v7957 = vlaneseq
        %v7958 = vshrl.u32 %v7957, 7
        %v7959 = vsub.s32 0, %v7958
        %v7960 = vrot.slane %v7943, %v7959
        %v7961 = vlaneseq
        %v7962 = vshrl.u32 %v7961, 7
        %v7963 = vsub.s32 0, %v7962
        %v7964 = vrot.slane %v7944, %v7963
        %7965 = vset.pattern.permute.xlu0 0
        %7966 = vperm.xlu0 %7965, %v7952
        %v7967 = vpop.permute.xlu0 %7966
        %7969 = vset.pattern.permute.xlu0 0
        %7970 = vperm.xlu0 %7969, %v7956
        %v7971 = vpop.permute.xlu0 %7970
        %7973 = vset.pattern.permute.xlu0 0
        %7974 = vperm.xlu0 %7973, %v7960
        %v7975 = vpop.permute.xlu0 %7974
        %7977 = vset.pattern.permute.xlu0 0
        %7978 = vperm.xlu0 %7977, %v7964
        %v7979 = vpop.permute.xlu0 %7978
        %v7981 = vmul.f32 %v7292, %v7967
        %v7982 = vmul.f32 %v7293, %v7967
        %v7983 = vmul.f32 %v7294, %v7971
        %v7984 = vmul.f32 %v7295, %v7971
        %v7985 = vmul.f32 %v7296, %v7975
        %v7986 = vmul.f32 %v7297, %v7975
        %v7987 = vmul.f32 %v7298, %v7979
        %v7988 = vmul.f32 %v7299, %v7979
        %7997 = vrot.lane.b32.xlu0 %v7981, 2
        %v7998 = vpop.permute.xlu0 %7997
        %7999 = vrot.lane.b32.xlu0 %v7982, 2
        %v8000 = vpop.permute.xlu0 %7999
        %8001 = vrot.lane.b32.xlu0 %v7983, 2
        %v8002 = vpop.permute.xlu0 %8001
        %8003 = vrot.lane.b32.xlu0 %v7984, 2
        %v8004 = vpop.permute.xlu0 %8003
        %8005 = vrot.lane.b32.xlu0 %v7985, 2
        %v8006 = vpop.permute.xlu0 %8005
        %8007 = vrot.lane.b32.xlu0 %v7986, 2
        %v8008 = vpop.permute.xlu0 %8007
        %8009 = vrot.lane.b32.xlu0 %v7987, 2
        %v8010 = vpop.permute.xlu0 %8009
        %8011 = vrot.lane.b32.xlu0 %v7988, 2
        %v8012 = vpop.permute.xlu0 %8011
        %v8021 = vadd.f32 %v7932, %v7998
        %v8022 = vadd.f32 %v7933, %v8000
        %v8023 = vadd.f32 %v7934, %v8002
        %v8024 = vadd.f32 %v7935, %v8004
        %v8025 = vadd.f32 %v7936, %v8006
        %v8026 = vadd.f32 %v7937, %v8008
        %v8027 = vadd.f32 %v7938, %v8010
        %v8028 = vadd.f32 %v7939, %v8012
        %v8029 = vsel %vm7524, %v8021, 0.0
        %v8030 = vsel %vm7524, %v8023, 0.0
        %v8031 = vadd.f32 %v8029, %v8030
        %v8032 = vsel %vm7524, %v8025, 0.0
        %v8033 = vadd.f32 %v8031, %v8032
        %v8034 = vsel %vm7524, %v8027, 0.0
        %v8035 = vadd.f32 %v8033, %v8034
        %v8036 = vsel %vm7524, %v8022, 0.0
        %v8037 = vsel %vm7524, %v8024, 0.0
        %v8038 = vadd.f32 %v8036, %v8037
        %v8039 = vsel %vm7524, %v8026, 0.0
        %v8040 = vadd.f32 %v8038, %v8039
        %v8041 = vsel %vm7524, %v8028, 0.0
        %v8042 = vadd.f32 %v8040, %v8041
        %8045 = vrot.lane.b32.xlu0 %v8035, 126
        %v8046 = vpop.permute.xlu0 %8045
        %8047 = vrot.lane.b32.xlu0 %v8042, 126
        %v8048 = vpop.permute.xlu0 %8047
        %s8051 = scalar_lea.vmem %s271, 32 [#allocation3]
        %8052 = vst.msk [vmem:[%s8051] sm:$0xff] %vm7547, %v8046
        %8053 = vst.msk [vmem:[%s8051 + $0x8] sm:$0xff] %vm7547, %v8048
        %s8054 = scalar_lea.vmem %s4, 3
        %v8055 = vld [vmem:[%s8054] sm:$0x1]
        %v8056 = vld [vmem:[%s8054 + $0x4] sm:$0x1]
        %v8057 = vld [vmem:[%s8054 + $0x8] sm:$0x1]
        %v8058 = vld [vmem:[%s8054 + $0xc] sm:$0x1]
        %v8063 = vlaneseq
        %v8064 = vshrl.u32 %v8063, 7
        %v8065 = vsub.s32 0, %v8064
        %v8066 = vrot.slane %v8055, %v8065
        %v8067 = vlaneseq
        %v8068 = vshrl.u32 %v8067, 7
        %v8069 = vsub.s32 0, %v8068
        %v8070 = vrot.slane %v8056, %v8069
        %v8071 = vlaneseq
        %v8072 = vshrl.u32 %v8071, 7
        %v8073 = vsub.s32 0, %v8072
        %v8074 = vrot.slane %v8057, %v8073
        %v8075 = vlaneseq
        %v8076 = vshrl.u32 %v8075, 7
        %v8077 = vsub.s32 0, %v8076
        %v8078 = vrot.slane %v8058, %v8077
        %8079 = vset.pattern.permute.xlu0 0
        %8080 = vperm.xlu0 %8079, %v8066
        %v8081 = vpop.permute.xlu0 %8080
        %8083 = vset.pattern.permute.xlu0 0
        %8084 = vperm.xlu0 %8083, %v8070
        %v8085 = vpop.permute.xlu0 %8084
        %8087 = vset.pattern.permute.xlu0 0
        %8088 = vperm.xlu0 %8087, %v8074
        %v8089 = vpop.permute.xlu0 %8088
        %8091 = vset.pattern.permute.xlu0 0
        %8092 = vperm.xlu0 %8091, %v8078
        %v8093 = vpop.permute.xlu0 %8092
        %v8095 = vmul.f32 %v5414, %v8081
        %v8096 = vmul.f32 %v5415, %v8081
        %v8097 = vmul.f32 %v5416, %v8085
        %v8098 = vmul.f32 %v5417, %v8085
        %v8099 = vmul.f32 %v5418, %v8089
        %v8100 = vmul.f32 %v5419, %v8089
        %v8101 = vmul.f32 %v5420, %v8093
        %v8102 = vmul.f32 %v5421, %v8093
        %s8103 = scalar_lea.vmem %s5, 3
        %v8104 = vld [vmem:[%s8103] sm:$0x1]
        %v8105 = vld [vmem:[%s8103 + $0x4] sm:$0x1]
        %v8106 = vld [vmem:[%s8103 + $0x8] sm:$0x1]
        %v8107 = vld [vmem:[%s8103 + $0xc] sm:$0x1]
        %v8112 = vlaneseq
        %v8113 = vshrl.u32 %v8112, 7
        %v8114 = vsub.s32 0, %v8113
        %v8115 = vrot.slane %v8104, %v8114
        %v8116 = vlaneseq
        %v8117 = vshrl.u32 %v8116, 7
        %v8118 = vsub.s32 0, %v8117
        %v8119 = vrot.slane %v8105, %v8118
        %v8120 = vlaneseq
        %v8121 = vshrl.u32 %v8120, 7
        %v8122 = vsub.s32 0, %v8121
        %v8123 = vrot.slane %v8106, %v8122
        %v8124 = vlaneseq
        %v8125 = vshrl.u32 %v8124, 7
        %v8126 = vsub.s32 0, %v8125
        %v8127 = vrot.slane %v8107, %v8126
        %8128 = vset.pattern.permute.xlu0 0
        %8129 = vperm.xlu0 %8128, %v8115
        %v8130 = vpop.permute.xlu0 %8129
        %8132 = vset.pattern.permute.xlu0 0
        %8133 = vperm.xlu0 %8132, %v8119
        %v8134 = vpop.permute.xlu0 %8133
        %8136 = vset.pattern.permute.xlu0 0
        %8137 = vperm.xlu0 %8136, %v8123
        %v8138 = vpop.permute.xlu0 %8137
        %8140 = vset.pattern.permute.xlu0 0
        %8141 = vperm.xlu0 %8140, %v8127
        %v8142 = vpop.permute.xlu0 %8141
        %v8144 = vmul.f32 %v6604, %v8130
        %v8145 = vmul.f32 %v6605, %v8130
        %v8146 = vmul.f32 %v6606, %v8134
        %v8147 = vmul.f32 %v6607, %v8134
        %v8148 = vmul.f32 %v6608, %v8138
        %v8149 = vmul.f32 %v6609, %v8138
        %v8150 = vmul.f32 %v6610, %v8142
        %v8151 = vmul.f32 %v6611, %v8142
        %8160 = vrot.lane.b32.xlu0 %v8144, 1
        %v8161 = vpop.permute.xlu0 %8160
        %8162 = vrot.lane.b32.xlu0 %v8145, 1
        %v8163 = vpop.permute.xlu0 %8162
        %8164 = vrot.lane.b32.xlu0 %v8146, 1
        %v8165 = vpop.permute.xlu0 %8164
        %8166 = vrot.lane.b32.xlu0 %v8147, 1
        %v8167 = vpop.permute.xlu0 %8166
        %8168 = vrot.lane.b32.xlu0 %v8148, 1
        %v8169 = vpop.permute.xlu0 %8168
        %8170 = vrot.lane.b32.xlu0 %v8149, 1
        %v8171 = vpop.permute.xlu0 %8170
        %8172 = vrot.lane.b32.xlu0 %v8150, 1
        %v8173 = vpop.permute.xlu0 %8172
        %8174 = vrot.lane.b32.xlu0 %v8151, 1
        %v8175 = vpop.permute.xlu0 %8174
        %v8184 = vadd.f32 %v8095, %v8161
        %v8185 = vadd.f32 %v8096, %v8163
        %v8186 = vadd.f32 %v8097, %v8165
        %v8187 = vadd.f32 %v8098, %v8167
        %v8188 = vadd.f32 %v8099, %v8169
        %v8189 = vadd.f32 %v8100, %v8171
        %v8190 = vadd.f32 %v8101, %v8173
        %v8191 = vadd.f32 %v8102, %v8175
        %s8192 = scalar_lea.vmem %s6, 3
        %v8193 = vld [vmem:[%s8192] sm:$0x1]
        %v8194 = vld [vmem:[%s8192 + $0x4] sm:$0x1]
        %v8195 = vld [vmem:[%s8192 + $0x8] sm:$0x1]
        %v8196 = vld [vmem:[%s8192 + $0xc] sm:$0x1]
        %v8201 = vlaneseq
        %v8202 = vshrl.u32 %v8201, 7
        %v8203 = vsub.s32 0, %v8202
        %v8204 = vrot.slane %v8193, %v8203
        %v8205 = vlaneseq
        %v8206 = vshrl.u32 %v8205, 7
        %v8207 = vsub.s32 0, %v8206
        %v8208 = vrot.slane %v8194, %v8207
        %v8209 = vlaneseq
        %v8210 = vshrl.u32 %v8209, 7
        %v8211 = vsub.s32 0, %v8210
        %v8212 = vrot.slane %v8195, %v8211
        %v8213 = vlaneseq
        %v8214 = vshrl.u32 %v8213, 7
        %v8215 = vsub.s32 0, %v8214
        %v8216 = vrot.slane %v8196, %v8215
        %8217 = vset.pattern.permute.xlu0 0
        %8218 = vperm.xlu0 %8217, %v8204
        %v8219 = vpop.permute.xlu0 %8218
        %8221 = vset.pattern.permute.xlu0 0
        %8222 = vperm.xlu0 %8221, %v8208
        %v8223 = vpop.permute.xlu0 %8222
        %8225 = vset.pattern.permute.xlu0 0
        %8226 = vperm.xlu0 %8225, %v8212
        %v8227 = vpop.permute.xlu0 %8226
        %8229 = vset.pattern.permute.xlu0 0
        %8230 = vperm.xlu0 %8229, %v8216
        %v8231 = vpop.permute.xlu0 %8230
        %v8233 = vmul.f32 %v7292, %v8219
        %v8234 = vmul.f32 %v7293, %v8219
        %v8235 = vmul.f32 %v7294, %v8223
        %v8236 = vmul.f32 %v7295, %v8223
        %v8237 = vmul.f32 %v7296, %v8227
        %v8238 = vmul.f32 %v7297, %v8227
        %v8239 = vmul.f32 %v7298, %v8231
        %v8240 = vmul.f32 %v7299, %v8231
        %8249 = vrot.lane.b32.xlu0 %v8233, 2
        %v8250 = vpop.permute.xlu0 %8249
        %8251 = vrot.lane.b32.xlu0 %v8234, 2
        %v8252 = vpop.permute.xlu0 %8251
        %8253 = vrot.lane.b32.xlu0 %v8235, 2
        %v8254 = vpop.permute.xlu0 %8253
        %8255 = vrot.lane.b32.xlu0 %v8236, 2
        %v8256 = vpop.permute.xlu0 %8255
        %8257 = vrot.lane.b32.xlu0 %v8237, 2
        %v8258 = vpop.permute.xlu0 %8257
        %8259 = vrot.lane.b32.xlu0 %v8238, 2
        %v8260 = vpop.permute.xlu0 %8259
        %8261 = vrot.lane.b32.xlu0 %v8239, 2
        %v8262 = vpop.permute.xlu0 %8261
        %8263 = vrot.lane.b32.xlu0 %v8240, 2
        %v8264 = vpop.permute.xlu0 %8263
        %v8273 = vadd.f32 %v8184, %v8250
        %v8274 = vadd.f32 %v8185, %v8252
        %v8275 = vadd.f32 %v8186, %v8254
        %v8276 = vadd.f32 %v8187, %v8256
        %v8277 = vadd.f32 %v8188, %v8258
        %v8278 = vadd.f32 %v8189, %v8260
        %v8279 = vadd.f32 %v8190, %v8262
        %v8280 = vadd.f32 %v8191, %v8264
        %v8281 = vsel %vm7524, %v8273, 0.0
        %v8282 = vsel %vm7524, %v8275, 0.0
        %v8283 = vadd.f32 %v8281, %v8282
        %v8284 = vsel %vm7524, %v8277, 0.0
        %v8285 = vadd.f32 %v8283, %v8284
        %v8286 = vsel %vm7524, %v8279, 0.0
        %v8287 = vadd.f32 %v8285, %v8286
        %v8288 = vsel %vm7524, %v8274, 0.0
        %v8289 = vsel %vm7524, %v8276, 0.0
        %v8290 = vadd.f32 %v8288, %v8289
        %v8291 = vsel %vm7524, %v8278, 0.0
        %v8292 = vadd.f32 %v8290, %v8291
        %v8293 = vsel %vm7524, %v8280, 0.0
        %v8294 = vadd.f32 %v8292, %v8293
        %8297 = vrot.lane.b32.xlu0 %v8287, 126
        %v8298 = vpop.permute.xlu0 %8297
        %8299 = vrot.lane.b32.xlu0 %v8294, 126
        %v8300 = vpop.permute.xlu0 %8299
        %s8303 = scalar_lea.vmem %s271, 48 [#allocation3]
        %8304 = vst.msk [vmem:[%s8303] sm:$0xff] %vm7547, %v8298
        %8305 = vst.msk [vmem:[%s8303 + $0x8] sm:$0xff] %vm7547, %v8300
        %s8306 = sand.u32 %s181, 1
        %s8307 = scalar_lea.sflag [#allocation4], %s8306
        %s8308 = sand.u32 %s181, 1
        %s8309 = smul.addr %s8308, 64
        %s8310 = scalar_lea.vmem [#allocation3], %s8309
        // Predicated region
        $region49: #{tpu_custom_call.1} parent=47 // pred_check
          %p8311 = pneg %p191
        $region50: #{tpu_custom_call.1} parent=47 // pred_check_branch
          %8313 = sbr.rel (%p8311) target = $region52
        $region51: #{tpu_custom_call.1} parent=47 // pred_region
          %s8315 = ssub.s32 1024, 1024
          %8316 = vsyncadd %s8307, %s8315
          %s8317 = smul.addr %s21, 8
          %s8318 = smul.addr %s8317, 128
          %s8319 = scalar_lea.hbm %s7, %s8318
          %s8320 = sshll.u32 %s8310, 4
          %s8321 = int_to_ptr.vmem [resolvable:$true] %s8320
          %8326 = dma.vmem_to_hbm [thread:$0]  %s8321, 1024, %s8319, %s8307, 128, 128, 8
        $region52: #{tpu_custom_call.1} parent=47 // pred_fallthru
          _
      $region48: #{tpu_custom_call.1} parent=5 // pred_fallthru
        _
      %p8327 = scmp.le.s32.totalorder 2, %s16
      // Predicated region
      $region53: #{tpu_custom_call.1} parent=5 // pred_check
        %p8328 = pneg %p8327
      $region54: #{tpu_custom_call.1} parent=5 // pred_check_branch
        %8330 = sbr.rel (%p8328) target = $region56
      $region55: #{tpu_custom_call.1} parent=5 // pred_region
        %s8331 = ssub.s32 %s16, 2
        // Predicated region
        $region57: #{tpu_custom_call.1} parent=55 // pred_check
          %p8332 = pneg %p197
        $region58: #{tpu_custom_call.1} parent=55 // pred_check_branch
          %8334 = sbr.rel (%p8332) target = $region60
        $region59: #{tpu_custom_call.1} parent=55 // pred_region
          %s8335 = sand.u32 %s182, 1
          %s8336 = scalar_lea.sflag [#allocation4], %s8335
          %s8337 = sand.u32 %s182, 1
          %s8338 = smul.addr %s8337, 64
          %s8339 = scalar_lea.vmem [#allocation3], %s8338
          %8340 = dma.done %s8336, 1024
        $region60: #{tpu_custom_call.1} parent=55 // pred_fallthru
          _
      $region56: #{tpu_custom_call.1} parent=5 // pred_fallthru
        _
    $region6: #{tpu_custom_call.1} parent=1 // loop_footer
      %s20 = sadd.s32 1, %s16
    $region7: #{tpu_custom_call.1} parent=1 // loop_footer_branch
      %15 = sbr.rel target = $region3
    $region8: #{tpu_custom_call.1} parent=1 // loop_exit
      _
    %8341 = vsyncpa [#allocation4], 1
    %s8342 = scalar_lea.sflag [#allocation4], 1
    %8343 = vsyncpa %s8342, 1

</llo_original>
